<compile_context>
chip_gen: v5e
topology: v5e:2x2
jax: 0.10.0
libtpu: 0.0.40
codegen_flags: <defaults>
</compile_context>

<pallas_src>
import functools
import math

import jax
import jax.numpy as jnp
from jax.experimental import pallas as pl
from jax.experimental.pallas import tpu as pltpu

IMAGE_SIZE = 64
LATENT_DIM = 64
IN_DIM = IMAGE_SIZE * IMAGE_SIZE * 3  # 12288
HIDDEN = 512


def _fused_ae_kernel(x_ref, w1_ref, b1_ref, w2_ref, b2_ref, w3_ref, b3_ref,
                     w4_ref, b4_ref, o_ref, acc1_ref, h3_ref, *, p1_steps):
    """Single-grid-axis fused autoencoder forward.

    Steps [0, p1_steps)          : accumulate x @ W1 over K-tiles.
    Step  p1_steps - 1 (epilogue): finish L1 (bias+ReLU), run L2/L3 in VMEM.
    Steps [p1_steps, end)        : y_tile = sigmoid(h3 @ W4_tile + b4_tile).
    """
    p = pl.program_id(0)

    # ---------------- Phase 1: encoder first layer (streamed over K) -------
    @pl.when(p == 0)
    def _():
        acc1_ref[...] = jnp.zeros_like(acc1_ref)

    @pl.when(p < p1_steps)
    def _():
        acc1_ref[...] += jnp.dot(
            x_ref[...], w1_ref[...], preferred_element_type=jnp.float32
        )

    # ------------- End of phase 1: L1 epilogue + tiny L2 / L3 in VMEM ------
    @pl.when(p == p1_steps - 1)
    def _():
        h1 = jnp.maximum(acc1_ref[...] + b1_ref[...], 0.0)
        lat = jnp.maximum(
            jnp.dot(h1, w2_ref[...], preferred_element_type=jnp.float32)
            + b2_ref[...],
            0.0,
        )
        h3_ref[...] = jnp.maximum(
            jnp.dot(lat, w3_ref[...], preferred_element_type=jnp.float32)
            + b3_ref[...],
            0.0,
        )

    # ---------------- Phase 2: decoder last layer (streamed over N) --------
    @pl.when(p >= p1_steps)
    def _():
        y = jnp.dot(
            h3_ref[...], w4_ref[...], preferred_element_type=jnp.float32
        ) + b4_ref[...]
        o_ref[...] = jax.nn.sigmoid(y).astype(o_ref.dtype)


def _pick_tiles():
    """Generation-gated weight-tile width and VMEM budget."""
    try:
        info = pltpu.get_tpu_info()
        vmem_bytes = int(info.vmem_capacity_bytes)
    except Exception:
        vmem_bytes = 64 << 20  # conservative (v7x-sized) fallback

    if vmem_bytes >= (100 << 20):
        # v5e / v6e: 128 MiB VMEM -> 12 MiB weight blocks (24 MiB dbl-buffered each)
        tile = 6144
        vmem_limit = 80 << 20
    else:
        # v7x: 64 MiB VMEM -> 6 MiB weight blocks, leave headroom for the compiler
        tile = 3072
        vmem_limit = 40 << 20
    return tile, tile, vmem_limit


@functools.partial(jax.jit, static_argnames=("tk", "tn", "vmem_limit"))
def autoencoder_forward(x_nchw, params, *, tk=3072, tn=3072, vmem_limit=40 << 20):
    B = x_nchw.shape[0]
    # torch.nn.Flatten: (B, C, H, W) -> (B, C*H*W), row-major == reshape.
    x = x_nchw.reshape(B, IN_DIM).astype(jnp.float32)

    (w1, b1), (w2, b2), (w3, b3), (w4, b4) = params
    b1r = b1.reshape(1, HIDDEN)
    b2r = b2.reshape(1, LATENT_DIM)
    b3r = b3.reshape(1, HIDDEN)
    b4r = b4.reshape(1, IN_DIM)

    assert IN_DIM % tk == 0 and IN_DIM % tn == 0
    p1 = IN_DIM // tk  # phase-1 steps (K-tiles of W1)
    p4 = IN_DIM // tn  # phase-2 steps (N-tiles of W4)
    grid = (p1 + p4,)
    last_k = p1 - 1

    # Clamped index maps: during the "other" phase the block index is held
    # constant, so Pallas issues no redundant DMA for that operand.
    x_map = lambda p: (0, jnp.minimum(p, last_k))
    w1_map = lambda p: (jnp.minimum(p, last_k), 0)
    phase2_map = lambda p: (0, jnp.maximum(p - p1, 0))
    const_map = lambda p: (0, 0)

    kernel = functools.partial(_fused_ae_kernel, p1_steps=p1)
    out_flat = pl.pallas_call(
        kernel,
        out_shape=jax.ShapeDtypeStruct((B, IN_DIM), jnp.float32),
        grid_spec=pltpu.PrefetchScalarGridSpec(
            num_scalar_prefetch=0,
            grid=grid,
            in_specs=[
                pl.BlockSpec((B, tk), x_map),                      # x (K-tiled)
                pl.BlockSpec((tk, HIDDEN), w1_map),                # W1 (K-tiled)
                pl.BlockSpec((1, HIDDEN), const_map),              # b1 (resident)
                pl.BlockSpec((HIDDEN, LATENT_DIM), const_map),     # W2 (resident)
                pl.BlockSpec((1, LATENT_DIM), const_map),          # b2 (resident)
                pl.BlockSpec((LATENT_DIM, HIDDEN), const_map),     # W3 (resident)
                pl.BlockSpec((1, HIDDEN), const_map),              # b3 (resident)
                pl.BlockSpec((HIDDEN, tn), phase2_map),            # W4 (N-tiled)
                pl.BlockSpec((1, tn), phase2_map),                 # b4 (N-tiled)
            ],
            out_specs=pl.BlockSpec((B, tn), phase2_map),
            scratch_shapes=[
                pltpu.VMEM((B, HIDDEN), jnp.float32),  # L1 accumulator
                pltpu.VMEM((B, HIDDEN), jnp.float32),  # L3 output (decoder hidden)
            ],
        ),
        compiler_params=pltpu.CompilerParams(
            dimension_semantics=("arbitrary",),  # single carried/sequential axis
            vmem_limit_bytes=vmem_limit,
        ),
    )(x, w1, b1r, w2, b2r, w3, b3r, w4, b4r)

    # torch.nn.Unflatten(1, (3, 64, 64))
    return out_flat.reshape(B, 3, IMAGE_SIZE, IMAGE_SIZE)


def init_params(key):
    """Deterministic init mimicking torch.nn.Linear default U[-1/sqrt(fan_in), ...]."""
    dims = [(IN_DIM, HIDDEN), (HIDDEN, LATENT_DIM), (LATENT_DIM, HIDDEN), (HIDDEN, IN_DIM)]
    params = []
    for i, (fan_in, fan_out) in enumerate(dims):
        kw, kb = jax.random.split(jax.random.fold_in(key, i))
        bound = 1.0 / math.sqrt(fan_in)
        w = jax.random.uniform(kw, (fan_in, fan_out), jnp.float32, -bound, bound)
        b = jax.random.uniform(kb, (fan_out,), jnp.float32, -bound, bound)
        params.append((w, b))
    return params


def reference_forward(x_nchw, params):
    """Pure-JAX reference for correctness check."""
    B = x_nchw.shape[0]
    h = x_nchw.reshape(B, IN_DIM).astype(jnp.float32)
    (w1, b1), (w2, b2), (w3, b3), (w4, b4) = params
    h = jnp.maximum(h @ w1 + b1, 0.0)
    h = jnp.maximum(h @ w2 + b2, 0.0)
    h = jnp.maximum(h @ w3 + b3, 0.0)
    h = jax.nn.sigmoid(h @ w4 + b4)
    return h.reshape(B, 3, IMAGE_SIZE, IMAGE_SIZE)


if __name__ == "__main__":
    key = jax.random.PRNGKey(0)
    kx, kp = jax.random.split(key)

    B = 2
    x = jax.random.uniform(kx, (B, 3, IMAGE_SIZE, IMAGE_SIZE), jnp.float32)
    params = init_params(kp)

    tk, tn, vmem_limit = _pick_tiles()
    out = autoencoder_forward(x, params, tk=tk, tn=tn, vmem_limit=vmem_limit)
    out = jax.block_until_ready(out)

    ref = reference_forward(x, params)
    assert out.shape == (B, 3, IMAGE_SIZE, IMAGE_SIZE)
    assert jnp.max(jnp.abs(out - ref)) < 2e-5

    print("KERNEL_OK")
</pallas_src>

<mosaic_0001>
module attributes {stable_mosaic.version = 11 : i64} {
  func.func @_fused_ae_kernel(%arg0: i32, %arg1: memref<2x3072xf32, #tpu.memory_space<vmem>>, %arg2: memref<3072x512xf32, #tpu.memory_space<vmem>>, %arg3: memref<1x512xf32, #tpu.memory_space<vmem>>, %arg4: memref<512x64xf32, #tpu.memory_space<vmem>>, %arg5: memref<1x64xf32, #tpu.memory_space<vmem>>, %arg6: memref<64x512xf32, #tpu.memory_space<vmem>>, %arg7: memref<1x512xf32, #tpu.memory_space<vmem>>, %arg8: memref<512x3072xf32, #tpu.memory_space<vmem>>, %arg9: memref<1x3072xf32, #tpu.memory_space<vmem>>, %arg10: memref<2x3072xf32, #tpu.memory_space<vmem>>, %arg11: memref<2x512xf32, #tpu.memory_space<vmem>>, %arg12: memref<2x512xf32, #tpu.memory_space<vmem>>) attributes {dimension_semantics = [#tpu.dimension_semantics<arbitrary>], iteration_bounds = array<i64: 8>, scalar_prefetch = 0 : i64, scratch_operands = 2 : i64, tpu.core_type = #tpu.core_type<tc>, window_params = [{transform_indices = @transform_0, window_bounds = array<i64: 2, 3072>}, {transform_indices = @transform_1, window_bounds = array<i64: 3072, 512>}, {pipeline_mode = #tpu.pipeline_mode<synchronous>, transform_indices = @transform_2, window_bounds = array<i64: 1, 512>}, {pipeline_mode = #tpu.pipeline_mode<synchronous>, transform_indices = @transform_3, window_bounds = array<i64: 512, 64>}, {pipeline_mode = #tpu.pipeline_mode<synchronous>, transform_indices = @transform_4, window_bounds = array<i64: 1, 64>}, {pipeline_mode = #tpu.pipeline_mode<synchronous>, transform_indices = @transform_5, window_bounds = array<i64: 64, 512>}, {pipeline_mode = #tpu.pipeline_mode<synchronous>, transform_indices = @transform_6, window_bounds = array<i64: 1, 512>}, {transform_indices = @transform_7, window_bounds = array<i64: 512, 3072>}, {transform_indices = @transform_8, window_bounds = array<i64: 1, 3072>}, {transform_indices = @transform_9, window_bounds = array<i64: 2, 3072>}]} {
    %c0_i32 = arith.constant 0 : i32
    %0 = arith.cmpi eq, %arg0, %c0_i32 : i32
    %1 = arith.extui %0 : i1 to i32
    %c0_i32_0 = arith.constant 0 : i32
    %2 = arith.cmpi ne, %1, %c0_i32_0 : i32
    scf.if %2 {
      %cst = arith.constant 0.000000e+00 : f32
      %12 = vector.broadcast %cst : f32 to vector<2x512xf32>
      %c0 = arith.constant 0 : index
      %c0_5 = arith.constant 0 : index
      %13 = vector.load %arg11[%c0, %c0_5] : memref<2x512xf32, #tpu.memory_space<vmem>>, vector<2x512xf32>
      tpu.vector_store %arg11[%c0, %c0_5], %12 {strides = array<i32>} : memref<2x512xf32, #tpu.memory_space<vmem>>, vector<2x512xf32>,
    } else {
    }
    %c4_i32 = arith.constant 4 : i32
    %3 = arith.cmpi slt, %arg0, %c4_i32 : i32
    %4 = arith.extui %3 : i1 to i32
    %c0_i32_1 = arith.constant 0 : i32
    %5 = arith.cmpi ne, %4, %c0_i32_1 : i32
    scf.if %5 {
      %c0 = arith.constant 0 : index
      %c0_5 = arith.constant 0 : index
      %12 = vector.load %arg11[%c0, %c0_5] : memref<2x512xf32, #tpu.memory_space<vmem>>, vector<2x512xf32>
      %c0_6 = arith.constant 0 : index
      %c0_7 = arith.constant 0 : index
      %13 = vector.load %arg1[%c0_6, %c0_7] : memref<2x3072xf32, #tpu.memory_space<vmem>>, vector<2x3072xf32>
      %c0_8 = arith.constant 0 : index
      %c0_9 = arith.constant 0 : index
      %14 = vector.load %arg2[%c0_8, %c0_9] : memref<3072x512xf32, #tpu.memory_space<vmem>>, vector<3072x512xf32>
      %cst = arith.constant dense<0.000000e+00> : vector<2x512xf32>
      %15 = tpu.matmul %13, %14, %cst {dimension_numbers = #tpu.dot_dimension_numbers<[1], [0], [0], [1], [0, 0, 1, 1], [], []>} : vector<2x3072xf32>, vector<3072x512xf32>, vector<2x512xf32> -> vector<2x512xf32>
      %16 = arith.addf %12, %15 : vector<2x512xf32>
      %c0_10 = arith.constant 0 : index
      %c0_11 = arith.constant 0 : index
      %17 = vector.load %arg11[%c0_10, %c0_11] : memref<2x512xf32, #tpu.memory_space<vmem>>, vector<2x512xf32>
      tpu.vector_store %arg11[%c0_10, %c0_11], %16 {strides = array<i32>} : memref<2x512xf32, #tpu.memory_space<vmem>>, vector<2x512xf32>,
    } else {
    }
    %c3_i32 = arith.constant 3 : i32
    %6 = arith.cmpi eq, %arg0, %c3_i32 : i32
    %7 = arith.extui %6 : i1 to i32
    %c0_i32_2 = arith.constant 0 : i32
    %8 = arith.cmpi ne, %7, %c0_i32_2 : i32
    scf.if %8 {
      %c0 = arith.constant 0 : index
      %c0_5 = arith.constant 0 : index
      %12 = vector.load %arg11[%c0, %c0_5] : memref<2x512xf32, #tpu.memory_space<vmem>>, vector<2x512xf32>
      %c0_6 = arith.constant 0 : index
      %c0_7 = arith.constant 0 : index
      %13 = vector.load %arg3[%c0_6, %c0_7] : memref<1x512xf32, #tpu.memory_space<vmem>>, vector<1x512xf32>
      %14 = vector.broadcast %13 : vector<1x512xf32> to vector<2x512xf32>
      %15 = arith.addf %12, %14 : vector<2x512xf32>
      %cst = arith.constant 0.000000e+00 : f32
      %16 = vector.broadcast %cst : f32 to vector<2x512xf32>
      %17 = arith.maximumf %15, %16 : vector<2x512xf32>
      %c0_8 = arith.constant 0 : index
      %c0_9 = arith.constant 0 : index
      %18 = vector.load %arg4[%c0_8, %c0_9] : memref<512x64xf32, #tpu.memory_space<vmem>>, vector<512x64xf32>
      %cst_10 = arith.constant dense<0.000000e+00> : vector<2x64xf32>
      %19 = tpu.matmul %17, %18, %cst_10 {dimension_numbers = #tpu.dot_dimension_numbers<[1], [0], [0], [1], [0, 0, 1, 1], [], []>} : vector<2x512xf32>, vector<512x64xf32>, vector<2x64xf32> -> vector<2x64xf32>
      %c0_11 = arith.constant 0 : index
      %c0_12 = arith.constant 0 : index
      %20 = vector.load %arg5[%c0_11, %c0_12] : memref<1x64xf32, #tpu.memory_space<vmem>>, vector<1x64xf32>
      %21 = vector.broadcast %20 : vector<1x64xf32> to vector<2x64xf32>
      %22 = arith.addf %19, %21 : vector<2x64xf32>
      %cst_13 = arith.constant 0.000000e+00 : f32
      %23 = vector.broadcast %cst_13 : f32 to vector<2x64xf32>
      %24 = arith.maximumf %22, %23 : vector<2x64xf32>
      %c0_14 = arith.constant 0 : index
      %c0_15 = arith.constant 0 : index
      %25 = vector.load %arg6[%c0_14, %c0_15] : memref<64x512xf32, #tpu.memory_space<vmem>>, vector<64x512xf32>
      %cst_16 = arith.constant dense<0.000000e+00> : vector<2x512xf32>
      %26 = tpu.matmul %24, %25, %cst_16 {dimension_numbers = #tpu.dot_dimension_numbers<[1], [0], [0], [1], [0, 0, 1, 1], [], []>} : vector<2x64xf32>, vector<64x512xf32>, vector<2x512xf32> -> vector<2x512xf32>
      %c0_17 = arith.constant 0 : index
      %c0_18 = arith.constant 0 : index
      %27 = vector.load %arg7[%c0_17, %c0_18] : memref<1x512xf32, #tpu.memory_space<vmem>>, vector<1x512xf32>
      %28 = vector.broadcast %27 : vector<1x512xf32> to vector<2x512xf32>
      %29 = arith.addf %26, %28 : vector<2x512xf32>
      %cst_19 = arith.constant 0.000000e+00 : f32
      %30 = vector.broadcast %cst_19 : f32 to vector<2x512xf32>
      %31 = arith.maximumf %29, %30 : vector<2x512xf32>
      %c0_20 = arith.constant 0 : index
      %c0_21 = arith.constant 0 : index
      %32 = vector.load %arg12[%c0_20, %c0_21] : memref<2x512xf32, #tpu.memory_space<vmem>>, vector<2x512xf32>
      tpu.vector_store %arg12[%c0_20, %c0_21], %31 {strides = array<i32>} : memref<2x512xf32, #tpu.memory_space<vmem>>, vector<2x512xf32>,
    } else {
    }
    %c4_i32_3 = arith.constant 4 : i32
    %9 = arith.cmpi sge, %arg0, %c4_i32_3 : i32
    %10 = arith.extui %9 : i1 to i32
    %c0_i32_4 = arith.constant 0 : i32
    %11 = arith.cmpi ne, %10, %c0_i32_4 : i32
    scf.if %11 {
      %c0 = arith.constant 0 : index
      %c0_5 = arith.constant 0 : index
      %12 = vector.load %arg12[%c0, %c0_5] : memref<2x512xf32, #tpu.memory_space<vmem>>, vector<2x512xf32>
      %c0_6 = arith.constant 0 : index
      %c0_7 = arith.constant 0 : index
      %13 = vector.load %arg8[%c0_6, %c0_7] : memref<512x3072xf32, #tpu.memory_space<vmem>>, vector<512x3072xf32>
      %cst = arith.constant dense<0.000000e+00> : vector<2x3072xf32>
      %14 = tpu.matmul %12, %13, %cst {dimension_numbers = #tpu.dot_dimension_numbers<[1], [0], [0], [1], [0, 0, 1, 1], [], []>} : vector<2x512xf32>, vector<512x3072xf32>, vector<2x3072xf32> -> vector<2x3072xf32>
      %c0_8 = arith.constant 0 : index
      %c0_9 = arith.constant 0 : index
      %15 = vector.load %arg9[%c0_8, %c0_9] : memref<1x3072xf32, #tpu.memory_space<vmem>>, vector<1x3072xf32>
      %16 = vector.broadcast %15 : vector<1x3072xf32> to vector<2x3072xf32>
      %17 = arith.addf %14, %16 : vector<2x3072xf32>
      %18 = arith.negf %17 : vector<2x3072xf32>
      %19 = math.exp %18 : vector<2x3072xf32>
      %cst_10 = arith.constant 1.000000e+00 : f32
      %20 = vector.broadcast %cst_10 : f32 to vector<2x3072xf32>
      %21 = arith.addf %20, %19 : vector<2x3072xf32>
      %22 = arith.divf %20, %21 : vector<2x3072xf32>
      %c0_11 = arith.constant 0 : index
      %c0_12 = arith.constant 0 : index
      %23 = vector.load %arg10[%c0_11, %c0_12] : memref<2x3072xf32, #tpu.memory_space<vmem>>, vector<2x3072xf32>
      tpu.vector_store %arg10[%c0_11, %c0_12], %22 {strides = array<i32>} : memref<2x3072xf32, #tpu.memory_space<vmem>>, vector<2x3072xf32>,
    } else {
    }
    return
  }
  func.func @transform_0(%arg0: i32) -> (i32, i32) {
    %c3_i32 = arith.constant 3 : i32
    %0 = arith.minsi %arg0, %c3_i32 : i32
    %c0_i32 = arith.constant 0 : i32
    %c0_i32_0 = arith.constant 0 : i32
    return %c0_i32, %0 : i32, i32
  }
  func.func @transform_1(%arg0: i32) -> (i32, i32) {
    %c3_i32 = arith.constant 3 : i32
    %0 = arith.minsi %arg0, %c3_i32 : i32
    %c0_i32 = arith.constant 0 : i32
    %c0_i32_0 = arith.constant 0 : i32
    return %0, %c0_i32 : i32, i32
  }
  func.func @transform_2(%arg0: i32) -> (i32, i32) {
    %c0_i32 = arith.constant 0 : i32
    %c0_i32_0 = arith.constant 0 : i32
    %c0_i32_1 = arith.constant 0 : i32
    return %c0_i32, %c0_i32_0 : i32, i32
  }
  func.func @transform_3(%arg0: i32) -> (i32, i32) {
    %c0_i32 = arith.constant 0 : i32
    %c0_i32_0 = arith.constant 0 : i32
    %c0_i32_1 = arith.constant 0 : i32
    return %c0_i32, %c0_i32_0 : i32, i32
  }
  func.func @transform_4(%arg0: i32) -> (i32, i32) {
    %c0_i32 = arith.constant 0 : i32
    %c0_i32_0 = arith.constant 0 : i32
    %c0_i32_1 = arith.constant 0 : i32
    return %c0_i32, %c0_i32_0 : i32, i32
  }
  func.func @transform_5(%arg0: i32) -> (i32, i32) {
    %c0_i32 = arith.constant 0 : i32
    %c0_i32_0 = arith.constant 0 : i32
    %c0_i32_1 = arith.constant 0 : i32
    return %c0_i32, %c0_i32_0 : i32, i32
  }
  func.func @transform_6(%arg0: i32) -> (i32, i32) {
    %c0_i32 = arith.constant 0 : i32
    %c0_i32_0 = arith.constant 0 : i32
    %c0_i32_1 = arith.constant 0 : i32
    return %c0_i32, %c0_i32_0 : i32, i32
  }
  func.func @transform_7(%arg0: i32) -> (i32, i32) {
    %c4_i32 = arith.constant 4 : i32
    %0 = arith.subi %arg0, %c4_i32 : i32
    %c0_i32 = arith.constant 0 : i32
    %1 = arith.maxsi %0, %c0_i32 : i32
    %c0_i32_0 = arith.constant 0 : i32
    %c0_i32_1 = arith.constant 0 : i32
    return %c0_i32_0, %1 : i32, i32
  }
  func.func @transform_8(%arg0: i32) -> (i32, i32) {
    %c4_i32 = arith.constant 4 : i32
    %0 = arith.subi %arg0, %c4_i32 : i32
    %c0_i32 = arith.constant 0 : i32
    %1 = arith.maxsi %0, %c0_i32 : i32
    %c0_i32_0 = arith.constant 0 : i32
    %c0_i32_1 = arith.constant 0 : i32
    return %c0_i32_0, %1 : i32, i32
  }
  func.func @transform_9(%arg0: i32) -> (i32, i32) {
    %c4_i32 = arith.constant 4 : i32
    %0 = arith.subi %arg0, %c4_i32 : i32
    %c0_i32 = arith.constant 0 : i32
    %1 = arith.maxsi %0, %c0_i32 : i32
    %c0_i32_0 = arith.constant 0 : i32
    %c0_i32_1 = arith.constant 0 : i32
    return %c0_i32_0, %1 : i32, i32
  }
}

</mosaic_0001>

<llo_original>
// kernel: autoencoder_forward.1
$region0: #{autoencoder_forward.1}
  #allocation0 [shape = 'u32[]', space=smem, size = 0x4, offset = 0x4, fixed_abs, tag = 'smem constant byte address 0x4 - core index']
  #allocation1 [shape = 'u32[72,128]{1,0:T(1,128)}', space=vmem, size = 0x9000, scoped, tag = 'internal scratch']
  #allocation2 [shape = 'f32[2,512]{1,0:T(2,128)}', space=vmem, size = 0x1000, scoped, tag = 'scratch operand']
  #allocation3 [shape = 'f32[2,512]{1,0:T(2,128)}', space=vmem, size = 0x1000, scoped, tag = 'scratch operand']
  %s0 = inlined_call_operand.vmem [shape: f32[2,12288], index: 0, kind: input, shape index: {}]
  %s1 = inlined_call_operand.hbm [shape: f32[12288,512], index: 1, kind: input, shape index: {}]
  %s2 = inlined_call_operand.hbm [shape: f32[1,512], index: 2, kind: input, shape index: {}]
  %s3 = inlined_call_operand.vmem [shape: f32[512,64], index: 3, kind: input, shape index: {}]
  %s4 = inlined_call_operand.hbm [shape: f32[1,64], index: 4, kind: input, shape index: {}]
  %s5 = inlined_call_operand.hbm [shape: f32[64,512], index: 5, kind: input, shape index: {}]
  %s6 = inlined_call_operand.hbm [shape: f32[1,512], index: 6, kind: input, shape index: {}]
  %s7 = inlined_call_operand.hbm [shape: f32[512,12288], index: 7, kind: input, shape index: {}]
  %s8 = inlined_call_operand.hbm [shape: f32[1,12288], index: 8, kind: input, shape index: {}]
  %s9 = inlined_call_operand.vmem [shape: f32[2,12288], index: 9, kind: output, shape index: {}]
  %s10 = sld [smem:[#allocation0]]
  $region113: #{autoencoder_forward.1} parent=0
    _
  %s12 = ssub.s32 1, %s10
  %s13 = scalar_select 0, %s12, %s10
  $region1: #{autoencoder_forward.1} parent=0
    #allocation4 [shape = 'u8[12582912]{0}', space=vmem, size = 0xc00000, scoped, tag = 'input window, operand 1']
    #allocation5 [shape = 's32[2]{0}', space=sflag, size = 0x8, scoped, tag = 'scoped memory for autoencoder_forward.1']
    #allocation6 [shape = 'u8[2048]{0}', space=vmem, size = 0x800, scoped, tag = 'input window, operand 2, single buffered']
    #allocation7 [shape = 's32[1]{0}', space=sflag, size = 0x4, scoped, tag = 'scoped memory for autoencoder_forward.1']
    #allocation8 [shape = 'u8[512]{0}', space=vmem, size = 0x400, scoped, tag = 'input window, operand 4, single buffered']
    #allocation9 [shape = 'u8[131072]{0}', space=vmem, size = 0x20000, scoped, tag = 'input window, operand 5, single buffered']
    #allocation10 [shape = 's32[1]{0}', space=sflag, size = 0x4, scoped, tag = 'scoped memory for autoencoder_forward.1']
    #allocation11 [shape = 'u8[2048]{0}', space=vmem, size = 0x800, scoped, tag = 'input window, operand 6, single buffered']
    #allocation12 [shape = 'u8[12582912]{0}', space=vmem, size = 0xc00000, scoped, tag = 'input window, operand 7']
    #allocation13 [shape = 's32[2]{0}', space=sflag, size = 0x8, scoped, tag = 'scoped memory for autoencoder_forward.1']
    #allocation14 [shape = 'u8[24576]{0}', space=vmem, size = 0x6000, scoped, tag = 'input window, operand 8']
    %14 = vsyncpa [#allocation5], 0
    %s15 = scalar_lea.sflag [#allocation5], 1
    %16 = vsyncpa %s15, 0
    %17 = vsyncpa [#allocation7], 0
    %18 = vsyncpa [#allocation10], 0
    %19 = vsyncpa [#allocation13], 0
    %s20 = scalar_lea.sflag [#allocation13], 1
    %21 = vsyncpa %s20, 0
    loop: start=0, step=1, limit=10
    $region2: #{autoencoder_forward.1} parent=1 // loop_pre_header
      _
    $region3: #{autoencoder_forward.1} parent=1 // loop_header
      %s23 = sphi 0, %s27
      %p24 = scmp.ge.s32.totalorder %s23, 10
      %s37 = sphi 0, %s39
      %s40 = sphi 0, %s37
      %s41 = sphi 0, %s40
      %s57 = sphi 0, %s41
      %s67 = sphi 0, %s69
      %s70 = sphi 0, %s67
      %s71 = sphi 0, %s70
      %s87 = sphi 0, %s71
      %s91 = sphi 0, %s91
      %s93 = sphi 0, %s91
      %s94 = sphi 0, %s93
      %s108 = sphi 0, %s94
      %s112 = sphi 0, %s112
      %s114 = sphi 0, %s112
      %s115 = sphi 0, %s114
      %s129 = sphi 0, %s115
      %s133 = sphi 0, %s133
      %s135 = sphi 0, %s133
      %s136 = sphi 0, %s135
      %s150 = sphi 0, %s136
      %s154 = sphi 0, %s154
      %s156 = sphi 0, %s154
      %s157 = sphi 0, %s156
      %s171 = sphi 0, %s157
      %s175 = sphi 0, %s175
      %s177 = sphi 0, %s175
      %s178 = sphi 0, %s177
      %s192 = sphi 0, %s178
      %s204 = sphi 0, %s206
      %s207 = sphi 0, %s204
      %s208 = sphi 0, %s207
      %s224 = sphi 0, %s208
      %s236 = sphi 0, %s238
      %s239 = sphi 0, %s236
      %s240 = sphi 0, %s239
      %s256 = sphi 0, %s240
      %s268 = sphi 0, %s270
      %s271 = sphi 0, %s268
      %s272 = sphi 0, %s271
      %s288 = sphi 0, %s272
    $region4: #{autoencoder_forward.1} parent=1 // loop_header_branch
      %26 = sbr.rel (%p24) target = $region8
    $region5: #{autoencoder_forward.1} parent=1 // loop_body
      %s28 = ssub.s32 %s23, 1
      %s29 = ssub.s32 %s23, 2
      %s30 = sadd.s32 %s23, 1
      %p31 = scmp.lt.s32.totalorder %s23, 3
      %s32 = scalar_select %p31, %s23, 3
      %p33 = scmp.lt.s32.totalorder %s30, 3
      %s34 = scalar_select %p33, %s30, 3
      %s35 = ssub.s32 %s32, %s34
      %p36 = scmp.eq.s32.totalorder %s35, 0
      %s38 = sadd.s32 %s37, 1
      %s39 = scalar_select %p36, %s37, %s38
      %p42 = pneg %p36
      %p43 = scmp.eq.s32.totalorder %s23, 7
      %p44 = por %p42, %p43
      %p45 = scmp.ne.s32.totalorder %s37, %s40
      %p46 = scmp.eq.s32.totalorder %s23, 0
      %p47 = por %p45, %p46
      %p48 = scmp.ne.s32.totalorder %s37, %s40
      %p49 = scmp.eq.s32.totalorder %s28, 7
      %p50 = por %p48, %p49
      %p51 = scmp.ne.s32.totalorder %s40, %s41
      %p52 = scmp.eq.s32.totalorder %s28, 0
      %p53 = por %p51, %p52
      %p54 = scmp.ne.s32.totalorder %s40, %s41
      %p55 = scmp.eq.s32.totalorder %s29, 7
      %p56 = por %p54, %p55
      %p58 = scmp.ne.s32.totalorder %s41, %s57
      %p59 = scmp.eq.s32.totalorder %s29, 0
      %p60 = por %p58, %p59
      %p61 = scmp.lt.s32.totalorder %s23, 3
      %s62 = scalar_select %p61, %s23, 3
      %p63 = scmp.lt.s32.totalorder %s30, 3
      %s64 = scalar_select %p63, %s30, 3
      %s65 = ssub.s32 %s62, %s64
      %p66 = scmp.eq.s32.totalorder %s65, 0
      %s68 = sadd.s32 %s67, 1
      %s69 = scalar_select %p66, %s67, %s68
      %p72 = pneg %p66
      %p73 = scmp.eq.s32.totalorder %s23, 7
      %p74 = por %p72, %p73
      %p75 = scmp.ne.s32.totalorder %s67, %s70
      %p76 = scmp.eq.s32.totalorder %s23, 0
      %p77 = por %p75, %p76
      %p78 = scmp.ne.s32.totalorder %s67, %s70
      %p79 = scmp.eq.s32.totalorder %s28, 7
      %p80 = por %p78, %p79
      %p81 = scmp.ne.s32.totalorder %s70, %s71
      %p82 = scmp.eq.s32.totalorder %s28, 0
      %p83 = por %p81, %p82
      %p84 = scmp.ne.s32.totalorder %s70, %s71
      %p85 = scmp.eq.s32.totalorder %s29, 7
      %p86 = por %p84, %p85
      %p88 = scmp.ne.s32.totalorder %s71, %s87
      %p89 = scmp.eq.s32.totalorder %s29, 0
      %p90 = por %p88, %p89
      %s92 = sadd.s32 %s91, 1
      %p95 = scmp.eq.s32.totalorder %s23, 7
      %p96 = scmp.ne.s32.totalorder %s91, %s93
      %p97 = scmp.eq.s32.totalorder %s23, 0
      %p98 = por %p96, %p97
      %p99 = scmp.ne.s32.totalorder %s91, %s93
      %p100 = scmp.eq.s32.totalorder %s28, 7
      %p101 = por %p99, %p100
      %p102 = scmp.ne.s32.totalorder %s93, %s94
      %p103 = scmp.eq.s32.totalorder %s28, 0
      %p104 = por %p102, %p103
      %p105 = scmp.ne.s32.totalorder %s93, %s94
      %p106 = scmp.eq.s32.totalorder %s29, 7
      %p107 = por %p105, %p106
      %p109 = scmp.ne.s32.totalorder %s94, %s108
      %p110 = scmp.eq.s32.totalorder %s29, 0
      %p111 = por %p109, %p110
      %s113 = sadd.s32 %s112, 1
      %p116 = scmp.eq.s32.totalorder %s23, 7
      %p117 = scmp.ne.s32.totalorder %s112, %s114
      %p118 = scmp.eq.s32.totalorder %s23, 0
      %p119 = por %p117, %p118
      %p120 = scmp.ne.s32.totalorder %s112, %s114
      %p121 = scmp.eq.s32.totalorder %s28, 7
      %p122 = por %p120, %p121
      %p123 = scmp.ne.s32.totalorder %s114, %s115
      %p124 = scmp.eq.s32.totalorder %s28, 0
      %p125 = por %p123, %p124
      %p126 = scmp.ne.s32.totalorder %s114, %s115
      %p127 = scmp.eq.s32.totalorder %s29, 7
      %p128 = por %p126, %p127
      %p130 = scmp.ne.s32.totalorder %s115, %s129
      %p131 = scmp.eq.s32.totalorder %s29, 0
      %p132 = por %p130, %p131
      %s134 = sadd.s32 %s133, 1
      %p137 = scmp.eq.s32.totalorder %s23, 7
      %p138 = scmp.ne.s32.totalorder %s133, %s135
      %p139 = scmp.eq.s32.totalorder %s23, 0
      %p140 = por %p138, %p139
      %p141 = scmp.ne.s32.totalorder %s133, %s135
      %p142 = scmp.eq.s32.totalorder %s28, 7
      %p143 = por %p141, %p142
      %p144 = scmp.ne.s32.totalorder %s135, %s136
      %p145 = scmp.eq.s32.totalorder %s28, 0
      %p146 = por %p144, %p145
      %p147 = scmp.ne.s32.totalorder %s135, %s136
      %p148 = scmp.eq.s32.totalorder %s29, 7
      %p149 = por %p147, %p148
      %p151 = scmp.ne.s32.totalorder %s136, %s150
      %p152 = scmp.eq.s32.totalorder %s29, 0
      %p153 = por %p151, %p152
      %s155 = sadd.s32 %s154, 1
      %p158 = scmp.eq.s32.totalorder %s23, 7
      %p159 = scmp.ne.s32.totalorder %s154, %s156
      %p160 = scmp.eq.s32.totalorder %s23, 0
      %p161 = por %p159, %p160
      %p162 = scmp.ne.s32.totalorder %s154, %s156
      %p163 = scmp.eq.s32.totalorder %s28, 7
      %p164 = por %p162, %p163
      %p165 = scmp.ne.s32.totalorder %s156, %s157
      %p166 = scmp.eq.s32.totalorder %s28, 0
      %p167 = por %p165, %p166
      %p168 = scmp.ne.s32.totalorder %s156, %s157
      %p169 = scmp.eq.s32.totalorder %s29, 7
      %p170 = por %p168, %p169
      %p172 = scmp.ne.s32.totalorder %s157, %s171
      %p173 = scmp.eq.s32.totalorder %s29, 0
      %p174 = por %p172, %p173
      %s176 = sadd.s32 %s175, 1
      %p179 = scmp.eq.s32.totalorder %s23, 7
      %p180 = scmp.ne.s32.totalorder %s175, %s177
      %p181 = scmp.eq.s32.totalorder %s23, 0
      %p182 = por %p180, %p181
      %p183 = scmp.ne.s32.totalorder %s175, %s177
      %p184 = scmp.eq.s32.totalorder %s28, 7
      %p185 = por %p183, %p184
      %p186 = scmp.ne.s32.totalorder %s177, %s178
      %p187 = scmp.eq.s32.totalorder %s28, 0
      %p188 = por %p186, %p187
      %p189 = scmp.ne.s32.totalorder %s177, %s178
      %p190 = scmp.eq.s32.totalorder %s29, 7
      %p191 = por %p189, %p190
      %p193 = scmp.ne.s32.totalorder %s178, %s192
      %p194 = scmp.eq.s32.totalorder %s29, 0
      %p195 = por %p193, %p194
      %s196 = ssub.s32 %s23, 4
      %p197 = scmp.gt.s32.totalorder %s196, 0
      %s198 = scalar_select %p197, %s196, 0
      %s199 = ssub.s32 %s30, 4
      %p200 = scmp.gt.s32.totalorder %s199, 0
      %s201 = scalar_select %p200, %s199, 0
      %s202 = ssub.s32 %s198, %s201
      %p203 = scmp.eq.s32.totalorder %s202, 0
      %s205 = sadd.s32 %s204, 1
      %s206 = scalar_select %p203, %s204, %s205
      %p209 = pneg %p203
      %p210 = scmp.eq.s32.totalorder %s23, 7
      %p211 = por %p209, %p210
      %p212 = scmp.ne.s32.totalorder %s204, %s207
      %p213 = scmp.eq.s32.totalorder %s23, 0
      %p214 = por %p212, %p213
      %p215 = scmp.ne.s32.totalorder %s204, %s207
      %p216 = scmp.eq.s32.totalorder %s28, 7
      %p217 = por %p215, %p216
      %p218 = scmp.ne.s32.totalorder %s207, %s208
      %p219 = scmp.eq.s32.totalorder %s28, 0
      %p220 = por %p218, %p219
      %p221 = scmp.ne.s32.totalorder %s207, %s208
      %p222 = scmp.eq.s32.totalorder %s29, 7
      %p223 = por %p221, %p222
      %p225 = scmp.ne.s32.totalorder %s208, %s224
      %p226 = scmp.eq.s32.totalorder %s29, 0
      %p227 = por %p225, %p226
      %s228 = ssub.s32 %s23, 4
      %p229 = scmp.gt.s32.totalorder %s228, 0
      %s230 = scalar_select %p229, %s228, 0
      %s231 = ssub.s32 %s30, 4
      %p232 = scmp.gt.s32.totalorder %s231, 0
      %s233 = scalar_select %p232, %s231, 0
      %s234 = ssub.s32 %s230, %s233
      %p235 = scmp.eq.s32.totalorder %s234, 0
      %s237 = sadd.s32 %s236, 1
      %s238 = scalar_select %p235, %s236, %s237
      %p241 = pneg %p235
      %p242 = scmp.eq.s32.totalorder %s23, 7
      %p243 = por %p241, %p242
      %p244 = scmp.ne.s32.totalorder %s236, %s239
      %p245 = scmp.eq.s32.totalorder %s23, 0
      %p246 = por %p244, %p245
      %p247 = scmp.ne.s32.totalorder %s236, %s239
      %p248 = scmp.eq.s32.totalorder %s28, 7
      %p249 = por %p247, %p248
      %p250 = scmp.ne.s32.totalorder %s239, %s240
      %p251 = scmp.eq.s32.totalorder %s28, 0
      %p252 = por %p250, %p251
      %p253 = scmp.ne.s32.totalorder %s239, %s240
      %p254 = scmp.eq.s32.totalorder %s29, 7
      %p255 = por %p253, %p254
      %p257 = scmp.ne.s32.totalorder %s240, %s256
      %p258 = scmp.eq.s32.totalorder %s29, 0
      %p259 = por %p257, %p258
      %s260 = ssub.s32 %s23, 4
      %p261 = scmp.gt.s32.totalorder %s260, 0
      %s262 = scalar_select %p261, %s260, 0
      %s263 = ssub.s32 %s30, 4
      %p264 = scmp.gt.s32.totalorder %s263, 0
      %s265 = scalar_select %p264, %s263, 0
      %s266 = ssub.s32 %s262, %s265
      %p267 = scmp.eq.s32.totalorder %s266, 0
      %s269 = sadd.s32 %s268, 1
      %s270 = scalar_select %p267, %s268, %s269
      %p273 = pneg %p267
      %p274 = scmp.eq.s32.totalorder %s23, 7
      %p275 = por %p273, %p274
      %p276 = scmp.ne.s32.totalorder %s268, %s271
      %p277 = scmp.eq.s32.totalorder %s23, 0
      %p278 = por %p276, %p277
      %p279 = scmp.ne.s32.totalorder %s268, %s271
      %p280 = scmp.eq.s32.totalorder %s28, 7
      %p281 = por %p279, %p280
      %p282 = scmp.ne.s32.totalorder %s271, %s272
      %p283 = scmp.eq.s32.totalorder %s28, 0
      %p284 = por %p282, %p283
      %p285 = scmp.ne.s32.totalorder %s271, %s272
      %p286 = scmp.eq.s32.totalorder %s29, 7
      %p287 = por %p285, %p286
      %p289 = scmp.ne.s32.totalorder %s272, %s288
      %p290 = scmp.eq.s32.totalorder %s29, 0
      %p291 = por %p289, %p290
      %p292 = scmp.le.s32.totalorder 1, %s23
      %p293 = scmp.lt.s32.totalorder %s23, 9
      %p294 = pnand %p292, %p293
      %p295 = pneg %p294
      // Predicated region
      $region9: #{autoencoder_forward.1} parent=5 // pred_check
        _
      $region10: #{autoencoder_forward.1} parent=5 // pred_check_branch
        %297 = sbr.rel (%p294) target = $region12
      $region11: #{autoencoder_forward.1} parent=5 // pred_region
        %s298 = ssub.s32 %s23, 1
        // Predicated region
        $region13: #{autoencoder_forward.1} parent=11 // pred_check
          %p299 = pneg %p104
        $region14: #{autoencoder_forward.1} parent=11 // pred_check_branch
          %301 = sbr.rel (%p299) target = $region16
        $region15: #{autoencoder_forward.1} parent=11 // pred_region
          %303 = vsyncadd [#allocation7], 0
          %s305 = sshll.u32 %s2, 4
          %s306 = int_to_ptr.hbm [resolvable:$true] %s305
          %s307 = sshll.u32 [#allocation6], 4
          %s308 = int_to_ptr.vmem [resolvable:$true] %s307
          %310 = dma.hbm_to_vmem [thread:$0]  %s306, 64, %s308, [#allocation7]
        $region16: #{autoencoder_forward.1} parent=11 // pred_fallthru
          _
        // Predicated region
        $region17: #{autoencoder_forward.1} parent=11 // pred_check
          %p311 = pneg %p125
        $region18: #{autoencoder_forward.1} parent=11 // pred_check_branch
          %313 = sbr.rel (%p311) target = $region20
        $region19: #{autoencoder_forward.1} parent=11 // pred_region
          _
        $region20: #{autoencoder_forward.1} parent=11 // pred_fallthru
          _
        // Predicated region
        $region21: #{autoencoder_forward.1} parent=11 // pred_check
          %p314 = pneg %p146
        $region22: #{autoencoder_forward.1} parent=11 // pred_check_branch
          %316 = sbr.rel (%p314) target = $region24
        $region23: #{autoencoder_forward.1} parent=11 // pred_region
          %318 = vsyncadd [#allocation7], 0
          %s320 = sshll.u32 %s4, 4
          %s321 = int_to_ptr.hbm [resolvable:$true] %s320
          %s322 = sshll.u32 [#allocation8], 4
          %s323 = int_to_ptr.vmem [resolvable:$true] %s322
          %325 = dma.hbm_to_vmem [thread:$0]  %s321, 16, %s323, [#allocation7]
        $region24: #{autoencoder_forward.1} parent=11 // pred_fallthru
          _
        // Predicated region
        $region25: #{autoencoder_forward.1} parent=11 // pred_check
          %p326 = pneg %p167
        $region26: #{autoencoder_forward.1} parent=11 // pred_check_branch
          %328 = sbr.rel (%p326) target = $region28
        $region27: #{autoencoder_forward.1} parent=11 // pred_region
          %330 = vsyncadd [#allocation10], 0
          %s331 = sshll.u32 %s5, 4
          %s332 = int_to_ptr.hbm [resolvable:$true] %s331
          %s333 = sshll.u32 [#allocation9], 4
          %s334 = int_to_ptr.vmem [resolvable:$true] %s333
          %339 = dma.hbm_to_vmem [thread:$0]  %s332, 4096, %s334, [#allocation10], 512, 512, 32
        $region28: #{autoencoder_forward.1} parent=11 // pred_fallthru
          _
        // Predicated region
        $region29: #{autoencoder_forward.1} parent=11 // pred_check
          %p340 = pneg %p188
        $region30: #{autoencoder_forward.1} parent=11 // pred_check_branch
          %342 = sbr.rel (%p340) target = $region32
        $region31: #{autoencoder_forward.1} parent=11 // pred_region
          %344 = vsyncadd [#allocation10], 0
          %s346 = sshll.u32 %s6, 4
          %s347 = int_to_ptr.hbm [resolvable:$true] %s346
          %s348 = sshll.u32 [#allocation11], 4
          %s349 = int_to_ptr.vmem [resolvable:$true] %s348
          %351 = dma.hbm_to_vmem [thread:$0]  %s347, 64, %s349, [#allocation10]
        $region32: #{autoencoder_forward.1} parent=11 // pred_fallthru
          _
      $region12: #{autoencoder_forward.1} parent=5 // pred_fallthru
        _
      %p352 = scmp.lt.s32.totalorder %s23, 8
      // Predicated region
      $region33: #{autoencoder_forward.1} parent=5 // pred_check
        %p353 = pneg %p352
      $region34: #{autoencoder_forward.1} parent=5 // pred_check_branch
        %355 = sbr.rel (%p353) target = $region36
      $region35: #{autoencoder_forward.1} parent=5 // pred_region
        // Predicated region
        $region37: #{autoencoder_forward.1} parent=35 // pred_check
          %p356 = pneg %p47
        $region38: #{autoencoder_forward.1} parent=35 // pred_check_branch
          %358 = sbr.rel (%p356) target = $region40
        $region39: #{autoencoder_forward.1} parent=35 // pred_region
          %p359 = scmp.lt.s32.totalorder %s23, 3
          %s360 = scalar_select %p359, %s23, 3
          %s361 = smul.u32 24, %s360
          %p362 = scmp.lt.s32.totalorder %s361, 95
          %s363 = scalar_select %p362, %s361, 95
          %s364 = smul.addr %s363, 2
          %s365 = scalar_lea.vmem %s0, %s364
          %p366 = scmp.lt.s32.totalorder %s23, 3
          %s367 = scalar_select %p366, %s23, 3
          %s368 = smul.u32 24, %s367
        $region40: #{autoencoder_forward.1} parent=35 // pred_fallthru
          _
        // Predicated region
        $region41: #{autoencoder_forward.1} parent=35 // pred_check
          %p369 = pneg %p77
        $region42: #{autoencoder_forward.1} parent=35 // pred_check_branch
          %371 = sbr.rel (%p369) target = $region44
        $region43: #{autoencoder_forward.1} parent=35 // pred_region
          %s372 = sand.u32 %s67, 1
          %s373 = scalar_lea.sflag [#allocation5], %s372
          %s374 = sand.u32 %s67, 1
          %s375 = smul.addr %s374, 12288
          %s376 = scalar_lea.vmem [#allocation4], %s375
          %p377 = scmp.lt.s32.totalorder %s23, 3
          %s378 = scalar_select %p377, %s23, 3
          %s379 = smul.u32 384, %s378
          %381 = vsyncadd %s373, 0
          %s382 = smul.addr %s379, 4
          %s383 = smul.addr %s382, 8
          %s384 = scalar_lea.hbm %s1, %s383
          %s385 = sshll.u32 %s384, 4
          %s386 = int_to_ptr.hbm [resolvable:$true] %s385
          %s387 = sshll.u32 %s376, 4
          %s388 = int_to_ptr.vmem [resolvable:$true] %s387
          %393 = dma.hbm_to_vmem [thread:$0]  %s386, 196608, %s388, %s373, 512, 512, 32
        $region44: #{autoencoder_forward.1} parent=35 // pred_fallthru
          _
        // Predicated region
        $region45: #{autoencoder_forward.1} parent=35 // pred_check
          %p394 = pneg %p214
        $region46: #{autoencoder_forward.1} parent=35 // pred_check_branch
          %396 = sbr.rel (%p394) target = $region48
        $region47: #{autoencoder_forward.1} parent=35 // pred_region
          %s397 = sand.u32 %s23, 1
          %s398 = scalar_lea.sflag [#allocation13], %s397
          %s399 = sand.u32 %s204, 1
          %s400 = smul.addr %s399, 12288
          %s401 = scalar_lea.vmem [#allocation12], %s400
          %s402 = ssub.s32 %s23, 4
          %p403 = scmp.gt.s32.totalorder %s402, 0
          %s404 = scalar_select %p403, %s402, 0
          %s405 = smul.u32 24, %s404
          %407 = vsyncadd %s398, 0
          %s408 = smul.addr %s405, 8
          %s409 = scalar_lea.hbm %s7, %s408
          %s410 = sshll.u32 %s409, 4
          %s411 = int_to_ptr.hbm [resolvable:$true] %s410
          %s412 = sshll.u32 %s401, 4
          %s413 = int_to_ptr.vmem [resolvable:$true] %s412
          %418 = dma.hbm_to_vmem [thread:$0]  %s411, 196608, %s413, %s398, 12288, 3072, 192
        $region48: #{autoencoder_forward.1} parent=35 // pred_fallthru
          _
        // Predicated region
        $region49: #{autoencoder_forward.1} parent=35 // pred_check
          %p419 = pneg %p246
        $region50: #{autoencoder_forward.1} parent=35 // pred_check_branch
          %421 = sbr.rel (%p419) target = $region52
        $region51: #{autoencoder_forward.1} parent=35 // pred_region
          %s422 = sand.u32 %s23, 1
          %s423 = scalar_lea.sflag [#allocation13], %s422
          %s424 = sand.u32 %s236, 1
          %s425 = smul.addr %s424, 24
          %s426 = scalar_lea.vmem [#allocation14], %s425
          %s427 = ssub.s32 %s23, 4
          %p428 = scmp.gt.s32.totalorder %s427, 0
          %s429 = scalar_select %p428, %s427, 0
          %s430 = smul.u32 24, %s429
          %432 = vsyncadd %s423, 0
          %s433 = scalar_lea.hbm %s8, %s430
          %s435 = sshll.u32 %s433, 4
          %s436 = int_to_ptr.hbm [resolvable:$true] %s435
          %s437 = sshll.u32 %s426, 4
          %s438 = int_to_ptr.vmem [resolvable:$true] %s437
          %440 = dma.hbm_to_vmem [thread:$0]  %s436, 384, %s438, %s423
        $region52: #{autoencoder_forward.1} parent=35 // pred_fallthru
          _
      $region36: #{autoencoder_forward.1} parent=5 // pred_fallthru
        _
      %p441 = scmp.le.s32.totalorder 1, %s23
      %p442 = scmp.lt.s32.totalorder %s23, 9
      %p443 = pnand %p441, %p442
      %p444 = pneg %p443
      // Predicated region
      $region53: #{autoencoder_forward.1} parent=5 // pred_check
        _
      $region54: #{autoencoder_forward.1} parent=5 // pred_check_branch
        %446 = sbr.rel (%p443) target = $region56
      $region55: #{autoencoder_forward.1} parent=5 // pred_region
        %s447 = ssub.s32 %s23, 1
        %s448 = sand.u32 %s70, 1
        %s449 = scalar_lea.sflag [#allocation5], %s448
        %s450 = sand.u32 %s70, 1
        %s451 = smul.addr %s450, 12288
        %s452 = scalar_lea.vmem [#allocation4], %s451
        // Predicated region
        $region57: #{autoencoder_forward.1} parent=55 // pred_check
          %p453 = pneg %p83
        $region58: #{autoencoder_forward.1} parent=55 // pred_check_branch
          %455 = sbr.rel (%p453) target = $region60
        $region59: #{autoencoder_forward.1} parent=55 // pred_region
          %457 = dma.done %s449, 196608
        $region60: #{autoencoder_forward.1} parent=55 // pred_fallthru
          _
        // Predicated region
        $region61: #{autoencoder_forward.1} parent=55 // pred_check
          %p458 = pneg %p104
        $region62: #{autoencoder_forward.1} parent=55 // pred_check_branch
          %460 = sbr.rel (%p458) target = $region64
        $region63: #{autoencoder_forward.1} parent=55 // pred_region
          %462 = dma.done [#allocation7], 64
        $region64: #{autoencoder_forward.1} parent=55 // pred_fallthru
          _
        // Predicated region
        $region65: #{autoencoder_forward.1} parent=55 // pred_check
          %p463 = pneg %p146
        $region66: #{autoencoder_forward.1} parent=55 // pred_check_branch
          %465 = sbr.rel (%p463) target = $region68
        $region67: #{autoencoder_forward.1} parent=55 // pred_region
          %467 = dma.done [#allocation7], 16
        $region68: #{autoencoder_forward.1} parent=55 // pred_fallthru
          _
        // Predicated region
        $region69: #{autoencoder_forward.1} parent=55 // pred_check
          %p468 = pneg %p167
        $region70: #{autoencoder_forward.1} parent=55 // pred_check_branch
          %470 = sbr.rel (%p468) target = $region72
        $region71: #{autoencoder_forward.1} parent=55 // pred_region
          %472 = dma.done [#allocation10], 4096
        $region72: #{autoencoder_forward.1} parent=55 // pred_fallthru
          _
        // Predicated region
        $region73: #{autoencoder_forward.1} parent=55 // pred_check
          %p473 = pneg %p188
        $region74: #{autoencoder_forward.1} parent=55 // pred_check_branch
          %475 = sbr.rel (%p473) target = $region76
        $region75: #{autoencoder_forward.1} parent=55 // pred_region
          %477 = dma.done [#allocation10], 64
        $region76: #{autoencoder_forward.1} parent=55 // pred_fallthru
          _
        %s478 = sand.u32 %s28, 1
        %s479 = scalar_lea.sflag [#allocation13], %s478
        %s480 = sand.u32 %s207, 1
        %s481 = smul.addr %s480, 12288
        %s482 = scalar_lea.vmem [#allocation12], %s481
        // Predicated region
        $region77: #{autoencoder_forward.1} parent=55 // pred_check
          %p483 = pneg %p220
        $region78: #{autoencoder_forward.1} parent=55 // pred_check_branch
          %485 = sbr.rel (%p483) target = $region80
        $region79: #{autoencoder_forward.1} parent=55 // pred_region
          %487 = dma.done %s479, 196608
        $region80: #{autoencoder_forward.1} parent=55 // pred_fallthru
          _
        %s488 = sand.u32 %s28, 1
        %s489 = scalar_lea.sflag [#allocation13], %s488
        %s490 = sand.u32 %s239, 1
        %s491 = smul.addr %s490, 24
        %s492 = scalar_lea.vmem [#allocation14], %s491
        // Predicated region
        $region81: #{autoencoder_forward.1} parent=55 // pred_check
          %p493 = pneg %p252
        $region82: #{autoencoder_forward.1} parent=55 // pred_check_branch
          %495 = sbr.rel (%p493) target = $region84
        $region83: #{autoencoder_forward.1} parent=55 // pred_region
          %497 = dma.done %s489, 384
        $region84: #{autoencoder_forward.1} parent=55 // pred_fallthru
          _
        %p498 = scmp.lt.s32.totalorder %s28, 3
        %s499 = scalar_select %p498, %s28, 3
        %s500 = smul.u32 24, %s499
        %p501 = scmp.lt.s32.totalorder %s500, 95
        %s502 = scalar_select %p501, %s500, 95
        %s503 = smul.addr %s502, 2
        %s504 = scalar_lea.vmem %s0, %s503
        %p505 = pneg %p53
        %p506 = pneg %p50
        %s507 = sand.u32 %s70, 1
        %s508 = scalar_lea.sflag [#allocation5], %s507
        %s509 = sand.u32 %s70, 1
        %s510 = smul.addr %s509, 12288
        %s511 = scalar_lea.vmem [#allocation4], %s510
        %p512 = pneg %p83
        %p513 = pneg %p80
        %p514 = pneg %p104
        %p515 = pneg %p101
        %p516 = pneg %p125
        %p517 = pneg %p122
        %p518 = pneg %p146
        %p519 = pneg %p143
        %p520 = pneg %p167
        %p521 = pneg %p164
        %p522 = pneg %p188
        %p523 = pneg %p185
        %s524 = sand.u32 %s28, 1
        %s525 = scalar_lea.sflag [#allocation13], %s524
        %s526 = sand.u32 %s207, 1
        %s527 = smul.addr %s526, 12288
        %s528 = scalar_lea.vmem [#allocation12], %s527
        %p529 = pneg %p220
        %p530 = pneg %p217
        %s531 = sand.u32 %s28, 1
        %s532 = scalar_lea.sflag [#allocation13], %s531
        %s533 = sand.u32 %s239, 1
        %s534 = smul.addr %s533, 24
        %s535 = scalar_lea.vmem [#allocation14], %s534
        %p536 = pneg %p252
        %p537 = pneg %p249
        %p538 = pneg %p284
        %p539 = pneg %p281
        %s540 = ssub.s32 %s28, 4
        %p541 = scmp.gt.s32.totalorder %s540, 0
        %s542 = scalar_select %p541, %s540, 0
        %s543 = smul.u32 24, %s542
        %p544 = scmp.lt.s32.totalorder %s543, 95
        %s545 = scalar_select %p544, %s543, 95
        %s546 = smul.addr %s545, 2
        %s547 = scalar_lea.vmem %s9, %s546
        %p548 = scmp.lt.s32.totalorder %s28, 3
        %s549 = scalar_select %p548, %s28, 3
        %s550 = smul.u32 24, %s549
        %p551 = scmp.lt.s32.totalorder %s550, 95
        %s552 = scalar_select %p551, %s550, 95
        %s553 = smul.addr %s552, 2
        %s554 = scalar_lea.vmem %s0, %s553
        %p555 = scmp.lt.s32.totalorder %s28, 3
        %s556 = scalar_select %p555, %s28, 3
        %s557 = smul.u32 24, %s556
        %p558 = scmp.lt.s32.totalorder %s28, 3
        %s559 = scalar_select %p558, %s28, 3
        %s560 = smul.u32 384, %s559
        %s561 = ssub.s32 %s28, 4
        %p562 = scmp.gt.s32.totalorder %s561, 0
        %s563 = scalar_select %p562, %s561, 0
        %s564 = smul.u32 24, %s563
        %s565 = ssub.s32 %s28, 4
        %p566 = scmp.gt.s32.totalorder %s565, 0
        %s567 = scalar_select %p566, %s565, 0
        %s568 = smul.u32 24, %s567
        %s569 = ssub.s32 %s28, 4
        %p570 = scmp.gt.s32.totalorder %s569, 0
        %s571 = scalar_select %p570, %s569, 0
        %s572 = smul.u32 24, %s571
        %p573 = scmp.lt.s32.totalorder %s572, 95
        %s574 = scalar_select %p573, %s572, 95
        %s575 = smul.addr %s574, 2
        %s576 = scalar_lea.vmem %s9, %s575
        %s577 = ssub.s32 %s28, 4
        %p578 = scmp.gt.s32.totalorder %s577, 0
        %s579 = scalar_select %p578, %s577, 0
        %s580 = smul.u32 24, %s579
        %p581 = scmp.eq.s32.totalorder %s28, 0
        // Predicated region
        $region85: #{autoencoder_forward.1} parent=55 // pred_check
          %p582 = pneg %p581
        $region86: #{autoencoder_forward.1} parent=55 // pred_check_branch
          %584 = sbr.rel (%p582) target = $region88
        $region87: #{autoencoder_forward.1} parent=55 // pred_region
          %585 = vst [vmem:[#allocation2] sm:$0xff] 0.0
        $region88: #{autoencoder_forward.1} parent=55 // pred_fallthru
          _
        %p586 = scmp.lt.s32.totalorder %s28, 4
        // Predicated region
        $region89: #{autoencoder_forward.1} parent=55 // pred_check
          %p587 = pneg %p586
        $region90: #{autoencoder_forward.1} parent=55 // pred_check_branch
          %589 = sbr.rel (%p587) target = $region92
        $region91: #{autoencoder_forward.1} parent=55 // pred_region
          %v590 = vld [vmem:[#allocation2] sm:$0xff]
          %v591 = vld [vmem:[%s554] sm:$0xff]
          %v592 = vld [vmem:[%s554 + $0x8] sm:$0xff]
          %v593 = vld [vmem:[%s554 + $0x10] sm:$0xff]
          %v594 = vld [vmem:[%s554 + $0x18] sm:$0xff]
          %v595 = vld [vmem:[%s554 + $0x20] sm:$0xff]
          %v596 = vld [vmem:[%s554 + $0x28] sm:$0xff]
          %v597 = vld [vmem:[%s452] sm:$0xff]
          %v598 = vld [vmem:[%s452 + $0x8] sm:$0xff]
          %v599 = vld [vmem:[%s452 + $0x10] sm:$0xff]
          %v600 = vld [vmem:[%s452 + $0x18] sm:$0xff]
          %v601 = vld [vmem:[%s452 + $0x20] sm:$0xff]
          %v602 = vld [vmem:[%s452 + $0x28] sm:$0xff]
          %v603 = vld [vmem:[%s452 + $0x30] sm:$0xff]
          %v604 = vld [vmem:[%s452 + $0x38] sm:$0xff]
          %v605 = vld [vmem:[%s452 + $0x40] sm:$0xff]
          %v606 = vld [vmem:[%s452 + $0x48] sm:$0xff]
          %v607 = vld [vmem:[%s452 + $0x50] sm:$0xff]
          %v608 = vld [vmem:[%s452 + $0x58] sm:$0xff]
          %v609 = vld [vmem:[%s452 + $0x60] sm:$0xff]
          %v610 = vld [vmem:[%s452 + $0x68] sm:$0xff]
          %v611 = vld [vmem:[%s452 + $0x70] sm:$0xff]
          %v612 = vld [vmem:[%s452 + $0x78] sm:$0xff]
          %v613 = vld [vmem:[%s452 + $0x80] sm:$0xff]
          %v614 = vld [vmem:[%s452 + $0x88] sm:$0xff]
          %v615 = vld [vmem:[%s452 + $0x90] sm:$0xff]
          %v616 = vld [vmem:[%s452 + $0x98] sm:$0xff]
          %v617 = vld [vmem:[%s452 + $0xa0] sm:$0xff]
          %v618 = vld [vmem:[%s452 + $0xa8] sm:$0xff]
          %v619 = vld [vmem:[%s452 + $0xb0] sm:$0xff]
          %v620 = vld [vmem:[%s452 + $0xb8] sm:$0xff]
          %v621 = vld [vmem:[%s452 + $0xc0] sm:$0xff]
          %v622 = vld [vmem:[%s452 + $0xc8] sm:$0xff]
          %v623 = vld [vmem:[%s452 + $0xd0] sm:$0xff]
          %v624 = vld [vmem:[%s452 + $0xd8] sm:$0xff]
          %v625 = vld [vmem:[%s452 + $0xe0] sm:$0xff]
          %v626 = vld [vmem:[%s452 + $0xe8] sm:$0xff]
          %v627 = vld [vmem:[%s452 + $0xf0] sm:$0xff]
          %v628 = vld [vmem:[%s452 + $0xf8] sm:$0xff]
          %v629 = vld [vmem:[%s452 + $0x100] sm:$0xff]
          %v630 = vld [vmem:[%s452 + $0x108] sm:$0xff]
          %v631 = vld [vmem:[%s452 + $0x110] sm:$0xff]
          %v632 = vld [vmem:[%s452 + $0x118] sm:$0xff]
          %v633 = vld [vmem:[%s452 + $0x120] sm:$0xff]
          %v634 = vld [vmem:[%s452 + $0x128] sm:$0xff]
          %v635 = vld [vmem:[%s452 + $0x130] sm:$0xff]
          %v636 = vld [vmem:[%s452 + $0x138] sm:$0xff]
          %v637 = vld [vmem:[%s452 + $0x140] sm:$0xff]
          %v638 = vld [vmem:[%s452 + $0x148] sm:$0xff]
          %v639 = vld [vmem:[%s452 + $0x150] sm:$0xff]
          %v640 = vld [vmem:[%s452 + $0x158] sm:$0xff]
          %v641 = vld [vmem:[%s452 + $0x160] sm:$0xff]
          %v642 = vld [vmem:[%s452 + $0x168] sm:$0xff]
          %v643 = vld [vmem:[%s452 + $0x170] sm:$0xff]
          %v644 = vld [vmem:[%s452 + $0x178] sm:$0xff]
          %v645 = vld [vmem:[%s452 + $0x180] sm:$0xff]
          %v646 = vld [vmem:[%s452 + $0x188] sm:$0xff]
          %v647 = vld [vmem:[%s452 + $0x190] sm:$0xff]
          %v648 = vld [vmem:[%s452 + $0x198] sm:$0xff]
          %v649 = vld [vmem:[%s452 + $0x1a0] sm:$0xff]
          %v650 = vld [vmem:[%s452 + $0x1a8] sm:$0xff]
          %v651 = vld [vmem:[%s452 + $0x1b0] sm:$0xff]
          %v652 = vld [vmem:[%s452 + $0x1b8] sm:$0xff]
          %v653 = vld [vmem:[%s452 + $0x1c0] sm:$0xff]
          %v654 = vld [vmem:[%s452 + $0x1c8] sm:$0xff]
          %v655 = vld [vmem:[%s452 + $0x1d0] sm:$0xff]
          %v656 = vld [vmem:[%s452 + $0x1d8] sm:$0xff]
          %v657 = vld [vmem:[%s452 + $0x1e0] sm:$0xff]
          %v658 = vld [vmem:[%s452 + $0x1e8] sm:$0xff]
          %v659 = vld [vmem:[%s452 + $0x1f0] sm:$0xff]
          %v660 = vld [vmem:[%s452 + $0x1f8] sm:$0xff]
          %v661 = vld [vmem:[%s452 + $0x200] sm:$0xff]
          %v662 = vld [vmem:[%s452 + $0x208] sm:$0xff]
          %v663 = vld [vmem:[%s452 + $0x210] sm:$0xff]
          %v664 = vld [vmem:[%s452 + $0x218] sm:$0xff]
          %v665 = vld [vmem:[%s452 + $0x220] sm:$0xff]
          %v666 = vld [vmem:[%s452 + $0x228] sm:$0xff]
          %v667 = vld [vmem:[%s452 + $0x230] sm:$0xff]
          %v668 = vld [vmem:[%s452 + $0x238] sm:$0xff]
          %v669 = vld [vmem:[%s452 + $0x240] sm:$0xff]
          %v670 = vld [vmem:[%s452 + $0x248] sm:$0xff]
          %v671 = vld [vmem:[%s452 + $0x250] sm:$0xff]
          %v672 = vld [vmem:[%s452 + $0x258] sm:$0xff]
          %v673 = vld [vmem:[%s452 + $0x260] sm:$0xff]
          %v674 = vld [vmem:[%s452 + $0x268] sm:$0xff]
          %v675 = vld [vmem:[%s452 + $0x270] sm:$0xff]
          %v676 = vld [vmem:[%s452 + $0x278] sm:$0xff]
          %v677 = vld [vmem:[%s452 + $0x280] sm:$0xff]
          %v678 = vld [vmem:[%s452 + $0x288] sm:$0xff]
          %v679 = vld [vmem:[%s452 + $0x290] sm:$0xff]
          %v680 = vld [vmem:[%s452 + $0x298] sm:$0xff]
          %v681 = vld [vmem:[%s452 + $0x2a0] sm:$0xff]
          %v682 = vld [vmem:[%s452 + $0x2a8] sm:$0xff]
          %v683 = vld [vmem:[%s452 + $0x2b0] sm:$0xff]
          %v684 = vld [vmem:[%s452 + $0x2b8] sm:$0xff]
          %v685 = vld [vmem:[%s452 + $0x2c0] sm:$0xff]
          %v686 = vld [vmem:[%s452 + $0x2c8] sm:$0xff]
          %v687 = vld [vmem:[%s452 + $0x2d0] sm:$0xff]
          %v688 = vld [vmem:[%s452 + $0x2d8] sm:$0xff]
          %v689 = vld [vmem:[%s452 + $0x2e0] sm:$0xff]
          %v690 = vld [vmem:[%s452 + $0x2e8] sm:$0xff]
          %v691 = vld [vmem:[%s452 + $0x2f0] sm:$0xff]
          %v692 = vld [vmem:[%s452 + $0x2f8] sm:$0xff]
          %v693 = vld [vmem:[%s452 + $0x300] sm:$0xff]
          %v694 = vld [vmem:[%s452 + $0x308] sm:$0xff]
          %v695 = vld [vmem:[%s452 + $0x310] sm:$0xff]
          %v696 = vld [vmem:[%s452 + $0x318] sm:$0xff]
          %v697 = vld [vmem:[%s452 + $0x320] sm:$0xff]
          %v698 = vld [vmem:[%s452 + $0x328] sm:$0xff]
          %v699 = vld [vmem:[%s452 + $0x330] sm:$0xff]
          %v700 = vld [vmem:[%s452 + $0x338] sm:$0xff]
          %v701 = vld [vmem:[%s452 + $0x340] sm:$0xff]
          %v702 = vld [vmem:[%s452 + $0x348] sm:$0xff]
          %v703 = vld [vmem:[%s452 + $0x350] sm:$0xff]
          %v704 = vld [vmem:[%s452 + $0x358] sm:$0xff]
          %v705 = vld [vmem:[%s452 + $0x360] sm:$0xff]
          %v706 = vld [vmem:[%s452 + $0x368] sm:$0xff]
          %v707 = vld [vmem:[%s452 + $0x370] sm:$0xff]
          %v708 = vld [vmem:[%s452 + $0x378] sm:$0xff]
          %v709 = vld [vmem:[%s452 + $0x380] sm:$0xff]
          %v710 = vld [vmem:[%s452 + $0x388] sm:$0xff]
          %v711 = vld [vmem:[%s452 + $0x390] sm:$0xff]
          %v712 = vld [vmem:[%s452 + $0x398] sm:$0xff]
          %v713 = vld [vmem:[%s452 + $0x3a0] sm:$0xff]
          %v714 = vld [vmem:[%s452 + $0x3a8] sm:$0xff]
          %v715 = vld [vmem:[%s452 + $0x3b0] sm:$0xff]
          %v716 = vld [vmem:[%s452 + $0x3b8] sm:$0xff]
          %v717 = vld [vmem:[%s452 + $0x3c0] sm:$0xff]
          %v718 = vld [vmem:[%s452 + $0x3c8] sm:$0xff]
          %v719 = vld [vmem:[%s452 + $0x3d0] sm:$0xff]
          %v720 = vld [vmem:[%s452 + $0x3d8] sm:$0xff]
          %v721 = vld [vmem:[%s452 + $0x3e0] sm:$0xff]
          %v722 = vld [vmem:[%s452 + $0x3e8] sm:$0xff]
          %v723 = vld [vmem:[%s452 + $0x3f0] sm:$0xff]
          %v724 = vld [vmem:[%s452 + $0x3f8] sm:$0xff]
          %v725 = vld [vmem:[%s452 + $0x400] sm:$0xff]
          %v726 = vld [vmem:[%s452 + $0x408] sm:$0xff]
          %v727 = vld [vmem:[%s452 + $0x410] sm:$0xff]
          %v728 = vld [vmem:[%s452 + $0x418] sm:$0xff]
          %v729 = vld [vmem:[%s452 + $0x420] sm:$0xff]
          %v730 = vld [vmem:[%s452 + $0x428] sm:$0xff]
          %v731 = vld [vmem:[%s452 + $0x430] sm:$0xff]
          %v732 = vld [vmem:[%s452 + $0x438] sm:$0xff]
          %v733 = vld [vmem:[%s452 + $0x440] sm:$0xff]
          %v734 = vld [vmem:[%s452 + $0x448] sm:$0xff]
          %v735 = vld [vmem:[%s452 + $0x450] sm:$0xff]
          %v736 = vld [vmem:[%s452 + $0x458] sm:$0xff]
          %v737 = vld [vmem:[%s452 + $0x460] sm:$0xff]
          %v738 = vld [vmem:[%s452 + $0x468] sm:$0xff]
          %v739 = vld [vmem:[%s452 + $0x470] sm:$0xff]
          %v740 = vld [vmem:[%s452 + $0x478] sm:$0xff]
          %v741 = vld [vmem:[%s452 + $0x480] sm:$0xff]
          %v742 = vld [vmem:[%s452 + $0x488] sm:$0xff]
          %v743 = vld [vmem:[%s452 + $0x490] sm:$0xff]
          %v744 = vld [vmem:[%s452 + $0x498] sm:$0xff]
          %v745 = vld [vmem:[%s452 + $0x4a0] sm:$0xff]
          %v746 = vld [vmem:[%s452 + $0x4a8] sm:$0xff]
          %v747 = vld [vmem:[%s452 + $0x4b0] sm:$0xff]
          %v748 = vld [vmem:[%s452 + $0x4b8] sm:$0xff]
          %v749 = vld [vmem:[%s452 + $0x4c0] sm:$0xff]
          %v750 = vld [vmem:[%s452 + $0x4c8] sm:$0xff]
          %v751 = vld [vmem:[%s452 + $0x4d0] sm:$0xff]
          %v752 = vld [vmem:[%s452 + $0x4d8] sm:$0xff]
          %v753 = vld [vmem:[%s452 + $0x4e0] sm:$0xff]
          %v754 = vld [vmem:[%s452 + $0x4e8] sm:$0xff]
          %v755 = vld [vmem:[%s452 + $0x4f0] sm:$0xff]
          %v756 = vld [vmem:[%s452 + $0x4f8] sm:$0xff]
          %v757 = vld [vmem:[%s452 + $0x500] sm:$0xff]
          %v758 = vld [vmem:[%s452 + $0x508] sm:$0xff]
          %v759 = vld [vmem:[%s452 + $0x510] sm:$0xff]
          %v760 = vld [vmem:[%s452 + $0x518] sm:$0xff]
          %v761 = vld [vmem:[%s452 + $0x520] sm:$0xff]
          %v762 = vld [vmem:[%s452 + $0x528] sm:$0xff]
          %v763 = vld [vmem:[%s452 + $0x530] sm:$0xff]
          %v764 = vld [vmem:[%s452 + $0x538] sm:$0xff]
          %v765 = vld [vmem:[%s452 + $0x540] sm:$0xff]
          %v766 = vld [vmem:[%s452 + $0x548] sm:$0xff]
          %v767 = vld [vmem:[%s452 + $0x550] sm:$0xff]
          %v768 = vld [vmem:[%s452 + $0x558] sm:$0xff]
          %v769 = vld [vmem:[%s452 + $0x560] sm:$0xff]
          %v770 = vld [vmem:[%s452 + $0x568] sm:$0xff]
          %v771 = vld [vmem:[%s452 + $0x570] sm:$0xff]
          %v772 = vld [vmem:[%s452 + $0x578] sm:$0xff]
          %v773 = vld [vmem:[%s452 + $0x580] sm:$0xff]
          %v774 = vld [vmem:[%s452 + $0x588] sm:$0xff]
          %v775 = vld [vmem:[%s452 + $0x590] sm:$0xff]
          %v776 = vld [vmem:[%s452 + $0x598] sm:$0xff]
          %v777 = vld [vmem:[%s452 + $0x5a0] sm:$0xff]
          %v778 = vld [vmem:[%s452 + $0x5a8] sm:$0xff]
          %v779 = vld [vmem:[%s452 + $0x5b0] sm:$0xff]
          %v780 = vld [vmem:[%s452 + $0x5b8] sm:$0xff]
          %v781 = vld [vmem:[%s452 + $0x5c0] sm:$0xff]
          %v782 = vld [vmem:[%s452 + $0x5c8] sm:$0xff]
          %v783 = vld [vmem:[%s452 + $0x5d0] sm:$0xff]
          %v784 = vld [vmem:[%s452 + $0x5d8] sm:$0xff]
          %v785 = vld [vmem:[%s452 + $0x5e0] sm:$0xff]
          %v786 = vld [vmem:[%s452 + $0x5e8] sm:$0xff]
          %v787 = vld [vmem:[%s452 + $0x5f0] sm:$0xff]
          %v788 = vld [vmem:[%s452 + $0x5f8] sm:$0xff]
          %v789 = vld [vmem:[%s452 + $0x600] sm:$0xff]
          %v790 = vld [vmem:[%s452 + $0x608] sm:$0xff]
          %v791 = vld [vmem:[%s452 + $0x610] sm:$0xff]
          %v792 = vld [vmem:[%s452 + $0x618] sm:$0xff]
          %v793 = vld [vmem:[%s452 + $0x620] sm:$0xff]
          %v794 = vld [vmem:[%s452 + $0x628] sm:$0xff]
          %v795 = vld [vmem:[%s452 + $0x630] sm:$0xff]
          %v796 = vld [vmem:[%s452 + $0x638] sm:$0xff]
          %v797 = vld [vmem:[%s452 + $0x640] sm:$0xff]
          %v798 = vld [vmem:[%s452 + $0x648] sm:$0xff]
          %v799 = vld [vmem:[%s452 + $0x650] sm:$0xff]
          %v800 = vld [vmem:[%s452 + $0x658] sm:$0xff]
          %v801 = vld [vmem:[%s452 + $0x660] sm:$0xff]
          %v802 = vld [vmem:[%s452 + $0x668] sm:$0xff]
          %v803 = vld [vmem:[%s452 + $0x670] sm:$0xff]
          %v804 = vld [vmem:[%s452 + $0x678] sm:$0xff]
          %v805 = vld [vmem:[%s452 + $0x680] sm:$0xff]
          %v806 = vld [vmem:[%s452 + $0x688] sm:$0xff]
          %v807 = vld [vmem:[%s452 + $0x690] sm:$0xff]
          %v808 = vld [vmem:[%s452 + $0x698] sm:$0xff]
          %v809 = vld [vmem:[%s452 + $0x6a0] sm:$0xff]
          %v810 = vld [vmem:[%s452 + $0x6a8] sm:$0xff]
          %v811 = vld [vmem:[%s452 + $0x6b0] sm:$0xff]
          %v812 = vld [vmem:[%s452 + $0x6b8] sm:$0xff]
          %v813 = vld [vmem:[%s452 + $0x6c0] sm:$0xff]
          %v814 = vld [vmem:[%s452 + $0x6c8] sm:$0xff]
          %v815 = vld [vmem:[%s452 + $0x6d0] sm:$0xff]
          %v816 = vld [vmem:[%s452 + $0x6d8] sm:$0xff]
          %v817 = vld [vmem:[%s452 + $0x6e0] sm:$0xff]
          %v818 = vld [vmem:[%s452 + $0x6e8] sm:$0xff]
          %v819 = vld [vmem:[%s452 + $0x6f0] sm:$0xff]
          %v820 = vld [vmem:[%s452 + $0x6f8] sm:$0xff]
          %v821 = vld [vmem:[%s452 + $0x700] sm:$0xff]
          %v822 = vld [vmem:[%s452 + $0x708] sm:$0xff]
          %v823 = vld [vmem:[%s452 + $0x710] sm:$0xff]
          %v824 = vld [vmem:[%s452 + $0x718] sm:$0xff]
          %v825 = vld [vmem:[%s452 + $0x720] sm:$0xff]
          %v826 = vld [vmem:[%s452 + $0x728] sm:$0xff]
          %v827 = vld [vmem:[%s452 + $0x730] sm:$0xff]
          %v828 = vld [vmem:[%s452 + $0x738] sm:$0xff]
          %v829 = vld [vmem:[%s452 + $0x740] sm:$0xff]
          %v830 = vld [vmem:[%s452 + $0x748] sm:$0xff]
          %v831 = vld [vmem:[%s452 + $0x750] sm:$0xff]
          %v832 = vld [vmem:[%s452 + $0x758] sm:$0xff]
          %v833 = vld [vmem:[%s452 + $0x760] sm:$0xff]
          %v834 = vld [vmem:[%s452 + $0x768] sm:$0xff]
          %v835 = vld [vmem:[%s452 + $0x770] sm:$0xff]
          %v836 = vld [vmem:[%s452 + $0x778] sm:$0xff]
          %v837 = vld [vmem:[%s452 + $0x780] sm:$0xff]
          %v838 = vld [vmem:[%s452 + $0x788] sm:$0xff]
          %v839 = vld [vmem:[%s452 + $0x790] sm:$0xff]
          %v840 = vld [vmem:[%s452 + $0x798] sm:$0xff]
          %v841 = vld [vmem:[%s452 + $0x7a0] sm:$0xff]
          %v842 = vld [vmem:[%s452 + $0x7a8] sm:$0xff]
          %v843 = vld [vmem:[%s452 + $0x7b0] sm:$0xff]
          %v844 = vld [vmem:[%s452 + $0x7b8] sm:$0xff]
          %v845 = vld [vmem:[%s452 + $0x7c0] sm:$0xff]
          %v846 = vld [vmem:[%s452 + $0x7c8] sm:$0xff]
          %v847 = vld [vmem:[%s452 + $0x7d0] sm:$0xff]
          %v848 = vld [vmem:[%s452 + $0x7d8] sm:$0xff]
          %v849 = vld [vmem:[%s452 + $0x7e0] sm:$0xff]
          %v850 = vld [vmem:[%s452 + $0x7e8] sm:$0xff]
          %v851 = vld [vmem:[%s452 + $0x7f0] sm:$0xff]
          %v852 = vld [vmem:[%s452 + $0x7f8] sm:$0xff]
          %v853 = vld [vmem:[%s452 + $0x800] sm:$0xff]
          %v854 = vld [vmem:[%s452 + $0x808] sm:$0xff]
          %v855 = vld [vmem:[%s452 + $0x810] sm:$0xff]
          %v856 = vld [vmem:[%s452 + $0x818] sm:$0xff]
          %v857 = vld [vmem:[%s452 + $0x820] sm:$0xff]
          %v858 = vld [vmem:[%s452 + $0x828] sm:$0xff]
          %v859 = vld [vmem:[%s452 + $0x830] sm:$0xff]
          %v860 = vld [vmem:[%s452 + $0x838] sm:$0xff]
          %v861 = vld [vmem:[%s452 + $0x840] sm:$0xff]
          %v862 = vld [vmem:[%s452 + $0x848] sm:$0xff]
          %v863 = vld [vmem:[%s452 + $0x850] sm:$0xff]
          %v864 = vld [vmem:[%s452 + $0x858] sm:$0xff]
          %v865 = vld [vmem:[%s452 + $0x860] sm:$0xff]
          %v866 = vld [vmem:[%s452 + $0x868] sm:$0xff]
          %v867 = vld [vmem:[%s452 + $0x870] sm:$0xff]
          %v868 = vld [vmem:[%s452 + $0x878] sm:$0xff]
          %v869 = vld [vmem:[%s452 + $0x880] sm:$0xff]
          %v870 = vld [vmem:[%s452 + $0x888] sm:$0xff]
          %v871 = vld [vmem:[%s452 + $0x890] sm:$0xff]
          %v872 = vld [vmem:[%s452 + $0x898] sm:$0xff]
          %v873 = vld [vmem:[%s452 + $0x8a0] sm:$0xff]
          %v874 = vld [vmem:[%s452 + $0x8a8] sm:$0xff]
          %v875 = vld [vmem:[%s452 + $0x8b0] sm:$0xff]
          %v876 = vld [vmem:[%s452 + $0x8b8] sm:$0xff]
          %v877 = vld [vmem:[%s452 + $0x8c0] sm:$0xff]
          %v878 = vld [vmem:[%s452 + $0x8c8] sm:$0xff]
          %v879 = vld [vmem:[%s452 + $0x8d0] sm:$0xff]
          %v880 = vld [vmem:[%s452 + $0x8d8] sm:$0xff]
          %v881 = vld [vmem:[%s452 + $0x8e0] sm:$0xff]
          %v882 = vld [vmem:[%s452 + $0x8e8] sm:$0xff]
          %v883 = vld [vmem:[%s452 + $0x8f0] sm:$0xff]
          %v884 = vld [vmem:[%s452 + $0x8f8] sm:$0xff]
          %v885 = vld [vmem:[%s452 + $0x900] sm:$0xff]
          %v886 = vld [vmem:[%s452 + $0x908] sm:$0xff]
          %v887 = vld [vmem:[%s452 + $0x910] sm:$0xff]
          %v888 = vld [vmem:[%s452 + $0x918] sm:$0xff]
          %v889 = vld [vmem:[%s452 + $0x920] sm:$0xff]
          %v890 = vld [vmem:[%s452 + $0x928] sm:$0xff]
          %v891 = vld [vmem:[%s452 + $0x930] sm:$0xff]
          %v892 = vld [vmem:[%s452 + $0x938] sm:$0xff]
          %v893 = vld [vmem:[%s452 + $0x940] sm:$0xff]
          %v894 = vld [vmem:[%s452 + $0x948] sm:$0xff]
          %v895 = vld [vmem:[%s452 + $0x950] sm:$0xff]
          %v896 = vld [vmem:[%s452 + $0x958] sm:$0xff]
          %v897 = vld [vmem:[%s452 + $0x960] sm:$0xff]
          %v898 = vld [vmem:[%s452 + $0x968] sm:$0xff]
          %v899 = vld [vmem:[%s452 + $0x970] sm:$0xff]
          %v900 = vld [vmem:[%s452 + $0x978] sm:$0xff]
          %v901 = vld [vmem:[%s452 + $0x980] sm:$0xff]
          %v902 = vld [vmem:[%s452 + $0x988] sm:$0xff]
          %v903 = vld [vmem:[%s452 + $0x990] sm:$0xff]
          %v904 = vld [vmem:[%s452 + $0x998] sm:$0xff]
          %v905 = vld [vmem:[%s452 + $0x9a0] sm:$0xff]
          %v906 = vld [vmem:[%s452 + $0x9a8] sm:$0xff]
          %v907 = vld [vmem:[%s452 + $0x9b0] sm:$0xff]
          %v908 = vld [vmem:[%s452 + $0x9b8] sm:$0xff]
          %v909 = vld [vmem:[%s452 + $0x9c0] sm:$0xff]
          %v910 = vld [vmem:[%s452 + $0x9c8] sm:$0xff]
          %v911 = vld [vmem:[%s452 + $0x9d0] sm:$0xff]
          %v912 = vld [vmem:[%s452 + $0x9d8] sm:$0xff]
          %v913 = vld [vmem:[%s452 + $0x9e0] sm:$0xff]
          %v914 = vld [vmem:[%s452 + $0x9e8] sm:$0xff]
          %v915 = vld [vmem:[%s452 + $0x9f0] sm:$0xff]
          %v916 = vld [vmem:[%s452 + $0x9f8] sm:$0xff]
          %v917 = vld [vmem:[%s452 + $0xa00] sm:$0xff]
          %v918 = vld [vmem:[%s452 + $0xa08] sm:$0xff]
          %v919 = vld [vmem:[%s452 + $0xa10] sm:$0xff]
          %v920 = vld [vmem:[%s452 + $0xa18] sm:$0xff]
          %v921 = vld [vmem:[%s452 + $0xa20] sm:$0xff]
          %v922 = vld [vmem:[%s452 + $0xa28] sm:$0xff]
          %v923 = vld [vmem:[%s452 + $0xa30] sm:$0xff]
          %v924 = vld [vmem:[%s452 + $0xa38] sm:$0xff]
          %v925 = vld [vmem:[%s452 + $0xa40] sm:$0xff]
          %v926 = vld [vmem:[%s452 + $0xa48] sm:$0xff]
          %v927 = vld [vmem:[%s452 + $0xa50] sm:$0xff]
          %v928 = vld [vmem:[%s452 + $0xa58] sm:$0xff]
          %v929 = vld [vmem:[%s452 + $0xa60] sm:$0xff]
          %v930 = vld [vmem:[%s452 + $0xa68] sm:$0xff]
          %v931 = vld [vmem:[%s452 + $0xa70] sm:$0xff]
          %v932 = vld [vmem:[%s452 + $0xa78] sm:$0xff]
          %v933 = vld [vmem:[%s452 + $0xa80] sm:$0xff]
          %v934 = vld [vmem:[%s452 + $0xa88] sm:$0xff]
          %v935 = vld [vmem:[%s452 + $0xa90] sm:$0xff]
          %v936 = vld [vmem:[%s452 + $0xa98] sm:$0xff]
          %v937 = vld [vmem:[%s452 + $0xaa0] sm:$0xff]
          %v938 = vld [vmem:[%s452 + $0xaa8] sm:$0xff]
          %v939 = vld [vmem:[%s452 + $0xab0] sm:$0xff]
          %v940 = vld [vmem:[%s452 + $0xab8] sm:$0xff]
          %v941 = vld [vmem:[%s452 + $0xac0] sm:$0xff]
          %v942 = vld [vmem:[%s452 + $0xac8] sm:$0xff]
          %v943 = vld [vmem:[%s452 + $0xad0] sm:$0xff]
          %v944 = vld [vmem:[%s452 + $0xad8] sm:$0xff]
          %v945 = vld [vmem:[%s452 + $0xae0] sm:$0xff]
          %v946 = vld [vmem:[%s452 + $0xae8] sm:$0xff]
          %v947 = vld [vmem:[%s452 + $0xaf0] sm:$0xff]
          %v948 = vld [vmem:[%s452 + $0xaf8] sm:$0xff]
          %v949 = vld [vmem:[%s452 + $0xb00] sm:$0xff]
          %v950 = vld [vmem:[%s452 + $0xb08] sm:$0xff]
          %v951 = vld [vmem:[%s452 + $0xb10] sm:$0xff]
          %v952 = vld [vmem:[%s452 + $0xb18] sm:$0xff]
          %v953 = vld [vmem:[%s452 + $0xb20] sm:$0xff]
          %v954 = vld [vmem:[%s452 + $0xb28] sm:$0xff]
          %v955 = vld [vmem:[%s452 + $0xb30] sm:$0xff]
          %v956 = vld [vmem:[%s452 + $0xb38] sm:$0xff]
          %v957 = vld [vmem:[%s452 + $0xb40] sm:$0xff]
          %v958 = vld [vmem:[%s452 + $0xb48] sm:$0xff]
          %v959 = vld [vmem:[%s452 + $0xb50] sm:$0xff]
          %v960 = vld [vmem:[%s452 + $0xb58] sm:$0xff]
          %v961 = vld [vmem:[%s452 + $0xb60] sm:$0xff]
          %v962 = vld [vmem:[%s452 + $0xb68] sm:$0xff]
          %v963 = vld [vmem:[%s452 + $0xb70] sm:$0xff]
          %v964 = vld [vmem:[%s452 + $0xb78] sm:$0xff]
          %v965 = vld [vmem:[%s452 + $0xb80] sm:$0xff]
          %v966 = vld [vmem:[%s452 + $0xb88] sm:$0xff]
          %v967 = vld [vmem:[%s452 + $0xb90] sm:$0xff]
          %v968 = vld [vmem:[%s452 + $0xb98] sm:$0xff]
          %v969 = vld [vmem:[%s452 + $0xba0] sm:$0xff]
          %v970 = vld [vmem:[%s452 + $0xba8] sm:$0xff]
          %v971 = vld [vmem:[%s452 + $0xbb0] sm:$0xff]
          %v972 = vld [vmem:[%s452 + $0xbb8] sm:$0xff]
          %v973 = vld [vmem:[%s452 + $0xbc0] sm:$0xff]
          %v974 = vld [vmem:[%s452 + $0xbc8] sm:$0xff]
          %v975 = vld [vmem:[%s452 + $0xbd0] sm:$0xff]
          %v976 = vld [vmem:[%s452 + $0xbd8] sm:$0xff]
          %v977 = vld [vmem:[%s452 + $0xbe0] sm:$0xff]
          %v978 = vld [vmem:[%s452 + $0xbe8] sm:$0xff]
          %v979 = vld [vmem:[%s452 + $0xbf0] sm:$0xff]
          %v980 = vld [vmem:[%s452 + $0xbf8] sm:$0xff]
          %v981 = vld [vmem:[%s452 + $0xc00] sm:$0xff]
          %v982 = vld [vmem:[%s452 + $0xc08] sm:$0xff]
          %v983 = vld [vmem:[%s452 + $0xc10] sm:$0xff]
          %v984 = vld [vmem:[%s452 + $0xc18] sm:$0xff]
          %v985 = vld [vmem:[%s452 + $0xc20] sm:$0xff]
          %v986 = vld [vmem:[%s452 + $0xc28] sm:$0xff]
          %v987 = vld [vmem:[%s452 + $0xc30] sm:$0xff]
          %v988 = vld [vmem:[%s452 + $0xc38] sm:$0xff]
          %v989 = vld [vmem:[%s452 + $0xc40] sm:$0xff]
          %v990 = vld [vmem:[%s452 + $0xc48] sm:$0xff]
          %v991 = vld [vmem:[%s452 + $0xc50] sm:$0xff]
          %v992 = vld [vmem:[%s452 + $0xc58] sm:$0xff]
          %v993 = vld [vmem:[%s452 + $0xc60] sm:$0xff]
          %v994 = vld [vmem:[%s452 + $0xc68] sm:$0xff]
          %v995 = vld [vmem:[%s452 + $0xc70] sm:$0xff]
          %v996 = vld [vmem:[%s452 + $0xc78] sm:$0xff]
          %v997 = vld [vmem:[%s452 + $0xc80] sm:$0xff]
          %v998 = vld [vmem:[%s452 + $0xc88] sm:$0xff]
          %v999 = vld [vmem:[%s452 + $0xc90] sm:$0xff]
          %v1000 = vld [vmem:[%s452 + $0xc98] sm:$0xff]
          %v1001 = vld [vmem:[%s452 + $0xca0] sm:$0xff]
          %v1002 = vld [vmem:[%s452 + $0xca8] sm:$0xff]
          %v1003 = vld [vmem:[%s452 + $0xcb0] sm:$0xff]
          %v1004 = vld [vmem:[%s452 + $0xcb8] sm:$0xff]
          %v1005 = vld [vmem:[%s452 + $0xcc0] sm:$0xff]
          %v1006 = vld [vmem:[%s452 + $0xcc8] sm:$0xff]
          %v1007 = vld [vmem:[%s452 + $0xcd0] sm:$0xff]
          %v1008 = vld [vmem:[%s452 + $0xcd8] sm:$0xff]
          %v1009 = vld [vmem:[%s452 + $0xce0] sm:$0xff]
          %v1010 = vld [vmem:[%s452 + $0xce8] sm:$0xff]
          %v1011 = vld [vmem:[%s452 + $0xcf0] sm:$0xff]
          %v1012 = vld [vmem:[%s452 + $0xcf8] sm:$0xff]
          %v1013 = vld [vmem:[%s452 + $0xd00] sm:$0xff]
          %v1014 = vld [vmem:[%s452 + $0xd08] sm:$0xff]
          %v1015 = vld [vmem:[%s452 + $0xd10] sm:$0xff]
          %v1016 = vld [vmem:[%s452 + $0xd18] sm:$0xff]
          %v1017 = vld [vmem:[%s452 + $0xd20] sm:$0xff]
          %v1018 = vld [vmem:[%s452 + $0xd28] sm:$0xff]
          %v1019 = vld [vmem:[%s452 + $0xd30] sm:$0xff]
          %v1020 = vld [vmem:[%s452 + $0xd38] sm:$0xff]
          %v1021 = vld [vmem:[%s452 + $0xd40] sm:$0xff]
          %v1022 = vld [vmem:[%s452 + $0xd48] sm:$0xff]
          %v1023 = vld [vmem:[%s452 + $0xd50] sm:$0xff]
          %v1024 = vld [vmem:[%s452 + $0xd58] sm:$0xff]
          %v1025 = vld [vmem:[%s452 + $0xd60] sm:$0xff]
          %v1026 = vld [vmem:[%s452 + $0xd68] sm:$0xff]
          %v1027 = vld [vmem:[%s452 + $0xd70] sm:$0xff]
          %v1028 = vld [vmem:[%s452 + $0xd78] sm:$0xff]
          %v1029 = vld [vmem:[%s452 + $0xd80] sm:$0xff]
          %v1030 = vld [vmem:[%s452 + $0xd88] sm:$0xff]
          %v1031 = vld [vmem:[%s452 + $0xd90] sm:$0xff]
          %v1032 = vld [vmem:[%s452 + $0xd98] sm:$0xff]
          %v1033 = vld [vmem:[%s452 + $0xda0] sm:$0xff]
          %v1034 = vld [vmem:[%s452 + $0xda8] sm:$0xff]
          %v1035 = vld [vmem:[%s452 + $0xdb0] sm:$0xff]
          %v1036 = vld [vmem:[%s452 + $0xdb8] sm:$0xff]
          %v1037 = vld [vmem:[%s452 + $0xdc0] sm:$0xff]
          %v1038 = vld [vmem:[%s452 + $0xdc8] sm:$0xff]
          %v1039 = vld [vmem:[%s452 + $0xdd0] sm:$0xff]
          %v1040 = vld [vmem:[%s452 + $0xdd8] sm:$0xff]
          %v1041 = vld [vmem:[%s452 + $0xde0] sm:$0xff]
          %v1042 = vld [vmem:[%s452 + $0xde8] sm:$0xff]
          %v1043 = vld [vmem:[%s452 + $0xdf0] sm:$0xff]
          %v1044 = vld [vmem:[%s452 + $0xdf8] sm:$0xff]
          %v1045 = vld [vmem:[%s452 + $0xe00] sm:$0xff]
          %v1046 = vld [vmem:[%s452 + $0xe08] sm:$0xff]
          %v1047 = vld [vmem:[%s452 + $0xe10] sm:$0xff]
          %v1048 = vld [vmem:[%s452 + $0xe18] sm:$0xff]
          %v1049 = vld [vmem:[%s452 + $0xe20] sm:$0xff]
          %v1050 = vld [vmem:[%s452 + $0xe28] sm:$0xff]
          %v1051 = vld [vmem:[%s452 + $0xe30] sm:$0xff]
          %v1052 = vld [vmem:[%s452 + $0xe38] sm:$0xff]
          %v1053 = vld [vmem:[%s452 + $0xe40] sm:$0xff]
          %v1054 = vld [vmem:[%s452 + $0xe48] sm:$0xff]
          %v1055 = vld [vmem:[%s452 + $0xe50] sm:$0xff]
          %v1056 = vld [vmem:[%s452 + $0xe58] sm:$0xff]
          %v1057 = vld [vmem:[%s452 + $0xe60] sm:$0xff]
          %v1058 = vld [vmem:[%s452 + $0xe68] sm:$0xff]
          %v1059 = vld [vmem:[%s452 + $0xe70] sm:$0xff]
          %v1060 = vld [vmem:[%s452 + $0xe78] sm:$0xff]
          %v1061 = vld [vmem:[%s452 + $0xe80] sm:$0xff]
          %v1062 = vld [vmem:[%s452 + $0xe88] sm:$0xff]
          %v1063 = vld [vmem:[%s452 + $0xe90] sm:$0xff]
          %v1064 = vld [vmem:[%s452 + $0xe98] sm:$0xff]
          %v1065 = vld [vmem:[%s452 + $0xea0] sm:$0xff]
          %v1066 = vld [vmem:[%s452 + $0xea8] sm:$0xff]
          %v1067 = vld [vmem:[%s452 + $0xeb0] sm:$0xff]
          %v1068 = vld [vmem:[%s452 + $0xeb8] sm:$0xff]
          %v1069 = vld [vmem:[%s452 + $0xec0] sm:$0xff]
          %v1070 = vld [vmem:[%s452 + $0xec8] sm:$0xff]
          %v1071 = vld [vmem:[%s452 + $0xed0] sm:$0xff]
          %v1072 = vld [vmem:[%s452 + $0xed8] sm:$0xff]
          %v1073 = vld [vmem:[%s452 + $0xee0] sm:$0xff]
          %v1074 = vld [vmem:[%s452 + $0xee8] sm:$0xff]
          %v1075 = vld [vmem:[%s452 + $0xef0] sm:$0xff]
          %v1076 = vld [vmem:[%s452 + $0xef8] sm:$0xff]
          %v1077 = vld [vmem:[%s452 + $0xf00] sm:$0xff]
          %v1078 = vld [vmem:[%s452 + $0xf08] sm:$0xff]
          %v1079 = vld [vmem:[%s452 + $0xf10] sm:$0xff]
          %v1080 = vld [vmem:[%s452 + $0xf18] sm:$0xff]
          %v1081 = vld [vmem:[%s452 + $0xf20] sm:$0xff]
          %v1082 = vld [vmem:[%s452 + $0xf28] sm:$0xff]
          %v1083 = vld [vmem:[%s452 + $0xf30] sm:$0xff]
          %v1084 = vld [vmem:[%s452 + $0xf38] sm:$0xff]
          %v1085 = vld [vmem:[%s452 + $0xf40] sm:$0xff]
          %v1086 = vld [vmem:[%s452 + $0xf48] sm:$0xff]
          %v1087 = vld [vmem:[%s452 + $0xf50] sm:$0xff]
          %v1088 = vld [vmem:[%s452 + $0xf58] sm:$0xff]
          %v1089 = vld [vmem:[%s452 + $0xf60] sm:$0xff]
          %v1090 = vld [vmem:[%s452 + $0xf68] sm:$0xff]
          %v1091 = vld [vmem:[%s452 + $0xf70] sm:$0xff]
          %v1092 = vld [vmem:[%s452 + $0xf78] sm:$0xff]
          %v1093 = vld [vmem:[%s452 + $0xf80] sm:$0xff]
          %v1094 = vld [vmem:[%s452 + $0xf88] sm:$0xff]
          %v1095 = vld [vmem:[%s452 + $0xf90] sm:$0xff]
          %v1096 = vld [vmem:[%s452 + $0xf98] sm:$0xff]
          %v1097 = vld [vmem:[%s452 + $0xfa0] sm:$0xff]
          %v1098 = vld [vmem:[%s452 + $0xfa8] sm:$0xff]
          %v1099 = vld [vmem:[%s452 + $0xfb0] sm:$0xff]
          %v1100 = vld [vmem:[%s452 + $0xfb8] sm:$0xff]
          %v1101 = vld [vmem:[%s452 + $0xfc0] sm:$0xff]
          %v1102 = vld [vmem:[%s452 + $0xfc8] sm:$0xff]
          %v1103 = vld [vmem:[%s452 + $0xfd0] sm:$0xff]
          %v1104 = vld [vmem:[%s452 + $0xfd8] sm:$0xff]
          %v1105 = vld [vmem:[%s452 + $0xfe0] sm:$0xff]
          %v1106 = vld [vmem:[%s452 + $0xfe8] sm:$0xff]
          %v1107 = vld [vmem:[%s452 + $0xff0] sm:$0xff]
          %v1108 = vld [vmem:[%s452 + $0xff8] sm:$0xff]
          %v1109 = vld [vmem:[%s452 + $0x1000] sm:$0xff]
          %v1110 = vld [vmem:[%s452 + $0x1008] sm:$0xff]
          %v1111 = vld [vmem:[%s452 + $0x1010] sm:$0xff]
          %v1112 = vld [vmem:[%s452 + $0x1018] sm:$0xff]
          %v1113 = vld [vmem:[%s452 + $0x1020] sm:$0xff]
          %v1114 = vld [vmem:[%s452 + $0x1028] sm:$0xff]
          %v1115 = vld [vmem:[%s452 + $0x1030] sm:$0xff]
          %v1116 = vld [vmem:[%s452 + $0x1038] sm:$0xff]
          %v1117 = vld [vmem:[%s452 + $0x1040] sm:$0xff]
          %v1118 = vld [vmem:[%s452 + $0x1048] sm:$0xff]
          %v1119 = vld [vmem:[%s452 + $0x1050] sm:$0xff]
          %v1120 = vld [vmem:[%s452 + $0x1058] sm:$0xff]
          %v1121 = vld [vmem:[%s452 + $0x1060] sm:$0xff]
          %v1122 = vld [vmem:[%s452 + $0x1068] sm:$0xff]
          %v1123 = vld [vmem:[%s452 + $0x1070] sm:$0xff]
          %v1124 = vld [vmem:[%s452 + $0x1078] sm:$0xff]
          %v1125 = vld [vmem:[%s452 + $0x1080] sm:$0xff]
          %v1126 = vld [vmem:[%s452 + $0x1088] sm:$0xff]
          %v1127 = vld [vmem:[%s452 + $0x1090] sm:$0xff]
          %v1128 = vld [vmem:[%s452 + $0x1098] sm:$0xff]
          %v1129 = vld [vmem:[%s452 + $0x10a0] sm:$0xff]
          %v1130 = vld [vmem:[%s452 + $0x10a8] sm:$0xff]
          %v1131 = vld [vmem:[%s452 + $0x10b0] sm:$0xff]
          %v1132 = vld [vmem:[%s452 + $0x10b8] sm:$0xff]
          %v1133 = vld [vmem:[%s452 + $0x10c0] sm:$0xff]
          %v1134 = vld [vmem:[%s452 + $0x10c8] sm:$0xff]
          %v1135 = vld [vmem:[%s452 + $0x10d0] sm:$0xff]
          %v1136 = vld [vmem:[%s452 + $0x10d8] sm:$0xff]
          %v1137 = vld [vmem:[%s452 + $0x10e0] sm:$0xff]
          %v1138 = vld [vmem:[%s452 + $0x10e8] sm:$0xff]
          %v1139 = vld [vmem:[%s452 + $0x10f0] sm:$0xff]
          %v1140 = vld [vmem:[%s452 + $0x10f8] sm:$0xff]
          %v1141 = vld [vmem:[%s452 + $0x1100] sm:$0xff]
          %v1142 = vld [vmem:[%s452 + $0x1108] sm:$0xff]
          %v1143 = vld [vmem:[%s452 + $0x1110] sm:$0xff]
          %v1144 = vld [vmem:[%s452 + $0x1118] sm:$0xff]
          %v1145 = vld [vmem:[%s452 + $0x1120] sm:$0xff]
          %v1146 = vld [vmem:[%s452 + $0x1128] sm:$0xff]
          %v1147 = vld [vmem:[%s452 + $0x1130] sm:$0xff]
          %v1148 = vld [vmem:[%s452 + $0x1138] sm:$0xff]
          %v1149 = vld [vmem:[%s452 + $0x1140] sm:$0xff]
          %v1150 = vld [vmem:[%s452 + $0x1148] sm:$0xff]
          %v1151 = vld [vmem:[%s452 + $0x1150] sm:$0xff]
          %v1152 = vld [vmem:[%s452 + $0x1158] sm:$0xff]
          %v1153 = vld [vmem:[%s452 + $0x1160] sm:$0xff]
          %v1154 = vld [vmem:[%s452 + $0x1168] sm:$0xff]
          %v1155 = vld [vmem:[%s452 + $0x1170] sm:$0xff]
          %v1156 = vld [vmem:[%s452 + $0x1178] sm:$0xff]
          %v1157 = vld [vmem:[%s452 + $0x1180] sm:$0xff]
          %v1158 = vld [vmem:[%s452 + $0x1188] sm:$0xff]
          %v1159 = vld [vmem:[%s452 + $0x1190] sm:$0xff]
          %v1160 = vld [vmem:[%s452 + $0x1198] sm:$0xff]
          %v1161 = vld [vmem:[%s452 + $0x11a0] sm:$0xff]
          %v1162 = vld [vmem:[%s452 + $0x11a8] sm:$0xff]
          %v1163 = vld [vmem:[%s452 + $0x11b0] sm:$0xff]
          %v1164 = vld [vmem:[%s452 + $0x11b8] sm:$0xff]
          %v1165 = vld [vmem:[%s452 + $0x11c0] sm:$0xff]
          %v1166 = vld [vmem:[%s452 + $0x11c8] sm:$0xff]
          %v1167 = vld [vmem:[%s452 + $0x11d0] sm:$0xff]
          %v1168 = vld [vmem:[%s452 + $0x11d8] sm:$0xff]
          %v1169 = vld [vmem:[%s452 + $0x11e0] sm:$0xff]
          %v1170 = vld [vmem:[%s452 + $0x11e8] sm:$0xff]
          %v1171 = vld [vmem:[%s452 + $0x11f0] sm:$0xff]
          %v1172 = vld [vmem:[%s452 + $0x11f8] sm:$0xff]
          %v1173 = vld [vmem:[%s452 + $0x1200] sm:$0xff]
          %v1174 = vld [vmem:[%s452 + $0x1208] sm:$0xff]
          %v1175 = vld [vmem:[%s452 + $0x1210] sm:$0xff]
          %v1176 = vld [vmem:[%s452 + $0x1218] sm:$0xff]
          %v1177 = vld [vmem:[%s452 + $0x1220] sm:$0xff]
          %v1178 = vld [vmem:[%s452 + $0x1228] sm:$0xff]
          %v1179 = vld [vmem:[%s452 + $0x1230] sm:$0xff]
          %v1180 = vld [vmem:[%s452 + $0x1238] sm:$0xff]
          %v1181 = vld [vmem:[%s452 + $0x1240] sm:$0xff]
          %v1182 = vld [vmem:[%s452 + $0x1248] sm:$0xff]
          %v1183 = vld [vmem:[%s452 + $0x1250] sm:$0xff]
          %v1184 = vld [vmem:[%s452 + $0x1258] sm:$0xff]
          %v1185 = vld [vmem:[%s452 + $0x1260] sm:$0xff]
          %v1186 = vld [vmem:[%s452 + $0x1268] sm:$0xff]
          %v1187 = vld [vmem:[%s452 + $0x1270] sm:$0xff]
          %v1188 = vld [vmem:[%s452 + $0x1278] sm:$0xff]
          %v1189 = vld [vmem:[%s452 + $0x1280] sm:$0xff]
          %v1190 = vld [vmem:[%s452 + $0x1288] sm:$0xff]
          %v1191 = vld [vmem:[%s452 + $0x1290] sm:$0xff]
          %v1192 = vld [vmem:[%s452 + $0x1298] sm:$0xff]
          %v1193 = vld [vmem:[%s452 + $0x12a0] sm:$0xff]
          %v1194 = vld [vmem:[%s452 + $0x12a8] sm:$0xff]
          %v1195 = vld [vmem:[%s452 + $0x12b0] sm:$0xff]
          %v1196 = vld [vmem:[%s452 + $0x12b8] sm:$0xff]
          %v1197 = vld [vmem:[%s452 + $0x12c0] sm:$0xff]
          %v1198 = vld [vmem:[%s452 + $0x12c8] sm:$0xff]
          %v1199 = vld [vmem:[%s452 + $0x12d0] sm:$0xff]
          %v1200 = vld [vmem:[%s452 + $0x12d8] sm:$0xff]
          %v1201 = vld [vmem:[%s452 + $0x12e0] sm:$0xff]
          %v1202 = vld [vmem:[%s452 + $0x12e8] sm:$0xff]
          %v1203 = vld [vmem:[%s452 + $0x12f0] sm:$0xff]
          %v1204 = vld [vmem:[%s452 + $0x12f8] sm:$0xff]
          %v1205 = vld [vmem:[%s452 + $0x1300] sm:$0xff]
          %v1206 = vld [vmem:[%s452 + $0x1308] sm:$0xff]
          %v1207 = vld [vmem:[%s452 + $0x1310] sm:$0xff]
          %v1208 = vld [vmem:[%s452 + $0x1318] sm:$0xff]
          %v1209 = vld [vmem:[%s452 + $0x1320] sm:$0xff]
          %v1210 = vld [vmem:[%s452 + $0x1328] sm:$0xff]
          %v1211 = vld [vmem:[%s452 + $0x1330] sm:$0xff]
          %v1212 = vld [vmem:[%s452 + $0x1338] sm:$0xff]
          %v1213 = vld [vmem:[%s452 + $0x1340] sm:$0xff]
          %v1214 = vld [vmem:[%s452 + $0x1348] sm:$0xff]
          %v1215 = vld [vmem:[%s452 + $0x1350] sm:$0xff]
          %v1216 = vld [vmem:[%s452 + $0x1358] sm:$0xff]
          %v1217 = vld [vmem:[%s452 + $0x1360] sm:$0xff]
          %v1218 = vld [vmem:[%s452 + $0x1368] sm:$0xff]
          %v1219 = vld [vmem:[%s452 + $0x1370] sm:$0xff]
          %v1220 = vld [vmem:[%s452 + $0x1378] sm:$0xff]
          %v1221 = vld [vmem:[%s452 + $0x1380] sm:$0xff]
          %v1222 = vld [vmem:[%s452 + $0x1388] sm:$0xff]
          %v1223 = vld [vmem:[%s452 + $0x1390] sm:$0xff]
          %v1224 = vld [vmem:[%s452 + $0x1398] sm:$0xff]
          %v1225 = vld [vmem:[%s452 + $0x13a0] sm:$0xff]
          %v1226 = vld [vmem:[%s452 + $0x13a8] sm:$0xff]
          %v1227 = vld [vmem:[%s452 + $0x13b0] sm:$0xff]
          %v1228 = vld [vmem:[%s452 + $0x13b8] sm:$0xff]
          %v1229 = vld [vmem:[%s452 + $0x13c0] sm:$0xff]
          %v1230 = vld [vmem:[%s452 + $0x13c8] sm:$0xff]
          %v1231 = vld [vmem:[%s452 + $0x13d0] sm:$0xff]
          %v1232 = vld [vmem:[%s452 + $0x13d8] sm:$0xff]
          %v1233 = vld [vmem:[%s452 + $0x13e0] sm:$0xff]
          %v1234 = vld [vmem:[%s452 + $0x13e8] sm:$0xff]
          %v1235 = vld [vmem:[%s452 + $0x13f0] sm:$0xff]
          %v1236 = vld [vmem:[%s452 + $0x13f8] sm:$0xff]
          %v1237 = vld [vmem:[%s452 + $0x1400] sm:$0xff]
          %v1238 = vld [vmem:[%s452 + $0x1408] sm:$0xff]
          %v1239 = vld [vmem:[%s452 + $0x1410] sm:$0xff]
          %v1240 = vld [vmem:[%s452 + $0x1418] sm:$0xff]
          %v1241 = vld [vmem:[%s452 + $0x1420] sm:$0xff]
          %v1242 = vld [vmem:[%s452 + $0x1428] sm:$0xff]
          %v1243 = vld [vmem:[%s452 + $0x1430] sm:$0xff]
          %v1244 = vld [vmem:[%s452 + $0x1438] sm:$0xff]
          %v1245 = vld [vmem:[%s452 + $0x1440] sm:$0xff]
          %v1246 = vld [vmem:[%s452 + $0x1448] sm:$0xff]
          %v1247 = vld [vmem:[%s452 + $0x1450] sm:$0xff]
          %v1248 = vld [vmem:[%s452 + $0x1458] sm:$0xff]
          %v1249 = vld [vmem:[%s452 + $0x1460] sm:$0xff]
          %v1250 = vld [vmem:[%s452 + $0x1468] sm:$0xff]
          %v1251 = vld [vmem:[%s452 + $0x1470] sm:$0xff]
          %v1252 = vld [vmem:[%s452 + $0x1478] sm:$0xff]
          %v1253 = vld [vmem:[%s452 + $0x1480] sm:$0xff]
          %v1254 = vld [vmem:[%s452 + $0x1488] sm:$0xff]
          %v1255 = vld [vmem:[%s452 + $0x1490] sm:$0xff]
          %v1256 = vld [vmem:[%s452 + $0x1498] sm:$0xff]
          %v1257 = vld [vmem:[%s452 + $0x14a0] sm:$0xff]
          %v1258 = vld [vmem:[%s452 + $0x14a8] sm:$0xff]
          %v1259 = vld [vmem:[%s452 + $0x14b0] sm:$0xff]
          %v1260 = vld [vmem:[%s452 + $0x14b8] sm:$0xff]
          %v1261 = vld [vmem:[%s452 + $0x14c0] sm:$0xff]
          %v1262 = vld [vmem:[%s452 + $0x14c8] sm:$0xff]
          %v1263 = vld [vmem:[%s452 + $0x14d0] sm:$0xff]
          %v1264 = vld [vmem:[%s452 + $0x14d8] sm:$0xff]
          %v1265 = vld [vmem:[%s452 + $0x14e0] sm:$0xff]
          %v1266 = vld [vmem:[%s452 + $0x14e8] sm:$0xff]
          %v1267 = vld [vmem:[%s452 + $0x14f0] sm:$0xff]
          %v1268 = vld [vmem:[%s452 + $0x14f8] sm:$0xff]
          %v1269 = vld [vmem:[%s452 + $0x1500] sm:$0xff]
          %v1270 = vld [vmem:[%s452 + $0x1508] sm:$0xff]
          %v1271 = vld [vmem:[%s452 + $0x1510] sm:$0xff]
          %v1272 = vld [vmem:[%s452 + $0x1518] sm:$0xff]
          %v1273 = vld [vmem:[%s452 + $0x1520] sm:$0xff]
          %v1274 = vld [vmem:[%s452 + $0x1528] sm:$0xff]
          %v1275 = vld [vmem:[%s452 + $0x1530] sm:$0xff]
          %v1276 = vld [vmem:[%s452 + $0x1538] sm:$0xff]
          %v1277 = vld [vmem:[%s452 + $0x1540] sm:$0xff]
          %v1278 = vld [vmem:[%s452 + $0x1548] sm:$0xff]
          %v1279 = vld [vmem:[%s452 + $0x1550] sm:$0xff]
          %v1280 = vld [vmem:[%s452 + $0x1558] sm:$0xff]
          %v1281 = vld [vmem:[%s452 + $0x1560] sm:$0xff]
          %v1282 = vld [vmem:[%s452 + $0x1568] sm:$0xff]
          %v1283 = vld [vmem:[%s452 + $0x1570] sm:$0xff]
          %v1284 = vld [vmem:[%s452 + $0x1578] sm:$0xff]
          %v1285 = vld [vmem:[%s452 + $0x1580] sm:$0xff]
          %v1286 = vld [vmem:[%s452 + $0x1588] sm:$0xff]
          %v1287 = vld [vmem:[%s452 + $0x1590] sm:$0xff]
          %v1288 = vld [vmem:[%s452 + $0x1598] sm:$0xff]
          %v1289 = vld [vmem:[%s452 + $0x15a0] sm:$0xff]
          %v1290 = vld [vmem:[%s452 + $0x15a8] sm:$0xff]
          %v1291 = vld [vmem:[%s452 + $0x15b0] sm:$0xff]
          %v1292 = vld [vmem:[%s452 + $0x15b8] sm:$0xff]
          %v1293 = vld [vmem:[%s452 + $0x15c0] sm:$0xff]
          %v1294 = vld [vmem:[%s452 + $0x15c8] sm:$0xff]
          %v1295 = vld [vmem:[%s452 + $0x15d0] sm:$0xff]
          %v1296 = vld [vmem:[%s452 + $0x15d8] sm:$0xff]
          %v1297 = vld [vmem:[%s452 + $0x15e0] sm:$0xff]
          %v1298 = vld [vmem:[%s452 + $0x15e8] sm:$0xff]
          %v1299 = vld [vmem:[%s452 + $0x15f0] sm:$0xff]
          %v1300 = vld [vmem:[%s452 + $0x15f8] sm:$0xff]
          %v1301 = vld [vmem:[%s452 + $0x1600] sm:$0xff]
          %v1302 = vld [vmem:[%s452 + $0x1608] sm:$0xff]
          %v1303 = vld [vmem:[%s452 + $0x1610] sm:$0xff]
          %v1304 = vld [vmem:[%s452 + $0x1618] sm:$0xff]
          %v1305 = vld [vmem:[%s452 + $0x1620] sm:$0xff]
          %v1306 = vld [vmem:[%s452 + $0x1628] sm:$0xff]
          %v1307 = vld [vmem:[%s452 + $0x1630] sm:$0xff]
          %v1308 = vld [vmem:[%s452 + $0x1638] sm:$0xff]
          %v1309 = vld [vmem:[%s452 + $0x1640] sm:$0xff]
          %v1310 = vld [vmem:[%s452 + $0x1648] sm:$0xff]
          %v1311 = vld [vmem:[%s452 + $0x1650] sm:$0xff]
          %v1312 = vld [vmem:[%s452 + $0x1658] sm:$0xff]
          %v1313 = vld [vmem:[%s452 + $0x1660] sm:$0xff]
          %v1314 = vld [vmem:[%s452 + $0x1668] sm:$0xff]
          %v1315 = vld [vmem:[%s452 + $0x1670] sm:$0xff]
          %v1316 = vld [vmem:[%s452 + $0x1678] sm:$0xff]
          %v1317 = vld [vmem:[%s452 + $0x1680] sm:$0xff]
          %v1318 = vld [vmem:[%s452 + $0x1688] sm:$0xff]
          %v1319 = vld [vmem:[%s452 + $0x1690] sm:$0xff]
          %v1320 = vld [vmem:[%s452 + $0x1698] sm:$0xff]
          %v1321 = vld [vmem:[%s452 + $0x16a0] sm:$0xff]
          %v1322 = vld [vmem:[%s452 + $0x16a8] sm:$0xff]
          %v1323 = vld [vmem:[%s452 + $0x16b0] sm:$0xff]
          %v1324 = vld [vmem:[%s452 + $0x16b8] sm:$0xff]
          %v1325 = vld [vmem:[%s452 + $0x16c0] sm:$0xff]
          %v1326 = vld [vmem:[%s452 + $0x16c8] sm:$0xff]
          %v1327 = vld [vmem:[%s452 + $0x16d0] sm:$0xff]
          %v1328 = vld [vmem:[%s452 + $0x16d8] sm:$0xff]
          %v1329 = vld [vmem:[%s452 + $0x16e0] sm:$0xff]
          %v1330 = vld [vmem:[%s452 + $0x16e8] sm:$0xff]
          %v1331 = vld [vmem:[%s452 + $0x16f0] sm:$0xff]
          %v1332 = vld [vmem:[%s452 + $0x16f8] sm:$0xff]
          %v1333 = vld [vmem:[%s452 + $0x1700] sm:$0xff]
          %v1334 = vld [vmem:[%s452 + $0x1708] sm:$0xff]
          %v1335 = vld [vmem:[%s452 + $0x1710] sm:$0xff]
          %v1336 = vld [vmem:[%s452 + $0x1718] sm:$0xff]
          %v1337 = vld [vmem:[%s452 + $0x1720] sm:$0xff]
          %v1338 = vld [vmem:[%s452 + $0x1728] sm:$0xff]
          %v1339 = vld [vmem:[%s452 + $0x1730] sm:$0xff]
          %v1340 = vld [vmem:[%s452 + $0x1738] sm:$0xff]
          %v1341 = vld [vmem:[%s452 + $0x1740] sm:$0xff]
          %v1342 = vld [vmem:[%s452 + $0x1748] sm:$0xff]
          %v1343 = vld [vmem:[%s452 + $0x1750] sm:$0xff]
          %v1344 = vld [vmem:[%s452 + $0x1758] sm:$0xff]
          %v1345 = vld [vmem:[%s452 + $0x1760] sm:$0xff]
          %v1346 = vld [vmem:[%s452 + $0x1768] sm:$0xff]
          %v1347 = vld [vmem:[%s452 + $0x1770] sm:$0xff]
          %v1348 = vld [vmem:[%s452 + $0x1778] sm:$0xff]
          %v1349 = vld [vmem:[%s452 + $0x1780] sm:$0xff]
          %v1350 = vld [vmem:[%s452 + $0x1788] sm:$0xff]
          %v1351 = vld [vmem:[%s452 + $0x1790] sm:$0xff]
          %v1352 = vld [vmem:[%s452 + $0x1798] sm:$0xff]
          %v1353 = vld [vmem:[%s452 + $0x17a0] sm:$0xff]
          %v1354 = vld [vmem:[%s452 + $0x17a8] sm:$0xff]
          %v1355 = vld [vmem:[%s452 + $0x17b0] sm:$0xff]
          %v1356 = vld [vmem:[%s452 + $0x17b8] sm:$0xff]
          %v1357 = vld [vmem:[%s452 + $0x17c0] sm:$0xff]
          %v1358 = vld [vmem:[%s452 + $0x17c8] sm:$0xff]
          %v1359 = vld [vmem:[%s452 + $0x17d0] sm:$0xff]
          %v1360 = vld [vmem:[%s452 + $0x17d8] sm:$0xff]
          %v1361 = vld [vmem:[%s452 + $0x17e0] sm:$0xff]
          %v1362 = vld [vmem:[%s452 + $0x17e8] sm:$0xff]
          %v1363 = vld [vmem:[%s452 + $0x17f0] sm:$0xff]
          %v1364 = vld [vmem:[%s452 + $0x17f8] sm:$0xff]
          %v1365 = vld [vmem:[%s452 + $0x1800] sm:$0xff]
          %v1366 = vld [vmem:[%s452 + $0x1808] sm:$0xff]
          %v1367 = vld [vmem:[%s452 + $0x1810] sm:$0xff]
          %v1368 = vld [vmem:[%s452 + $0x1818] sm:$0xff]
          %v1369 = vld [vmem:[%s452 + $0x1820] sm:$0xff]
          %v1370 = vld [vmem:[%s452 + $0x1828] sm:$0xff]
          %v1371 = vld [vmem:[%s452 + $0x1830] sm:$0xff]
          %v1372 = vld [vmem:[%s452 + $0x1838] sm:$0xff]
          %v1373 = vld [vmem:[%s452 + $0x1840] sm:$0xff]
          %v1374 = vld [vmem:[%s452 + $0x1848] sm:$0xff]
          %v1375 = vld [vmem:[%s452 + $0x1850] sm:$0xff]
          %v1376 = vld [vmem:[%s452 + $0x1858] sm:$0xff]
          %v1377 = vld [vmem:[%s452 + $0x1860] sm:$0xff]
          %v1378 = vld [vmem:[%s452 + $0x1868] sm:$0xff]
          %v1379 = vld [vmem:[%s452 + $0x1870] sm:$0xff]
          %v1380 = vld [vmem:[%s452 + $0x1878] sm:$0xff]
          %v1381 = vld [vmem:[%s452 + $0x1880] sm:$0xff]
          %v1382 = vld [vmem:[%s452 + $0x1888] sm:$0xff]
          %v1383 = vld [vmem:[%s452 + $0x1890] sm:$0xff]
          %v1384 = vld [vmem:[%s452 + $0x1898] sm:$0xff]
          %v1385 = vld [vmem:[%s452 + $0x18a0] sm:$0xff]
          %v1386 = vld [vmem:[%s452 + $0x18a8] sm:$0xff]
          %v1387 = vld [vmem:[%s452 + $0x18b0] sm:$0xff]
          %v1388 = vld [vmem:[%s452 + $0x18b8] sm:$0xff]
          %v1389 = vld [vmem:[%s452 + $0x18c0] sm:$0xff]
          %v1390 = vld [vmem:[%s452 + $0x18c8] sm:$0xff]
          %v1391 = vld [vmem:[%s452 + $0x18d0] sm:$0xff]
          %v1392 = vld [vmem:[%s452 + $0x18d8] sm:$0xff]
          %v1393 = vld [vmem:[%s452 + $0x18e0] sm:$0xff]
          %v1394 = vld [vmem:[%s452 + $0x18e8] sm:$0xff]
          %v1395 = vld [vmem:[%s452 + $0x18f0] sm:$0xff]
          %v1396 = vld [vmem:[%s452 + $0x18f8] sm:$0xff]
          %v1397 = vld [vmem:[%s452 + $0x1900] sm:$0xff]
          %v1398 = vld [vmem:[%s452 + $0x1908] sm:$0xff]
          %v1399 = vld [vmem:[%s452 + $0x1910] sm:$0xff]
          %v1400 = vld [vmem:[%s452 + $0x1918] sm:$0xff]
          %v1401 = vld [vmem:[%s452 + $0x1920] sm:$0xff]
          %v1402 = vld [vmem:[%s452 + $0x1928] sm:$0xff]
          %v1403 = vld [vmem:[%s452 + $0x1930] sm:$0xff]
          %v1404 = vld [vmem:[%s452 + $0x1938] sm:$0xff]
          %v1405 = vld [vmem:[%s452 + $0x1940] sm:$0xff]
          %v1406 = vld [vmem:[%s452 + $0x1948] sm:$0xff]
          %v1407 = vld [vmem:[%s452 + $0x1950] sm:$0xff]
          %v1408 = vld [vmem:[%s452 + $0x1958] sm:$0xff]
          %v1409 = vld [vmem:[%s452 + $0x1960] sm:$0xff]
          %v1410 = vld [vmem:[%s452 + $0x1968] sm:$0xff]
          %v1411 = vld [vmem:[%s452 + $0x1970] sm:$0xff]
          %v1412 = vld [vmem:[%s452 + $0x1978] sm:$0xff]
          %v1413 = vld [vmem:[%s452 + $0x1980] sm:$0xff]
          %v1414 = vld [vmem:[%s452 + $0x1988] sm:$0xff]
          %v1415 = vld [vmem:[%s452 + $0x1990] sm:$0xff]
          %v1416 = vld [vmem:[%s452 + $0x1998] sm:$0xff]
          %v1417 = vld [vmem:[%s452 + $0x19a0] sm:$0xff]
          %v1418 = vld [vmem:[%s452 + $0x19a8] sm:$0xff]
          %v1419 = vld [vmem:[%s452 + $0x19b0] sm:$0xff]
          %v1420 = vld [vmem:[%s452 + $0x19b8] sm:$0xff]
          %v1421 = vld [vmem:[%s452 + $0x19c0] sm:$0xff]
          %v1422 = vld [vmem:[%s452 + $0x19c8] sm:$0xff]
          %v1423 = vld [vmem:[%s452 + $0x19d0] sm:$0xff]
          %v1424 = vld [vmem:[%s452 + $0x19d8] sm:$0xff]
          %v1425 = vld [vmem:[%s452 + $0x19e0] sm:$0xff]
          %v1426 = vld [vmem:[%s452 + $0x19e8] sm:$0xff]
          %v1427 = vld [vmem:[%s452 + $0x19f0] sm:$0xff]
          %v1428 = vld [vmem:[%s452 + $0x19f8] sm:$0xff]
          %v1429 = vld [vmem:[%s452 + $0x1a00] sm:$0xff]
          %v1430 = vld [vmem:[%s452 + $0x1a08] sm:$0xff]
          %v1431 = vld [vmem:[%s452 + $0x1a10] sm:$0xff]
          %v1432 = vld [vmem:[%s452 + $0x1a18] sm:$0xff]
          %v1433 = vld [vmem:[%s452 + $0x1a20] sm:$0xff]
          %v1434 = vld [vmem:[%s452 + $0x1a28] sm:$0xff]
          %v1435 = vld [vmem:[%s452 + $0x1a30] sm:$0xff]
          %v1436 = vld [vmem:[%s452 + $0x1a38] sm:$0xff]
          %v1437 = vld [vmem:[%s452 + $0x1a40] sm:$0xff]
          %v1438 = vld [vmem:[%s452 + $0x1a48] sm:$0xff]
          %v1439 = vld [vmem:[%s452 + $0x1a50] sm:$0xff]
          %v1440 = vld [vmem:[%s452 + $0x1a58] sm:$0xff]
          %v1441 = vld [vmem:[%s452 + $0x1a60] sm:$0xff]
          %v1442 = vld [vmem:[%s452 + $0x1a68] sm:$0xff]
          %v1443 = vld [vmem:[%s452 + $0x1a70] sm:$0xff]
          %v1444 = vld [vmem:[%s452 + $0x1a78] sm:$0xff]
          %v1445 = vld [vmem:[%s452 + $0x1a80] sm:$0xff]
          %v1446 = vld [vmem:[%s452 + $0x1a88] sm:$0xff]
          %v1447 = vld [vmem:[%s452 + $0x1a90] sm:$0xff]
          %v1448 = vld [vmem:[%s452 + $0x1a98] sm:$0xff]
          %v1449 = vld [vmem:[%s452 + $0x1aa0] sm:$0xff]
          %v1450 = vld [vmem:[%s452 + $0x1aa8] sm:$0xff]
          %v1451 = vld [vmem:[%s452 + $0x1ab0] sm:$0xff]
          %v1452 = vld [vmem:[%s452 + $0x1ab8] sm:$0xff]
          %v1453 = vld [vmem:[%s452 + $0x1ac0] sm:$0xff]
          %v1454 = vld [vmem:[%s452 + $0x1ac8] sm:$0xff]
          %v1455 = vld [vmem:[%s452 + $0x1ad0] sm:$0xff]
          %v1456 = vld [vmem:[%s452 + $0x1ad8] sm:$0xff]
          %v1457 = vld [vmem:[%s452 + $0x1ae0] sm:$0xff]
          %v1458 = vld [vmem:[%s452 + $0x1ae8] sm:$0xff]
          %v1459 = vld [vmem:[%s452 + $0x1af0] sm:$0xff]
          %v1460 = vld [vmem:[%s452 + $0x1af8] sm:$0xff]
          %v1461 = vld [vmem:[%s452 + $0x1b00] sm:$0xff]
          %v1462 = vld [vmem:[%s452 + $0x1b08] sm:$0xff]
          %v1463 = vld [vmem:[%s452 + $0x1b10] sm:$0xff]
          %v1464 = vld [vmem:[%s452 + $0x1b18] sm:$0xff]
          %v1465 = vld [vmem:[%s452 + $0x1b20] sm:$0xff]
          %v1466 = vld [vmem:[%s452 + $0x1b28] sm:$0xff]
          %v1467 = vld [vmem:[%s452 + $0x1b30] sm:$0xff]
          %v1468 = vld [vmem:[%s452 + $0x1b38] sm:$0xff]
          %v1469 = vld [vmem:[%s452 + $0x1b40] sm:$0xff]
          %v1470 = vld [vmem:[%s452 + $0x1b48] sm:$0xff]
          %v1471 = vld [vmem:[%s452 + $0x1b50] sm:$0xff]
          %v1472 = vld [vmem:[%s452 + $0x1b58] sm:$0xff]
          %v1473 = vld [vmem:[%s452 + $0x1b60] sm:$0xff]
          %v1474 = vld [vmem:[%s452 + $0x1b68] sm:$0xff]
          %v1475 = vld [vmem:[%s452 + $0x1b70] sm:$0xff]
          %v1476 = vld [vmem:[%s452 + $0x1b78] sm:$0xff]
          %v1477 = vld [vmem:[%s452 + $0x1b80] sm:$0xff]
          %v1478 = vld [vmem:[%s452 + $0x1b88] sm:$0xff]
          %v1479 = vld [vmem:[%s452 + $0x1b90] sm:$0xff]
          %v1480 = vld [vmem:[%s452 + $0x1b98] sm:$0xff]
          %v1481 = vld [vmem:[%s452 + $0x1ba0] sm:$0xff]
          %v1482 = vld [vmem:[%s452 + $0x1ba8] sm:$0xff]
          %v1483 = vld [vmem:[%s452 + $0x1bb0] sm:$0xff]
          %v1484 = vld [vmem:[%s452 + $0x1bb8] sm:$0xff]
          %v1485 = vld [vmem:[%s452 + $0x1bc0] sm:$0xff]
          %v1486 = vld [vmem:[%s452 + $0x1bc8] sm:$0xff]
          %v1487 = vld [vmem:[%s452 + $0x1bd0] sm:$0xff]
          %v1488 = vld [vmem:[%s452 + $0x1bd8] sm:$0xff]
          %v1489 = vld [vmem:[%s452 + $0x1be0] sm:$0xff]
          %v1490 = vld [vmem:[%s452 + $0x1be8] sm:$0xff]
          %v1491 = vld [vmem:[%s452 + $0x1bf0] sm:$0xff]
          %v1492 = vld [vmem:[%s452 + $0x1bf8] sm:$0xff]
          %v1493 = vld [vmem:[%s452 + $0x1c00] sm:$0xff]
          %v1494 = vld [vmem:[%s452 + $0x1c08] sm:$0xff]
          %v1495 = vld [vmem:[%s452 + $0x1c10] sm:$0xff]
          %v1496 = vld [vmem:[%s452 + $0x1c18] sm:$0xff]
          %v1497 = vld [vmem:[%s452 + $0x1c20] sm:$0xff]
          %v1498 = vld [vmem:[%s452 + $0x1c28] sm:$0xff]
          %v1499 = vld [vmem:[%s452 + $0x1c30] sm:$0xff]
          %v1500 = vld [vmem:[%s452 + $0x1c38] sm:$0xff]
          %v1501 = vld [vmem:[%s452 + $0x1c40] sm:$0xff]
          %v1502 = vld [vmem:[%s452 + $0x1c48] sm:$0xff]
          %v1503 = vld [vmem:[%s452 + $0x1c50] sm:$0xff]
          %v1504 = vld [vmem:[%s452 + $0x1c58] sm:$0xff]
          %v1505 = vld [vmem:[%s452 + $0x1c60] sm:$0xff]
          %v1506 = vld [vmem:[%s452 + $0x1c68] sm:$0xff]
          %v1507 = vld [vmem:[%s452 + $0x1c70] sm:$0xff]
          %v1508 = vld [vmem:[%s452 + $0x1c78] sm:$0xff]
          %v1509 = vld [vmem:[%s452 + $0x1c80] sm:$0xff]
          %v1510 = vld [vmem:[%s452 + $0x1c88] sm:$0xff]
          %v1511 = vld [vmem:[%s452 + $0x1c90] sm:$0xff]
          %v1512 = vld [vmem:[%s452 + $0x1c98] sm:$0xff]
          %v1513 = vld [vmem:[%s452 + $0x1ca0] sm:$0xff]
          %v1514 = vld [vmem:[%s452 + $0x1ca8] sm:$0xff]
          %v1515 = vld [vmem:[%s452 + $0x1cb0] sm:$0xff]
          %v1516 = vld [vmem:[%s452 + $0x1cb8] sm:$0xff]
          %v1517 = vld [vmem:[%s452 + $0x1cc0] sm:$0xff]
          %v1518 = vld [vmem:[%s452 + $0x1cc8] sm:$0xff]
          %v1519 = vld [vmem:[%s452 + $0x1cd0] sm:$0xff]
          %v1520 = vld [vmem:[%s452 + $0x1cd8] sm:$0xff]
          %v1521 = vld [vmem:[%s452 + $0x1ce0] sm:$0xff]
          %v1522 = vld [vmem:[%s452 + $0x1ce8] sm:$0xff]
          %v1523 = vld [vmem:[%s452 + $0x1cf0] sm:$0xff]
          %v1524 = vld [vmem:[%s452 + $0x1cf8] sm:$0xff]
          %v1525 = vld [vmem:[%s452 + $0x1d00] sm:$0xff]
          %v1526 = vld [vmem:[%s452 + $0x1d08] sm:$0xff]
          %v1527 = vld [vmem:[%s452 + $0x1d10] sm:$0xff]
          %v1528 = vld [vmem:[%s452 + $0x1d18] sm:$0xff]
          %v1529 = vld [vmem:[%s452 + $0x1d20] sm:$0xff]
          %v1530 = vld [vmem:[%s452 + $0x1d28] sm:$0xff]
          %v1531 = vld [vmem:[%s452 + $0x1d30] sm:$0xff]
          %v1532 = vld [vmem:[%s452 + $0x1d38] sm:$0xff]
          %v1533 = vld [vmem:[%s452 + $0x1d40] sm:$0xff]
          %v1534 = vld [vmem:[%s452 + $0x1d48] sm:$0xff]
          %v1535 = vld [vmem:[%s452 + $0x1d50] sm:$0xff]
          %v1536 = vld [vmem:[%s452 + $0x1d58] sm:$0xff]
          %v1537 = vld [vmem:[%s452 + $0x1d60] sm:$0xff]
          %v1538 = vld [vmem:[%s452 + $0x1d68] sm:$0xff]
          %v1539 = vld [vmem:[%s452 + $0x1d70] sm:$0xff]
          %v1540 = vld [vmem:[%s452 + $0x1d78] sm:$0xff]
          %v1541 = vld [vmem:[%s452 + $0x1d80] sm:$0xff]
          %v1542 = vld [vmem:[%s452 + $0x1d88] sm:$0xff]
          %v1543 = vld [vmem:[%s452 + $0x1d90] sm:$0xff]
          %v1544 = vld [vmem:[%s452 + $0x1d98] sm:$0xff]
          %v1545 = vld [vmem:[%s452 + $0x1da0] sm:$0xff]
          %v1546 = vld [vmem:[%s452 + $0x1da8] sm:$0xff]
          %v1547 = vld [vmem:[%s452 + $0x1db0] sm:$0xff]
          %v1548 = vld [vmem:[%s452 + $0x1db8] sm:$0xff]
          %v1549 = vld [vmem:[%s452 + $0x1dc0] sm:$0xff]
          %v1550 = vld [vmem:[%s452 + $0x1dc8] sm:$0xff]
          %v1551 = vld [vmem:[%s452 + $0x1dd0] sm:$0xff]
          %v1552 = vld [vmem:[%s452 + $0x1dd8] sm:$0xff]
          %v1553 = vld [vmem:[%s452 + $0x1de0] sm:$0xff]
          %v1554 = vld [vmem:[%s452 + $0x1de8] sm:$0xff]
          %v1555 = vld [vmem:[%s452 + $0x1df0] sm:$0xff]
          %v1556 = vld [vmem:[%s452 + $0x1df8] sm:$0xff]
          %v1557 = vld [vmem:[%s452 + $0x1e00] sm:$0xff]
          %v1558 = vld [vmem:[%s452 + $0x1e08] sm:$0xff]
          %v1559 = vld [vmem:[%s452 + $0x1e10] sm:$0xff]
          %v1560 = vld [vmem:[%s452 + $0x1e18] sm:$0xff]
          %v1561 = vld [vmem:[%s452 + $0x1e20] sm:$0xff]
          %v1562 = vld [vmem:[%s452 + $0x1e28] sm:$0xff]
          %v1563 = vld [vmem:[%s452 + $0x1e30] sm:$0xff]
          %v1564 = vld [vmem:[%s452 + $0x1e38] sm:$0xff]
          %v1565 = vld [vmem:[%s452 + $0x1e40] sm:$0xff]
          %v1566 = vld [vmem:[%s452 + $0x1e48] sm:$0xff]
          %v1567 = vld [vmem:[%s452 + $0x1e50] sm:$0xff]
          %v1568 = vld [vmem:[%s452 + $0x1e58] sm:$0xff]
          %v1569 = vld [vmem:[%s452 + $0x1e60] sm:$0xff]
          %v1570 = vld [vmem:[%s452 + $0x1e68] sm:$0xff]
          %v1571 = vld [vmem:[%s452 + $0x1e70] sm:$0xff]
          %v1572 = vld [vmem:[%s452 + $0x1e78] sm:$0xff]
          %v1573 = vld [vmem:[%s452 + $0x1e80] sm:$0xff]
          %v1574 = vld [vmem:[%s452 + $0x1e88] sm:$0xff]
          %v1575 = vld [vmem:[%s452 + $0x1e90] sm:$0xff]
          %v1576 = vld [vmem:[%s452 + $0x1e98] sm:$0xff]
          %v1577 = vld [vmem:[%s452 + $0x1ea0] sm:$0xff]
          %v1578 = vld [vmem:[%s452 + $0x1ea8] sm:$0xff]
          %v1579 = vld [vmem:[%s452 + $0x1eb0] sm:$0xff]
          %v1580 = vld [vmem:[%s452 + $0x1eb8] sm:$0xff]
          %v1581 = vld [vmem:[%s452 + $0x1ec0] sm:$0xff]
          %v1582 = vld [vmem:[%s452 + $0x1ec8] sm:$0xff]
          %v1583 = vld [vmem:[%s452 + $0x1ed0] sm:$0xff]
          %v1584 = vld [vmem:[%s452 + $0x1ed8] sm:$0xff]
          %v1585 = vld [vmem:[%s452 + $0x1ee0] sm:$0xff]
          %v1586 = vld [vmem:[%s452 + $0x1ee8] sm:$0xff]
          %v1587 = vld [vmem:[%s452 + $0x1ef0] sm:$0xff]
          %v1588 = vld [vmem:[%s452 + $0x1ef8] sm:$0xff]
          %v1589 = vld [vmem:[%s452 + $0x1f00] sm:$0xff]
          %v1590 = vld [vmem:[%s452 + $0x1f08] sm:$0xff]
          %v1591 = vld [vmem:[%s452 + $0x1f10] sm:$0xff]
          %v1592 = vld [vmem:[%s452 + $0x1f18] sm:$0xff]
          %v1593 = vld [vmem:[%s452 + $0x1f20] sm:$0xff]
          %v1594 = vld [vmem:[%s452 + $0x1f28] sm:$0xff]
          %v1595 = vld [vmem:[%s452 + $0x1f30] sm:$0xff]
          %v1596 = vld [vmem:[%s452 + $0x1f38] sm:$0xff]
          %v1597 = vld [vmem:[%s452 + $0x1f40] sm:$0xff]
          %v1598 = vld [vmem:[%s452 + $0x1f48] sm:$0xff]
          %v1599 = vld [vmem:[%s452 + $0x1f50] sm:$0xff]
          %v1600 = vld [vmem:[%s452 + $0x1f58] sm:$0xff]
          %v1601 = vld [vmem:[%s452 + $0x1f60] sm:$0xff]
          %v1602 = vld [vmem:[%s452 + $0x1f68] sm:$0xff]
          %v1603 = vld [vmem:[%s452 + $0x1f70] sm:$0xff]
          %v1604 = vld [vmem:[%s452 + $0x1f78] sm:$0xff]
          %v1605 = vld [vmem:[%s452 + $0x1f80] sm:$0xff]
          %v1606 = vld [vmem:[%s452 + $0x1f88] sm:$0xff]
          %v1607 = vld [vmem:[%s452 + $0x1f90] sm:$0xff]
          %v1608 = vld [vmem:[%s452 + $0x1f98] sm:$0xff]
          %v1609 = vld [vmem:[%s452 + $0x1fa0] sm:$0xff]
          %v1610 = vld [vmem:[%s452 + $0x1fa8] sm:$0xff]
          %v1611 = vld [vmem:[%s452 + $0x1fb0] sm:$0xff]
          %v1612 = vld [vmem:[%s452 + $0x1fb8] sm:$0xff]
          %v1613 = vld [vmem:[%s452 + $0x1fc0] sm:$0xff]
          %v1614 = vld [vmem:[%s452 + $0x1fc8] sm:$0xff]
          %v1615 = vld [vmem:[%s452 + $0x1fd0] sm:$0xff]
          %v1616 = vld [vmem:[%s452 + $0x1fd8] sm:$0xff]
          %v1617 = vld [vmem:[%s452 + $0x1fe0] sm:$0xff]
          %v1618 = vld [vmem:[%s452 + $0x1fe8] sm:$0xff]
          %v1619 = vld [vmem:[%s452 + $0x1ff0] sm:$0xff]
          %v1620 = vld [vmem:[%s452 + $0x1ff8] sm:$0xff]
          %v1621 = vld [vmem:[%s452 + $0x2000] sm:$0xff]
          %v1622 = vld [vmem:[%s452 + $0x2008] sm:$0xff]
          %v1623 = vld [vmem:[%s452 + $0x2010] sm:$0xff]
          %v1624 = vld [vmem:[%s452 + $0x2018] sm:$0xff]
          %v1625 = vld [vmem:[%s452 + $0x2020] sm:$0xff]
          %v1626 = vld [vmem:[%s452 + $0x2028] sm:$0xff]
          %v1627 = vld [vmem:[%s452 + $0x2030] sm:$0xff]
          %v1628 = vld [vmem:[%s452 + $0x2038] sm:$0xff]
          %v1629 = vld [vmem:[%s452 + $0x2040] sm:$0xff]
          %v1630 = vld [vmem:[%s452 + $0x2048] sm:$0xff]
          %v1631 = vld [vmem:[%s452 + $0x2050] sm:$0xff]
          %v1632 = vld [vmem:[%s452 + $0x2058] sm:$0xff]
          %v1633 = vld [vmem:[%s452 + $0x2060] sm:$0xff]
          %v1634 = vld [vmem:[%s452 + $0x2068] sm:$0xff]
          %v1635 = vld [vmem:[%s452 + $0x2070] sm:$0xff]
          %v1636 = vld [vmem:[%s452 + $0x2078] sm:$0xff]
          %v1637 = vld [vmem:[%s452 + $0x2080] sm:$0xff]
          %v1638 = vld [vmem:[%s452 + $0x2088] sm:$0xff]
          %v1639 = vld [vmem:[%s452 + $0x2090] sm:$0xff]
          %v1640 = vld [vmem:[%s452 + $0x2098] sm:$0xff]
          %v1641 = vld [vmem:[%s452 + $0x20a0] sm:$0xff]
          %v1642 = vld [vmem:[%s452 + $0x20a8] sm:$0xff]
          %v1643 = vld [vmem:[%s452 + $0x20b0] sm:$0xff]
          %v1644 = vld [vmem:[%s452 + $0x20b8] sm:$0xff]
          %v1645 = vld [vmem:[%s452 + $0x20c0] sm:$0xff]
          %v1646 = vld [vmem:[%s452 + $0x20c8] sm:$0xff]
          %v1647 = vld [vmem:[%s452 + $0x20d0] sm:$0xff]
          %v1648 = vld [vmem:[%s452 + $0x20d8] sm:$0xff]
          %v1649 = vld [vmem:[%s452 + $0x20e0] sm:$0xff]
          %v1650 = vld [vmem:[%s452 + $0x20e8] sm:$0xff]
          %v1651 = vld [vmem:[%s452 + $0x20f0] sm:$0xff]
          %v1652 = vld [vmem:[%s452 + $0x20f8] sm:$0xff]
          %v1653 = vld [vmem:[%s452 + $0x2100] sm:$0xff]
          %v1654 = vld [vmem:[%s452 + $0x2108] sm:$0xff]
          %v1655 = vld [vmem:[%s452 + $0x2110] sm:$0xff]
          %v1656 = vld [vmem:[%s452 + $0x2118] sm:$0xff]
          %v1657 = vld [vmem:[%s452 + $0x2120] sm:$0xff]
          %v1658 = vld [vmem:[%s452 + $0x2128] sm:$0xff]
          %v1659 = vld [vmem:[%s452 + $0x2130] sm:$0xff]
          %v1660 = vld [vmem:[%s452 + $0x2138] sm:$0xff]
          %v1661 = vld [vmem:[%s452 + $0x2140] sm:$0xff]
          %v1662 = vld [vmem:[%s452 + $0x2148] sm:$0xff]
          %v1663 = vld [vmem:[%s452 + $0x2150] sm:$0xff]
          %v1664 = vld [vmem:[%s452 + $0x2158] sm:$0xff]
          %v1665 = vld [vmem:[%s452 + $0x2160] sm:$0xff]
          %v1666 = vld [vmem:[%s452 + $0x2168] sm:$0xff]
          %v1667 = vld [vmem:[%s452 + $0x2170] sm:$0xff]
          %v1668 = vld [vmem:[%s452 + $0x2178] sm:$0xff]
          %v1669 = vld [vmem:[%s452 + $0x2180] sm:$0xff]
          %v1670 = vld [vmem:[%s452 + $0x2188] sm:$0xff]
          %v1671 = vld [vmem:[%s452 + $0x2190] sm:$0xff]
          %v1672 = vld [vmem:[%s452 + $0x2198] sm:$0xff]
          %v1673 = vld [vmem:[%s452 + $0x21a0] sm:$0xff]
          %v1674 = vld [vmem:[%s452 + $0x21a8] sm:$0xff]
          %v1675 = vld [vmem:[%s452 + $0x21b0] sm:$0xff]
          %v1676 = vld [vmem:[%s452 + $0x21b8] sm:$0xff]
          %v1677 = vld [vmem:[%s452 + $0x21c0] sm:$0xff]
          %v1678 = vld [vmem:[%s452 + $0x21c8] sm:$0xff]
          %v1679 = vld [vmem:[%s452 + $0x21d0] sm:$0xff]
          %v1680 = vld [vmem:[%s452 + $0x21d8] sm:$0xff]
          %v1681 = vld [vmem:[%s452 + $0x21e0] sm:$0xff]
          %v1682 = vld [vmem:[%s452 + $0x21e8] sm:$0xff]
          %v1683 = vld [vmem:[%s452 + $0x21f0] sm:$0xff]
          %v1684 = vld [vmem:[%s452 + $0x21f8] sm:$0xff]
          %v1685 = vld [vmem:[%s452 + $0x2200] sm:$0xff]
          %v1686 = vld [vmem:[%s452 + $0x2208] sm:$0xff]
          %v1687 = vld [vmem:[%s452 + $0x2210] sm:$0xff]
          %v1688 = vld [vmem:[%s452 + $0x2218] sm:$0xff]
          %v1689 = vld [vmem:[%s452 + $0x2220] sm:$0xff]
          %v1690 = vld [vmem:[%s452 + $0x2228] sm:$0xff]
          %v1691 = vld [vmem:[%s452 + $0x2230] sm:$0xff]
          %v1692 = vld [vmem:[%s452 + $0x2238] sm:$0xff]
          %v1693 = vld [vmem:[%s452 + $0x2240] sm:$0xff]
          %v1694 = vld [vmem:[%s452 + $0x2248] sm:$0xff]
          %v1695 = vld [vmem:[%s452 + $0x2250] sm:$0xff]
          %v1696 = vld [vmem:[%s452 + $0x2258] sm:$0xff]
          %v1697 = vld [vmem:[%s452 + $0x2260] sm:$0xff]
          %v1698 = vld [vmem:[%s452 + $0x2268] sm:$0xff]
          %v1699 = vld [vmem:[%s452 + $0x2270] sm:$0xff]
          %v1700 = vld [vmem:[%s452 + $0x2278] sm:$0xff]
          %v1701 = vld [vmem:[%s452 + $0x2280] sm:$0xff]
          %v1702 = vld [vmem:[%s452 + $0x2288] sm:$0xff]
          %v1703 = vld [vmem:[%s452 + $0x2290] sm:$0xff]
          %v1704 = vld [vmem:[%s452 + $0x2298] sm:$0xff]
          %v1705 = vld [vmem:[%s452 + $0x22a0] sm:$0xff]
          %v1706 = vld [vmem:[%s452 + $0x22a8] sm:$0xff]
          %v1707 = vld [vmem:[%s452 + $0x22b0] sm:$0xff]
          %v1708 = vld [vmem:[%s452 + $0x22b8] sm:$0xff]
          %v1709 = vld [vmem:[%s452 + $0x22c0] sm:$0xff]
          %v1710 = vld [vmem:[%s452 + $0x22c8] sm:$0xff]
          %v1711 = vld [vmem:[%s452 + $0x22d0] sm:$0xff]
          %v1712 = vld [vmem:[%s452 + $0x22d8] sm:$0xff]
          %v1713 = vld [vmem:[%s452 + $0x22e0] sm:$0xff]
          %v1714 = vld [vmem:[%s452 + $0x22e8] sm:$0xff]
          %v1715 = vld [vmem:[%s452 + $0x22f0] sm:$0xff]
          %v1716 = vld [vmem:[%s452 + $0x22f8] sm:$0xff]
          %v1717 = vld [vmem:[%s452 + $0x2300] sm:$0xff]
          %v1718 = vld [vmem:[%s452 + $0x2308] sm:$0xff]
          %v1719 = vld [vmem:[%s452 + $0x2310] sm:$0xff]
          %v1720 = vld [vmem:[%s452 + $0x2318] sm:$0xff]
          %v1721 = vld [vmem:[%s452 + $0x2320] sm:$0xff]
          %v1722 = vld [vmem:[%s452 + $0x2328] sm:$0xff]
          %v1723 = vld [vmem:[%s452 + $0x2330] sm:$0xff]
          %v1724 = vld [vmem:[%s452 + $0x2338] sm:$0xff]
          %v1725 = vld [vmem:[%s452 + $0x2340] sm:$0xff]
          %v1726 = vld [vmem:[%s452 + $0x2348] sm:$0xff]
          %v1727 = vld [vmem:[%s452 + $0x2350] sm:$0xff]
          %v1728 = vld [vmem:[%s452 + $0x2358] sm:$0xff]
          %v1729 = vld [vmem:[%s452 + $0x2360] sm:$0xff]
          %v1730 = vld [vmem:[%s452 + $0x2368] sm:$0xff]
          %v1731 = vld [vmem:[%s452 + $0x2370] sm:$0xff]
          %v1732 = vld [vmem:[%s452 + $0x2378] sm:$0xff]
          %v1733 = vld [vmem:[%s452 + $0x2380] sm:$0xff]
          %v1734 = vld [vmem:[%s452 + $0x2388] sm:$0xff]
          %v1735 = vld [vmem:[%s452 + $0x2390] sm:$0xff]
          %v1736 = vld [vmem:[%s452 + $0x2398] sm:$0xff]
          %v1737 = vld [vmem:[%s452 + $0x23a0] sm:$0xff]
          %v1738 = vld [vmem:[%s452 + $0x23a8] sm:$0xff]
          %v1739 = vld [vmem:[%s452 + $0x23b0] sm:$0xff]
          %v1740 = vld [vmem:[%s452 + $0x23b8] sm:$0xff]
          %v1741 = vld [vmem:[%s452 + $0x23c0] sm:$0xff]
          %v1742 = vld [vmem:[%s452 + $0x23c8] sm:$0xff]
          %v1743 = vld [vmem:[%s452 + $0x23d0] sm:$0xff]
          %v1744 = vld [vmem:[%s452 + $0x23d8] sm:$0xff]
          %v1745 = vld [vmem:[%s452 + $0x23e0] sm:$0xff]
          %v1746 = vld [vmem:[%s452 + $0x23e8] sm:$0xff]
          %v1747 = vld [vmem:[%s452 + $0x23f0] sm:$0xff]
          %v1748 = vld [vmem:[%s452 + $0x23f8] sm:$0xff]
          %v1749 = vld [vmem:[%s452 + $0x2400] sm:$0xff]
          %v1750 = vld [vmem:[%s452 + $0x2408] sm:$0xff]
          %v1751 = vld [vmem:[%s452 + $0x2410] sm:$0xff]
          %v1752 = vld [vmem:[%s452 + $0x2418] sm:$0xff]
          %v1753 = vld [vmem:[%s452 + $0x2420] sm:$0xff]
          %v1754 = vld [vmem:[%s452 + $0x2428] sm:$0xff]
          %v1755 = vld [vmem:[%s452 + $0x2430] sm:$0xff]
          %v1756 = vld [vmem:[%s452 + $0x2438] sm:$0xff]
          %v1757 = vld [vmem:[%s452 + $0x2440] sm:$0xff]
          %v1758 = vld [vmem:[%s452 + $0x2448] sm:$0xff]
          %v1759 = vld [vmem:[%s452 + $0x2450] sm:$0xff]
          %v1760 = vld [vmem:[%s452 + $0x2458] sm:$0xff]
          %v1761 = vld [vmem:[%s452 + $0x2460] sm:$0xff]
          %v1762 = vld [vmem:[%s452 + $0x2468] sm:$0xff]
          %v1763 = vld [vmem:[%s452 + $0x2470] sm:$0xff]
          %v1764 = vld [vmem:[%s452 + $0x2478] sm:$0xff]
          %v1765 = vld [vmem:[%s452 + $0x2480] sm:$0xff]
          %v1766 = vld [vmem:[%s452 + $0x2488] sm:$0xff]
          %v1767 = vld [vmem:[%s452 + $0x2490] sm:$0xff]
          %v1768 = vld [vmem:[%s452 + $0x2498] sm:$0xff]
          %v1769 = vld [vmem:[%s452 + $0x24a0] sm:$0xff]
          %v1770 = vld [vmem:[%s452 + $0x24a8] sm:$0xff]
          %v1771 = vld [vmem:[%s452 + $0x24b0] sm:$0xff]
          %v1772 = vld [vmem:[%s452 + $0x24b8] sm:$0xff]
          %v1773 = vld [vmem:[%s452 + $0x24c0] sm:$0xff]
          %v1774 = vld [vmem:[%s452 + $0x24c8] sm:$0xff]
          %v1775 = vld [vmem:[%s452 + $0x24d0] sm:$0xff]
          %v1776 = vld [vmem:[%s452 + $0x24d8] sm:$0xff]
          %v1777 = vld [vmem:[%s452 + $0x24e0] sm:$0xff]
          %v1778 = vld [vmem:[%s452 + $0x24e8] sm:$0xff]
          %v1779 = vld [vmem:[%s452 + $0x24f0] sm:$0xff]
          %v1780 = vld [vmem:[%s452 + $0x24f8] sm:$0xff]
          %v1781 = vld [vmem:[%s452 + $0x2500] sm:$0xff]
          %v1782 = vld [vmem:[%s452 + $0x2508] sm:$0xff]
          %v1783 = vld [vmem:[%s452 + $0x2510] sm:$0xff]
          %v1784 = vld [vmem:[%s452 + $0x2518] sm:$0xff]
          %v1785 = vld [vmem:[%s452 + $0x2520] sm:$0xff]
          %v1786 = vld [vmem:[%s452 + $0x2528] sm:$0xff]
          %v1787 = vld [vmem:[%s452 + $0x2530] sm:$0xff]
          %v1788 = vld [vmem:[%s452 + $0x2538] sm:$0xff]
          %v1789 = vld [vmem:[%s452 + $0x2540] sm:$0xff]
          %v1790 = vld [vmem:[%s452 + $0x2548] sm:$0xff]
          %v1791 = vld [vmem:[%s452 + $0x2550] sm:$0xff]
          %v1792 = vld [vmem:[%s452 + $0x2558] sm:$0xff]
          %v1793 = vld [vmem:[%s452 + $0x2560] sm:$0xff]
          %v1794 = vld [vmem:[%s452 + $0x2568] sm:$0xff]
          %v1795 = vld [vmem:[%s452 + $0x2570] sm:$0xff]
          %v1796 = vld [vmem:[%s452 + $0x2578] sm:$0xff]
          %v1797 = vld [vmem:[%s452 + $0x2580] sm:$0xff]
          %v1798 = vld [vmem:[%s452 + $0x2588] sm:$0xff]
          %v1799 = vld [vmem:[%s452 + $0x2590] sm:$0xff]
          %v1800 = vld [vmem:[%s452 + $0x2598] sm:$0xff]
          %v1801 = vld [vmem:[%s452 + $0x25a0] sm:$0xff]
          %v1802 = vld [vmem:[%s452 + $0x25a8] sm:$0xff]
          %v1803 = vld [vmem:[%s452 + $0x25b0] sm:$0xff]
          %v1804 = vld [vmem:[%s452 + $0x25b8] sm:$0xff]
          %v1805 = vld [vmem:[%s452 + $0x25c0] sm:$0xff]
          %v1806 = vld [vmem:[%s452 + $0x25c8] sm:$0xff]
          %v1807 = vld [vmem:[%s452 + $0x25d0] sm:$0xff]
          %v1808 = vld [vmem:[%s452 + $0x25d8] sm:$0xff]
          %v1809 = vld [vmem:[%s452 + $0x25e0] sm:$0xff]
          %v1810 = vld [vmem:[%s452 + $0x25e8] sm:$0xff]
          %v1811 = vld [vmem:[%s452 + $0x25f0] sm:$0xff]
          %v1812 = vld [vmem:[%s452 + $0x25f8] sm:$0xff]
          %v1813 = vld [vmem:[%s452 + $0x2600] sm:$0xff]
          %v1814 = vld [vmem:[%s452 + $0x2608] sm:$0xff]
          %v1815 = vld [vmem:[%s452 + $0x2610] sm:$0xff]
          %v1816 = vld [vmem:[%s452 + $0x2618] sm:$0xff]
          %v1817 = vld [vmem:[%s452 + $0x2620] sm:$0xff]
          %v1818 = vld [vmem:[%s452 + $0x2628] sm:$0xff]
          %v1819 = vld [vmem:[%s452 + $0x2630] sm:$0xff]
          %v1820 = vld [vmem:[%s452 + $0x2638] sm:$0xff]
          %v1821 = vld [vmem:[%s452 + $0x2640] sm:$0xff]
          %v1822 = vld [vmem:[%s452 + $0x2648] sm:$0xff]
          %v1823 = vld [vmem:[%s452 + $0x2650] sm:$0xff]
          %v1824 = vld [vmem:[%s452 + $0x2658] sm:$0xff]
          %v1825 = vld [vmem:[%s452 + $0x2660] sm:$0xff]
          %v1826 = vld [vmem:[%s452 + $0x2668] sm:$0xff]
          %v1827 = vld [vmem:[%s452 + $0x2670] sm:$0xff]
          %v1828 = vld [vmem:[%s452 + $0x2678] sm:$0xff]
          %v1829 = vld [vmem:[%s452 + $0x2680] sm:$0xff]
          %v1830 = vld [vmem:[%s452 + $0x2688] sm:$0xff]
          %v1831 = vld [vmem:[%s452 + $0x2690] sm:$0xff]
          %v1832 = vld [vmem:[%s452 + $0x2698] sm:$0xff]
          %v1833 = vld [vmem:[%s452 + $0x26a0] sm:$0xff]
          %v1834 = vld [vmem:[%s452 + $0x26a8] sm:$0xff]
          %v1835 = vld [vmem:[%s452 + $0x26b0] sm:$0xff]
          %v1836 = vld [vmem:[%s452 + $0x26b8] sm:$0xff]
          %v1837 = vld [vmem:[%s452 + $0x26c0] sm:$0xff]
          %v1838 = vld [vmem:[%s452 + $0x26c8] sm:$0xff]
          %v1839 = vld [vmem:[%s452 + $0x26d0] sm:$0xff]
          %v1840 = vld [vmem:[%s452 + $0x26d8] sm:$0xff]
          %v1841 = vld [vmem:[%s452 + $0x26e0] sm:$0xff]
          %v1842 = vld [vmem:[%s452 + $0x26e8] sm:$0xff]
          %v1843 = vld [vmem:[%s452 + $0x26f0] sm:$0xff]
          %v1844 = vld [vmem:[%s452 + $0x26f8] sm:$0xff]
          %v1845 = vld [vmem:[%s452 + $0x2700] sm:$0xff]
          %v1846 = vld [vmem:[%s452 + $0x2708] sm:$0xff]
          %v1847 = vld [vmem:[%s452 + $0x2710] sm:$0xff]
          %v1848 = vld [vmem:[%s452 + $0x2718] sm:$0xff]
          %v1849 = vld [vmem:[%s452 + $0x2720] sm:$0xff]
          %v1850 = vld [vmem:[%s452 + $0x2728] sm:$0xff]
          %v1851 = vld [vmem:[%s452 + $0x2730] sm:$0xff]
          %v1852 = vld [vmem:[%s452 + $0x2738] sm:$0xff]
          %v1853 = vld [vmem:[%s452 + $0x2740] sm:$0xff]
          %v1854 = vld [vmem:[%s452 + $0x2748] sm:$0xff]
          %v1855 = vld [vmem:[%s452 + $0x2750] sm:$0xff]
          %v1856 = vld [vmem:[%s452 + $0x2758] sm:$0xff]
          %v1857 = vld [vmem:[%s452 + $0x2760] sm:$0xff]
          %v1858 = vld [vmem:[%s452 + $0x2768] sm:$0xff]
          %v1859 = vld [vmem:[%s452 + $0x2770] sm:$0xff]
          %v1860 = vld [vmem:[%s452 + $0x2778] sm:$0xff]
          %v1861 = vld [vmem:[%s452 + $0x2780] sm:$0xff]
          %v1862 = vld [vmem:[%s452 + $0x2788] sm:$0xff]
          %v1863 = vld [vmem:[%s452 + $0x2790] sm:$0xff]
          %v1864 = vld [vmem:[%s452 + $0x2798] sm:$0xff]
          %v1865 = vld [vmem:[%s452 + $0x27a0] sm:$0xff]
          %v1866 = vld [vmem:[%s452 + $0x27a8] sm:$0xff]
          %v1867 = vld [vmem:[%s452 + $0x27b0] sm:$0xff]
          %v1868 = vld [vmem:[%s452 + $0x27b8] sm:$0xff]
          %v1869 = vld [vmem:[%s452 + $0x27c0] sm:$0xff]
          %v1870 = vld [vmem:[%s452 + $0x27c8] sm:$0xff]
          %v1871 = vld [vmem:[%s452 + $0x27d0] sm:$0xff]
          %v1872 = vld [vmem:[%s452 + $0x27d8] sm:$0xff]
          %v1873 = vld [vmem:[%s452 + $0x27e0] sm:$0xff]
          %v1874 = vld [vmem:[%s452 + $0x27e8] sm:$0xff]
          %v1875 = vld [vmem:[%s452 + $0x27f0] sm:$0xff]
          %v1876 = vld [vmem:[%s452 + $0x27f8] sm:$0xff]
          %v1877 = vld [vmem:[%s452 + $0x2800] sm:$0xff]
          %v1878 = vld [vmem:[%s452 + $0x2808] sm:$0xff]
          %v1879 = vld [vmem:[%s452 + $0x2810] sm:$0xff]
          %v1880 = vld [vmem:[%s452 + $0x2818] sm:$0xff]
          %v1881 = vld [vmem:[%s452 + $0x2820] sm:$0xff]
          %v1882 = vld [vmem:[%s452 + $0x2828] sm:$0xff]
          %v1883 = vld [vmem:[%s452 + $0x2830] sm:$0xff]
          %v1884 = vld [vmem:[%s452 + $0x2838] sm:$0xff]
          %v1885 = vld [vmem:[%s452 + $0x2840] sm:$0xff]
          %v1886 = vld [vmem:[%s452 + $0x2848] sm:$0xff]
          %v1887 = vld [vmem:[%s452 + $0x2850] sm:$0xff]
          %v1888 = vld [vmem:[%s452 + $0x2858] sm:$0xff]
          %v1889 = vld [vmem:[%s452 + $0x2860] sm:$0xff]
          %v1890 = vld [vmem:[%s452 + $0x2868] sm:$0xff]
          %v1891 = vld [vmem:[%s452 + $0x2870] sm:$0xff]
          %v1892 = vld [vmem:[%s452 + $0x2878] sm:$0xff]
          %v1893 = vld [vmem:[%s452 + $0x2880] sm:$0xff]
          %v1894 = vld [vmem:[%s452 + $0x2888] sm:$0xff]
          %v1895 = vld [vmem:[%s452 + $0x2890] sm:$0xff]
          %v1896 = vld [vmem:[%s452 + $0x2898] sm:$0xff]
          %v1897 = vld [vmem:[%s452 + $0x28a0] sm:$0xff]
          %v1898 = vld [vmem:[%s452 + $0x28a8] sm:$0xff]
          %v1899 = vld [vmem:[%s452 + $0x28b0] sm:$0xff]
          %v1900 = vld [vmem:[%s452 + $0x28b8] sm:$0xff]
          %v1901 = vld [vmem:[%s452 + $0x28c0] sm:$0xff]
          %v1902 = vld [vmem:[%s452 + $0x28c8] sm:$0xff]
          %v1903 = vld [vmem:[%s452 + $0x28d0] sm:$0xff]
          %v1904 = vld [vmem:[%s452 + $0x28d8] sm:$0xff]
          %v1905 = vld [vmem:[%s452 + $0x28e0] sm:$0xff]
          %v1906 = vld [vmem:[%s452 + $0x28e8] sm:$0xff]
          %v1907 = vld [vmem:[%s452 + $0x28f0] sm:$0xff]
          %v1908 = vld [vmem:[%s452 + $0x28f8] sm:$0xff]
          %v1909 = vld [vmem:[%s452 + $0x2900] sm:$0xff]
          %v1910 = vld [vmem:[%s452 + $0x2908] sm:$0xff]
          %v1911 = vld [vmem:[%s452 + $0x2910] sm:$0xff]
          %v1912 = vld [vmem:[%s452 + $0x2918] sm:$0xff]
          %v1913 = vld [vmem:[%s452 + $0x2920] sm:$0xff]
          %v1914 = vld [vmem:[%s452 + $0x2928] sm:$0xff]
          %v1915 = vld [vmem:[%s452 + $0x2930] sm:$0xff]
          %v1916 = vld [vmem:[%s452 + $0x2938] sm:$0xff]
          %v1917 = vld [vmem:[%s452 + $0x2940] sm:$0xff]
          %v1918 = vld [vmem:[%s452 + $0x2948] sm:$0xff]
          %v1919 = vld [vmem:[%s452 + $0x2950] sm:$0xff]
          %v1920 = vld [vmem:[%s452 + $0x2958] sm:$0xff]
          %v1921 = vld [vmem:[%s452 + $0x2960] sm:$0xff]
          %v1922 = vld [vmem:[%s452 + $0x2968] sm:$0xff]
          %v1923 = vld [vmem:[%s452 + $0x2970] sm:$0xff]
          %v1924 = vld [vmem:[%s452 + $0x2978] sm:$0xff]
          %v1925 = vld [vmem:[%s452 + $0x2980] sm:$0xff]
          %v1926 = vld [vmem:[%s452 + $0x2988] sm:$0xff]
          %v1927 = vld [vmem:[%s452 + $0x2990] sm:$0xff]
          %v1928 = vld [vmem:[%s452 + $0x2998] sm:$0xff]
          %v1929 = vld [vmem:[%s452 + $0x29a0] sm:$0xff]
          %v1930 = vld [vmem:[%s452 + $0x29a8] sm:$0xff]
          %v1931 = vld [vmem:[%s452 + $0x29b0] sm:$0xff]
          %v1932 = vld [vmem:[%s452 + $0x29b8] sm:$0xff]
          %v1933 = vld [vmem:[%s452 + $0x29c0] sm:$0xff]
          %v1934 = vld [vmem:[%s452 + $0x29c8] sm:$0xff]
          %v1935 = vld [vmem:[%s452 + $0x29d0] sm:$0xff]
          %v1936 = vld [vmem:[%s452 + $0x29d8] sm:$0xff]
          %v1937 = vld [vmem:[%s452 + $0x29e0] sm:$0xff]
          %v1938 = vld [vmem:[%s452 + $0x29e8] sm:$0xff]
          %v1939 = vld [vmem:[%s452 + $0x29f0] sm:$0xff]
          %v1940 = vld [vmem:[%s452 + $0x29f8] sm:$0xff]
          %v1941 = vld [vmem:[%s452 + $0x2a00] sm:$0xff]
          %v1942 = vld [vmem:[%s452 + $0x2a08] sm:$0xff]
          %v1943 = vld [vmem:[%s452 + $0x2a10] sm:$0xff]
          %v1944 = vld [vmem:[%s452 + $0x2a18] sm:$0xff]
          %v1945 = vld [vmem:[%s452 + $0x2a20] sm:$0xff]
          %v1946 = vld [vmem:[%s452 + $0x2a28] sm:$0xff]
          %v1947 = vld [vmem:[%s452 + $0x2a30] sm:$0xff]
          %v1948 = vld [vmem:[%s452 + $0x2a38] sm:$0xff]
          %v1949 = vld [vmem:[%s452 + $0x2a40] sm:$0xff]
          %v1950 = vld [vmem:[%s452 + $0x2a48] sm:$0xff]
          %v1951 = vld [vmem:[%s452 + $0x2a50] sm:$0xff]
          %v1952 = vld [vmem:[%s452 + $0x2a58] sm:$0xff]
          %v1953 = vld [vmem:[%s452 + $0x2a60] sm:$0xff]
          %v1954 = vld [vmem:[%s452 + $0x2a68] sm:$0xff]
          %v1955 = vld [vmem:[%s452 + $0x2a70] sm:$0xff]
          %v1956 = vld [vmem:[%s452 + $0x2a78] sm:$0xff]
          %v1957 = vld [vmem:[%s452 + $0x2a80] sm:$0xff]
          %v1958 = vld [vmem:[%s452 + $0x2a88] sm:$0xff]
          %v1959 = vld [vmem:[%s452 + $0x2a90] sm:$0xff]
          %v1960 = vld [vmem:[%s452 + $0x2a98] sm:$0xff]
          %v1961 = vld [vmem:[%s452 + $0x2aa0] sm:$0xff]
          %v1962 = vld [vmem:[%s452 + $0x2aa8] sm:$0xff]
          %v1963 = vld [vmem:[%s452 + $0x2ab0] sm:$0xff]
          %v1964 = vld [vmem:[%s452 + $0x2ab8] sm:$0xff]
          %v1965 = vld [vmem:[%s452 + $0x2ac0] sm:$0xff]
          %v1966 = vld [vmem:[%s452 + $0x2ac8] sm:$0xff]
          %v1967 = vld [vmem:[%s452 + $0x2ad0] sm:$0xff]
          %v1968 = vld [vmem:[%s452 + $0x2ad8] sm:$0xff]
          %v1969 = vld [vmem:[%s452 + $0x2ae0] sm:$0xff]
          %v1970 = vld [vmem:[%s452 + $0x2ae8] sm:$0xff]
          %v1971 = vld [vmem:[%s452 + $0x2af0] sm:$0xff]
          %v1972 = vld [vmem:[%s452 + $0x2af8] sm:$0xff]
          %v1973 = vld [vmem:[%s452 + $0x2b00] sm:$0xff]
          %v1974 = vld [vmem:[%s452 + $0x2b08] sm:$0xff]
          %v1975 = vld [vmem:[%s452 + $0x2b10] sm:$0xff]
          %v1976 = vld [vmem:[%s452 + $0x2b18] sm:$0xff]
          %v1977 = vld [vmem:[%s452 + $0x2b20] sm:$0xff]
          %v1978 = vld [vmem:[%s452 + $0x2b28] sm:$0xff]
          %v1979 = vld [vmem:[%s452 + $0x2b30] sm:$0xff]
          %v1980 = vld [vmem:[%s452 + $0x2b38] sm:$0xff]
          %v1981 = vld [vmem:[%s452 + $0x2b40] sm:$0xff]
          %v1982 = vld [vmem:[%s452 + $0x2b48] sm:$0xff]
          %v1983 = vld [vmem:[%s452 + $0x2b50] sm:$0xff]
          %v1984 = vld [vmem:[%s452 + $0x2b58] sm:$0xff]
          %v1985 = vld [vmem:[%s452 + $0x2b60] sm:$0xff]
          %v1986 = vld [vmem:[%s452 + $0x2b68] sm:$0xff]
          %v1987 = vld [vmem:[%s452 + $0x2b70] sm:$0xff]
          %v1988 = vld [vmem:[%s452 + $0x2b78] sm:$0xff]
          %v1989 = vld [vmem:[%s452 + $0x2b80] sm:$0xff]
          %v1990 = vld [vmem:[%s452 + $0x2b88] sm:$0xff]
          %v1991 = vld [vmem:[%s452 + $0x2b90] sm:$0xff]
          %v1992 = vld [vmem:[%s452 + $0x2b98] sm:$0xff]
          %v1993 = vld [vmem:[%s452 + $0x2ba0] sm:$0xff]
          %v1994 = vld [vmem:[%s452 + $0x2ba8] sm:$0xff]
          %v1995 = vld [vmem:[%s452 + $0x2bb0] sm:$0xff]
          %v1996 = vld [vmem:[%s452 + $0x2bb8] sm:$0xff]
          %v1997 = vld [vmem:[%s452 + $0x2bc0] sm:$0xff]
          %v1998 = vld [vmem:[%s452 + $0x2bc8] sm:$0xff]
          %v1999 = vld [vmem:[%s452 + $0x2bd0] sm:$0xff]
          %v2000 = vld [vmem:[%s452 + $0x2bd8] sm:$0xff]
          %v2001 = vld [vmem:[%s452 + $0x2be0] sm:$0xff]
          %v2002 = vld [vmem:[%s452 + $0x2be8] sm:$0xff]
          %v2003 = vld [vmem:[%s452 + $0x2bf0] sm:$0xff]
          %v2004 = vld [vmem:[%s452 + $0x2bf8] sm:$0xff]
          %v2005 = vld [vmem:[%s452 + $0x2c00] sm:$0xff]
          %v2006 = vld [vmem:[%s452 + $0x2c08] sm:$0xff]
          %v2007 = vld [vmem:[%s452 + $0x2c10] sm:$0xff]
          %v2008 = vld [vmem:[%s452 + $0x2c18] sm:$0xff]
          %v2009 = vld [vmem:[%s452 + $0x2c20] sm:$0xff]
          %v2010 = vld [vmem:[%s452 + $0x2c28] sm:$0xff]
          %v2011 = vld [vmem:[%s452 + $0x2c30] sm:$0xff]
          %v2012 = vld [vmem:[%s452 + $0x2c38] sm:$0xff]
          %v2013 = vld [vmem:[%s452 + $0x2c40] sm:$0xff]
          %v2014 = vld [vmem:[%s452 + $0x2c48] sm:$0xff]
          %v2015 = vld [vmem:[%s452 + $0x2c50] sm:$0xff]
          %v2016 = vld [vmem:[%s452 + $0x2c58] sm:$0xff]
          %v2017 = vld [vmem:[%s452 + $0x2c60] sm:$0xff]
          %v2018 = vld [vmem:[%s452 + $0x2c68] sm:$0xff]
          %v2019 = vld [vmem:[%s452 + $0x2c70] sm:$0xff]
          %v2020 = vld [vmem:[%s452 + $0x2c78] sm:$0xff]
          %v2021 = vld [vmem:[%s452 + $0x2c80] sm:$0xff]
          %v2022 = vld [vmem:[%s452 + $0x2c88] sm:$0xff]
          %v2023 = vld [vmem:[%s452 + $0x2c90] sm:$0xff]
          %v2024 = vld [vmem:[%s452 + $0x2c98] sm:$0xff]
          %v2025 = vld [vmem:[%s452 + $0x2ca0] sm:$0xff]
          %v2026 = vld [vmem:[%s452 + $0x2ca8] sm:$0xff]
          %v2027 = vld [vmem:[%s452 + $0x2cb0] sm:$0xff]
          %v2028 = vld [vmem:[%s452 + $0x2cb8] sm:$0xff]
          %v2029 = vld [vmem:[%s452 + $0x2cc0] sm:$0xff]
          %v2030 = vld [vmem:[%s452 + $0x2cc8] sm:$0xff]
          %v2031 = vld [vmem:[%s452 + $0x2cd0] sm:$0xff]
          %v2032 = vld [vmem:[%s452 + $0x2cd8] sm:$0xff]
          %v2033 = vld [vmem:[%s452 + $0x2ce0] sm:$0xff]
          %v2034 = vld [vmem:[%s452 + $0x2ce8] sm:$0xff]
          %v2035 = vld [vmem:[%s452 + $0x2cf0] sm:$0xff]
          %v2036 = vld [vmem:[%s452 + $0x2cf8] sm:$0xff]
          %v2037 = vld [vmem:[%s452 + $0x2d00] sm:$0xff]
          %v2038 = vld [vmem:[%s452 + $0x2d08] sm:$0xff]
          %v2039 = vld [vmem:[%s452 + $0x2d10] sm:$0xff]
          %v2040 = vld [vmem:[%s452 + $0x2d18] sm:$0xff]
          %v2041 = vld [vmem:[%s452 + $0x2d20] sm:$0xff]
          %v2042 = vld [vmem:[%s452 + $0x2d28] sm:$0xff]
          %v2043 = vld [vmem:[%s452 + $0x2d30] sm:$0xff]
          %v2044 = vld [vmem:[%s452 + $0x2d38] sm:$0xff]
          %v2045 = vld [vmem:[%s452 + $0x2d40] sm:$0xff]
          %v2046 = vld [vmem:[%s452 + $0x2d48] sm:$0xff]
          %v2047 = vld [vmem:[%s452 + $0x2d50] sm:$0xff]
          %v2048 = vld [vmem:[%s452 + $0x2d58] sm:$0xff]
          %v2049 = vld [vmem:[%s452 + $0x2d60] sm:$0xff]
          %v2050 = vld [vmem:[%s452 + $0x2d68] sm:$0xff]
          %v2051 = vld [vmem:[%s452 + $0x2d70] sm:$0xff]
          %v2052 = vld [vmem:[%s452 + $0x2d78] sm:$0xff]
          %v2053 = vld [vmem:[%s452 + $0x2d80] sm:$0xff]
          %v2054 = vld [vmem:[%s452 + $0x2d88] sm:$0xff]
          %v2055 = vld [vmem:[%s452 + $0x2d90] sm:$0xff]
          %v2056 = vld [vmem:[%s452 + $0x2d98] sm:$0xff]
          %v2057 = vld [vmem:[%s452 + $0x2da0] sm:$0xff]
          %v2058 = vld [vmem:[%s452 + $0x2da8] sm:$0xff]
          %v2059 = vld [vmem:[%s452 + $0x2db0] sm:$0xff]
          %v2060 = vld [vmem:[%s452 + $0x2db8] sm:$0xff]
          %v2061 = vld [vmem:[%s452 + $0x2dc0] sm:$0xff]
          %v2062 = vld [vmem:[%s452 + $0x2dc8] sm:$0xff]
          %v2063 = vld [vmem:[%s452 + $0x2dd0] sm:$0xff]
          %v2064 = vld [vmem:[%s452 + $0x2dd8] sm:$0xff]
          %v2065 = vld [vmem:[%s452 + $0x2de0] sm:$0xff]
          %v2066 = vld [vmem:[%s452 + $0x2de8] sm:$0xff]
          %v2067 = vld [vmem:[%s452 + $0x2df0] sm:$0xff]
          %v2068 = vld [vmem:[%s452 + $0x2df8] sm:$0xff]
          %v2069 = vld [vmem:[%s452 + $0x2e00] sm:$0xff]
          %v2070 = vld [vmem:[%s452 + $0x2e08] sm:$0xff]
          %v2071 = vld [vmem:[%s452 + $0x2e10] sm:$0xff]
          %v2072 = vld [vmem:[%s452 + $0x2e18] sm:$0xff]
          %v2073 = vld [vmem:[%s452 + $0x2e20] sm:$0xff]
          %v2074 = vld [vmem:[%s452 + $0x2e28] sm:$0xff]
          %v2075 = vld [vmem:[%s452 + $0x2e30] sm:$0xff]
          %v2076 = vld [vmem:[%s452 + $0x2e38] sm:$0xff]
          %v2077 = vld [vmem:[%s452 + $0x2e40] sm:$0xff]
          %v2078 = vld [vmem:[%s452 + $0x2e48] sm:$0xff]
          %v2079 = vld [vmem:[%s452 + $0x2e50] sm:$0xff]
          %v2080 = vld [vmem:[%s452 + $0x2e58] sm:$0xff]
          %v2081 = vld [vmem:[%s452 + $0x2e60] sm:$0xff]
          %v2082 = vld [vmem:[%s452 + $0x2e68] sm:$0xff]
          %v2083 = vld [vmem:[%s452 + $0x2e70] sm:$0xff]
          %v2084 = vld [vmem:[%s452 + $0x2e78] sm:$0xff]
          %v2085 = vld [vmem:[%s452 + $0x2e80] sm:$0xff]
          %v2086 = vld [vmem:[%s452 + $0x2e88] sm:$0xff]
          %v2087 = vld [vmem:[%s452 + $0x2e90] sm:$0xff]
          %v2088 = vld [vmem:[%s452 + $0x2e98] sm:$0xff]
          %v2089 = vld [vmem:[%s452 + $0x2ea0] sm:$0xff]
          %v2090 = vld [vmem:[%s452 + $0x2ea8] sm:$0xff]
          %v2091 = vld [vmem:[%s452 + $0x2eb0] sm:$0xff]
          %v2092 = vld [vmem:[%s452 + $0x2eb8] sm:$0xff]
          %v2093 = vld [vmem:[%s452 + $0x2ec0] sm:$0xff]
          %v2094 = vld [vmem:[%s452 + $0x2ec8] sm:$0xff]
          %v2095 = vld [vmem:[%s452 + $0x2ed0] sm:$0xff]
          %v2096 = vld [vmem:[%s452 + $0x2ed8] sm:$0xff]
          %v2097 = vld [vmem:[%s452 + $0x2ee0] sm:$0xff]
          %v2098 = vld [vmem:[%s452 + $0x2ee8] sm:$0xff]
          %v2099 = vld [vmem:[%s452 + $0x2ef0] sm:$0xff]
          %v2100 = vld [vmem:[%s452 + $0x2ef8] sm:$0xff]
          %v2101 = vld [vmem:[%s452 + $0x2f00] sm:$0xff]
          %v2102 = vld [vmem:[%s452 + $0x2f08] sm:$0xff]
          %v2103 = vld [vmem:[%s452 + $0x2f10] sm:$0xff]
          %v2104 = vld [vmem:[%s452 + $0x2f18] sm:$0xff]
          %v2105 = vld [vmem:[%s452 + $0x2f20] sm:$0xff]
          %v2106 = vld [vmem:[%s452 + $0x2f28] sm:$0xff]
          %v2107 = vld [vmem:[%s452 + $0x2f30] sm:$0xff]
          %v2108 = vld [vmem:[%s452 + $0x2f38] sm:$0xff]
          %v2109 = vld [vmem:[%s452 + $0x2f40] sm:$0xff]
          %v2110 = vld [vmem:[%s452 + $0x2f48] sm:$0xff]
          %v2111 = vld [vmem:[%s452 + $0x2f50] sm:$0xff]
          %v2112 = vld [vmem:[%s452 + $0x2f58] sm:$0xff]
          %v2113 = vld [vmem:[%s452 + $0x2f60] sm:$0xff]
          %v2114 = vld [vmem:[%s452 + $0x2f68] sm:$0xff]
          %v2115 = vld [vmem:[%s452 + $0x2f70] sm:$0xff]
          %v2116 = vld [vmem:[%s452 + $0x2f78] sm:$0xff]
          %v2117 = vld [vmem:[%s452 + $0x2f80] sm:$0xff]
          %v2118 = vld [vmem:[%s452 + $0x2f88] sm:$0xff]
          %v2119 = vld [vmem:[%s452 + $0x2f90] sm:$0xff]
          %v2120 = vld [vmem:[%s452 + $0x2f98] sm:$0xff]
          %v2121 = vld [vmem:[%s452 + $0x2fa0] sm:$0xff]
          %v2122 = vld [vmem:[%s452 + $0x2fa8] sm:$0xff]
          %v2123 = vld [vmem:[%s452 + $0x2fb0] sm:$0xff]
          %v2124 = vld [vmem:[%s452 + $0x2fb8] sm:$0xff]
          %v2125 = vld [vmem:[%s452 + $0x2fc0] sm:$0xff]
          %v2126 = vld [vmem:[%s452 + $0x2fc8] sm:$0xff]
          %v2127 = vld [vmem:[%s452 + $0x2fd0] sm:$0xff]
          %v2128 = vld [vmem:[%s452 + $0x2fd8] sm:$0xff]
          %v2129 = vld [vmem:[%s452 + $0x2fe0] sm:$0xff]
          %v2130 = vld [vmem:[%s452 + $0x2fe8] sm:$0xff]
          %v2131 = vld [vmem:[%s452 + $0x2ff0] sm:$0xff]
          %v2132 = vld [vmem:[%s452 + $0x2ff8] sm:$0xff]
          %2139 = vst [vmem:[#allocation1] ss:$4 sm:$0xff] %v591
          %s2140 = scalar_lea.vmem [#allocation1], 32
          %2141 = vst [vmem:[%s2140] ss:$4 sm:$0xff] %v592
          %v2142 = vld.sshfl [vmem:[#allocation1] sm:$0xff pattern:$0x73625140]
          %v2143 = vld.sshfl [vmem:[#allocation1 + $0x8] sm:$0xff pattern:$0x73625140]
          %v2144 = vld.sshfl [vmem:[#allocation1 + $0x10] sm:$0xff pattern:$0x73625140]
          %v2145 = vld.sshfl [vmem:[#allocation1 + $0x18] sm:$0xff pattern:$0x73625140]
          %v2146 = vld.sshfl [vmem:[#allocation1 + $0x20] sm:$0xff pattern:$0x73625140]
          %v2147 = vld.sshfl [vmem:[#allocation1 + $0x28] sm:$0xff pattern:$0x73625140]
          %v2148 = vld.sshfl [vmem:[#allocation1 + $0x30] sm:$0xff pattern:$0x73625140]
          %v2149 = vld.sshfl [vmem:[#allocation1 + $0x38] sm:$0xff pattern:$0x73625140]
          %2150 = vst [vmem:[#allocation1] ss:$4 sm:$0xff] %v593
          %2151 = vst [vmem:[%s2140] ss:$4 sm:$0xff] %v594
          %v2152 = vld.sshfl [vmem:[#allocation1] sm:$0xff pattern:$0x73625140]
          %v2153 = vld.sshfl [vmem:[#allocation1 + $0x8] sm:$0xff pattern:$0x73625140]
          %v2154 = vld.sshfl [vmem:[#allocation1 + $0x10] sm:$0xff pattern:$0x73625140]
          %v2155 = vld.sshfl [vmem:[#allocation1 + $0x18] sm:$0xff pattern:$0x73625140]
          %v2156 = vld.sshfl [vmem:[#allocation1 + $0x20] sm:$0xff pattern:$0x73625140]
          %v2157 = vld.sshfl [vmem:[#allocation1 + $0x28] sm:$0xff pattern:$0x73625140]
          %v2158 = vld.sshfl [vmem:[#allocation1 + $0x30] sm:$0xff pattern:$0x73625140]
          %v2159 = vld.sshfl [vmem:[#allocation1 + $0x38] sm:$0xff pattern:$0x73625140]
          %2160 = vst [vmem:[#allocation1] ss:$4 sm:$0xff] %v595
          %2161 = vst [vmem:[%s2140] ss:$4 sm:$0xff] %v596
          %v2162 = vld.sshfl [vmem:[#allocation1] sm:$0xff pattern:$0x73625140]
          %v2163 = vld.sshfl [vmem:[#allocation1 + $0x8] sm:$0xff pattern:$0x73625140]
          %v2164 = vld.sshfl [vmem:[#allocation1 + $0x10] sm:$0xff pattern:$0x73625140]
          %v2165 = vld.sshfl [vmem:[#allocation1 + $0x18] sm:$0xff pattern:$0x73625140]
          %v2166 = vld.sshfl [vmem:[#allocation1 + $0x20] sm:$0xff pattern:$0x73625140]
          %v2167 = vld.sshfl [vmem:[#allocation1 + $0x28] sm:$0xff pattern:$0x73625140]
          %v2168 = vld.sshfl [vmem:[#allocation1 + $0x30] sm:$0xff pattern:$0x73625140]
          %v2169 = vld.sshfl [vmem:[#allocation1 + $0x38] sm:$0xff pattern:$0x73625140]
          %2194 = vmatpush.msra.mxu0 %v657
          %2195 = vmatpush.msra.mxu0 %v653
          %2196 = vmatpush.msra.mxu0 %v649
          %2197 = vmatpush.msra.mxu0 %v645
          %2198 = vmatpush.msra.mxu0 %v641
          %2199 = vmatpush.msra.mxu0 %v637
          %2200 = vmatpush.msra.mxu0 %v633
          %2201 = vmatpush.msra.mxu0 %v629
          %2202 = vmatpush.msra.mxu0 %v625
          %2203 = vmatpush.msra.mxu0 %v621
          %2204 = vmatpush.msra.mxu0 %v617
          %2205 = vmatpush.msra.mxu0 %v613
          %2206 = vmatpush.msra.mxu0 %v609
          %2207 = vmatpush.msra.mxu0 %v605
          %2208 = vmatpush.msra.mxu0 %v601
          %2209 = vmatpush.msra.mxu0 %v597
          %2210 = vmatmul.f32.gmra.mxu0 %v2142
          %v2211 = vpop.f32.mrf.mxu0
          %v2212 = vadd.f32 0.0, %v2211
          %2213 = vdwg.mxu0
          %2214 = vmatpush.msra.mxu0 %v721
          %2215 = vmatpush.msra.mxu0 %v717
          %2216 = vmatpush.msra.mxu0 %v713
          %2217 = vmatpush.msra.mxu0 %v709
          %2218 = vmatpush.msra.mxu0 %v705
          %2219 = vmatpush.msra.mxu0 %v701
          %2220 = vmatpush.msra.mxu0 %v697
          %2221 = vmatpush.msra.mxu0 %v693
          %2222 = vmatpush.msra.mxu0 %v689
          %2223 = vmatpush.msra.mxu0 %v685
          %2224 = vmatpush.msra.mxu0 %v681
          %2225 = vmatpush.msra.mxu0 %v677
          %2226 = vmatpush.msra.mxu0 %v673
          %2227 = vmatpush.msra.mxu0 %v669
          %2228 = vmatpush.msra.mxu0 %v665
          %2229 = vmatpush.msra.mxu0 %v661
          %2230 = vmatmul.f32.gmra.mxu0 %v2143
          %v2231 = vpop.f32.mrf.mxu0
          %v2232 = vadd.f32 %v2212, %v2231
          %2233 = vdwg.mxu0
          %2234 = vmatpush.msra.mxu0 %v785
          %2235 = vmatpush.msra.mxu0 %v781
          %2236 = vmatpush.msra.mxu0 %v777
          %2237 = vmatpush.msra.mxu0 %v773
          %2238 = vmatpush.msra.mxu0 %v769
          %2239 = vmatpush.msra.mxu0 %v765
          %2240 = vmatpush.msra.mxu0 %v761
          %2241 = vmatpush.msra.mxu0 %v757
          %2242 = vmatpush.msra.mxu0 %v753
          %2243 = vmatpush.msra.mxu0 %v749
          %2244 = vmatpush.msra.mxu0 %v745
          %2245 = vmatpush.msra.mxu0 %v741
          %2246 = vmatpush.msra.mxu0 %v737
          %2247 = vmatpush.msra.mxu0 %v733
          %2248 = vmatpush.msra.mxu0 %v729
          %2249 = vmatpush.msra.mxu0 %v725
          %2250 = vmatmul.f32.gmra.mxu0 %v2144
          %v2251 = vpop.f32.mrf.mxu0
          %v2252 = vadd.f32 %v2232, %v2251
          %2253 = vdwg.mxu0
          %2254 = vmatpush.msra.mxu0 %v849
          %2255 = vmatpush.msra.mxu0 %v845
          %2256 = vmatpush.msra.mxu0 %v841
          %2257 = vmatpush.msra.mxu0 %v837
          %2258 = vmatpush.msra.mxu0 %v833
          %2259 = vmatpush.msra.mxu0 %v829
          %2260 = vmatpush.msra.mxu0 %v825
          %2261 = vmatpush.msra.mxu0 %v821
          %2262 = vmatpush.msra.mxu0 %v817
          %2263 = vmatpush.msra.mxu0 %v813
          %2264 = vmatpush.msra.mxu0 %v809
          %2265 = vmatpush.msra.mxu0 %v805
          %2266 = vmatpush.msra.mxu0 %v801
          %2267 = vmatpush.msra.mxu0 %v797
          %2268 = vmatpush.msra.mxu0 %v793
          %2269 = vmatpush.msra.mxu0 %v789
          %2270 = vmatmul.f32.gmra.mxu0 %v2145
          %v2271 = vpop.f32.mrf.mxu0
          %v2272 = vadd.f32 %v2252, %v2271
          %2273 = vdwg.mxu0
          %2274 = vmatpush.msra.mxu0 %v913
          %2275 = vmatpush.msra.mxu0 %v909
          %2276 = vmatpush.msra.mxu0 %v905
          %2277 = vmatpush.msra.mxu0 %v901
          %2278 = vmatpush.msra.mxu0 %v897
          %2279 = vmatpush.msra.mxu0 %v893
          %2280 = vmatpush.msra.mxu0 %v889
          %2281 = vmatpush.msra.mxu0 %v885
          %2282 = vmatpush.msra.mxu0 %v881
          %2283 = vmatpush.msra.mxu0 %v877
          %2284 = vmatpush.msra.mxu0 %v873
          %2285 = vmatpush.msra.mxu0 %v869
          %2286 = vmatpush.msra.mxu0 %v865
          %2287 = vmatpush.msra.mxu0 %v861
          %2288 = vmatpush.msra.mxu0 %v857
          %2289 = vmatpush.msra.mxu0 %v853
          %2290 = vmatmul.f32.gmra.mxu0 %v2146
          %v2291 = vpop.f32.mrf.mxu0
          %v2292 = vadd.f32 %v2272, %v2291
          %2293 = vdwg.mxu0
          %2294 = vmatpush.msra.mxu0 %v977
          %2295 = vmatpush.msra.mxu0 %v973
          %2296 = vmatpush.msra.mxu0 %v969
          %2297 = vmatpush.msra.mxu0 %v965
          %2298 = vmatpush.msra.mxu0 %v961
          %2299 = vmatpush.msra.mxu0 %v957
          %2300 = vmatpush.msra.mxu0 %v953
          %2301 = vmatpush.msra.mxu0 %v949
          %2302 = vmatpush.msra.mxu0 %v945
          %2303 = vmatpush.msra.mxu0 %v941
          %2304 = vmatpush.msra.mxu0 %v937
          %2305 = vmatpush.msra.mxu0 %v933
          %2306 = vmatpush.msra.mxu0 %v929
          %2307 = vmatpush.msra.mxu0 %v925
          %2308 = vmatpush.msra.mxu0 %v921
          %2309 = vmatpush.msra.mxu0 %v917
          %2310 = vmatmul.f32.gmra.mxu0 %v2147
          %v2311 = vpop.f32.mrf.mxu0
          %v2312 = vadd.f32 %v2292, %v2311
          %2313 = vdwg.mxu0
          %2314 = vmatpush.msra.mxu0 %v1041
          %2315 = vmatpush.msra.mxu0 %v1037
          %2316 = vmatpush.msra.mxu0 %v1033
          %2317 = vmatpush.msra.mxu0 %v1029
          %2318 = vmatpush.msra.mxu0 %v1025
          %2319 = vmatpush.msra.mxu0 %v1021
          %2320 = vmatpush.msra.mxu0 %v1017
          %2321 = vmatpush.msra.mxu0 %v1013
          %2322 = vmatpush.msra.mxu0 %v1009
          %2323 = vmatpush.msra.mxu0 %v1005
          %2324 = vmatpush.msra.mxu0 %v1001
          %2325 = vmatpush.msra.mxu0 %v997
          %2326 = vmatpush.msra.mxu0 %v993
          %2327 = vmatpush.msra.mxu0 %v989
          %2328 = vmatpush.msra.mxu0 %v985
          %2329 = vmatpush.msra.mxu0 %v981
          %2330 = vmatmul.f32.gmra.mxu0 %v2148
          %v2331 = vpop.f32.mrf.mxu0
          %v2332 = vadd.f32 %v2312, %v2331
          %2333 = vdwg.mxu0
          %2334 = vmatpush.msra.mxu0 %v1105
          %2335 = vmatpush.msra.mxu0 %v1101
          %2336 = vmatpush.msra.mxu0 %v1097
          %2337 = vmatpush.msra.mxu0 %v1093
          %2338 = vmatpush.msra.mxu0 %v1089
          %2339 = vmatpush.msra.mxu0 %v1085
          %2340 = vmatpush.msra.mxu0 %v1081
          %2341 = vmatpush.msra.mxu0 %v1077
          %2342 = vmatpush.msra.mxu0 %v1073
          %2343 = vmatpush.msra.mxu0 %v1069
          %2344 = vmatpush.msra.mxu0 %v1065
          %2345 = vmatpush.msra.mxu0 %v1061
          %2346 = vmatpush.msra.mxu0 %v1057
          %2347 = vmatpush.msra.mxu0 %v1053
          %2348 = vmatpush.msra.mxu0 %v1049
          %2349 = vmatpush.msra.mxu0 %v1045
          %2350 = vmatmul.f32.gmra.mxu0 %v2149
          %v2351 = vpop.f32.mrf.mxu0
          %v2352 = vadd.f32 %v2332, %v2351
          %2353 = vdwg.mxu0
          %2354 = vmatpush.msra.mxu0 %v1169
          %2355 = vmatpush.msra.mxu0 %v1165
          %2356 = vmatpush.msra.mxu0 %v1161
          %2357 = vmatpush.msra.mxu0 %v1157
          %2358 = vmatpush.msra.mxu0 %v1153
          %2359 = vmatpush.msra.mxu0 %v1149
          %2360 = vmatpush.msra.mxu0 %v1145
          %2361 = vmatpush.msra.mxu0 %v1141
          %2362 = vmatpush.msra.mxu0 %v1137
          %2363 = vmatpush.msra.mxu0 %v1133
          %2364 = vmatpush.msra.mxu0 %v1129
          %2365 = vmatpush.msra.mxu0 %v1125
          %2366 = vmatpush.msra.mxu0 %v1121
          %2367 = vmatpush.msra.mxu0 %v1117
          %2368 = vmatpush.msra.mxu0 %v1113
          %2369 = vmatpush.msra.mxu0 %v1109
          %2370 = vmatmul.f32.gmra.mxu0 %v2152
          %v2371 = vpop.f32.mrf.mxu0
          %v2372 = vadd.f32 %v2352, %v2371
          %2373 = vdwg.mxu0
          %2374 = vmatpush.msra.mxu0 %v1233
          %2375 = vmatpush.msra.mxu0 %v1229
          %2376 = vmatpush.msra.mxu0 %v1225
          %2377 = vmatpush.msra.mxu0 %v1221
          %2378 = vmatpush.msra.mxu0 %v1217
          %2379 = vmatpush.msra.mxu0 %v1213
          %2380 = vmatpush.msra.mxu0 %v1209
          %2381 = vmatpush.msra.mxu0 %v1205
          %2382 = vmatpush.msra.mxu0 %v1201
          %2383 = vmatpush.msra.mxu0 %v1197
          %2384 = vmatpush.msra.mxu0 %v1193
          %2385 = vmatpush.msra.mxu0 %v1189
          %2386 = vmatpush.msra.mxu0 %v1185
          %2387 = vmatpush.msra.mxu0 %v1181
          %2388 = vmatpush.msra.mxu0 %v1177
          %2389 = vmatpush.msra.mxu0 %v1173
          %2390 = vmatmul.f32.gmra.mxu0 %v2153
          %v2391 = vpop.f32.mrf.mxu0
          %v2392 = vadd.f32 %v2372, %v2391
          %2393 = vdwg.mxu0
          %2394 = vmatpush.msra.mxu0 %v1297
          %2395 = vmatpush.msra.mxu0 %v1293
          %2396 = vmatpush.msra.mxu0 %v1289
          %2397 = vmatpush.msra.mxu0 %v1285
          %2398 = vmatpush.msra.mxu0 %v1281
          %2399 = vmatpush.msra.mxu0 %v1277
          %2400 = vmatpush.msra.mxu0 %v1273
          %2401 = vmatpush.msra.mxu0 %v1269
          %2402 = vmatpush.msra.mxu0 %v1265
          %2403 = vmatpush.msra.mxu0 %v1261
          %2404 = vmatpush.msra.mxu0 %v1257
          %2405 = vmatpush.msra.mxu0 %v1253
          %2406 = vmatpush.msra.mxu0 %v1249
          %2407 = vmatpush.msra.mxu0 %v1245
          %2408 = vmatpush.msra.mxu0 %v1241
          %2409 = vmatpush.msra.mxu0 %v1237
          %2410 = vmatmul.f32.gmra.mxu0 %v2154
          %v2411 = vpop.f32.mrf.mxu0
          %v2412 = vadd.f32 %v2392, %v2411
          %2413 = vdwg.mxu0
          %2414 = vmatpush.msra.mxu0 %v1361
          %2415 = vmatpush.msra.mxu0 %v1357
          %2416 = vmatpush.msra.mxu0 %v1353
          %2417 = vmatpush.msra.mxu0 %v1349
          %2418 = vmatpush.msra.mxu0 %v1345
          %2419 = vmatpush.msra.mxu0 %v1341
          %2420 = vmatpush.msra.mxu0 %v1337
          %2421 = vmatpush.msra.mxu0 %v1333
          %2422 = vmatpush.msra.mxu0 %v1329
          %2423 = vmatpush.msra.mxu0 %v1325
          %2424 = vmatpush.msra.mxu0 %v1321
          %2425 = vmatpush.msra.mxu0 %v1317
          %2426 = vmatpush.msra.mxu0 %v1313
          %2427 = vmatpush.msra.mxu0 %v1309
          %2428 = vmatpush.msra.mxu0 %v1305
          %2429 = vmatpush.msra.mxu0 %v1301
          %2430 = vmatmul.f32.gmra.mxu0 %v2155
          %v2431 = vpop.f32.mrf.mxu0
          %v2432 = vadd.f32 %v2412, %v2431
          %2433 = vdwg.mxu0
          %2434 = vmatpush.msra.mxu0 %v1425
          %2435 = vmatpush.msra.mxu0 %v1421
          %2436 = vmatpush.msra.mxu0 %v1417
          %2437 = vmatpush.msra.mxu0 %v1413
          %2438 = vmatpush.msra.mxu0 %v1409
          %2439 = vmatpush.msra.mxu0 %v1405
          %2440 = vmatpush.msra.mxu0 %v1401
          %2441 = vmatpush.msra.mxu0 %v1397
          %2442 = vmatpush.msra.mxu0 %v1393
          %2443 = vmatpush.msra.mxu0 %v1389
          %2444 = vmatpush.msra.mxu0 %v1385
          %2445 = vmatpush.msra.mxu0 %v1381
          %2446 = vmatpush.msra.mxu0 %v1377
          %2447 = vmatpush.msra.mxu0 %v1373
          %2448 = vmatpush.msra.mxu0 %v1369
          %2449 = vmatpush.msra.mxu0 %v1365
          %2450 = vmatmul.f32.gmra.mxu0 %v2156
          %v2451 = vpop.f32.mrf.mxu0
          %v2452 = vadd.f32 %v2432, %v2451
          %2453 = vdwg.mxu0
          %2454 = vmatpush.msra.mxu0 %v1489
          %2455 = vmatpush.msra.mxu0 %v1485
          %2456 = vmatpush.msra.mxu0 %v1481
          %2457 = vmatpush.msra.mxu0 %v1477
          %2458 = vmatpush.msra.mxu0 %v1473
          %2459 = vmatpush.msra.mxu0 %v1469
          %2460 = vmatpush.msra.mxu0 %v1465
          %2461 = vmatpush.msra.mxu0 %v1461
          %2462 = vmatpush.msra.mxu0 %v1457
          %2463 = vmatpush.msra.mxu0 %v1453
          %2464 = vmatpush.msra.mxu0 %v1449
          %2465 = vmatpush.msra.mxu0 %v1445
          %2466 = vmatpush.msra.mxu0 %v1441
          %2467 = vmatpush.msra.mxu0 %v1437
          %2468 = vmatpush.msra.mxu0 %v1433
          %2469 = vmatpush.msra.mxu0 %v1429
          %2470 = vmatmul.f32.gmra.mxu0 %v2157
          %v2471 = vpop.f32.mrf.mxu0
          %v2472 = vadd.f32 %v2452, %v2471
          %2473 = vdwg.mxu0
          %2474 = vmatpush.msra.mxu0 %v1553
          %2475 = vmatpush.msra.mxu0 %v1549
          %2476 = vmatpush.msra.mxu0 %v1545
          %2477 = vmatpush.msra.mxu0 %v1541
          %2478 = vmatpush.msra.mxu0 %v1537
          %2479 = vmatpush.msra.mxu0 %v1533
          %2480 = vmatpush.msra.mxu0 %v1529
          %2481 = vmatpush.msra.mxu0 %v1525
          %2482 = vmatpush.msra.mxu0 %v1521
          %2483 = vmatpush.msra.mxu0 %v1517
          %2484 = vmatpush.msra.mxu0 %v1513
          %2485 = vmatpush.msra.mxu0 %v1509
          %2486 = vmatpush.msra.mxu0 %v1505
          %2487 = vmatpush.msra.mxu0 %v1501
          %2488 = vmatpush.msra.mxu0 %v1497
          %2489 = vmatpush.msra.mxu0 %v1493
          %2490 = vmatmul.f32.gmra.mxu0 %v2158
          %v2491 = vpop.f32.mrf.mxu0
          %v2492 = vadd.f32 %v2472, %v2491
          %2493 = vdwg.mxu0
          %2494 = vmatpush.msra.mxu0 %v1617
          %2495 = vmatpush.msra.mxu0 %v1613
          %2496 = vmatpush.msra.mxu0 %v1609
          %2497 = vmatpush.msra.mxu0 %v1605
          %2498 = vmatpush.msra.mxu0 %v1601
          %2499 = vmatpush.msra.mxu0 %v1597
          %2500 = vmatpush.msra.mxu0 %v1593
          %2501 = vmatpush.msra.mxu0 %v1589
          %2502 = vmatpush.msra.mxu0 %v1585
          %2503 = vmatpush.msra.mxu0 %v1581
          %2504 = vmatpush.msra.mxu0 %v1577
          %2505 = vmatpush.msra.mxu0 %v1573
          %2506 = vmatpush.msra.mxu0 %v1569
          %2507 = vmatpush.msra.mxu0 %v1565
          %2508 = vmatpush.msra.mxu0 %v1561
          %2509 = vmatpush.msra.mxu0 %v1557
          %2510 = vmatmul.f32.gmra.mxu0 %v2159
          %v2511 = vpop.f32.mrf.mxu0
          %v2512 = vadd.f32 %v2492, %v2511
          %2513 = vdwg.mxu0
          %2514 = vmatpush.msra.mxu0 %v1681
          %2515 = vmatpush.msra.mxu0 %v1677
          %2516 = vmatpush.msra.mxu0 %v1673
          %2517 = vmatpush.msra.mxu0 %v1669
          %2518 = vmatpush.msra.mxu0 %v1665
          %2519 = vmatpush.msra.mxu0 %v1661
          %2520 = vmatpush.msra.mxu0 %v1657
          %2521 = vmatpush.msra.mxu0 %v1653
          %2522 = vmatpush.msra.mxu0 %v1649
          %2523 = vmatpush.msra.mxu0 %v1645
          %2524 = vmatpush.msra.mxu0 %v1641
          %2525 = vmatpush.msra.mxu0 %v1637
          %2526 = vmatpush.msra.mxu0 %v1633
          %2527 = vmatpush.msra.mxu0 %v1629
          %2528 = vmatpush.msra.mxu0 %v1625
          %2529 = vmatpush.msra.mxu0 %v1621
          %2530 = vmatmul.f32.gmra.mxu0 %v2162
          %v2531 = vpop.f32.mrf.mxu0
          %v2532 = vadd.f32 %v2512, %v2531
          %2533 = vdwg.mxu0
          %2534 = vmatpush.msra.mxu0 %v1745
          %2535 = vmatpush.msra.mxu0 %v1741
          %2536 = vmatpush.msra.mxu0 %v1737
          %2537 = vmatpush.msra.mxu0 %v1733
          %2538 = vmatpush.msra.mxu0 %v1729
          %2539 = vmatpush.msra.mxu0 %v1725
          %2540 = vmatpush.msra.mxu0 %v1721
          %2541 = vmatpush.msra.mxu0 %v1717
          %2542 = vmatpush.msra.mxu0 %v1713
          %2543 = vmatpush.msra.mxu0 %v1709
          %2544 = vmatpush.msra.mxu0 %v1705
          %2545 = vmatpush.msra.mxu0 %v1701
          %2546 = vmatpush.msra.mxu0 %v1697
          %2547 = vmatpush.msra.mxu0 %v1693
          %2548 = vmatpush.msra.mxu0 %v1689
          %2549 = vmatpush.msra.mxu0 %v1685
          %2550 = vmatmul.f32.gmra.mxu0 %v2163
          %v2551 = vpop.f32.mrf.mxu0
          %v2552 = vadd.f32 %v2532, %v2551
          %2553 = vdwg.mxu0
          %2554 = vmatpush.msra.mxu0 %v1809
          %2555 = vmatpush.msra.mxu0 %v1805
          %2556 = vmatpush.msra.mxu0 %v1801
          %2557 = vmatpush.msra.mxu0 %v1797
          %2558 = vmatpush.msra.mxu0 %v1793
          %2559 = vmatpush.msra.mxu0 %v1789
          %2560 = vmatpush.msra.mxu0 %v1785
          %2561 = vmatpush.msra.mxu0 %v1781
          %2562 = vmatpush.msra.mxu0 %v1777
          %2563 = vmatpush.msra.mxu0 %v1773
          %2564 = vmatpush.msra.mxu0 %v1769
          %2565 = vmatpush.msra.mxu0 %v1765
          %2566 = vmatpush.msra.mxu0 %v1761
          %2567 = vmatpush.msra.mxu0 %v1757
          %2568 = vmatpush.msra.mxu0 %v1753
          %2569 = vmatpush.msra.mxu0 %v1749
          %2570 = vmatmul.f32.gmra.mxu0 %v2164
          %v2571 = vpop.f32.mrf.mxu0
          %v2572 = vadd.f32 %v2552, %v2571
          %2573 = vdwg.mxu0
          %2574 = vmatpush.msra.mxu0 %v1873
          %2575 = vmatpush.msra.mxu0 %v1869
          %2576 = vmatpush.msra.mxu0 %v1865
          %2577 = vmatpush.msra.mxu0 %v1861
          %2578 = vmatpush.msra.mxu0 %v1857
          %2579 = vmatpush.msra.mxu0 %v1853
          %2580 = vmatpush.msra.mxu0 %v1849
          %2581 = vmatpush.msra.mxu0 %v1845
          %2582 = vmatpush.msra.mxu0 %v1841
          %2583 = vmatpush.msra.mxu0 %v1837
          %2584 = vmatpush.msra.mxu0 %v1833
          %2585 = vmatpush.msra.mxu0 %v1829
          %2586 = vmatpush.msra.mxu0 %v1825
          %2587 = vmatpush.msra.mxu0 %v1821
          %2588 = vmatpush.msra.mxu0 %v1817
          %2589 = vmatpush.msra.mxu0 %v1813
          %2590 = vmatmul.f32.gmra.mxu0 %v2165
          %v2591 = vpop.f32.mrf.mxu0
          %v2592 = vadd.f32 %v2572, %v2591
          %2593 = vdwg.mxu0
          %2594 = vmatpush.msra.mxu0 %v1937
          %2595 = vmatpush.msra.mxu0 %v1933
          %2596 = vmatpush.msra.mxu0 %v1929
          %2597 = vmatpush.msra.mxu0 %v1925
          %2598 = vmatpush.msra.mxu0 %v1921
          %2599 = vmatpush.msra.mxu0 %v1917
          %2600 = vmatpush.msra.mxu0 %v1913
          %2601 = vmatpush.msra.mxu0 %v1909
          %2602 = vmatpush.msra.mxu0 %v1905
          %2603 = vmatpush.msra.mxu0 %v1901
          %2604 = vmatpush.msra.mxu0 %v1897
          %2605 = vmatpush.msra.mxu0 %v1893
          %2606 = vmatpush.msra.mxu0 %v1889
          %2607 = vmatpush.msra.mxu0 %v1885
          %2608 = vmatpush.msra.mxu0 %v1881
          %2609 = vmatpush.msra.mxu0 %v1877
          %2610 = vmatmul.f32.gmra.mxu0 %v2166
          %v2611 = vpop.f32.mrf.mxu0
          %v2612 = vadd.f32 %v2592, %v2611
          %2613 = vdwg.mxu0
          %2614 = vmatpush.msra.mxu0 %v2001
          %2615 = vmatpush.msra.mxu0 %v1997
          %2616 = vmatpush.msra.mxu0 %v1993
          %2617 = vmatpush.msra.mxu0 %v1989
          %2618 = vmatpush.msra.mxu0 %v1985
          %2619 = vmatpush.msra.mxu0 %v1981
          %2620 = vmatpush.msra.mxu0 %v1977
          %2621 = vmatpush.msra.mxu0 %v1973
          %2622 = vmatpush.msra.mxu0 %v1969
          %2623 = vmatpush.msra.mxu0 %v1965
          %2624 = vmatpush.msra.mxu0 %v1961
          %2625 = vmatpush.msra.mxu0 %v1957
          %2626 = vmatpush.msra.mxu0 %v1953
          %2627 = vmatpush.msra.mxu0 %v1949
          %2628 = vmatpush.msra.mxu0 %v1945
          %2629 = vmatpush.msra.mxu0 %v1941
          %2630 = vmatmul.f32.gmra.mxu0 %v2167
          %v2631 = vpop.f32.mrf.mxu0
          %v2632 = vadd.f32 %v2612, %v2631
          %2633 = vdwg.mxu0
          %2634 = vmatpush.msra.mxu0 %v2065
          %2635 = vmatpush.msra.mxu0 %v2061
          %2636 = vmatpush.msra.mxu0 %v2057
          %2637 = vmatpush.msra.mxu0 %v2053
          %2638 = vmatpush.msra.mxu0 %v2049
          %2639 = vmatpush.msra.mxu0 %v2045
          %2640 = vmatpush.msra.mxu0 %v2041
          %2641 = vmatpush.msra.mxu0 %v2037
          %2642 = vmatpush.msra.mxu0 %v2033
          %2643 = vmatpush.msra.mxu0 %v2029
          %2644 = vmatpush.msra.mxu0 %v2025
          %2645 = vmatpush.msra.mxu0 %v2021
          %2646 = vmatpush.msra.mxu0 %v2017
          %2647 = vmatpush.msra.mxu0 %v2013
          %2648 = vmatpush.msra.mxu0 %v2009
          %2649 = vmatpush.msra.mxu0 %v2005
          %2650 = vmatmul.f32.gmra.mxu0 %v2168
          %v2651 = vpop.f32.mrf.mxu0
          %v2652 = vadd.f32 %v2632, %v2651
          %2653 = vdwg.mxu0
          %2654 = vmatpush.msra.mxu0 %v2129
          %2655 = vmatpush.msra.mxu0 %v2125
          %2656 = vmatpush.msra.mxu0 %v2121
          %2657 = vmatpush.msra.mxu0 %v2117
          %2658 = vmatpush.msra.mxu0 %v2113
          %2659 = vmatpush.msra.mxu0 %v2109
          %2660 = vmatpush.msra.mxu0 %v2105
          %2661 = vmatpush.msra.mxu0 %v2101
          %2662 = vmatpush.msra.mxu0 %v2097
          %2663 = vmatpush.msra.mxu0 %v2093
          %2664 = vmatpush.msra.mxu0 %v2089
          %2665 = vmatpush.msra.mxu0 %v2085
          %2666 = vmatpush.msra.mxu0 %v2081
          %2667 = vmatpush.msra.mxu0 %v2077
          %2668 = vmatpush.msra.mxu0 %v2073
          %2669 = vmatpush.msra.mxu0 %v2069
          %2670 = vmatmul.f32.gmra.mxu0 %v2169
          %v2671 = vpop.f32.mrf.mxu0
          %v2672 = vadd.f32 %v2652, %v2671
          %2673 = vdwg.mxu0
          %2674 = vmatpush.msra.mxu0 %v658
          %2675 = vmatpush.msra.mxu0 %v654
          %2676 = vmatpush.msra.mxu0 %v650
          %2677 = vmatpush.msra.mxu0 %v646
          %2678 = vmatpush.msra.mxu0 %v642
          %2679 = vmatpush.msra.mxu0 %v638
          %2680 = vmatpush.msra.mxu0 %v634
          %2681 = vmatpush.msra.mxu0 %v630
          %2682 = vmatpush.msra.mxu0 %v626
          %2683 = vmatpush.msra.mxu0 %v622
          %2684 = vmatpush.msra.mxu0 %v618
          %2685 = vmatpush.msra.mxu0 %v614
          %2686 = vmatpush.msra.mxu0 %v610
          %2687 = vmatpush.msra.mxu0 %v606
          %2688 = vmatpush.msra.mxu0 %v602
          %2689 = vmatpush.msra.mxu0 %v598
          %2690 = vmatmul.f32.gmra.mxu0 %v2142
          %v2691 = vpop.f32.mrf.mxu0
          %v2692 = vadd.f32 0.0, %v2691
          %2693 = vdwg.mxu0
          %2694 = vmatpush.msra.mxu0 %v722
          %2695 = vmatpush.msra.mxu0 %v718
          %2696 = vmatpush.msra.mxu0 %v714
          %2697 = vmatpush.msra.mxu0 %v710
          %2698 = vmatpush.msra.mxu0 %v706
          %2699 = vmatpush.msra.mxu0 %v702
          %2700 = vmatpush.msra.mxu0 %v698
          %2701 = vmatpush.msra.mxu0 %v694
          %2702 = vmatpush.msra.mxu0 %v690
          %2703 = vmatpush.msra.mxu0 %v686
          %2704 = vmatpush.msra.mxu0 %v682
          %2705 = vmatpush.msra.mxu0 %v678
          %2706 = vmatpush.msra.mxu0 %v674
          %2707 = vmatpush.msra.mxu0 %v670
          %2708 = vmatpush.msra.mxu0 %v666
          %2709 = vmatpush.msra.mxu0 %v662
          %2710 = vmatmul.f32.gmra.mxu0 %v2143
          %v2711 = vpop.f32.mrf.mxu0
          %v2712 = vadd.f32 %v2692, %v2711
          %2713 = vdwg.mxu0
          %2714 = vmatpush.msra.mxu0 %v786
          %2715 = vmatpush.msra.mxu0 %v782
          %2716 = vmatpush.msra.mxu0 %v778
          %2717 = vmatpush.msra.mxu0 %v774
          %2718 = vmatpush.msra.mxu0 %v770
          %2719 = vmatpush.msra.mxu0 %v766
          %2720 = vmatpush.msra.mxu0 %v762
          %2721 = vmatpush.msra.mxu0 %v758
          %2722 = vmatpush.msra.mxu0 %v754
          %2723 = vmatpush.msra.mxu0 %v750
          %2724 = vmatpush.msra.mxu0 %v746
          %2725 = vmatpush.msra.mxu0 %v742
          %2726 = vmatpush.msra.mxu0 %v738
          %2727 = vmatpush.msra.mxu0 %v734
          %2728 = vmatpush.msra.mxu0 %v730
          %2729 = vmatpush.msra.mxu0 %v726
          %2730 = vmatmul.f32.gmra.mxu0 %v2144
          %v2731 = vpop.f32.mrf.mxu0
          %v2732 = vadd.f32 %v2712, %v2731
          %2733 = vdwg.mxu0
          %2734 = vmatpush.msra.mxu0 %v850
          %2735 = vmatpush.msra.mxu0 %v846
          %2736 = vmatpush.msra.mxu0 %v842
          %2737 = vmatpush.msra.mxu0 %v838
          %2738 = vmatpush.msra.mxu0 %v834
          %2739 = vmatpush.msra.mxu0 %v830
          %2740 = vmatpush.msra.mxu0 %v826
          %2741 = vmatpush.msra.mxu0 %v822
          %2742 = vmatpush.msra.mxu0 %v818
          %2743 = vmatpush.msra.mxu0 %v814
          %2744 = vmatpush.msra.mxu0 %v810
          %2745 = vmatpush.msra.mxu0 %v806
          %2746 = vmatpush.msra.mxu0 %v802
          %2747 = vmatpush.msra.mxu0 %v798
          %2748 = vmatpush.msra.mxu0 %v794
          %2749 = vmatpush.msra.mxu0 %v790
          %2750 = vmatmul.f32.gmra.mxu0 %v2145
          %v2751 = vpop.f32.mrf.mxu0
          %v2752 = vadd.f32 %v2732, %v2751
          %2753 = vdwg.mxu0
          %2754 = vmatpush.msra.mxu0 %v914
          %2755 = vmatpush.msra.mxu0 %v910
          %2756 = vmatpush.msra.mxu0 %v906
          %2757 = vmatpush.msra.mxu0 %v902
          %2758 = vmatpush.msra.mxu0 %v898
          %2759 = vmatpush.msra.mxu0 %v894
          %2760 = vmatpush.msra.mxu0 %v890
          %2761 = vmatpush.msra.mxu0 %v886
          %2762 = vmatpush.msra.mxu0 %v882
          %2763 = vmatpush.msra.mxu0 %v878
          %2764 = vmatpush.msra.mxu0 %v874
          %2765 = vmatpush.msra.mxu0 %v870
          %2766 = vmatpush.msra.mxu0 %v866
          %2767 = vmatpush.msra.mxu0 %v862
          %2768 = vmatpush.msra.mxu0 %v858
          %2769 = vmatpush.msra.mxu0 %v854
          %2770 = vmatmul.f32.gmra.mxu0 %v2146
          %v2771 = vpop.f32.mrf.mxu0
          %v2772 = vadd.f32 %v2752, %v2771
          %2773 = vdwg.mxu0
          %2774 = vmatpush.msra.mxu0 %v978
          %2775 = vmatpush.msra.mxu0 %v974
          %2776 = vmatpush.msra.mxu0 %v970
          %2777 = vmatpush.msra.mxu0 %v966
          %2778 = vmatpush.msra.mxu0 %v962
          %2779 = vmatpush.msra.mxu0 %v958
          %2780 = vmatpush.msra.mxu0 %v954
          %2781 = vmatpush.msra.mxu0 %v950
          %2782 = vmatpush.msra.mxu0 %v946
          %2783 = vmatpush.msra.mxu0 %v942
          %2784 = vmatpush.msra.mxu0 %v938
          %2785 = vmatpush.msra.mxu0 %v934
          %2786 = vmatpush.msra.mxu0 %v930
          %2787 = vmatpush.msra.mxu0 %v926
          %2788 = vmatpush.msra.mxu0 %v922
          %2789 = vmatpush.msra.mxu0 %v918
          %2790 = vmatmul.f32.gmra.mxu0 %v2147
          %v2791 = vpop.f32.mrf.mxu0
          %v2792 = vadd.f32 %v2772, %v2791
          %2793 = vdwg.mxu0
          %2794 = vmatpush.msra.mxu0 %v1042
          %2795 = vmatpush.msra.mxu0 %v1038
          %2796 = vmatpush.msra.mxu0 %v1034
          %2797 = vmatpush.msra.mxu0 %v1030
          %2798 = vmatpush.msra.mxu0 %v1026
          %2799 = vmatpush.msra.mxu0 %v1022
          %2800 = vmatpush.msra.mxu0 %v1018
          %2801 = vmatpush.msra.mxu0 %v1014
          %2802 = vmatpush.msra.mxu0 %v1010
          %2803 = vmatpush.msra.mxu0 %v1006
          %2804 = vmatpush.msra.mxu0 %v1002
          %2805 = vmatpush.msra.mxu0 %v998
          %2806 = vmatpush.msra.mxu0 %v994
          %2807 = vmatpush.msra.mxu0 %v990
          %2808 = vmatpush.msra.mxu0 %v986
          %2809 = vmatpush.msra.mxu0 %v982
          %2810 = vmatmul.f32.gmra.mxu0 %v2148
          %v2811 = vpop.f32.mrf.mxu0
          %v2812 = vadd.f32 %v2792, %v2811
          %2813 = vdwg.mxu0
          %2814 = vmatpush.msra.mxu0 %v1106
          %2815 = vmatpush.msra.mxu0 %v1102
          %2816 = vmatpush.msra.mxu0 %v1098
          %2817 = vmatpush.msra.mxu0 %v1094
          %2818 = vmatpush.msra.mxu0 %v1090
          %2819 = vmatpush.msra.mxu0 %v1086
          %2820 = vmatpush.msra.mxu0 %v1082
          %2821 = vmatpush.msra.mxu0 %v1078
          %2822 = vmatpush.msra.mxu0 %v1074
          %2823 = vmatpush.msra.mxu0 %v1070
          %2824 = vmatpush.msra.mxu0 %v1066
          %2825 = vmatpush.msra.mxu0 %v1062
          %2826 = vmatpush.msra.mxu0 %v1058
          %2827 = vmatpush.msra.mxu0 %v1054
          %2828 = vmatpush.msra.mxu0 %v1050
          %2829 = vmatpush.msra.mxu0 %v1046
          %2830 = vmatmul.f32.gmra.mxu0 %v2149
          %v2831 = vpop.f32.mrf.mxu0
          %v2832 = vadd.f32 %v2812, %v2831
          %2833 = vdwg.mxu0
          %2834 = vmatpush.msra.mxu0 %v1170
          %2835 = vmatpush.msra.mxu0 %v1166
          %2836 = vmatpush.msra.mxu0 %v1162
          %2837 = vmatpush.msra.mxu0 %v1158
          %2838 = vmatpush.msra.mxu0 %v1154
          %2839 = vmatpush.msra.mxu0 %v1150
          %2840 = vmatpush.msra.mxu0 %v1146
          %2841 = vmatpush.msra.mxu0 %v1142
          %2842 = vmatpush.msra.mxu0 %v1138
          %2843 = vmatpush.msra.mxu0 %v1134
          %2844 = vmatpush.msra.mxu0 %v1130
          %2845 = vmatpush.msra.mxu0 %v1126
          %2846 = vmatpush.msra.mxu0 %v1122
          %2847 = vmatpush.msra.mxu0 %v1118
          %2848 = vmatpush.msra.mxu0 %v1114
          %2849 = vmatpush.msra.mxu0 %v1110
          %2850 = vmatmul.f32.gmra.mxu0 %v2152
          %v2851 = vpop.f32.mrf.mxu0
          %v2852 = vadd.f32 %v2832, %v2851
          %2853 = vdwg.mxu0
          %2854 = vmatpush.msra.mxu0 %v1234
          %2855 = vmatpush.msra.mxu0 %v1230
          %2856 = vmatpush.msra.mxu0 %v1226
          %2857 = vmatpush.msra.mxu0 %v1222
          %2858 = vmatpush.msra.mxu0 %v1218
          %2859 = vmatpush.msra.mxu0 %v1214
          %2860 = vmatpush.msra.mxu0 %v1210
          %2861 = vmatpush.msra.mxu0 %v1206
          %2862 = vmatpush.msra.mxu0 %v1202
          %2863 = vmatpush.msra.mxu0 %v1198
          %2864 = vmatpush.msra.mxu0 %v1194
          %2865 = vmatpush.msra.mxu0 %v1190
          %2866 = vmatpush.msra.mxu0 %v1186
          %2867 = vmatpush.msra.mxu0 %v1182
          %2868 = vmatpush.msra.mxu0 %v1178
          %2869 = vmatpush.msra.mxu0 %v1174
          %2870 = vmatmul.f32.gmra.mxu0 %v2153
          %v2871 = vpop.f32.mrf.mxu0
          %v2872 = vadd.f32 %v2852, %v2871
          %2873 = vdwg.mxu0
          %2874 = vmatpush.msra.mxu0 %v1298
          %2875 = vmatpush.msra.mxu0 %v1294
          %2876 = vmatpush.msra.mxu0 %v1290
          %2877 = vmatpush.msra.mxu0 %v1286
          %2878 = vmatpush.msra.mxu0 %v1282
          %2879 = vmatpush.msra.mxu0 %v1278
          %2880 = vmatpush.msra.mxu0 %v1274
          %2881 = vmatpush.msra.mxu0 %v1270
          %2882 = vmatpush.msra.mxu0 %v1266
          %2883 = vmatpush.msra.mxu0 %v1262
          %2884 = vmatpush.msra.mxu0 %v1258
          %2885 = vmatpush.msra.mxu0 %v1254
          %2886 = vmatpush.msra.mxu0 %v1250
          %2887 = vmatpush.msra.mxu0 %v1246
          %2888 = vmatpush.msra.mxu0 %v1242
          %2889 = vmatpush.msra.mxu0 %v1238
          %2890 = vmatmul.f32.gmra.mxu0 %v2154
          %v2891 = vpop.f32.mrf.mxu0
          %v2892 = vadd.f32 %v2872, %v2891
          %2893 = vdwg.mxu0
          %2894 = vmatpush.msra.mxu0 %v1362
          %2895 = vmatpush.msra.mxu0 %v1358
          %2896 = vmatpush.msra.mxu0 %v1354
          %2897 = vmatpush.msra.mxu0 %v1350
          %2898 = vmatpush.msra.mxu0 %v1346
          %2899 = vmatpush.msra.mxu0 %v1342
          %2900 = vmatpush.msra.mxu0 %v1338
          %2901 = vmatpush.msra.mxu0 %v1334
          %2902 = vmatpush.msra.mxu0 %v1330
          %2903 = vmatpush.msra.mxu0 %v1326
          %2904 = vmatpush.msra.mxu0 %v1322
          %2905 = vmatpush.msra.mxu0 %v1318
          %2906 = vmatpush.msra.mxu0 %v1314
          %2907 = vmatpush.msra.mxu0 %v1310
          %2908 = vmatpush.msra.mxu0 %v1306
          %2909 = vmatpush.msra.mxu0 %v1302
          %2910 = vmatmul.f32.gmra.mxu0 %v2155
          %v2911 = vpop.f32.mrf.mxu0
          %v2912 = vadd.f32 %v2892, %v2911
          %2913 = vdwg.mxu0
          %2914 = vmatpush.msra.mxu0 %v1426
          %2915 = vmatpush.msra.mxu0 %v1422
          %2916 = vmatpush.msra.mxu0 %v1418
          %2917 = vmatpush.msra.mxu0 %v1414
          %2918 = vmatpush.msra.mxu0 %v1410
          %2919 = vmatpush.msra.mxu0 %v1406
          %2920 = vmatpush.msra.mxu0 %v1402
          %2921 = vmatpush.msra.mxu0 %v1398
          %2922 = vmatpush.msra.mxu0 %v1394
          %2923 = vmatpush.msra.mxu0 %v1390
          %2924 = vmatpush.msra.mxu0 %v1386
          %2925 = vmatpush.msra.mxu0 %v1382
          %2926 = vmatpush.msra.mxu0 %v1378
          %2927 = vmatpush.msra.mxu0 %v1374
          %2928 = vmatpush.msra.mxu0 %v1370
          %2929 = vmatpush.msra.mxu0 %v1366
          %2930 = vmatmul.f32.gmra.mxu0 %v2156
          %v2931 = vpop.f32.mrf.mxu0
          %v2932 = vadd.f32 %v2912, %v2931
          %2933 = vdwg.mxu0
          %2934 = vmatpush.msra.mxu0 %v1490
          %2935 = vmatpush.msra.mxu0 %v1486
          %2936 = vmatpush.msra.mxu0 %v1482
          %2937 = vmatpush.msra.mxu0 %v1478
          %2938 = vmatpush.msra.mxu0 %v1474
          %2939 = vmatpush.msra.mxu0 %v1470
          %2940 = vmatpush.msra.mxu0 %v1466
          %2941 = vmatpush.msra.mxu0 %v1462
          %2942 = vmatpush.msra.mxu0 %v1458
          %2943 = vmatpush.msra.mxu0 %v1454
          %2944 = vmatpush.msra.mxu0 %v1450
          %2945 = vmatpush.msra.mxu0 %v1446
          %2946 = vmatpush.msra.mxu0 %v1442
          %2947 = vmatpush.msra.mxu0 %v1438
          %2948 = vmatpush.msra.mxu0 %v1434
          %2949 = vmatpush.msra.mxu0 %v1430
          %2950 = vmatmul.f32.gmra.mxu0 %v2157
          %v2951 = vpop.f32.mrf.mxu0
          %v2952 = vadd.f32 %v2932, %v2951
          %2953 = vdwg.mxu0
          %2954 = vmatpush.msra.mxu0 %v1554
          %2955 = vmatpush.msra.mxu0 %v1550
          %2956 = vmatpush.msra.mxu0 %v1546
          %2957 = vmatpush.msra.mxu0 %v1542
          %2958 = vmatpush.msra.mxu0 %v1538
          %2959 = vmatpush.msra.mxu0 %v1534
          %2960 = vmatpush.msra.mxu0 %v1530
          %2961 = vmatpush.msra.mxu0 %v1526
          %2962 = vmatpush.msra.mxu0 %v1522
          %2963 = vmatpush.msra.mxu0 %v1518
          %2964 = vmatpush.msra.mxu0 %v1514
          %2965 = vmatpush.msra.mxu0 %v1510
          %2966 = vmatpush.msra.mxu0 %v1506
          %2967 = vmatpush.msra.mxu0 %v1502
          %2968 = vmatpush.msra.mxu0 %v1498
          %2969 = vmatpush.msra.mxu0 %v1494
          %2970 = vmatmul.f32.gmra.mxu0 %v2158
          %v2971 = vpop.f32.mrf.mxu0
          %v2972 = vadd.f32 %v2952, %v2971
          %2973 = vdwg.mxu0
          %2974 = vmatpush.msra.mxu0 %v1618
          %2975 = vmatpush.msra.mxu0 %v1614
          %2976 = vmatpush.msra.mxu0 %v1610
          %2977 = vmatpush.msra.mxu0 %v1606
          %2978 = vmatpush.msra.mxu0 %v1602
          %2979 = vmatpush.msra.mxu0 %v1598
          %2980 = vmatpush.msra.mxu0 %v1594
          %2981 = vmatpush.msra.mxu0 %v1590
          %2982 = vmatpush.msra.mxu0 %v1586
          %2983 = vmatpush.msra.mxu0 %v1582
          %2984 = vmatpush.msra.mxu0 %v1578
          %2985 = vmatpush.msra.mxu0 %v1574
          %2986 = vmatpush.msra.mxu0 %v1570
          %2987 = vmatpush.msra.mxu0 %v1566
          %2988 = vmatpush.msra.mxu0 %v1562
          %2989 = vmatpush.msra.mxu0 %v1558
          %2990 = vmatmul.f32.gmra.mxu0 %v2159
          %v2991 = vpop.f32.mrf.mxu0
          %v2992 = vadd.f32 %v2972, %v2991
          %2993 = vdwg.mxu0
          %2994 = vmatpush.msra.mxu0 %v1682
          %2995 = vmatpush.msra.mxu0 %v1678
          %2996 = vmatpush.msra.mxu0 %v1674
          %2997 = vmatpush.msra.mxu0 %v1670
          %2998 = vmatpush.msra.mxu0 %v1666
          %2999 = vmatpush.msra.mxu0 %v1662
          %3000 = vmatpush.msra.mxu0 %v1658
          %3001 = vmatpush.msra.mxu0 %v1654
          %3002 = vmatpush.msra.mxu0 %v1650
          %3003 = vmatpush.msra.mxu0 %v1646
          %3004 = vmatpush.msra.mxu0 %v1642
          %3005 = vmatpush.msra.mxu0 %v1638
          %3006 = vmatpush.msra.mxu0 %v1634
          %3007 = vmatpush.msra.mxu0 %v1630
          %3008 = vmatpush.msra.mxu0 %v1626
          %3009 = vmatpush.msra.mxu0 %v1622
          %3010 = vmatmul.f32.gmra.mxu0 %v2162
          %v3011 = vpop.f32.mrf.mxu0
          %v3012 = vadd.f32 %v2992, %v3011
          %3013 = vdwg.mxu0
          %3014 = vmatpush.msra.mxu0 %v1746
          %3015 = vmatpush.msra.mxu0 %v1742
          %3016 = vmatpush.msra.mxu0 %v1738
          %3017 = vmatpush.msra.mxu0 %v1734
          %3018 = vmatpush.msra.mxu0 %v1730
          %3019 = vmatpush.msra.mxu0 %v1726
          %3020 = vmatpush.msra.mxu0 %v1722
          %3021 = vmatpush.msra.mxu0 %v1718
          %3022 = vmatpush.msra.mxu0 %v1714
          %3023 = vmatpush.msra.mxu0 %v1710
          %3024 = vmatpush.msra.mxu0 %v1706
          %3025 = vmatpush.msra.mxu0 %v1702
          %3026 = vmatpush.msra.mxu0 %v1698
          %3027 = vmatpush.msra.mxu0 %v1694
          %3028 = vmatpush.msra.mxu0 %v1690
          %3029 = vmatpush.msra.mxu0 %v1686
          %3030 = vmatmul.f32.gmra.mxu0 %v2163
          %v3031 = vpop.f32.mrf.mxu0
          %v3032 = vadd.f32 %v3012, %v3031
          %3033 = vdwg.mxu0
          %3034 = vmatpush.msra.mxu0 %v1810
          %3035 = vmatpush.msra.mxu0 %v1806
          %3036 = vmatpush.msra.mxu0 %v1802
          %3037 = vmatpush.msra.mxu0 %v1798
          %3038 = vmatpush.msra.mxu0 %v1794
          %3039 = vmatpush.msra.mxu0 %v1790
          %3040 = vmatpush.msra.mxu0 %v1786
          %3041 = vmatpush.msra.mxu0 %v1782
          %3042 = vmatpush.msra.mxu0 %v1778
          %3043 = vmatpush.msra.mxu0 %v1774
          %3044 = vmatpush.msra.mxu0 %v1770
          %3045 = vmatpush.msra.mxu0 %v1766
          %3046 = vmatpush.msra.mxu0 %v1762
          %3047 = vmatpush.msra.mxu0 %v1758
          %3048 = vmatpush.msra.mxu0 %v1754
          %3049 = vmatpush.msra.mxu0 %v1750
          %3050 = vmatmul.f32.gmra.mxu0 %v2164
          %v3051 = vpop.f32.mrf.mxu0
          %v3052 = vadd.f32 %v3032, %v3051
          %3053 = vdwg.mxu0
          %3054 = vmatpush.msra.mxu0 %v1874
          %3055 = vmatpush.msra.mxu0 %v1870
          %3056 = vmatpush.msra.mxu0 %v1866
          %3057 = vmatpush.msra.mxu0 %v1862
          %3058 = vmatpush.msra.mxu0 %v1858
          %3059 = vmatpush.msra.mxu0 %v1854
          %3060 = vmatpush.msra.mxu0 %v1850
          %3061 = vmatpush.msra.mxu0 %v1846
          %3062 = vmatpush.msra.mxu0 %v1842
          %3063 = vmatpush.msra.mxu0 %v1838
          %3064 = vmatpush.msra.mxu0 %v1834
          %3065 = vmatpush.msra.mxu0 %v1830
          %3066 = vmatpush.msra.mxu0 %v1826
          %3067 = vmatpush.msra.mxu0 %v1822
          %3068 = vmatpush.msra.mxu0 %v1818
          %3069 = vmatpush.msra.mxu0 %v1814
          %3070 = vmatmul.f32.gmra.mxu0 %v2165
          %v3071 = vpop.f32.mrf.mxu0
          %v3072 = vadd.f32 %v3052, %v3071
          %3073 = vdwg.mxu0
          %3074 = vmatpush.msra.mxu0 %v1938
          %3075 = vmatpush.msra.mxu0 %v1934
          %3076 = vmatpush.msra.mxu0 %v1930
          %3077 = vmatpush.msra.mxu0 %v1926
          %3078 = vmatpush.msra.mxu0 %v1922
          %3079 = vmatpush.msra.mxu0 %v1918
          %3080 = vmatpush.msra.mxu0 %v1914
          %3081 = vmatpush.msra.mxu0 %v1910
          %3082 = vmatpush.msra.mxu0 %v1906
          %3083 = vmatpush.msra.mxu0 %v1902
          %3084 = vmatpush.msra.mxu0 %v1898
          %3085 = vmatpush.msra.mxu0 %v1894
          %3086 = vmatpush.msra.mxu0 %v1890
          %3087 = vmatpush.msra.mxu0 %v1886
          %3088 = vmatpush.msra.mxu0 %v1882
          %3089 = vmatpush.msra.mxu0 %v1878
          %3090 = vmatmul.f32.gmra.mxu0 %v2166
          %v3091 = vpop.f32.mrf.mxu0
          %v3092 = vadd.f32 %v3072, %v3091
          %3093 = vdwg.mxu0
          %3094 = vmatpush.msra.mxu0 %v2002
          %3095 = vmatpush.msra.mxu0 %v1998
          %3096 = vmatpush.msra.mxu0 %v1994
          %3097 = vmatpush.msra.mxu0 %v1990
          %3098 = vmatpush.msra.mxu0 %v1986
          %3099 = vmatpush.msra.mxu0 %v1982
          %3100 = vmatpush.msra.mxu0 %v1978
          %3101 = vmatpush.msra.mxu0 %v1974
          %3102 = vmatpush.msra.mxu0 %v1970
          %3103 = vmatpush.msra.mxu0 %v1966
          %3104 = vmatpush.msra.mxu0 %v1962
          %3105 = vmatpush.msra.mxu0 %v1958
          %3106 = vmatpush.msra.mxu0 %v1954
          %3107 = vmatpush.msra.mxu0 %v1950
          %3108 = vmatpush.msra.mxu0 %v1946
          %3109 = vmatpush.msra.mxu0 %v1942
          %3110 = vmatmul.f32.gmra.mxu0 %v2167
          %v3111 = vpop.f32.mrf.mxu0
          %v3112 = vadd.f32 %v3092, %v3111
          %3113 = vdwg.mxu0
          %3114 = vmatpush.msra.mxu0 %v2066
          %3115 = vmatpush.msra.mxu0 %v2062
          %3116 = vmatpush.msra.mxu0 %v2058
          %3117 = vmatpush.msra.mxu0 %v2054
          %3118 = vmatpush.msra.mxu0 %v2050
          %3119 = vmatpush.msra.mxu0 %v2046
          %3120 = vmatpush.msra.mxu0 %v2042
          %3121 = vmatpush.msra.mxu0 %v2038
          %3122 = vmatpush.msra.mxu0 %v2034
          %3123 = vmatpush.msra.mxu0 %v2030
          %3124 = vmatpush.msra.mxu0 %v2026
          %3125 = vmatpush.msra.mxu0 %v2022
          %3126 = vmatpush.msra.mxu0 %v2018
          %3127 = vmatpush.msra.mxu0 %v2014
          %3128 = vmatpush.msra.mxu0 %v2010
          %3129 = vmatpush.msra.mxu0 %v2006
          %3130 = vmatmul.f32.gmra.mxu0 %v2168
          %v3131 = vpop.f32.mrf.mxu0
          %v3132 = vadd.f32 %v3112, %v3131
          %3133 = vdwg.mxu0
          %3134 = vmatpush.msra.mxu0 %v2130
          %3135 = vmatpush.msra.mxu0 %v2126
          %3136 = vmatpush.msra.mxu0 %v2122
          %3137 = vmatpush.msra.mxu0 %v2118
          %3138 = vmatpush.msra.mxu0 %v2114
          %3139 = vmatpush.msra.mxu0 %v2110
          %3140 = vmatpush.msra.mxu0 %v2106
          %3141 = vmatpush.msra.mxu0 %v2102
          %3142 = vmatpush.msra.mxu0 %v2098
          %3143 = vmatpush.msra.mxu0 %v2094
          %3144 = vmatpush.msra.mxu0 %v2090
          %3145 = vmatpush.msra.mxu0 %v2086
          %3146 = vmatpush.msra.mxu0 %v2082
          %3147 = vmatpush.msra.mxu0 %v2078
          %3148 = vmatpush.msra.mxu0 %v2074
          %3149 = vmatpush.msra.mxu0 %v2070
          %3150 = vmatmul.f32.gmra.mxu0 %v2169
          %v3151 = vpop.f32.mrf.mxu0
          %v3152 = vadd.f32 %v3132, %v3151
          %3153 = vdwg.mxu0
          %3154 = vmatpush.msra.mxu0 %v659
          %3155 = vmatpush.msra.mxu0 %v655
          %3156 = vmatpush.msra.mxu0 %v651
          %3157 = vmatpush.msra.mxu0 %v647
          %3158 = vmatpush.msra.mxu0 %v643
          %3159 = vmatpush.msra.mxu0 %v639
          %3160 = vmatpush.msra.mxu0 %v635
          %3161 = vmatpush.msra.mxu0 %v631
          %3162 = vmatpush.msra.mxu0 %v627
          %3163 = vmatpush.msra.mxu0 %v623
          %3164 = vmatpush.msra.mxu0 %v619
          %3165 = vmatpush.msra.mxu0 %v615
          %3166 = vmatpush.msra.mxu0 %v611
          %3167 = vmatpush.msra.mxu0 %v607
          %3168 = vmatpush.msra.mxu0 %v603
          %3169 = vmatpush.msra.mxu0 %v599
          %3170 = vmatmul.f32.gmra.mxu0 %v2142
          %v3171 = vpop.f32.mrf.mxu0
          %v3172 = vadd.f32 0.0, %v3171
          %3173 = vdwg.mxu0
          %3174 = vmatpush.msra.mxu0 %v723
          %3175 = vmatpush.msra.mxu0 %v719
          %3176 = vmatpush.msra.mxu0 %v715
          %3177 = vmatpush.msra.mxu0 %v711
          %3178 = vmatpush.msra.mxu0 %v707
          %3179 = vmatpush.msra.mxu0 %v703
          %3180 = vmatpush.msra.mxu0 %v699
          %3181 = vmatpush.msra.mxu0 %v695
          %3182 = vmatpush.msra.mxu0 %v691
          %3183 = vmatpush.msra.mxu0 %v687
          %3184 = vmatpush.msra.mxu0 %v683
          %3185 = vmatpush.msra.mxu0 %v679
          %3186 = vmatpush.msra.mxu0 %v675
          %3187 = vmatpush.msra.mxu0 %v671
          %3188 = vmatpush.msra.mxu0 %v667
          %3189 = vmatpush.msra.mxu0 %v663
          %3190 = vmatmul.f32.gmra.mxu0 %v2143
          %v3191 = vpop.f32.mrf.mxu0
          %v3192 = vadd.f32 %v3172, %v3191
          %3193 = vdwg.mxu0
          %3194 = vmatpush.msra.mxu0 %v787
          %3195 = vmatpush.msra.mxu0 %v783
          %3196 = vmatpush.msra.mxu0 %v779
          %3197 = vmatpush.msra.mxu0 %v775
          %3198 = vmatpush.msra.mxu0 %v771
          %3199 = vmatpush.msra.mxu0 %v767
          %3200 = vmatpush.msra.mxu0 %v763
          %3201 = vmatpush.msra.mxu0 %v759
          %3202 = vmatpush.msra.mxu0 %v755
          %3203 = vmatpush.msra.mxu0 %v751
          %3204 = vmatpush.msra.mxu0 %v747
          %3205 = vmatpush.msra.mxu0 %v743
          %3206 = vmatpush.msra.mxu0 %v739
          %3207 = vmatpush.msra.mxu0 %v735
          %3208 = vmatpush.msra.mxu0 %v731
          %3209 = vmatpush.msra.mxu0 %v727
          %3210 = vmatmul.f32.gmra.mxu0 %v2144
          %v3211 = vpop.f32.mrf.mxu0
          %v3212 = vadd.f32 %v3192, %v3211
          %3213 = vdwg.mxu0
          %3214 = vmatpush.msra.mxu0 %v851
          %3215 = vmatpush.msra.mxu0 %v847
          %3216 = vmatpush.msra.mxu0 %v843
          %3217 = vmatpush.msra.mxu0 %v839
          %3218 = vmatpush.msra.mxu0 %v835
          %3219 = vmatpush.msra.mxu0 %v831
          %3220 = vmatpush.msra.mxu0 %v827
          %3221 = vmatpush.msra.mxu0 %v823
          %3222 = vmatpush.msra.mxu0 %v819
          %3223 = vmatpush.msra.mxu0 %v815
          %3224 = vmatpush.msra.mxu0 %v811
          %3225 = vmatpush.msra.mxu0 %v807
          %3226 = vmatpush.msra.mxu0 %v803
          %3227 = vmatpush.msra.mxu0 %v799
          %3228 = vmatpush.msra.mxu0 %v795
          %3229 = vmatpush.msra.mxu0 %v791
          %3230 = vmatmul.f32.gmra.mxu0 %v2145
          %v3231 = vpop.f32.mrf.mxu0
          %v3232 = vadd.f32 %v3212, %v3231
          %3233 = vdwg.mxu0
          %3234 = vmatpush.msra.mxu0 %v915
          %3235 = vmatpush.msra.mxu0 %v911
          %3236 = vmatpush.msra.mxu0 %v907
          %3237 = vmatpush.msra.mxu0 %v903
          %3238 = vmatpush.msra.mxu0 %v899
          %3239 = vmatpush.msra.mxu0 %v895
          %3240 = vmatpush.msra.mxu0 %v891
          %3241 = vmatpush.msra.mxu0 %v887
          %3242 = vmatpush.msra.mxu0 %v883
          %3243 = vmatpush.msra.mxu0 %v879
          %3244 = vmatpush.msra.mxu0 %v875
          %3245 = vmatpush.msra.mxu0 %v871
          %3246 = vmatpush.msra.mxu0 %v867
          %3247 = vmatpush.msra.mxu0 %v863
          %3248 = vmatpush.msra.mxu0 %v859
          %3249 = vmatpush.msra.mxu0 %v855
          %3250 = vmatmul.f32.gmra.mxu0 %v2146
          %v3251 = vpop.f32.mrf.mxu0
          %v3252 = vadd.f32 %v3232, %v3251
          %3253 = vdwg.mxu0
          %3254 = vmatpush.msra.mxu0 %v979
          %3255 = vmatpush.msra.mxu0 %v975
          %3256 = vmatpush.msra.mxu0 %v971
          %3257 = vmatpush.msra.mxu0 %v967
          %3258 = vmatpush.msra.mxu0 %v963
          %3259 = vmatpush.msra.mxu0 %v959
          %3260 = vmatpush.msra.mxu0 %v955
          %3261 = vmatpush.msra.mxu0 %v951
          %3262 = vmatpush.msra.mxu0 %v947
          %3263 = vmatpush.msra.mxu0 %v943
          %3264 = vmatpush.msra.mxu0 %v939
          %3265 = vmatpush.msra.mxu0 %v935
          %3266 = vmatpush.msra.mxu0 %v931
          %3267 = vmatpush.msra.mxu0 %v927
          %3268 = vmatpush.msra.mxu0 %v923
          %3269 = vmatpush.msra.mxu0 %v919
          %3270 = vmatmul.f32.gmra.mxu0 %v2147
          %v3271 = vpop.f32.mrf.mxu0
          %v3272 = vadd.f32 %v3252, %v3271
          %3273 = vdwg.mxu0
          %3274 = vmatpush.msra.mxu0 %v1043
          %3275 = vmatpush.msra.mxu0 %v1039
          %3276 = vmatpush.msra.mxu0 %v1035
          %3277 = vmatpush.msra.mxu0 %v1031
          %3278 = vmatpush.msra.mxu0 %v1027
          %3279 = vmatpush.msra.mxu0 %v1023
          %3280 = vmatpush.msra.mxu0 %v1019
          %3281 = vmatpush.msra.mxu0 %v1015
          %3282 = vmatpush.msra.mxu0 %v1011
          %3283 = vmatpush.msra.mxu0 %v1007
          %3284 = vmatpush.msra.mxu0 %v1003
          %3285 = vmatpush.msra.mxu0 %v999
          %3286 = vmatpush.msra.mxu0 %v995
          %3287 = vmatpush.msra.mxu0 %v991
          %3288 = vmatpush.msra.mxu0 %v987
          %3289 = vmatpush.msra.mxu0 %v983
          %3290 = vmatmul.f32.gmra.mxu0 %v2148
          %v3291 = vpop.f32.mrf.mxu0
          %v3292 = vadd.f32 %v3272, %v3291
          %3293 = vdwg.mxu0
          %3294 = vmatpush.msra.mxu0 %v1107
          %3295 = vmatpush.msra.mxu0 %v1103
          %3296 = vmatpush.msra.mxu0 %v1099
          %3297 = vmatpush.msra.mxu0 %v1095
          %3298 = vmatpush.msra.mxu0 %v1091
          %3299 = vmatpush.msra.mxu0 %v1087
          %3300 = vmatpush.msra.mxu0 %v1083
          %3301 = vmatpush.msra.mxu0 %v1079
          %3302 = vmatpush.msra.mxu0 %v1075
          %3303 = vmatpush.msra.mxu0 %v1071
          %3304 = vmatpush.msra.mxu0 %v1067
          %3305 = vmatpush.msra.mxu0 %v1063
          %3306 = vmatpush.msra.mxu0 %v1059
          %3307 = vmatpush.msra.mxu0 %v1055
          %3308 = vmatpush.msra.mxu0 %v1051
          %3309 = vmatpush.msra.mxu0 %v1047
          %3310 = vmatmul.f32.gmra.mxu0 %v2149
          %v3311 = vpop.f32.mrf.mxu0
          %v3312 = vadd.f32 %v3292, %v3311
          %3313 = vdwg.mxu0
          %3314 = vmatpush.msra.mxu0 %v1171
          %3315 = vmatpush.msra.mxu0 %v1167
          %3316 = vmatpush.msra.mxu0 %v1163
          %3317 = vmatpush.msra.mxu0 %v1159
          %3318 = vmatpush.msra.mxu0 %v1155
          %3319 = vmatpush.msra.mxu0 %v1151
          %3320 = vmatpush.msra.mxu0 %v1147
          %3321 = vmatpush.msra.mxu0 %v1143
          %3322 = vmatpush.msra.mxu0 %v1139
          %3323 = vmatpush.msra.mxu0 %v1135
          %3324 = vmatpush.msra.mxu0 %v1131
          %3325 = vmatpush.msra.mxu0 %v1127
          %3326 = vmatpush.msra.mxu0 %v1123
          %3327 = vmatpush.msra.mxu0 %v1119
          %3328 = vmatpush.msra.mxu0 %v1115
          %3329 = vmatpush.msra.mxu0 %v1111
          %3330 = vmatmul.f32.gmra.mxu0 %v2152
          %v3331 = vpop.f32.mrf.mxu0
          %v3332 = vadd.f32 %v3312, %v3331
          %3333 = vdwg.mxu0
          %3334 = vmatpush.msra.mxu0 %v1235
          %3335 = vmatpush.msra.mxu0 %v1231
          %3336 = vmatpush.msra.mxu0 %v1227
          %3337 = vmatpush.msra.mxu0 %v1223
          %3338 = vmatpush.msra.mxu0 %v1219
          %3339 = vmatpush.msra.mxu0 %v1215
          %3340 = vmatpush.msra.mxu0 %v1211
          %3341 = vmatpush.msra.mxu0 %v1207
          %3342 = vmatpush.msra.mxu0 %v1203
          %3343 = vmatpush.msra.mxu0 %v1199
          %3344 = vmatpush.msra.mxu0 %v1195
          %3345 = vmatpush.msra.mxu0 %v1191
          %3346 = vmatpush.msra.mxu0 %v1187
          %3347 = vmatpush.msra.mxu0 %v1183
          %3348 = vmatpush.msra.mxu0 %v1179
          %3349 = vmatpush.msra.mxu0 %v1175
          %3350 = vmatmul.f32.gmra.mxu0 %v2153
          %v3351 = vpop.f32.mrf.mxu0
          %v3352 = vadd.f32 %v3332, %v3351
          %3353 = vdwg.mxu0
          %3354 = vmatpush.msra.mxu0 %v1299
          %3355 = vmatpush.msra.mxu0 %v1295
          %3356 = vmatpush.msra.mxu0 %v1291
          %3357 = vmatpush.msra.mxu0 %v1287
          %3358 = vmatpush.msra.mxu0 %v1283
          %3359 = vmatpush.msra.mxu0 %v1279
          %3360 = vmatpush.msra.mxu0 %v1275
          %3361 = vmatpush.msra.mxu0 %v1271
          %3362 = vmatpush.msra.mxu0 %v1267
          %3363 = vmatpush.msra.mxu0 %v1263
          %3364 = vmatpush.msra.mxu0 %v1259
          %3365 = vmatpush.msra.mxu0 %v1255
          %3366 = vmatpush.msra.mxu0 %v1251
          %3367 = vmatpush.msra.mxu0 %v1247
          %3368 = vmatpush.msra.mxu0 %v1243
          %3369 = vmatpush.msra.mxu0 %v1239
          %3370 = vmatmul.f32.gmra.mxu0 %v2154
          %v3371 = vpop.f32.mrf.mxu0
          %v3372 = vadd.f32 %v3352, %v3371
          %3373 = vdwg.mxu0
          %3374 = vmatpush.msra.mxu0 %v1363
          %3375 = vmatpush.msra.mxu0 %v1359
          %3376 = vmatpush.msra.mxu0 %v1355
          %3377 = vmatpush.msra.mxu0 %v1351
          %3378 = vmatpush.msra.mxu0 %v1347
          %3379 = vmatpush.msra.mxu0 %v1343
          %3380 = vmatpush.msra.mxu0 %v1339
          %3381 = vmatpush.msra.mxu0 %v1335
          %3382 = vmatpush.msra.mxu0 %v1331
          %3383 = vmatpush.msra.mxu0 %v1327
          %3384 = vmatpush.msra.mxu0 %v1323
          %3385 = vmatpush.msra.mxu0 %v1319
          %3386 = vmatpush.msra.mxu0 %v1315
          %3387 = vmatpush.msra.mxu0 %v1311
          %3388 = vmatpush.msra.mxu0 %v1307
          %3389 = vmatpush.msra.mxu0 %v1303
          %3390 = vmatmul.f32.gmra.mxu0 %v2155
          %v3391 = vpop.f32.mrf.mxu0
          %v3392 = vadd.f32 %v3372, %v3391
          %3393 = vdwg.mxu0
          %3394 = vmatpush.msra.mxu0 %v1427
          %3395 = vmatpush.msra.mxu0 %v1423
          %3396 = vmatpush.msra.mxu0 %v1419
          %3397 = vmatpush.msra.mxu0 %v1415
          %3398 = vmatpush.msra.mxu0 %v1411
          %3399 = vmatpush.msra.mxu0 %v1407
          %3400 = vmatpush.msra.mxu0 %v1403
          %3401 = vmatpush.msra.mxu0 %v1399
          %3402 = vmatpush.msra.mxu0 %v1395
          %3403 = vmatpush.msra.mxu0 %v1391
          %3404 = vmatpush.msra.mxu0 %v1387
          %3405 = vmatpush.msra.mxu0 %v1383
          %3406 = vmatpush.msra.mxu0 %v1379
          %3407 = vmatpush.msra.mxu0 %v1375
          %3408 = vmatpush.msra.mxu0 %v1371
          %3409 = vmatpush.msra.mxu0 %v1367
          %3410 = vmatmul.f32.gmra.mxu0 %v2156
          %v3411 = vpop.f32.mrf.mxu0
          %v3412 = vadd.f32 %v3392, %v3411
          %3413 = vdwg.mxu0
          %3414 = vmatpush.msra.mxu0 %v1491
          %3415 = vmatpush.msra.mxu0 %v1487
          %3416 = vmatpush.msra.mxu0 %v1483
          %3417 = vmatpush.msra.mxu0 %v1479
          %3418 = vmatpush.msra.mxu0 %v1475
          %3419 = vmatpush.msra.mxu0 %v1471
          %3420 = vmatpush.msra.mxu0 %v1467
          %3421 = vmatpush.msra.mxu0 %v1463
          %3422 = vmatpush.msra.mxu0 %v1459
          %3423 = vmatpush.msra.mxu0 %v1455
          %3424 = vmatpush.msra.mxu0 %v1451
          %3425 = vmatpush.msra.mxu0 %v1447
          %3426 = vmatpush.msra.mxu0 %v1443
          %3427 = vmatpush.msra.mxu0 %v1439
          %3428 = vmatpush.msra.mxu0 %v1435
          %3429 = vmatpush.msra.mxu0 %v1431
          %3430 = vmatmul.f32.gmra.mxu0 %v2157
          %v3431 = vpop.f32.mrf.mxu0
          %v3432 = vadd.f32 %v3412, %v3431
          %3433 = vdwg.mxu0
          %3434 = vmatpush.msra.mxu0 %v1555
          %3435 = vmatpush.msra.mxu0 %v1551
          %3436 = vmatpush.msra.mxu0 %v1547
          %3437 = vmatpush.msra.mxu0 %v1543
          %3438 = vmatpush.msra.mxu0 %v1539
          %3439 = vmatpush.msra.mxu0 %v1535
          %3440 = vmatpush.msra.mxu0 %v1531
          %3441 = vmatpush.msra.mxu0 %v1527
          %3442 = vmatpush.msra.mxu0 %v1523
          %3443 = vmatpush.msra.mxu0 %v1519
          %3444 = vmatpush.msra.mxu0 %v1515
          %3445 = vmatpush.msra.mxu0 %v1511
          %3446 = vmatpush.msra.mxu0 %v1507
          %3447 = vmatpush.msra.mxu0 %v1503
          %3448 = vmatpush.msra.mxu0 %v1499
          %3449 = vmatpush.msra.mxu0 %v1495
          %3450 = vmatmul.f32.gmra.mxu0 %v2158
          %v3451 = vpop.f32.mrf.mxu0
          %v3452 = vadd.f32 %v3432, %v3451
          %3453 = vdwg.mxu0
          %3454 = vmatpush.msra.mxu0 %v1619
          %3455 = vmatpush.msra.mxu0 %v1615
          %3456 = vmatpush.msra.mxu0 %v1611
          %3457 = vmatpush.msra.mxu0 %v1607
          %3458 = vmatpush.msra.mxu0 %v1603
          %3459 = vmatpush.msra.mxu0 %v1599
          %3460 = vmatpush.msra.mxu0 %v1595
          %3461 = vmatpush.msra.mxu0 %v1591
          %3462 = vmatpush.msra.mxu0 %v1587
          %3463 = vmatpush.msra.mxu0 %v1583
          %3464 = vmatpush.msra.mxu0 %v1579
          %3465 = vmatpush.msra.mxu0 %v1575
          %3466 = vmatpush.msra.mxu0 %v1571
          %3467 = vmatpush.msra.mxu0 %v1567
          %3468 = vmatpush.msra.mxu0 %v1563
          %3469 = vmatpush.msra.mxu0 %v1559
          %3470 = vmatmul.f32.gmra.mxu0 %v2159
          %v3471 = vpop.f32.mrf.mxu0
          %v3472 = vadd.f32 %v3452, %v3471
          %3473 = vdwg.mxu0
          %3474 = vmatpush.msra.mxu0 %v1683
          %3475 = vmatpush.msra.mxu0 %v1679
          %3476 = vmatpush.msra.mxu0 %v1675
          %3477 = vmatpush.msra.mxu0 %v1671
          %3478 = vmatpush.msra.mxu0 %v1667
          %3479 = vmatpush.msra.mxu0 %v1663
          %3480 = vmatpush.msra.mxu0 %v1659
          %3481 = vmatpush.msra.mxu0 %v1655
          %3482 = vmatpush.msra.mxu0 %v1651
          %3483 = vmatpush.msra.mxu0 %v1647
          %3484 = vmatpush.msra.mxu0 %v1643
          %3485 = vmatpush.msra.mxu0 %v1639
          %3486 = vmatpush.msra.mxu0 %v1635
          %3487 = vmatpush.msra.mxu0 %v1631
          %3488 = vmatpush.msra.mxu0 %v1627
          %3489 = vmatpush.msra.mxu0 %v1623
          %3490 = vmatmul.f32.gmra.mxu0 %v2162
          %v3491 = vpop.f32.mrf.mxu0
          %v3492 = vadd.f32 %v3472, %v3491
          %3493 = vdwg.mxu0
          %3494 = vmatpush.msra.mxu0 %v1747
          %3495 = vmatpush.msra.mxu0 %v1743
          %3496 = vmatpush.msra.mxu0 %v1739
          %3497 = vmatpush.msra.mxu0 %v1735
          %3498 = vmatpush.msra.mxu0 %v1731
          %3499 = vmatpush.msra.mxu0 %v1727
          %3500 = vmatpush.msra.mxu0 %v1723
          %3501 = vmatpush.msra.mxu0 %v1719
          %3502 = vmatpush.msra.mxu0 %v1715
          %3503 = vmatpush.msra.mxu0 %v1711
          %3504 = vmatpush.msra.mxu0 %v1707
          %3505 = vmatpush.msra.mxu0 %v1703
          %3506 = vmatpush.msra.mxu0 %v1699
          %3507 = vmatpush.msra.mxu0 %v1695
          %3508 = vmatpush.msra.mxu0 %v1691
          %3509 = vmatpush.msra.mxu0 %v1687
          %3510 = vmatmul.f32.gmra.mxu0 %v2163
          %v3511 = vpop.f32.mrf.mxu0
          %v3512 = vadd.f32 %v3492, %v3511
          %3513 = vdwg.mxu0
          %3514 = vmatpush.msra.mxu0 %v1811
          %3515 = vmatpush.msra.mxu0 %v1807
          %3516 = vmatpush.msra.mxu0 %v1803
          %3517 = vmatpush.msra.mxu0 %v1799
          %3518 = vmatpush.msra.mxu0 %v1795
          %3519 = vmatpush.msra.mxu0 %v1791
          %3520 = vmatpush.msra.mxu0 %v1787
          %3521 = vmatpush.msra.mxu0 %v1783
          %3522 = vmatpush.msra.mxu0 %v1779
          %3523 = vmatpush.msra.mxu0 %v1775
          %3524 = vmatpush.msra.mxu0 %v1771
          %3525 = vmatpush.msra.mxu0 %v1767
          %3526 = vmatpush.msra.mxu0 %v1763
          %3527 = vmatpush.msra.mxu0 %v1759
          %3528 = vmatpush.msra.mxu0 %v1755
          %3529 = vmatpush.msra.mxu0 %v1751
          %3530 = vmatmul.f32.gmra.mxu0 %v2164
          %v3531 = vpop.f32.mrf.mxu0
          %v3532 = vadd.f32 %v3512, %v3531
          %3533 = vdwg.mxu0
          %3534 = vmatpush.msra.mxu0 %v1875
          %3535 = vmatpush.msra.mxu0 %v1871
          %3536 = vmatpush.msra.mxu0 %v1867
          %3537 = vmatpush.msra.mxu0 %v1863
          %3538 = vmatpush.msra.mxu0 %v1859
          %3539 = vmatpush.msra.mxu0 %v1855
          %3540 = vmatpush.msra.mxu0 %v1851
          %3541 = vmatpush.msra.mxu0 %v1847
          %3542 = vmatpush.msra.mxu0 %v1843
          %3543 = vmatpush.msra.mxu0 %v1839
          %3544 = vmatpush.msra.mxu0 %v1835
          %3545 = vmatpush.msra.mxu0 %v1831
          %3546 = vmatpush.msra.mxu0 %v1827
          %3547 = vmatpush.msra.mxu0 %v1823
          %3548 = vmatpush.msra.mxu0 %v1819
          %3549 = vmatpush.msra.mxu0 %v1815
          %3550 = vmatmul.f32.gmra.mxu0 %v2165
          %v3551 = vpop.f32.mrf.mxu0
          %v3552 = vadd.f32 %v3532, %v3551
          %3553 = vdwg.mxu0
          %3554 = vmatpush.msra.mxu0 %v1939
          %3555 = vmatpush.msra.mxu0 %v1935
          %3556 = vmatpush.msra.mxu0 %v1931
          %3557 = vmatpush.msra.mxu0 %v1927
          %3558 = vmatpush.msra.mxu0 %v1923
          %3559 = vmatpush.msra.mxu0 %v1919
          %3560 = vmatpush.msra.mxu0 %v1915
          %3561 = vmatpush.msra.mxu0 %v1911
          %3562 = vmatpush.msra.mxu0 %v1907
          %3563 = vmatpush.msra.mxu0 %v1903
          %3564 = vmatpush.msra.mxu0 %v1899
          %3565 = vmatpush.msra.mxu0 %v1895
          %3566 = vmatpush.msra.mxu0 %v1891
          %3567 = vmatpush.msra.mxu0 %v1887
          %3568 = vmatpush.msra.mxu0 %v1883
          %3569 = vmatpush.msra.mxu0 %v1879
          %3570 = vmatmul.f32.gmra.mxu0 %v2166
          %v3571 = vpop.f32.mrf.mxu0
          %v3572 = vadd.f32 %v3552, %v3571
          %3573 = vdwg.mxu0
          %3574 = vmatpush.msra.mxu0 %v2003
          %3575 = vmatpush.msra.mxu0 %v1999
          %3576 = vmatpush.msra.mxu0 %v1995
          %3577 = vmatpush.msra.mxu0 %v1991
          %3578 = vmatpush.msra.mxu0 %v1987
          %3579 = vmatpush.msra.mxu0 %v1983
          %3580 = vmatpush.msra.mxu0 %v1979
          %3581 = vmatpush.msra.mxu0 %v1975
          %3582 = vmatpush.msra.mxu0 %v1971
          %3583 = vmatpush.msra.mxu0 %v1967
          %3584 = vmatpush.msra.mxu0 %v1963
          %3585 = vmatpush.msra.mxu0 %v1959
          %3586 = vmatpush.msra.mxu0 %v1955
          %3587 = vmatpush.msra.mxu0 %v1951
          %3588 = vmatpush.msra.mxu0 %v1947
          %3589 = vmatpush.msra.mxu0 %v1943
          %3590 = vmatmul.f32.gmra.mxu0 %v2167
          %v3591 = vpop.f32.mrf.mxu0
          %v3592 = vadd.f32 %v3572, %v3591
          %3593 = vdwg.mxu0
          %3594 = vmatpush.msra.mxu0 %v2067
          %3595 = vmatpush.msra.mxu0 %v2063
          %3596 = vmatpush.msra.mxu0 %v2059
          %3597 = vmatpush.msra.mxu0 %v2055
          %3598 = vmatpush.msra.mxu0 %v2051
          %3599 = vmatpush.msra.mxu0 %v2047
          %3600 = vmatpush.msra.mxu0 %v2043
          %3601 = vmatpush.msra.mxu0 %v2039
          %3602 = vmatpush.msra.mxu0 %v2035
          %3603 = vmatpush.msra.mxu0 %v2031
          %3604 = vmatpush.msra.mxu0 %v2027
          %3605 = vmatpush.msra.mxu0 %v2023
          %3606 = vmatpush.msra.mxu0 %v2019
          %3607 = vmatpush.msra.mxu0 %v2015
          %3608 = vmatpush.msra.mxu0 %v2011
          %3609 = vmatpush.msra.mxu0 %v2007
          %3610 = vmatmul.f32.gmra.mxu0 %v2168
          %v3611 = vpop.f32.mrf.mxu0
          %v3612 = vadd.f32 %v3592, %v3611
          %3613 = vdwg.mxu0
          %3614 = vmatpush.msra.mxu0 %v2131
          %3615 = vmatpush.msra.mxu0 %v2127
          %3616 = vmatpush.msra.mxu0 %v2123
          %3617 = vmatpush.msra.mxu0 %v2119
          %3618 = vmatpush.msra.mxu0 %v2115
          %3619 = vmatpush.msra.mxu0 %v2111
          %3620 = vmatpush.msra.mxu0 %v2107
          %3621 = vmatpush.msra.mxu0 %v2103
          %3622 = vmatpush.msra.mxu0 %v2099
          %3623 = vmatpush.msra.mxu0 %v2095
          %3624 = vmatpush.msra.mxu0 %v2091
          %3625 = vmatpush.msra.mxu0 %v2087
          %3626 = vmatpush.msra.mxu0 %v2083
          %3627 = vmatpush.msra.mxu0 %v2079
          %3628 = vmatpush.msra.mxu0 %v2075
          %3629 = vmatpush.msra.mxu0 %v2071
          %3630 = vmatmul.f32.gmra.mxu0 %v2169
          %v3631 = vpop.f32.mrf.mxu0
          %v3632 = vadd.f32 %v3612, %v3631
          %3633 = vdwg.mxu0
          %3634 = vmatpush.msra.mxu0 %v660
          %3635 = vmatpush.msra.mxu0 %v656
          %3636 = vmatpush.msra.mxu0 %v652
          %3637 = vmatpush.msra.mxu0 %v648
          %3638 = vmatpush.msra.mxu0 %v644
          %3639 = vmatpush.msra.mxu0 %v640
          %3640 = vmatpush.msra.mxu0 %v636
          %3641 = vmatpush.msra.mxu0 %v632
          %3642 = vmatpush.msra.mxu0 %v628
          %3643 = vmatpush.msra.mxu0 %v624
          %3644 = vmatpush.msra.mxu0 %v620
          %3645 = vmatpush.msra.mxu0 %v616
          %3646 = vmatpush.msra.mxu0 %v612
          %3647 = vmatpush.msra.mxu0 %v608
          %3648 = vmatpush.msra.mxu0 %v604
          %3649 = vmatpush.msra.mxu0 %v600
          %3650 = vmatmul.f32.gmra.mxu0 %v2142
          %v3651 = vpop.f32.mrf.mxu0
          %v3652 = vadd.f32 0.0, %v3651
          %3653 = vdwg.mxu0
          %3654 = vmatpush.msra.mxu0 %v724
          %3655 = vmatpush.msra.mxu0 %v720
          %3656 = vmatpush.msra.mxu0 %v716
          %3657 = vmatpush.msra.mxu0 %v712
          %3658 = vmatpush.msra.mxu0 %v708
          %3659 = vmatpush.msra.mxu0 %v704
          %3660 = vmatpush.msra.mxu0 %v700
          %3661 = vmatpush.msra.mxu0 %v696
          %3662 = vmatpush.msra.mxu0 %v692
          %3663 = vmatpush.msra.mxu0 %v688
          %3664 = vmatpush.msra.mxu0 %v684
          %3665 = vmatpush.msra.mxu0 %v680
          %3666 = vmatpush.msra.mxu0 %v676
          %3667 = vmatpush.msra.mxu0 %v672
          %3668 = vmatpush.msra.mxu0 %v668
          %3669 = vmatpush.msra.mxu0 %v664
          %3670 = vmatmul.f32.gmra.mxu0 %v2143
          %v3671 = vpop.f32.mrf.mxu0
          %v3672 = vadd.f32 %v3652, %v3671
          %3673 = vdwg.mxu0
          %3674 = vmatpush.msra.mxu0 %v788
          %3675 = vmatpush.msra.mxu0 %v784
          %3676 = vmatpush.msra.mxu0 %v780
          %3677 = vmatpush.msra.mxu0 %v776
          %3678 = vmatpush.msra.mxu0 %v772
          %3679 = vmatpush.msra.mxu0 %v768
          %3680 = vmatpush.msra.mxu0 %v764
          %3681 = vmatpush.msra.mxu0 %v760
          %3682 = vmatpush.msra.mxu0 %v756
          %3683 = vmatpush.msra.mxu0 %v752
          %3684 = vmatpush.msra.mxu0 %v748
          %3685 = vmatpush.msra.mxu0 %v744
          %3686 = vmatpush.msra.mxu0 %v740
          %3687 = vmatpush.msra.mxu0 %v736
          %3688 = vmatpush.msra.mxu0 %v732
          %3689 = vmatpush.msra.mxu0 %v728
          %3690 = vmatmul.f32.gmra.mxu0 %v2144
          %v3691 = vpop.f32.mrf.mxu0
          %v3692 = vadd.f32 %v3672, %v3691
          %3693 = vdwg.mxu0
          %3694 = vmatpush.msra.mxu0 %v852
          %3695 = vmatpush.msra.mxu0 %v848
          %3696 = vmatpush.msra.mxu0 %v844
          %3697 = vmatpush.msra.mxu0 %v840
          %3698 = vmatpush.msra.mxu0 %v836
          %3699 = vmatpush.msra.mxu0 %v832
          %3700 = vmatpush.msra.mxu0 %v828
          %3701 = vmatpush.msra.mxu0 %v824
          %3702 = vmatpush.msra.mxu0 %v820
          %3703 = vmatpush.msra.mxu0 %v816
          %3704 = vmatpush.msra.mxu0 %v812
          %3705 = vmatpush.msra.mxu0 %v808
          %3706 = vmatpush.msra.mxu0 %v804
          %3707 = vmatpush.msra.mxu0 %v800
          %3708 = vmatpush.msra.mxu0 %v796
          %3709 = vmatpush.msra.mxu0 %v792
          %3710 = vmatmul.f32.gmra.mxu0 %v2145
          %v3711 = vpop.f32.mrf.mxu0
          %v3712 = vadd.f32 %v3692, %v3711
          %3713 = vdwg.mxu0
          %3714 = vmatpush.msra.mxu0 %v916
          %3715 = vmatpush.msra.mxu0 %v912
          %3716 = vmatpush.msra.mxu0 %v908
          %3717 = vmatpush.msra.mxu0 %v904
          %3718 = vmatpush.msra.mxu0 %v900
          %3719 = vmatpush.msra.mxu0 %v896
          %3720 = vmatpush.msra.mxu0 %v892
          %3721 = vmatpush.msra.mxu0 %v888
          %3722 = vmatpush.msra.mxu0 %v884
          %3723 = vmatpush.msra.mxu0 %v880
          %3724 = vmatpush.msra.mxu0 %v876
          %3725 = vmatpush.msra.mxu0 %v872
          %3726 = vmatpush.msra.mxu0 %v868
          %3727 = vmatpush.msra.mxu0 %v864
          %3728 = vmatpush.msra.mxu0 %v860
          %3729 = vmatpush.msra.mxu0 %v856
          %3730 = vmatmul.f32.gmra.mxu0 %v2146
          %v3731 = vpop.f32.mrf.mxu0
          %v3732 = vadd.f32 %v3712, %v3731
          %3733 = vdwg.mxu0
          %3734 = vmatpush.msra.mxu0 %v980
          %3735 = vmatpush.msra.mxu0 %v976
          %3736 = vmatpush.msra.mxu0 %v972
          %3737 = vmatpush.msra.mxu0 %v968
          %3738 = vmatpush.msra.mxu0 %v964
          %3739 = vmatpush.msra.mxu0 %v960
          %3740 = vmatpush.msra.mxu0 %v956
          %3741 = vmatpush.msra.mxu0 %v952
          %3742 = vmatpush.msra.mxu0 %v948
          %3743 = vmatpush.msra.mxu0 %v944
          %3744 = vmatpush.msra.mxu0 %v940
          %3745 = vmatpush.msra.mxu0 %v936
          %3746 = vmatpush.msra.mxu0 %v932
          %3747 = vmatpush.msra.mxu0 %v928
          %3748 = vmatpush.msra.mxu0 %v924
          %3749 = vmatpush.msra.mxu0 %v920
          %3750 = vmatmul.f32.gmra.mxu0 %v2147
          %v3751 = vpop.f32.mrf.mxu0
          %v3752 = vadd.f32 %v3732, %v3751
          %3753 = vdwg.mxu0
          %3754 = vmatpush.msra.mxu0 %v1044
          %3755 = vmatpush.msra.mxu0 %v1040
          %3756 = vmatpush.msra.mxu0 %v1036
          %3757 = vmatpush.msra.mxu0 %v1032
          %3758 = vmatpush.msra.mxu0 %v1028
          %3759 = vmatpush.msra.mxu0 %v1024
          %3760 = vmatpush.msra.mxu0 %v1020
          %3761 = vmatpush.msra.mxu0 %v1016
          %3762 = vmatpush.msra.mxu0 %v1012
          %3763 = vmatpush.msra.mxu0 %v1008
          %3764 = vmatpush.msra.mxu0 %v1004
          %3765 = vmatpush.msra.mxu0 %v1000
          %3766 = vmatpush.msra.mxu0 %v996
          %3767 = vmatpush.msra.mxu0 %v992
          %3768 = vmatpush.msra.mxu0 %v988
          %3769 = vmatpush.msra.mxu0 %v984
          %3770 = vmatmul.f32.gmra.mxu0 %v2148
          %v3771 = vpop.f32.mrf.mxu0
          %v3772 = vadd.f32 %v3752, %v3771
          %3773 = vdwg.mxu0
          %3774 = vmatpush.msra.mxu0 %v1108
          %3775 = vmatpush.msra.mxu0 %v1104
          %3776 = vmatpush.msra.mxu0 %v1100
          %3777 = vmatpush.msra.mxu0 %v1096
          %3778 = vmatpush.msra.mxu0 %v1092
          %3779 = vmatpush.msra.mxu0 %v1088
          %3780 = vmatpush.msra.mxu0 %v1084
          %3781 = vmatpush.msra.mxu0 %v1080
          %3782 = vmatpush.msra.mxu0 %v1076
          %3783 = vmatpush.msra.mxu0 %v1072
          %3784 = vmatpush.msra.mxu0 %v1068
          %3785 = vmatpush.msra.mxu0 %v1064
          %3786 = vmatpush.msra.mxu0 %v1060
          %3787 = vmatpush.msra.mxu0 %v1056
          %3788 = vmatpush.msra.mxu0 %v1052
          %3789 = vmatpush.msra.mxu0 %v1048
          %3790 = vmatmul.f32.gmra.mxu0 %v2149
          %v3791 = vpop.f32.mrf.mxu0
          %v3792 = vadd.f32 %v3772, %v3791
          %3793 = vdwg.mxu0
          %3794 = vmatpush.msra.mxu0 %v1172
          %3795 = vmatpush.msra.mxu0 %v1168
          %3796 = vmatpush.msra.mxu0 %v1164
          %3797 = vmatpush.msra.mxu0 %v1160
          %3798 = vmatpush.msra.mxu0 %v1156
          %3799 = vmatpush.msra.mxu0 %v1152
          %3800 = vmatpush.msra.mxu0 %v1148
          %3801 = vmatpush.msra.mxu0 %v1144
          %3802 = vmatpush.msra.mxu0 %v1140
          %3803 = vmatpush.msra.mxu0 %v1136
          %3804 = vmatpush.msra.mxu0 %v1132
          %3805 = vmatpush.msra.mxu0 %v1128
          %3806 = vmatpush.msra.mxu0 %v1124
          %3807 = vmatpush.msra.mxu0 %v1120
          %3808 = vmatpush.msra.mxu0 %v1116
          %3809 = vmatpush.msra.mxu0 %v1112
          %3810 = vmatmul.f32.gmra.mxu0 %v2152
          %v3811 = vpop.f32.mrf.mxu0
          %v3812 = vadd.f32 %v3792, %v3811
          %3813 = vdwg.mxu0
          %3814 = vmatpush.msra.mxu0 %v1236
          %3815 = vmatpush.msra.mxu0 %v1232
          %3816 = vmatpush.msra.mxu0 %v1228
          %3817 = vmatpush.msra.mxu0 %v1224
          %3818 = vmatpush.msra.mxu0 %v1220
          %3819 = vmatpush.msra.mxu0 %v1216
          %3820 = vmatpush.msra.mxu0 %v1212
          %3821 = vmatpush.msra.mxu0 %v1208
          %3822 = vmatpush.msra.mxu0 %v1204
          %3823 = vmatpush.msra.mxu0 %v1200
          %3824 = vmatpush.msra.mxu0 %v1196
          %3825 = vmatpush.msra.mxu0 %v1192
          %3826 = vmatpush.msra.mxu0 %v1188
          %3827 = vmatpush.msra.mxu0 %v1184
          %3828 = vmatpush.msra.mxu0 %v1180
          %3829 = vmatpush.msra.mxu0 %v1176
          %3830 = vmatmul.f32.gmra.mxu0 %v2153
          %v3831 = vpop.f32.mrf.mxu0
          %v3832 = vadd.f32 %v3812, %v3831
          %3833 = vdwg.mxu0
          %3834 = vmatpush.msra.mxu0 %v1300
          %3835 = vmatpush.msra.mxu0 %v1296
          %3836 = vmatpush.msra.mxu0 %v1292
          %3837 = vmatpush.msra.mxu0 %v1288
          %3838 = vmatpush.msra.mxu0 %v1284
          %3839 = vmatpush.msra.mxu0 %v1280
          %3840 = vmatpush.msra.mxu0 %v1276
          %3841 = vmatpush.msra.mxu0 %v1272
          %3842 = vmatpush.msra.mxu0 %v1268
          %3843 = vmatpush.msra.mxu0 %v1264
          %3844 = vmatpush.msra.mxu0 %v1260
          %3845 = vmatpush.msra.mxu0 %v1256
          %3846 = vmatpush.msra.mxu0 %v1252
          %3847 = vmatpush.msra.mxu0 %v1248
          %3848 = vmatpush.msra.mxu0 %v1244
          %3849 = vmatpush.msra.mxu0 %v1240
          %3850 = vmatmul.f32.gmra.mxu0 %v2154
          %v3851 = vpop.f32.mrf.mxu0
          %v3852 = vadd.f32 %v3832, %v3851
          %3853 = vdwg.mxu0
          %3854 = vmatpush.msra.mxu0 %v1364
          %3855 = vmatpush.msra.mxu0 %v1360
          %3856 = vmatpush.msra.mxu0 %v1356
          %3857 = vmatpush.msra.mxu0 %v1352
          %3858 = vmatpush.msra.mxu0 %v1348
          %3859 = vmatpush.msra.mxu0 %v1344
          %3860 = vmatpush.msra.mxu0 %v1340
          %3861 = vmatpush.msra.mxu0 %v1336
          %3862 = vmatpush.msra.mxu0 %v1332
          %3863 = vmatpush.msra.mxu0 %v1328
          %3864 = vmatpush.msra.mxu0 %v1324
          %3865 = vmatpush.msra.mxu0 %v1320
          %3866 = vmatpush.msra.mxu0 %v1316
          %3867 = vmatpush.msra.mxu0 %v1312
          %3868 = vmatpush.msra.mxu0 %v1308
          %3869 = vmatpush.msra.mxu0 %v1304
          %3870 = vmatmul.f32.gmra.mxu0 %v2155
          %v3871 = vpop.f32.mrf.mxu0
          %v3872 = vadd.f32 %v3852, %v3871
          %3873 = vdwg.mxu0
          %3874 = vmatpush.msra.mxu0 %v1428
          %3875 = vmatpush.msra.mxu0 %v1424
          %3876 = vmatpush.msra.mxu0 %v1420
          %3877 = vmatpush.msra.mxu0 %v1416
          %3878 = vmatpush.msra.mxu0 %v1412
          %3879 = vmatpush.msra.mxu0 %v1408
          %3880 = vmatpush.msra.mxu0 %v1404
          %3881 = vmatpush.msra.mxu0 %v1400
          %3882 = vmatpush.msra.mxu0 %v1396
          %3883 = vmatpush.msra.mxu0 %v1392
          %3884 = vmatpush.msra.mxu0 %v1388
          %3885 = vmatpush.msra.mxu0 %v1384
          %3886 = vmatpush.msra.mxu0 %v1380
          %3887 = vmatpush.msra.mxu0 %v1376
          %3888 = vmatpush.msra.mxu0 %v1372
          %3889 = vmatpush.msra.mxu0 %v1368
          %3890 = vmatmul.f32.gmra.mxu0 %v2156
          %v3891 = vpop.f32.mrf.mxu0
          %v3892 = vadd.f32 %v3872, %v3891
          %3893 = vdwg.mxu0
          %3894 = vmatpush.msra.mxu0 %v1492
          %3895 = vmatpush.msra.mxu0 %v1488
          %3896 = vmatpush.msra.mxu0 %v1484
          %3897 = vmatpush.msra.mxu0 %v1480
          %3898 = vmatpush.msra.mxu0 %v1476
          %3899 = vmatpush.msra.mxu0 %v1472
          %3900 = vmatpush.msra.mxu0 %v1468
          %3901 = vmatpush.msra.mxu0 %v1464
          %3902 = vmatpush.msra.mxu0 %v1460
          %3903 = vmatpush.msra.mxu0 %v1456
          %3904 = vmatpush.msra.mxu0 %v1452
          %3905 = vmatpush.msra.mxu0 %v1448
          %3906 = vmatpush.msra.mxu0 %v1444
          %3907 = vmatpush.msra.mxu0 %v1440
          %3908 = vmatpush.msra.mxu0 %v1436
          %3909 = vmatpush.msra.mxu0 %v1432
          %3910 = vmatmul.f32.gmra.mxu0 %v2157
          %v3911 = vpop.f32.mrf.mxu0
          %v3912 = vadd.f32 %v3892, %v3911
          %3913 = vdwg.mxu0
          %3914 = vmatpush.msra.mxu0 %v1556
          %3915 = vmatpush.msra.mxu0 %v1552
          %3916 = vmatpush.msra.mxu0 %v1548
          %3917 = vmatpush.msra.mxu0 %v1544
          %3918 = vmatpush.msra.mxu0 %v1540
          %3919 = vmatpush.msra.mxu0 %v1536
          %3920 = vmatpush.msra.mxu0 %v1532
          %3921 = vmatpush.msra.mxu0 %v1528
          %3922 = vmatpush.msra.mxu0 %v1524
          %3923 = vmatpush.msra.mxu0 %v1520
          %3924 = vmatpush.msra.mxu0 %v1516
          %3925 = vmatpush.msra.mxu0 %v1512
          %3926 = vmatpush.msra.mxu0 %v1508
          %3927 = vmatpush.msra.mxu0 %v1504
          %3928 = vmatpush.msra.mxu0 %v1500
          %3929 = vmatpush.msra.mxu0 %v1496
          %3930 = vmatmul.f32.gmra.mxu0 %v2158
          %v3931 = vpop.f32.mrf.mxu0
          %v3932 = vadd.f32 %v3912, %v3931
          %3933 = vdwg.mxu0
          %3934 = vmatpush.msra.mxu0 %v1620
          %3935 = vmatpush.msra.mxu0 %v1616
          %3936 = vmatpush.msra.mxu0 %v1612
          %3937 = vmatpush.msra.mxu0 %v1608
          %3938 = vmatpush.msra.mxu0 %v1604
          %3939 = vmatpush.msra.mxu0 %v1600
          %3940 = vmatpush.msra.mxu0 %v1596
          %3941 = vmatpush.msra.mxu0 %v1592
          %3942 = vmatpush.msra.mxu0 %v1588
          %3943 = vmatpush.msra.mxu0 %v1584
          %3944 = vmatpush.msra.mxu0 %v1580
          %3945 = vmatpush.msra.mxu0 %v1576
          %3946 = vmatpush.msra.mxu0 %v1572
          %3947 = vmatpush.msra.mxu0 %v1568
          %3948 = vmatpush.msra.mxu0 %v1564
          %3949 = vmatpush.msra.mxu0 %v1560
          %3950 = vmatmul.f32.gmra.mxu0 %v2159
          %v3951 = vpop.f32.mrf.mxu0
          %v3952 = vadd.f32 %v3932, %v3951
          %3953 = vdwg.mxu0
          %3954 = vmatpush.msra.mxu0 %v1684
          %3955 = vmatpush.msra.mxu0 %v1680
          %3956 = vmatpush.msra.mxu0 %v1676
          %3957 = vmatpush.msra.mxu0 %v1672
          %3958 = vmatpush.msra.mxu0 %v1668
          %3959 = vmatpush.msra.mxu0 %v1664
          %3960 = vmatpush.msra.mxu0 %v1660
          %3961 = vmatpush.msra.mxu0 %v1656
          %3962 = vmatpush.msra.mxu0 %v1652
          %3963 = vmatpush.msra.mxu0 %v1648
          %3964 = vmatpush.msra.mxu0 %v1644
          %3965 = vmatpush.msra.mxu0 %v1640
          %3966 = vmatpush.msra.mxu0 %v1636
          %3967 = vmatpush.msra.mxu0 %v1632
          %3968 = vmatpush.msra.mxu0 %v1628
          %3969 = vmatpush.msra.mxu0 %v1624
          %3970 = vmatmul.f32.gmra.mxu0 %v2162
          %v3971 = vpop.f32.mrf.mxu0
          %v3972 = vadd.f32 %v3952, %v3971
          %3973 = vdwg.mxu0
          %3974 = vmatpush.msra.mxu0 %v1748
          %3975 = vmatpush.msra.mxu0 %v1744
          %3976 = vmatpush.msra.mxu0 %v1740
          %3977 = vmatpush.msra.mxu0 %v1736
          %3978 = vmatpush.msra.mxu0 %v1732
          %3979 = vmatpush.msra.mxu0 %v1728
          %3980 = vmatpush.msra.mxu0 %v1724
          %3981 = vmatpush.msra.mxu0 %v1720
          %3982 = vmatpush.msra.mxu0 %v1716
          %3983 = vmatpush.msra.mxu0 %v1712
          %3984 = vmatpush.msra.mxu0 %v1708
          %3985 = vmatpush.msra.mxu0 %v1704
          %3986 = vmatpush.msra.mxu0 %v1700
          %3987 = vmatpush.msra.mxu0 %v1696
          %3988 = vmatpush.msra.mxu0 %v1692
          %3989 = vmatpush.msra.mxu0 %v1688
          %3990 = vmatmul.f32.gmra.mxu0 %v2163
          %v3991 = vpop.f32.mrf.mxu0
          %v3992 = vadd.f32 %v3972, %v3991
          %3993 = vdwg.mxu0
          %3994 = vmatpush.msra.mxu0 %v1812
          %3995 = vmatpush.msra.mxu0 %v1808
          %3996 = vmatpush.msra.mxu0 %v1804
          %3997 = vmatpush.msra.mxu0 %v1800
          %3998 = vmatpush.msra.mxu0 %v1796
          %3999 = vmatpush.msra.mxu0 %v1792
          %4000 = vmatpush.msra.mxu0 %v1788
          %4001 = vmatpush.msra.mxu0 %v1784
          %4002 = vmatpush.msra.mxu0 %v1780
          %4003 = vmatpush.msra.mxu0 %v1776
          %4004 = vmatpush.msra.mxu0 %v1772
          %4005 = vmatpush.msra.mxu0 %v1768
          %4006 = vmatpush.msra.mxu0 %v1764
          %4007 = vmatpush.msra.mxu0 %v1760
          %4008 = vmatpush.msra.mxu0 %v1756
          %4009 = vmatpush.msra.mxu0 %v1752
          %4010 = vmatmul.f32.gmra.mxu0 %v2164
          %v4011 = vpop.f32.mrf.mxu0
          %v4012 = vadd.f32 %v3992, %v4011
          %4013 = vdwg.mxu0
          %4014 = vmatpush.msra.mxu0 %v1876
          %4015 = vmatpush.msra.mxu0 %v1872
          %4016 = vmatpush.msra.mxu0 %v1868
          %4017 = vmatpush.msra.mxu0 %v1864
          %4018 = vmatpush.msra.mxu0 %v1860
          %4019 = vmatpush.msra.mxu0 %v1856
          %4020 = vmatpush.msra.mxu0 %v1852
          %4021 = vmatpush.msra.mxu0 %v1848
          %4022 = vmatpush.msra.mxu0 %v1844
          %4023 = vmatpush.msra.mxu0 %v1840
          %4024 = vmatpush.msra.mxu0 %v1836
          %4025 = vmatpush.msra.mxu0 %v1832
          %4026 = vmatpush.msra.mxu0 %v1828
          %4027 = vmatpush.msra.mxu0 %v1824
          %4028 = vmatpush.msra.mxu0 %v1820
          %4029 = vmatpush.msra.mxu0 %v1816
          %4030 = vmatmul.f32.gmra.mxu0 %v2165
          %v4031 = vpop.f32.mrf.mxu0
          %v4032 = vadd.f32 %v4012, %v4031
          %4033 = vdwg.mxu0
          %4034 = vmatpush.msra.mxu0 %v1940
          %4035 = vmatpush.msra.mxu0 %v1936
          %4036 = vmatpush.msra.mxu0 %v1932
          %4037 = vmatpush.msra.mxu0 %v1928
          %4038 = vmatpush.msra.mxu0 %v1924
          %4039 = vmatpush.msra.mxu0 %v1920
          %4040 = vmatpush.msra.mxu0 %v1916
          %4041 = vmatpush.msra.mxu0 %v1912
          %4042 = vmatpush.msra.mxu0 %v1908
          %4043 = vmatpush.msra.mxu0 %v1904
          %4044 = vmatpush.msra.mxu0 %v1900
          %4045 = vmatpush.msra.mxu0 %v1896
          %4046 = vmatpush.msra.mxu0 %v1892
          %4047 = vmatpush.msra.mxu0 %v1888
          %4048 = vmatpush.msra.mxu0 %v1884
          %4049 = vmatpush.msra.mxu0 %v1880
          %4050 = vmatmul.f32.gmra.mxu0 %v2166
          %v4051 = vpop.f32.mrf.mxu0
          %v4052 = vadd.f32 %v4032, %v4051
          %4053 = vdwg.mxu0
          %4054 = vmatpush.msra.mxu0 %v2004
          %4055 = vmatpush.msra.mxu0 %v2000
          %4056 = vmatpush.msra.mxu0 %v1996
          %4057 = vmatpush.msra.mxu0 %v1992
          %4058 = vmatpush.msra.mxu0 %v1988
          %4059 = vmatpush.msra.mxu0 %v1984
          %4060 = vmatpush.msra.mxu0 %v1980
          %4061 = vmatpush.msra.mxu0 %v1976
          %4062 = vmatpush.msra.mxu0 %v1972
          %4063 = vmatpush.msra.mxu0 %v1968
          %4064 = vmatpush.msra.mxu0 %v1964
          %4065 = vmatpush.msra.mxu0 %v1960
          %4066 = vmatpush.msra.mxu0 %v1956
          %4067 = vmatpush.msra.mxu0 %v1952
          %4068 = vmatpush.msra.mxu0 %v1948
          %4069 = vmatpush.msra.mxu0 %v1944
          %4070 = vmatmul.f32.gmra.mxu0 %v2167
          %v4071 = vpop.f32.mrf.mxu0
          %v4072 = vadd.f32 %v4052, %v4071
          %4073 = vdwg.mxu0
          %4074 = vmatpush.msra.mxu0 %v2068
          %4075 = vmatpush.msra.mxu0 %v2064
          %4076 = vmatpush.msra.mxu0 %v2060
          %4077 = vmatpush.msra.mxu0 %v2056
          %4078 = vmatpush.msra.mxu0 %v2052
          %4079 = vmatpush.msra.mxu0 %v2048
          %4080 = vmatpush.msra.mxu0 %v2044
          %4081 = vmatpush.msra.mxu0 %v2040
          %4082 = vmatpush.msra.mxu0 %v2036
          %4083 = vmatpush.msra.mxu0 %v2032
          %4084 = vmatpush.msra.mxu0 %v2028
          %4085 = vmatpush.msra.mxu0 %v2024
          %4086 = vmatpush.msra.mxu0 %v2020
          %4087 = vmatpush.msra.mxu0 %v2016
          %4088 = vmatpush.msra.mxu0 %v2012
          %4089 = vmatpush.msra.mxu0 %v2008
          %4090 = vmatmul.f32.gmra.mxu0 %v2168
          %v4091 = vpop.f32.mrf.mxu0
          %v4092 = vadd.f32 %v4072, %v4091
          %4093 = vdwg.mxu0
          %4094 = vmatpush.msra.mxu0 %v2132
          %4095 = vmatpush.msra.mxu0 %v2128
          %4096 = vmatpush.msra.mxu0 %v2124
          %4097 = vmatpush.msra.mxu0 %v2120
          %4098 = vmatpush.msra.mxu0 %v2116
          %4099 = vmatpush.msra.mxu0 %v2112
          %4100 = vmatpush.msra.mxu0 %v2108
          %4101 = vmatpush.msra.mxu0 %v2104
          %4102 = vmatpush.msra.mxu0 %v2100
          %4103 = vmatpush.msra.mxu0 %v2096
          %4104 = vmatpush.msra.mxu0 %v2092
          %4105 = vmatpush.msra.mxu0 %v2088
          %4106 = vmatpush.msra.mxu0 %v2084
          %4107 = vmatpush.msra.mxu0 %v2080
          %4108 = vmatpush.msra.mxu0 %v2076
          %4109 = vmatpush.msra.mxu0 %v2072
          %4110 = vmatmul.f32.gmra.mxu0 %v2169
          %v4111 = vpop.f32.mrf.mxu0
          %v4112 = vadd.f32 %v4092, %v4111
          %4113 = vdwg.mxu0
          %v4118 = vrot.slane %v3152, 6
          %v4119 = vrot.slane %v3632, 4
          %v4120 = vrot.slane %v4112, 2
          %vm4121 = vcmask 1041408
          %v4122 = vsel %vm4121, %v2672, %v4118
          %vm4123 = vcmask 1045508
          %v4124 = vsel %vm4123, %v4119, %v4120
          %vm4125 = vcmask 1043456
          %v4126 = vsel %vm4125, %v4122, %v4124
          %v4128 = vadd.f32 %v590, %v4126
          %4129 = vst [vmem:[#allocation2] sm:$0xff] %v4128
        $region92: #{autoencoder_forward.1} parent=55 // pred_fallthru
          _
        %p4130 = scmp.eq.s32.totalorder %s28, 3
        // Predicated region
        $region93: #{autoencoder_forward.1} parent=55 // pred_check
          %p4131 = pneg %p4130
        $region94: #{autoencoder_forward.1} parent=55 // pred_check_branch
          %4133 = sbr.rel (%p4131) target = $region96
        $region95: #{autoencoder_forward.1} parent=55 // pred_region
          %v4134 = vld [vmem:[#allocation2] sm:$0xff]
          %v4135 = vld [vmem:[#allocation6] sm:$0xf]
          %v4137 = vperm.slane %v4135, 0
          %v4138 = vperm.slane %v4135, 1
          %v4139 = vperm.slane %v4135, 2
          %v4140 = vperm.slane %v4135, 3
          %v4141 = vrot.slane %v4138, 6
          %v4142 = vrot.slane %v4139, 4
          %v4143 = vrot.slane %v4140, 2
          %vm4144 = vcmask 1041408
          %v4145 = vsel %vm4144, %v4137, %v4141
          %vm4146 = vcmask 1045508
          %v4147 = vsel %vm4146, %v4142, %v4143
          %vm4148 = vcmask 1043456
          %v4149 = vsel %vm4148, %v4145, %v4147
          %v4151 = vadd.f32 %v4134, %v4149
          %v4152 = vmax.f32 %v4151, 0.0
          %v4153 = vld [vmem:[%s3] sm:$0xff]
          %v4154 = vld [vmem:[%s3 + $0x8] sm:$0xff]
          %v4155 = vld [vmem:[%s3 + $0x10] sm:$0xff]
          %v4156 = vld [vmem:[%s3 + $0x18] sm:$0xff]
          %v4157 = vld [vmem:[%s3 + $0x20] sm:$0xff]
          %v4158 = vld [vmem:[%s3 + $0x28] sm:$0xff]
          %v4159 = vld [vmem:[%s3 + $0x30] sm:$0xff]
          %v4160 = vld [vmem:[%s3 + $0x38] sm:$0xff]
          %v4161 = vld [vmem:[%s3 + $0x40] sm:$0xff]
          %v4162 = vld [vmem:[%s3 + $0x48] sm:$0xff]
          %v4163 = vld [vmem:[%s3 + $0x50] sm:$0xff]
          %v4164 = vld [vmem:[%s3 + $0x58] sm:$0xff]
          %v4165 = vld [vmem:[%s3 + $0x60] sm:$0xff]
          %v4166 = vld [vmem:[%s3 + $0x68] sm:$0xff]
          %v4167 = vld [vmem:[%s3 + $0x70] sm:$0xff]
          %v4168 = vld [vmem:[%s3 + $0x78] sm:$0xff]
          %v4169 = vld [vmem:[%s3 + $0x80] sm:$0xff]
          %v4170 = vld [vmem:[%s3 + $0x88] sm:$0xff]
          %v4171 = vld [vmem:[%s3 + $0x90] sm:$0xff]
          %v4172 = vld [vmem:[%s3 + $0x98] sm:$0xff]
          %v4173 = vld [vmem:[%s3 + $0xa0] sm:$0xff]
          %v4174 = vld [vmem:[%s3 + $0xa8] sm:$0xff]
          %v4175 = vld [vmem:[%s3 + $0xb0] sm:$0xff]
          %v4176 = vld [vmem:[%s3 + $0xb8] sm:$0xff]
          %v4177 = vld [vmem:[%s3 + $0xc0] sm:$0xff]
          %v4178 = vld [vmem:[%s3 + $0xc8] sm:$0xff]
          %v4179 = vld [vmem:[%s3 + $0xd0] sm:$0xff]
          %v4180 = vld [vmem:[%s3 + $0xd8] sm:$0xff]
          %v4181 = vld [vmem:[%s3 + $0xe0] sm:$0xff]
          %v4182 = vld [vmem:[%s3 + $0xe8] sm:$0xff]
          %v4183 = vld [vmem:[%s3 + $0xf0] sm:$0xff]
          %v4184 = vld [vmem:[%s3 + $0xf8] sm:$0xff]
          %v4185 = vld [vmem:[%s3 + $0x100] sm:$0xff]
          %v4186 = vld [vmem:[%s3 + $0x108] sm:$0xff]
          %v4187 = vld [vmem:[%s3 + $0x110] sm:$0xff]
          %v4188 = vld [vmem:[%s3 + $0x118] sm:$0xff]
          %v4189 = vld [vmem:[%s3 + $0x120] sm:$0xff]
          %v4190 = vld [vmem:[%s3 + $0x128] sm:$0xff]
          %v4191 = vld [vmem:[%s3 + $0x130] sm:$0xff]
          %v4192 = vld [vmem:[%s3 + $0x138] sm:$0xff]
          %v4193 = vld [vmem:[%s3 + $0x140] sm:$0xff]
          %v4194 = vld [vmem:[%s3 + $0x148] sm:$0xff]
          %v4195 = vld [vmem:[%s3 + $0x150] sm:$0xff]
          %v4196 = vld [vmem:[%s3 + $0x158] sm:$0xff]
          %v4197 = vld [vmem:[%s3 + $0x160] sm:$0xff]
          %v4198 = vld [vmem:[%s3 + $0x168] sm:$0xff]
          %v4199 = vld [vmem:[%s3 + $0x170] sm:$0xff]
          %v4200 = vld [vmem:[%s3 + $0x178] sm:$0xff]
          %v4201 = vld [vmem:[%s3 + $0x180] sm:$0xff]
          %v4202 = vld [vmem:[%s3 + $0x188] sm:$0xff]
          %v4203 = vld [vmem:[%s3 + $0x190] sm:$0xff]
          %v4204 = vld [vmem:[%s3 + $0x198] sm:$0xff]
          %v4205 = vld [vmem:[%s3 + $0x1a0] sm:$0xff]
          %v4206 = vld [vmem:[%s3 + $0x1a8] sm:$0xff]
          %v4207 = vld [vmem:[%s3 + $0x1b0] sm:$0xff]
          %v4208 = vld [vmem:[%s3 + $0x1b8] sm:$0xff]
          %v4209 = vld [vmem:[%s3 + $0x1c0] sm:$0xff]
          %v4210 = vld [vmem:[%s3 + $0x1c8] sm:$0xff]
          %v4211 = vld [vmem:[%s3 + $0x1d0] sm:$0xff]
          %v4212 = vld [vmem:[%s3 + $0x1d8] sm:$0xff]
          %v4213 = vld [vmem:[%s3 + $0x1e0] sm:$0xff]
          %v4214 = vld [vmem:[%s3 + $0x1e8] sm:$0xff]
          %v4215 = vld [vmem:[%s3 + $0x1f0] sm:$0xff]
          %v4216 = vld [vmem:[%s3 + $0x1f8] sm:$0xff]
          %v4217 = vld [vmem:[#allocation8] sm:$0x1]
          %v4219 = vperm.slane %v4217, 0
          %4222 = vst [vmem:[#allocation1] ss:$4 sm:$0xff] %v4152
          %v4223 = vld.sshfl [vmem:[#allocation1] sm:$0xff pattern:$0x73625140]
          %v4224 = vld.sshfl [vmem:[#allocation1 + $0x8] sm:$0xff pattern:$0x73625140]
          %v4225 = vld.sshfl [vmem:[#allocation1 + $0x10] sm:$0xff pattern:$0x73625140]
          %v4226 = vld.sshfl [vmem:[#allocation1 + $0x18] sm:$0xff pattern:$0x73625140]
          %4231 = vmatpush.msra.mxu0 %v4168
          %4232 = vmatpush.msra.mxu0 %v4167
          %4233 = vmatpush.msra.mxu0 %v4166
          %4234 = vmatpush.msra.mxu0 %v4165
          %4235 = vmatpush.msra.mxu0 %v4164
          %4236 = vmatpush.msra.mxu0 %v4163
          %4237 = vmatpush.msra.mxu0 %v4162
          %4238 = vmatpush.msra.mxu0 %v4161
          %4239 = vmatpush.msra.mxu0 %v4160
          %4240 = vmatpush.msra.mxu0 %v4159
          %4241 = vmatpush.msra.mxu0 %v4158
          %4242 = vmatpush.msra.mxu0 %v4157
          %4243 = vmatpush.msra.mxu0 %v4156
          %4244 = vmatpush.msra.mxu0 %v4155
          %4245 = vmatpush.msra.mxu0 %v4154
          %4246 = vmatpush.msra.mxu0 %v4153
          %4247 = vmatmul.f32.gmra.mxu0 %v4223
          %v4248 = vpop.f32.mrf.mxu0
          %v4249 = vadd.f32 %v4219, %v4248
          %4250 = vdwg.mxu0
          %4251 = vmatpush.msra.mxu0 %v4184
          %4252 = vmatpush.msra.mxu0 %v4183
          %4253 = vmatpush.msra.mxu0 %v4182
          %4254 = vmatpush.msra.mxu0 %v4181
          %4255 = vmatpush.msra.mxu0 %v4180
          %4256 = vmatpush.msra.mxu0 %v4179
          %4257 = vmatpush.msra.mxu0 %v4178
          %4258 = vmatpush.msra.mxu0 %v4177
          %4259 = vmatpush.msra.mxu0 %v4176
          %4260 = vmatpush.msra.mxu0 %v4175
          %4261 = vmatpush.msra.mxu0 %v4174
          %4262 = vmatpush.msra.mxu0 %v4173
          %4263 = vmatpush.msra.mxu0 %v4172
          %4264 = vmatpush.msra.mxu0 %v4171
          %4265 = vmatpush.msra.mxu0 %v4170
          %4266 = vmatpush.msra.mxu0 %v4169
          %4267 = vmatmul.f32.gmra.mxu0 %v4224
          %v4268 = vpop.f32.mrf.mxu0
          %v4269 = vadd.f32 %v4249, %v4268
          %4270 = vdwg.mxu0
          %4271 = vmatpush.msra.mxu0 %v4200
          %4272 = vmatpush.msra.mxu0 %v4199
          %4273 = vmatpush.msra.mxu0 %v4198
          %4274 = vmatpush.msra.mxu0 %v4197
          %4275 = vmatpush.msra.mxu0 %v4196
          %4276 = vmatpush.msra.mxu0 %v4195
          %4277 = vmatpush.msra.mxu0 %v4194
          %4278 = vmatpush.msra.mxu0 %v4193
          %4279 = vmatpush.msra.mxu0 %v4192
          %4280 = vmatpush.msra.mxu0 %v4191
          %4281 = vmatpush.msra.mxu0 %v4190
          %4282 = vmatpush.msra.mxu0 %v4189
          %4283 = vmatpush.msra.mxu0 %v4188
          %4284 = vmatpush.msra.mxu0 %v4187
          %4285 = vmatpush.msra.mxu0 %v4186
          %4286 = vmatpush.msra.mxu0 %v4185
          %4287 = vmatmul.f32.gmra.mxu0 %v4225
          %v4288 = vpop.f32.mrf.mxu0
          %v4289 = vadd.f32 %v4269, %v4288
          %4290 = vdwg.mxu0
          %4291 = vmatpush.msra.mxu0 %v4216
          %4292 = vmatpush.msra.mxu0 %v4215
          %4293 = vmatpush.msra.mxu0 %v4214
          %4294 = vmatpush.msra.mxu0 %v4213
          %4295 = vmatpush.msra.mxu0 %v4212
          %4296 = vmatpush.msra.mxu0 %v4211
          %4297 = vmatpush.msra.mxu0 %v4210
          %4298 = vmatpush.msra.mxu0 %v4209
          %4299 = vmatpush.msra.mxu0 %v4208
          %4300 = vmatpush.msra.mxu0 %v4207
          %4301 = vmatpush.msra.mxu0 %v4206
          %4302 = vmatpush.msra.mxu0 %v4205
          %4303 = vmatpush.msra.mxu0 %v4204
          %4304 = vmatpush.msra.mxu0 %v4203
          %4305 = vmatpush.msra.mxu0 %v4202
          %4306 = vmatpush.msra.mxu0 %v4201
          %4307 = vmatmul.f32.gmra.mxu0 %v4226
          %v4308 = vpop.f32.mrf.mxu0
          %v4309 = vadd.f32 %v4289, %v4308
          %4310 = vdwg.mxu0
          %v4311 = vmax.f32 %v4309, 0.0
          %v4312 = vld [vmem:[#allocation9] sm:$0xff]
          %v4313 = vld [vmem:[#allocation9 + $0x8] sm:$0xff]
          %v4314 = vld [vmem:[#allocation9 + $0x10] sm:$0xff]
          %v4315 = vld [vmem:[#allocation9 + $0x18] sm:$0xff]
          %v4316 = vld [vmem:[#allocation9 + $0x20] sm:$0xff]
          %v4317 = vld [vmem:[#allocation9 + $0x28] sm:$0xff]
          %v4318 = vld [vmem:[#allocation9 + $0x30] sm:$0xff]
          %v4319 = vld [vmem:[#allocation9 + $0x38] sm:$0xff]
          %v4320 = vld [vmem:[#allocation9 + $0x40] sm:$0xff]
          %v4321 = vld [vmem:[#allocation9 + $0x48] sm:$0xff]
          %v4322 = vld [vmem:[#allocation9 + $0x50] sm:$0xff]
          %v4323 = vld [vmem:[#allocation9 + $0x58] sm:$0xff]
          %v4324 = vld [vmem:[#allocation9 + $0x60] sm:$0xff]
          %v4325 = vld [vmem:[#allocation9 + $0x68] sm:$0xff]
          %v4326 = vld [vmem:[#allocation9 + $0x70] sm:$0xff]
          %v4327 = vld [vmem:[#allocation9 + $0x78] sm:$0xff]
          %v4328 = vld [vmem:[#allocation9 + $0x80] sm:$0xff]
          %v4329 = vld [vmem:[#allocation9 + $0x88] sm:$0xff]
          %v4330 = vld [vmem:[#allocation9 + $0x90] sm:$0xff]
          %v4331 = vld [vmem:[#allocation9 + $0x98] sm:$0xff]
          %v4332 = vld [vmem:[#allocation9 + $0xa0] sm:$0xff]
          %v4333 = vld [vmem:[#allocation9 + $0xa8] sm:$0xff]
          %v4334 = vld [vmem:[#allocation9 + $0xb0] sm:$0xff]
          %v4335 = vld [vmem:[#allocation9 + $0xb8] sm:$0xff]
          %v4336 = vld [vmem:[#allocation9 + $0xc0] sm:$0xff]
          %v4337 = vld [vmem:[#allocation9 + $0xc8] sm:$0xff]
          %v4338 = vld [vmem:[#allocation9 + $0xd0] sm:$0xff]
          %v4339 = vld [vmem:[#allocation9 + $0xd8] sm:$0xff]
          %v4340 = vld [vmem:[#allocation9 + $0xe0] sm:$0xff]
          %v4341 = vld [vmem:[#allocation9 + $0xe8] sm:$0xff]
          %v4342 = vld [vmem:[#allocation9 + $0xf0] sm:$0xff]
          %v4343 = vld [vmem:[#allocation9 + $0xf8] sm:$0xff]
          %v4344 = vld [vmem:[#allocation11] sm:$0xf]
          %v4346 = vperm.slane %v4344, 0
          %v4347 = vperm.slane %v4344, 1
          %v4348 = vperm.slane %v4344, 2
          %v4349 = vperm.slane %v4344, 3
          %vm4354 = vcmask 523264
          %v4356 = vsel %vm4354, %v4311, 0
          %4358 = vmatpush.msra.mxu0 0.0
          %4359 = vmatpush.msra.mxu0 0.0
          %4360 = vmatpush.msra.mxu0 0.0
          %4361 = vmatpush.msra.mxu0 0.0
          %4362 = vmatpush.msra.mxu0 0.0
          %4363 = vmatpush.msra.mxu0 0.0
          %4364 = vmatpush.msra.mxu0 0.0
          %4365 = vmatpush.msra.mxu0 0.0
          %4366 = vmatpush.msra.mxu0 %v4340
          %4367 = vmatpush.msra.mxu0 %v4336
          %4368 = vmatpush.msra.mxu0 %v4332
          %4369 = vmatpush.msra.mxu0 %v4328
          %4370 = vmatpush.msra.mxu0 %v4324
          %4371 = vmatpush.msra.mxu0 %v4320
          %4372 = vmatpush.msra.mxu0 %v4316
          %4373 = vmatpush.msra.mxu0 %v4312
          %4374 = vmatmul.f32.gmra.mxu0 %v4356
          %v4375 = vpop.f32.mrf.mxu0
          %v4376 = vadd.f32 %v4346, %v4375
          %4377 = vdwg.mxu0
          %4378 = vmatpush.msra.mxu0 0.0
          %4379 = vmatpush.msra.mxu0 0.0
          %4380 = vmatpush.msra.mxu0 0.0
          %4381 = vmatpush.msra.mxu0 0.0
          %4382 = vmatpush.msra.mxu0 0.0
          %4383 = vmatpush.msra.mxu0 0.0
          %4384 = vmatpush.msra.mxu0 0.0
          %4385 = vmatpush.msra.mxu0 0.0
          %4386 = vmatpush.msra.mxu0 %v4341
          %4387 = vmatpush.msra.mxu0 %v4337
          %4388 = vmatpush.msra.mxu0 %v4333
          %4389 = vmatpush.msra.mxu0 %v4329
          %4390 = vmatpush.msra.mxu0 %v4325
          %4391 = vmatpush.msra.mxu0 %v4321
          %4392 = vmatpush.msra.mxu0 %v4317
          %4393 = vmatpush.msra.mxu0 %v4313
          %4394 = vmatmul.f32.gmra.mxu0 %v4356
          %v4395 = vpop.f32.mrf.mxu0
          %v4396 = vadd.f32 %v4347, %v4395
          %4397 = vdwg.mxu0
          %4398 = vmatpush.msra.mxu0 0.0
          %4399 = vmatpush.msra.mxu0 0.0
          %4400 = vmatpush.msra.mxu0 0.0
          %4401 = vmatpush.msra.mxu0 0.0
          %4402 = vmatpush.msra.mxu0 0.0
          %4403 = vmatpush.msra.mxu0 0.0
          %4404 = vmatpush.msra.mxu0 0.0
          %4405 = vmatpush.msra.mxu0 0.0
          %4406 = vmatpush.msra.mxu0 %v4342
          %4407 = vmatpush.msra.mxu0 %v4338
          %4408 = vmatpush.msra.mxu0 %v4334
          %4409 = vmatpush.msra.mxu0 %v4330
          %4410 = vmatpush.msra.mxu0 %v4326
          %4411 = vmatpush.msra.mxu0 %v4322
          %4412 = vmatpush.msra.mxu0 %v4318
          %4413 = vmatpush.msra.mxu0 %v4314
          %4414 = vmatmul.f32.gmra.mxu0 %v4356
          %v4415 = vpop.f32.mrf.mxu0
          %v4416 = vadd.f32 %v4348, %v4415
          %4417 = vdwg.mxu0
          %4418 = vmatpush.msra.mxu0 0.0
          %4419 = vmatpush.msra.mxu0 0.0
          %4420 = vmatpush.msra.mxu0 0.0
          %4421 = vmatpush.msra.mxu0 0.0
          %4422 = vmatpush.msra.mxu0 0.0
          %4423 = vmatpush.msra.mxu0 0.0
          %4424 = vmatpush.msra.mxu0 0.0
          %4425 = vmatpush.msra.mxu0 0.0
          %4426 = vmatpush.msra.mxu0 %v4343
          %4427 = vmatpush.msra.mxu0 %v4339
          %4428 = vmatpush.msra.mxu0 %v4335
          %4429 = vmatpush.msra.mxu0 %v4331
          %4430 = vmatpush.msra.mxu0 %v4327
          %4431 = vmatpush.msra.mxu0 %v4323
          %4432 = vmatpush.msra.mxu0 %v4319
          %4433 = vmatpush.msra.mxu0 %v4315
          %4434 = vmatmul.f32.gmra.mxu0 %v4356
          %v4435 = vpop.f32.mrf.mxu0
          %v4436 = vadd.f32 %v4349, %v4435
          %4437 = vdwg.mxu0
          %v4438 = vmax.f32 %v4376, 0.0
          %v4439 = vmax.f32 %v4396, 0.0
          %v4440 = vmax.f32 %v4416, 0.0
          %v4441 = vmax.f32 %v4436, 0.0
          %v4446 = vrot.slane %v4439, 6
          %v4447 = vrot.slane %v4440, 4
          %v4448 = vrot.slane %v4441, 2
          %v4449 = vsel %vm4144, %v4438, %v4446
          %v4450 = vsel %vm4146, %v4447, %v4448
          %v4451 = vsel %vm4148, %v4449, %v4450
          %4453 = vst [vmem:[#allocation3] sm:$0xff] %v4451
        $region96: #{autoencoder_forward.1} parent=55 // pred_fallthru
          _
        %p4454 = scmp.ge.s32.totalorder %s28, 4
        // Predicated region
        $region97: #{autoencoder_forward.1} parent=55 // pred_check
          %p4455 = pneg %p4454
        $region98: #{autoencoder_forward.1} parent=55 // pred_check_branch
          %4457 = sbr.rel (%p4455) target = $region100
        $region99: #{autoencoder_forward.1} parent=55 // pred_region
          %v4458 = vld [vmem:[#allocation3] sm:$0xff]
          %v4459 = vld [vmem:[%s482] sm:$0xff]
          %v4460 = vld [vmem:[%s482 + $0x8] sm:$0xff]
          %v4461 = vld [vmem:[%s482 + $0x10] sm:$0xff]
          %v4462 = vld [vmem:[%s482 + $0x18] sm:$0xff]
          %v4463 = vld [vmem:[%s482 + $0x20] sm:$0xff]
          %v4464 = vld [vmem:[%s482 + $0x28] sm:$0xff]
          %v4465 = vld [vmem:[%s482 + $0x30] sm:$0xff]
          %v4466 = vld [vmem:[%s482 + $0x38] sm:$0xff]
          %v4467 = vld [vmem:[%s482 + $0x40] sm:$0xff]
          %v4468 = vld [vmem:[%s482 + $0x48] sm:$0xff]
          %v4469 = vld [vmem:[%s482 + $0x50] sm:$0xff]
          %v4470 = vld [vmem:[%s482 + $0x58] sm:$0xff]
          %v4471 = vld [vmem:[%s482 + $0x60] sm:$0xff]
          %v4472 = vld [vmem:[%s482 + $0x68] sm:$0xff]
          %v4473 = vld [vmem:[%s482 + $0x70] sm:$0xff]
          %v4474 = vld [vmem:[%s482 + $0x78] sm:$0xff]
          %v4475 = vld [vmem:[%s482 + $0x80] sm:$0xff]
          %v4476 = vld [vmem:[%s482 + $0x88] sm:$0xff]
          %v4477 = vld [vmem:[%s482 + $0x90] sm:$0xff]
          %v4478 = vld [vmem:[%s482 + $0x98] sm:$0xff]
          %v4479 = vld [vmem:[%s482 + $0xa0] sm:$0xff]
          %v4480 = vld [vmem:[%s482 + $0xa8] sm:$0xff]
          %v4481 = vld [vmem:[%s482 + $0xb0] sm:$0xff]
          %v4482 = vld [vmem:[%s482 + $0xb8] sm:$0xff]
          %v4483 = vld [vmem:[%s482 + $0xc0] sm:$0xff]
          %v4484 = vld [vmem:[%s482 + $0xc8] sm:$0xff]
          %v4485 = vld [vmem:[%s482 + $0xd0] sm:$0xff]
          %v4486 = vld [vmem:[%s482 + $0xd8] sm:$0xff]
          %v4487 = vld [vmem:[%s482 + $0xe0] sm:$0xff]
          %v4488 = vld [vmem:[%s482 + $0xe8] sm:$0xff]
          %v4489 = vld [vmem:[%s482 + $0xf0] sm:$0xff]
          %v4490 = vld [vmem:[%s482 + $0xf8] sm:$0xff]
          %v4491 = vld [vmem:[%s482 + $0x100] sm:$0xff]
          %v4492 = vld [vmem:[%s482 + $0x108] sm:$0xff]
          %v4493 = vld [vmem:[%s482 + $0x110] sm:$0xff]
          %v4494 = vld [vmem:[%s482 + $0x118] sm:$0xff]
          %v4495 = vld [vmem:[%s482 + $0x120] sm:$0xff]
          %v4496 = vld [vmem:[%s482 + $0x128] sm:$0xff]
          %v4497 = vld [vmem:[%s482 + $0x130] sm:$0xff]
          %v4498 = vld [vmem:[%s482 + $0x138] sm:$0xff]
          %v4499 = vld [vmem:[%s482 + $0x140] sm:$0xff]
          %v4500 = vld [vmem:[%s482 + $0x148] sm:$0xff]
          %v4501 = vld [vmem:[%s482 + $0x150] sm:$0xff]
          %v4502 = vld [vmem:[%s482 + $0x158] sm:$0xff]
          %v4503 = vld [vmem:[%s482 + $0x160] sm:$0xff]
          %v4504 = vld [vmem:[%s482 + $0x168] sm:$0xff]
          %v4505 = vld [vmem:[%s482 + $0x170] sm:$0xff]
          %v4506 = vld [vmem:[%s482 + $0x178] sm:$0xff]
          %v4507 = vld [vmem:[%s482 + $0x180] sm:$0xff]
          %v4508 = vld [vmem:[%s482 + $0x188] sm:$0xff]
          %v4509 = vld [vmem:[%s482 + $0x190] sm:$0xff]
          %v4510 = vld [vmem:[%s482 + $0x198] sm:$0xff]
          %v4511 = vld [vmem:[%s482 + $0x1a0] sm:$0xff]
          %v4512 = vld [vmem:[%s482 + $0x1a8] sm:$0xff]
          %v4513 = vld [vmem:[%s482 + $0x1b0] sm:$0xff]
          %v4514 = vld [vmem:[%s482 + $0x1b8] sm:$0xff]
          %v4515 = vld [vmem:[%s482 + $0x1c0] sm:$0xff]
          %v4516 = vld [vmem:[%s482 + $0x1c8] sm:$0xff]
          %v4517 = vld [vmem:[%s482 + $0x1d0] sm:$0xff]
          %v4518 = vld [vmem:[%s482 + $0x1d8] sm:$0xff]
          %v4519 = vld [vmem:[%s482 + $0x1e0] sm:$0xff]
          %v4520 = vld [vmem:[%s482 + $0x1e8] sm:$0xff]
          %v4521 = vld [vmem:[%s482 + $0x1f0] sm:$0xff]
          %v4522 = vld [vmem:[%s482 + $0x1f8] sm:$0xff]
          %v4523 = vld [vmem:[%s482 + $0x200] sm:$0xff]
          %v4524 = vld [vmem:[%s482 + $0x208] sm:$0xff]
          %v4525 = vld [vmem:[%s482 + $0x210] sm:$0xff]
          %v4526 = vld [vmem:[%s482 + $0x218] sm:$0xff]
          %v4527 = vld [vmem:[%s482 + $0x220] sm:$0xff]
          %v4528 = vld [vmem:[%s482 + $0x228] sm:$0xff]
          %v4529 = vld [vmem:[%s482 + $0x230] sm:$0xff]
          %v4530 = vld [vmem:[%s482 + $0x238] sm:$0xff]
          %v4531 = vld [vmem:[%s482 + $0x240] sm:$0xff]
          %v4532 = vld [vmem:[%s482 + $0x248] sm:$0xff]
          %v4533 = vld [vmem:[%s482 + $0x250] sm:$0xff]
          %v4534 = vld [vmem:[%s482 + $0x258] sm:$0xff]
          %v4535 = vld [vmem:[%s482 + $0x260] sm:$0xff]
          %v4536 = vld [vmem:[%s482 + $0x268] sm:$0xff]
          %v4537 = vld [vmem:[%s482 + $0x270] sm:$0xff]
          %v4538 = vld [vmem:[%s482 + $0x278] sm:$0xff]
          %v4539 = vld [vmem:[%s482 + $0x280] sm:$0xff]
          %v4540 = vld [vmem:[%s482 + $0x288] sm:$0xff]
          %v4541 = vld [vmem:[%s482 + $0x290] sm:$0xff]
          %v4542 = vld [vmem:[%s482 + $0x298] sm:$0xff]
          %v4543 = vld [vmem:[%s482 + $0x2a0] sm:$0xff]
          %v4544 = vld [vmem:[%s482 + $0x2a8] sm:$0xff]
          %v4545 = vld [vmem:[%s482 + $0x2b0] sm:$0xff]
          %v4546 = vld [vmem:[%s482 + $0x2b8] sm:$0xff]
          %v4547 = vld [vmem:[%s482 + $0x2c0] sm:$0xff]
          %v4548 = vld [vmem:[%s482 + $0x2c8] sm:$0xff]
          %v4549 = vld [vmem:[%s482 + $0x2d0] sm:$0xff]
          %v4550 = vld [vmem:[%s482 + $0x2d8] sm:$0xff]
          %v4551 = vld [vmem:[%s482 + $0x2e0] sm:$0xff]
          %v4552 = vld [vmem:[%s482 + $0x2e8] sm:$0xff]
          %v4553 = vld [vmem:[%s482 + $0x2f0] sm:$0xff]
          %v4554 = vld [vmem:[%s482 + $0x2f8] sm:$0xff]
          %v4555 = vld [vmem:[%s482 + $0x300] sm:$0xff]
          %v4556 = vld [vmem:[%s482 + $0x308] sm:$0xff]
          %v4557 = vld [vmem:[%s482 + $0x310] sm:$0xff]
          %v4558 = vld [vmem:[%s482 + $0x318] sm:$0xff]
          %v4559 = vld [vmem:[%s482 + $0x320] sm:$0xff]
          %v4560 = vld [vmem:[%s482 + $0x328] sm:$0xff]
          %v4561 = vld [vmem:[%s482 + $0x330] sm:$0xff]
          %v4562 = vld [vmem:[%s482 + $0x338] sm:$0xff]
          %v4563 = vld [vmem:[%s482 + $0x340] sm:$0xff]
          %v4564 = vld [vmem:[%s482 + $0x348] sm:$0xff]
          %v4565 = vld [vmem:[%s482 + $0x350] sm:$0xff]
          %v4566 = vld [vmem:[%s482 + $0x358] sm:$0xff]
          %v4567 = vld [vmem:[%s482 + $0x360] sm:$0xff]
          %v4568 = vld [vmem:[%s482 + $0x368] sm:$0xff]
          %v4569 = vld [vmem:[%s482 + $0x370] sm:$0xff]
          %v4570 = vld [vmem:[%s482 + $0x378] sm:$0xff]
          %v4571 = vld [vmem:[%s482 + $0x380] sm:$0xff]
          %v4572 = vld [vmem:[%s482 + $0x388] sm:$0xff]
          %v4573 = vld [vmem:[%s482 + $0x390] sm:$0xff]
          %v4574 = vld [vmem:[%s482 + $0x398] sm:$0xff]
          %v4575 = vld [vmem:[%s482 + $0x3a0] sm:$0xff]
          %v4576 = vld [vmem:[%s482 + $0x3a8] sm:$0xff]
          %v4577 = vld [vmem:[%s482 + $0x3b0] sm:$0xff]
          %v4578 = vld [vmem:[%s482 + $0x3b8] sm:$0xff]
          %v4579 = vld [vmem:[%s482 + $0x3c0] sm:$0xff]
          %v4580 = vld [vmem:[%s482 + $0x3c8] sm:$0xff]
          %v4581 = vld [vmem:[%s482 + $0x3d0] sm:$0xff]
          %v4582 = vld [vmem:[%s482 + $0x3d8] sm:$0xff]
          %v4583 = vld [vmem:[%s482 + $0x3e0] sm:$0xff]
          %v4584 = vld [vmem:[%s482 + $0x3e8] sm:$0xff]
          %v4585 = vld [vmem:[%s482 + $0x3f0] sm:$0xff]
          %v4586 = vld [vmem:[%s482 + $0x3f8] sm:$0xff]
          %v4587 = vld [vmem:[%s482 + $0x400] sm:$0xff]
          %v4588 = vld [vmem:[%s482 + $0x408] sm:$0xff]
          %v4589 = vld [vmem:[%s482 + $0x410] sm:$0xff]
          %v4590 = vld [vmem:[%s482 + $0x418] sm:$0xff]
          %v4591 = vld [vmem:[%s482 + $0x420] sm:$0xff]
          %v4592 = vld [vmem:[%s482 + $0x428] sm:$0xff]
          %v4593 = vld [vmem:[%s482 + $0x430] sm:$0xff]
          %v4594 = vld [vmem:[%s482 + $0x438] sm:$0xff]
          %v4595 = vld [vmem:[%s482 + $0x440] sm:$0xff]
          %v4596 = vld [vmem:[%s482 + $0x448] sm:$0xff]
          %v4597 = vld [vmem:[%s482 + $0x450] sm:$0xff]
          %v4598 = vld [vmem:[%s482 + $0x458] sm:$0xff]
          %v4599 = vld [vmem:[%s482 + $0x460] sm:$0xff]
          %v4600 = vld [vmem:[%s482 + $0x468] sm:$0xff]
          %v4601 = vld [vmem:[%s482 + $0x470] sm:$0xff]
          %v4602 = vld [vmem:[%s482 + $0x478] sm:$0xff]
          %v4603 = vld [vmem:[%s482 + $0x480] sm:$0xff]
          %v4604 = vld [vmem:[%s482 + $0x488] sm:$0xff]
          %v4605 = vld [vmem:[%s482 + $0x490] sm:$0xff]
          %v4606 = vld [vmem:[%s482 + $0x498] sm:$0xff]
          %v4607 = vld [vmem:[%s482 + $0x4a0] sm:$0xff]
          %v4608 = vld [vmem:[%s482 + $0x4a8] sm:$0xff]
          %v4609 = vld [vmem:[%s482 + $0x4b0] sm:$0xff]
          %v4610 = vld [vmem:[%s482 + $0x4b8] sm:$0xff]
          %v4611 = vld [vmem:[%s482 + $0x4c0] sm:$0xff]
          %v4612 = vld [vmem:[%s482 + $0x4c8] sm:$0xff]
          %v4613 = vld [vmem:[%s482 + $0x4d0] sm:$0xff]
          %v4614 = vld [vmem:[%s482 + $0x4d8] sm:$0xff]
          %v4615 = vld [vmem:[%s482 + $0x4e0] sm:$0xff]
          %v4616 = vld [vmem:[%s482 + $0x4e8] sm:$0xff]
          %v4617 = vld [vmem:[%s482 + $0x4f0] sm:$0xff]
          %v4618 = vld [vmem:[%s482 + $0x4f8] sm:$0xff]
          %v4619 = vld [vmem:[%s482 + $0x500] sm:$0xff]
          %v4620 = vld [vmem:[%s482 + $0x508] sm:$0xff]
          %v4621 = vld [vmem:[%s482 + $0x510] sm:$0xff]
          %v4622 = vld [vmem:[%s482 + $0x518] sm:$0xff]
          %v4623 = vld [vmem:[%s482 + $0x520] sm:$0xff]
          %v4624 = vld [vmem:[%s482 + $0x528] sm:$0xff]
          %v4625 = vld [vmem:[%s482 + $0x530] sm:$0xff]
          %v4626 = vld [vmem:[%s482 + $0x538] sm:$0xff]
          %v4627 = vld [vmem:[%s482 + $0x540] sm:$0xff]
          %v4628 = vld [vmem:[%s482 + $0x548] sm:$0xff]
          %v4629 = vld [vmem:[%s482 + $0x550] sm:$0xff]
          %v4630 = vld [vmem:[%s482 + $0x558] sm:$0xff]
          %v4631 = vld [vmem:[%s482 + $0x560] sm:$0xff]
          %v4632 = vld [vmem:[%s482 + $0x568] sm:$0xff]
          %v4633 = vld [vmem:[%s482 + $0x570] sm:$0xff]
          %v4634 = vld [vmem:[%s482 + $0x578] sm:$0xff]
          %v4635 = vld [vmem:[%s482 + $0x580] sm:$0xff]
          %v4636 = vld [vmem:[%s482 + $0x588] sm:$0xff]
          %v4637 = vld [vmem:[%s482 + $0x590] sm:$0xff]
          %v4638 = vld [vmem:[%s482 + $0x598] sm:$0xff]
          %v4639 = vld [vmem:[%s482 + $0x5a0] sm:$0xff]
          %v4640 = vld [vmem:[%s482 + $0x5a8] sm:$0xff]
          %v4641 = vld [vmem:[%s482 + $0x5b0] sm:$0xff]
          %v4642 = vld [vmem:[%s482 + $0x5b8] sm:$0xff]
          %v4643 = vld [vmem:[%s482 + $0x5c0] sm:$0xff]
          %v4644 = vld [vmem:[%s482 + $0x5c8] sm:$0xff]
          %v4645 = vld [vmem:[%s482 + $0x5d0] sm:$0xff]
          %v4646 = vld [vmem:[%s482 + $0x5d8] sm:$0xff]
          %v4647 = vld [vmem:[%s482 + $0x5e0] sm:$0xff]
          %v4648 = vld [vmem:[%s482 + $0x5e8] sm:$0xff]
          %v4649 = vld [vmem:[%s482 + $0x5f0] sm:$0xff]
          %v4650 = vld [vmem:[%s482 + $0x5f8] sm:$0xff]
          %v4651 = vld [vmem:[%s482 + $0x600] sm:$0xff]
          %v4652 = vld [vmem:[%s482 + $0x608] sm:$0xff]
          %v4653 = vld [vmem:[%s482 + $0x610] sm:$0xff]
          %v4654 = vld [vmem:[%s482 + $0x618] sm:$0xff]
          %v4655 = vld [vmem:[%s482 + $0x620] sm:$0xff]
          %v4656 = vld [vmem:[%s482 + $0x628] sm:$0xff]
          %v4657 = vld [vmem:[%s482 + $0x630] sm:$0xff]
          %v4658 = vld [vmem:[%s482 + $0x638] sm:$0xff]
          %v4659 = vld [vmem:[%s482 + $0x640] sm:$0xff]
          %v4660 = vld [vmem:[%s482 + $0x648] sm:$0xff]
          %v4661 = vld [vmem:[%s482 + $0x650] sm:$0xff]
          %v4662 = vld [vmem:[%s482 + $0x658] sm:$0xff]
          %v4663 = vld [vmem:[%s482 + $0x660] sm:$0xff]
          %v4664 = vld [vmem:[%s482 + $0x668] sm:$0xff]
          %v4665 = vld [vmem:[%s482 + $0x670] sm:$0xff]
          %v4666 = vld [vmem:[%s482 + $0x678] sm:$0xff]
          %v4667 = vld [vmem:[%s482 + $0x680] sm:$0xff]
          %v4668 = vld [vmem:[%s482 + $0x688] sm:$0xff]
          %v4669 = vld [vmem:[%s482 + $0x690] sm:$0xff]
          %v4670 = vld [vmem:[%s482 + $0x698] sm:$0xff]
          %v4671 = vld [vmem:[%s482 + $0x6a0] sm:$0xff]
          %v4672 = vld [vmem:[%s482 + $0x6a8] sm:$0xff]
          %v4673 = vld [vmem:[%s482 + $0x6b0] sm:$0xff]
          %v4674 = vld [vmem:[%s482 + $0x6b8] sm:$0xff]
          %v4675 = vld [vmem:[%s482 + $0x6c0] sm:$0xff]
          %v4676 = vld [vmem:[%s482 + $0x6c8] sm:$0xff]
          %v4677 = vld [vmem:[%s482 + $0x6d0] sm:$0xff]
          %v4678 = vld [vmem:[%s482 + $0x6d8] sm:$0xff]
          %v4679 = vld [vmem:[%s482 + $0x6e0] sm:$0xff]
          %v4680 = vld [vmem:[%s482 + $0x6e8] sm:$0xff]
          %v4681 = vld [vmem:[%s482 + $0x6f0] sm:$0xff]
          %v4682 = vld [vmem:[%s482 + $0x6f8] sm:$0xff]
          %v4683 = vld [vmem:[%s482 + $0x700] sm:$0xff]
          %v4684 = vld [vmem:[%s482 + $0x708] sm:$0xff]
          %v4685 = vld [vmem:[%s482 + $0x710] sm:$0xff]
          %v4686 = vld [vmem:[%s482 + $0x718] sm:$0xff]
          %v4687 = vld [vmem:[%s482 + $0x720] sm:$0xff]
          %v4688 = vld [vmem:[%s482 + $0x728] sm:$0xff]
          %v4689 = vld [vmem:[%s482 + $0x730] sm:$0xff]
          %v4690 = vld [vmem:[%s482 + $0x738] sm:$0xff]
          %v4691 = vld [vmem:[%s482 + $0x740] sm:$0xff]
          %v4692 = vld [vmem:[%s482 + $0x748] sm:$0xff]
          %v4693 = vld [vmem:[%s482 + $0x750] sm:$0xff]
          %v4694 = vld [vmem:[%s482 + $0x758] sm:$0xff]
          %v4695 = vld [vmem:[%s482 + $0x760] sm:$0xff]
          %v4696 = vld [vmem:[%s482 + $0x768] sm:$0xff]
          %v4697 = vld [vmem:[%s482 + $0x770] sm:$0xff]
          %v4698 = vld [vmem:[%s482 + $0x778] sm:$0xff]
          %v4699 = vld [vmem:[%s482 + $0x780] sm:$0xff]
          %v4700 = vld [vmem:[%s482 + $0x788] sm:$0xff]
          %v4701 = vld [vmem:[%s482 + $0x790] sm:$0xff]
          %v4702 = vld [vmem:[%s482 + $0x798] sm:$0xff]
          %v4703 = vld [vmem:[%s482 + $0x7a0] sm:$0xff]
          %v4704 = vld [vmem:[%s482 + $0x7a8] sm:$0xff]
          %v4705 = vld [vmem:[%s482 + $0x7b0] sm:$0xff]
          %v4706 = vld [vmem:[%s482 + $0x7b8] sm:$0xff]
          %v4707 = vld [vmem:[%s482 + $0x7c0] sm:$0xff]
          %v4708 = vld [vmem:[%s482 + $0x7c8] sm:$0xff]
          %v4709 = vld [vmem:[%s482 + $0x7d0] sm:$0xff]
          %v4710 = vld [vmem:[%s482 + $0x7d8] sm:$0xff]
          %v4711 = vld [vmem:[%s482 + $0x7e0] sm:$0xff]
          %v4712 = vld [vmem:[%s482 + $0x7e8] sm:$0xff]
          %v4713 = vld [vmem:[%s482 + $0x7f0] sm:$0xff]
          %v4714 = vld [vmem:[%s482 + $0x7f8] sm:$0xff]
          %v4715 = vld [vmem:[%s482 + $0x800] sm:$0xff]
          %v4716 = vld [vmem:[%s482 + $0x808] sm:$0xff]
          %v4717 = vld [vmem:[%s482 + $0x810] sm:$0xff]
          %v4718 = vld [vmem:[%s482 + $0x818] sm:$0xff]
          %v4719 = vld [vmem:[%s482 + $0x820] sm:$0xff]
          %v4720 = vld [vmem:[%s482 + $0x828] sm:$0xff]
          %v4721 = vld [vmem:[%s482 + $0x830] sm:$0xff]
          %v4722 = vld [vmem:[%s482 + $0x838] sm:$0xff]
          %v4723 = vld [vmem:[%s482 + $0x840] sm:$0xff]
          %v4724 = vld [vmem:[%s482 + $0x848] sm:$0xff]
          %v4725 = vld [vmem:[%s482 + $0x850] sm:$0xff]
          %v4726 = vld [vmem:[%s482 + $0x858] sm:$0xff]
          %v4727 = vld [vmem:[%s482 + $0x860] sm:$0xff]
          %v4728 = vld [vmem:[%s482 + $0x868] sm:$0xff]
          %v4729 = vld [vmem:[%s482 + $0x870] sm:$0xff]
          %v4730 = vld [vmem:[%s482 + $0x878] sm:$0xff]
          %v4731 = vld [vmem:[%s482 + $0x880] sm:$0xff]
          %v4732 = vld [vmem:[%s482 + $0x888] sm:$0xff]
          %v4733 = vld [vmem:[%s482 + $0x890] sm:$0xff]
          %v4734 = vld [vmem:[%s482 + $0x898] sm:$0xff]
          %v4735 = vld [vmem:[%s482 + $0x8a0] sm:$0xff]
          %v4736 = vld [vmem:[%s482 + $0x8a8] sm:$0xff]
          %v4737 = vld [vmem:[%s482 + $0x8b0] sm:$0xff]
          %v4738 = vld [vmem:[%s482 + $0x8b8] sm:$0xff]
          %v4739 = vld [vmem:[%s482 + $0x8c0] sm:$0xff]
          %v4740 = vld [vmem:[%s482 + $0x8c8] sm:$0xff]
          %v4741 = vld [vmem:[%s482 + $0x8d0] sm:$0xff]
          %v4742 = vld [vmem:[%s482 + $0x8d8] sm:$0xff]
          %v4743 = vld [vmem:[%s482 + $0x8e0] sm:$0xff]
          %v4744 = vld [vmem:[%s482 + $0x8e8] sm:$0xff]
          %v4745 = vld [vmem:[%s482 + $0x8f0] sm:$0xff]
          %v4746 = vld [vmem:[%s482 + $0x8f8] sm:$0xff]
          %v4747 = vld [vmem:[%s482 + $0x900] sm:$0xff]
          %v4748 = vld [vmem:[%s482 + $0x908] sm:$0xff]
          %v4749 = vld [vmem:[%s482 + $0x910] sm:$0xff]
          %v4750 = vld [vmem:[%s482 + $0x918] sm:$0xff]
          %v4751 = vld [vmem:[%s482 + $0x920] sm:$0xff]
          %v4752 = vld [vmem:[%s482 + $0x928] sm:$0xff]
          %v4753 = vld [vmem:[%s482 + $0x930] sm:$0xff]
          %v4754 = vld [vmem:[%s482 + $0x938] sm:$0xff]
          %v4755 = vld [vmem:[%s482 + $0x940] sm:$0xff]
          %v4756 = vld [vmem:[%s482 + $0x948] sm:$0xff]
          %v4757 = vld [vmem:[%s482 + $0x950] sm:$0xff]
          %v4758 = vld [vmem:[%s482 + $0x958] sm:$0xff]
          %v4759 = vld [vmem:[%s482 + $0x960] sm:$0xff]
          %v4760 = vld [vmem:[%s482 + $0x968] sm:$0xff]
          %v4761 = vld [vmem:[%s482 + $0x970] sm:$0xff]
          %v4762 = vld [vmem:[%s482 + $0x978] sm:$0xff]
          %v4763 = vld [vmem:[%s482 + $0x980] sm:$0xff]
          %v4764 = vld [vmem:[%s482 + $0x988] sm:$0xff]
          %v4765 = vld [vmem:[%s482 + $0x990] sm:$0xff]
          %v4766 = vld [vmem:[%s482 + $0x998] sm:$0xff]
          %v4767 = vld [vmem:[%s482 + $0x9a0] sm:$0xff]
          %v4768 = vld [vmem:[%s482 + $0x9a8] sm:$0xff]
          %v4769 = vld [vmem:[%s482 + $0x9b0] sm:$0xff]
          %v4770 = vld [vmem:[%s482 + $0x9b8] sm:$0xff]
          %v4771 = vld [vmem:[%s482 + $0x9c0] sm:$0xff]
          %v4772 = vld [vmem:[%s482 + $0x9c8] sm:$0xff]
          %v4773 = vld [vmem:[%s482 + $0x9d0] sm:$0xff]
          %v4774 = vld [vmem:[%s482 + $0x9d8] sm:$0xff]
          %v4775 = vld [vmem:[%s482 + $0x9e0] sm:$0xff]
          %v4776 = vld [vmem:[%s482 + $0x9e8] sm:$0xff]
          %v4777 = vld [vmem:[%s482 + $0x9f0] sm:$0xff]
          %v4778 = vld [vmem:[%s482 + $0x9f8] sm:$0xff]
          %v4779 = vld [vmem:[%s482 + $0xa00] sm:$0xff]
          %v4780 = vld [vmem:[%s482 + $0xa08] sm:$0xff]
          %v4781 = vld [vmem:[%s482 + $0xa10] sm:$0xff]
          %v4782 = vld [vmem:[%s482 + $0xa18] sm:$0xff]
          %v4783 = vld [vmem:[%s482 + $0xa20] sm:$0xff]
          %v4784 = vld [vmem:[%s482 + $0xa28] sm:$0xff]
          %v4785 = vld [vmem:[%s482 + $0xa30] sm:$0xff]
          %v4786 = vld [vmem:[%s482 + $0xa38] sm:$0xff]
          %v4787 = vld [vmem:[%s482 + $0xa40] sm:$0xff]
          %v4788 = vld [vmem:[%s482 + $0xa48] sm:$0xff]
          %v4789 = vld [vmem:[%s482 + $0xa50] sm:$0xff]
          %v4790 = vld [vmem:[%s482 + $0xa58] sm:$0xff]
          %v4791 = vld [vmem:[%s482 + $0xa60] sm:$0xff]
          %v4792 = vld [vmem:[%s482 + $0xa68] sm:$0xff]
          %v4793 = vld [vmem:[%s482 + $0xa70] sm:$0xff]
          %v4794 = vld [vmem:[%s482 + $0xa78] sm:$0xff]
          %v4795 = vld [vmem:[%s482 + $0xa80] sm:$0xff]
          %v4796 = vld [vmem:[%s482 + $0xa88] sm:$0xff]
          %v4797 = vld [vmem:[%s482 + $0xa90] sm:$0xff]
          %v4798 = vld [vmem:[%s482 + $0xa98] sm:$0xff]
          %v4799 = vld [vmem:[%s482 + $0xaa0] sm:$0xff]
          %v4800 = vld [vmem:[%s482 + $0xaa8] sm:$0xff]
          %v4801 = vld [vmem:[%s482 + $0xab0] sm:$0xff]
          %v4802 = vld [vmem:[%s482 + $0xab8] sm:$0xff]
          %v4803 = vld [vmem:[%s482 + $0xac0] sm:$0xff]
          %v4804 = vld [vmem:[%s482 + $0xac8] sm:$0xff]
          %v4805 = vld [vmem:[%s482 + $0xad0] sm:$0xff]
          %v4806 = vld [vmem:[%s482 + $0xad8] sm:$0xff]
          %v4807 = vld [vmem:[%s482 + $0xae0] sm:$0xff]
          %v4808 = vld [vmem:[%s482 + $0xae8] sm:$0xff]
          %v4809 = vld [vmem:[%s482 + $0xaf0] sm:$0xff]
          %v4810 = vld [vmem:[%s482 + $0xaf8] sm:$0xff]
          %v4811 = vld [vmem:[%s482 + $0xb00] sm:$0xff]
          %v4812 = vld [vmem:[%s482 + $0xb08] sm:$0xff]
          %v4813 = vld [vmem:[%s482 + $0xb10] sm:$0xff]
          %v4814 = vld [vmem:[%s482 + $0xb18] sm:$0xff]
          %v4815 = vld [vmem:[%s482 + $0xb20] sm:$0xff]
          %v4816 = vld [vmem:[%s482 + $0xb28] sm:$0xff]
          %v4817 = vld [vmem:[%s482 + $0xb30] sm:$0xff]
          %v4818 = vld [vmem:[%s482 + $0xb38] sm:$0xff]
          %v4819 = vld [vmem:[%s482 + $0xb40] sm:$0xff]
          %v4820 = vld [vmem:[%s482 + $0xb48] sm:$0xff]
          %v4821 = vld [vmem:[%s482 + $0xb50] sm:$0xff]
          %v4822 = vld [vmem:[%s482 + $0xb58] sm:$0xff]
          %v4823 = vld [vmem:[%s482 + $0xb60] sm:$0xff]
          %v4824 = vld [vmem:[%s482 + $0xb68] sm:$0xff]
          %v4825 = vld [vmem:[%s482 + $0xb70] sm:$0xff]
          %v4826 = vld [vmem:[%s482 + $0xb78] sm:$0xff]
          %v4827 = vld [vmem:[%s482 + $0xb80] sm:$0xff]
          %v4828 = vld [vmem:[%s482 + $0xb88] sm:$0xff]
          %v4829 = vld [vmem:[%s482 + $0xb90] sm:$0xff]
          %v4830 = vld [vmem:[%s482 + $0xb98] sm:$0xff]
          %v4831 = vld [vmem:[%s482 + $0xba0] sm:$0xff]
          %v4832 = vld [vmem:[%s482 + $0xba8] sm:$0xff]
          %v4833 = vld [vmem:[%s482 + $0xbb0] sm:$0xff]
          %v4834 = vld [vmem:[%s482 + $0xbb8] sm:$0xff]
          %v4835 = vld [vmem:[%s482 + $0xbc0] sm:$0xff]
          %v4836 = vld [vmem:[%s482 + $0xbc8] sm:$0xff]
          %v4837 = vld [vmem:[%s482 + $0xbd0] sm:$0xff]
          %v4838 = vld [vmem:[%s482 + $0xbd8] sm:$0xff]
          %v4839 = vld [vmem:[%s482 + $0xbe0] sm:$0xff]
          %v4840 = vld [vmem:[%s482 + $0xbe8] sm:$0xff]
          %v4841 = vld [vmem:[%s482 + $0xbf0] sm:$0xff]
          %v4842 = vld [vmem:[%s482 + $0xbf8] sm:$0xff]
          %v4843 = vld [vmem:[%s482 + $0xc00] sm:$0xff]
          %v4844 = vld [vmem:[%s482 + $0xc08] sm:$0xff]
          %v4845 = vld [vmem:[%s482 + $0xc10] sm:$0xff]
          %v4846 = vld [vmem:[%s482 + $0xc18] sm:$0xff]
          %v4847 = vld [vmem:[%s482 + $0xc20] sm:$0xff]
          %v4848 = vld [vmem:[%s482 + $0xc28] sm:$0xff]
          %v4849 = vld [vmem:[%s482 + $0xc30] sm:$0xff]
          %v4850 = vld [vmem:[%s482 + $0xc38] sm:$0xff]
          %v4851 = vld [vmem:[%s482 + $0xc40] sm:$0xff]
          %v4852 = vld [vmem:[%s482 + $0xc48] sm:$0xff]
          %v4853 = vld [vmem:[%s482 + $0xc50] sm:$0xff]
          %v4854 = vld [vmem:[%s482 + $0xc58] sm:$0xff]
          %v4855 = vld [vmem:[%s482 + $0xc60] sm:$0xff]
          %v4856 = vld [vmem:[%s482 + $0xc68] sm:$0xff]
          %v4857 = vld [vmem:[%s482 + $0xc70] sm:$0xff]
          %v4858 = vld [vmem:[%s482 + $0xc78] sm:$0xff]
          %v4859 = vld [vmem:[%s482 + $0xc80] sm:$0xff]
          %v4860 = vld [vmem:[%s482 + $0xc88] sm:$0xff]
          %v4861 = vld [vmem:[%s482 + $0xc90] sm:$0xff]
          %v4862 = vld [vmem:[%s482 + $0xc98] sm:$0xff]
          %v4863 = vld [vmem:[%s482 + $0xca0] sm:$0xff]
          %v4864 = vld [vmem:[%s482 + $0xca8] sm:$0xff]
          %v4865 = vld [vmem:[%s482 + $0xcb0] sm:$0xff]
          %v4866 = vld [vmem:[%s482 + $0xcb8] sm:$0xff]
          %v4867 = vld [vmem:[%s482 + $0xcc0] sm:$0xff]
          %v4868 = vld [vmem:[%s482 + $0xcc8] sm:$0xff]
          %v4869 = vld [vmem:[%s482 + $0xcd0] sm:$0xff]
          %v4870 = vld [vmem:[%s482 + $0xcd8] sm:$0xff]
          %v4871 = vld [vmem:[%s482 + $0xce0] sm:$0xff]
          %v4872 = vld [vmem:[%s482 + $0xce8] sm:$0xff]
          %v4873 = vld [vmem:[%s482 + $0xcf0] sm:$0xff]
          %v4874 = vld [vmem:[%s482 + $0xcf8] sm:$0xff]
          %v4875 = vld [vmem:[%s482 + $0xd00] sm:$0xff]
          %v4876 = vld [vmem:[%s482 + $0xd08] sm:$0xff]
          %v4877 = vld [vmem:[%s482 + $0xd10] sm:$0xff]
          %v4878 = vld [vmem:[%s482 + $0xd18] sm:$0xff]
          %v4879 = vld [vmem:[%s482 + $0xd20] sm:$0xff]
          %v4880 = vld [vmem:[%s482 + $0xd28] sm:$0xff]
          %v4881 = vld [vmem:[%s482 + $0xd30] sm:$0xff]
          %v4882 = vld [vmem:[%s482 + $0xd38] sm:$0xff]
          %v4883 = vld [vmem:[%s482 + $0xd40] sm:$0xff]
          %v4884 = vld [vmem:[%s482 + $0xd48] sm:$0xff]
          %v4885 = vld [vmem:[%s482 + $0xd50] sm:$0xff]
          %v4886 = vld [vmem:[%s482 + $0xd58] sm:$0xff]
          %v4887 = vld [vmem:[%s482 + $0xd60] sm:$0xff]
          %v4888 = vld [vmem:[%s482 + $0xd68] sm:$0xff]
          %v4889 = vld [vmem:[%s482 + $0xd70] sm:$0xff]
          %v4890 = vld [vmem:[%s482 + $0xd78] sm:$0xff]
          %v4891 = vld [vmem:[%s482 + $0xd80] sm:$0xff]
          %v4892 = vld [vmem:[%s482 + $0xd88] sm:$0xff]
          %v4893 = vld [vmem:[%s482 + $0xd90] sm:$0xff]
          %v4894 = vld [vmem:[%s482 + $0xd98] sm:$0xff]
          %v4895 = vld [vmem:[%s482 + $0xda0] sm:$0xff]
          %v4896 = vld [vmem:[%s482 + $0xda8] sm:$0xff]
          %v4897 = vld [vmem:[%s482 + $0xdb0] sm:$0xff]
          %v4898 = vld [vmem:[%s482 + $0xdb8] sm:$0xff]
          %v4899 = vld [vmem:[%s482 + $0xdc0] sm:$0xff]
          %v4900 = vld [vmem:[%s482 + $0xdc8] sm:$0xff]
          %v4901 = vld [vmem:[%s482 + $0xdd0] sm:$0xff]
          %v4902 = vld [vmem:[%s482 + $0xdd8] sm:$0xff]
          %v4903 = vld [vmem:[%s482 + $0xde0] sm:$0xff]
          %v4904 = vld [vmem:[%s482 + $0xde8] sm:$0xff]
          %v4905 = vld [vmem:[%s482 + $0xdf0] sm:$0xff]
          %v4906 = vld [vmem:[%s482 + $0xdf8] sm:$0xff]
          %v4907 = vld [vmem:[%s482 + $0xe00] sm:$0xff]
          %v4908 = vld [vmem:[%s482 + $0xe08] sm:$0xff]
          %v4909 = vld [vmem:[%s482 + $0xe10] sm:$0xff]
          %v4910 = vld [vmem:[%s482 + $0xe18] sm:$0xff]
          %v4911 = vld [vmem:[%s482 + $0xe20] sm:$0xff]
          %v4912 = vld [vmem:[%s482 + $0xe28] sm:$0xff]
          %v4913 = vld [vmem:[%s482 + $0xe30] sm:$0xff]
          %v4914 = vld [vmem:[%s482 + $0xe38] sm:$0xff]
          %v4915 = vld [vmem:[%s482 + $0xe40] sm:$0xff]
          %v4916 = vld [vmem:[%s482 + $0xe48] sm:$0xff]
          %v4917 = vld [vmem:[%s482 + $0xe50] sm:$0xff]
          %v4918 = vld [vmem:[%s482 + $0xe58] sm:$0xff]
          %v4919 = vld [vmem:[%s482 + $0xe60] sm:$0xff]
          %v4920 = vld [vmem:[%s482 + $0xe68] sm:$0xff]
          %v4921 = vld [vmem:[%s482 + $0xe70] sm:$0xff]
          %v4922 = vld [vmem:[%s482 + $0xe78] sm:$0xff]
          %v4923 = vld [vmem:[%s482 + $0xe80] sm:$0xff]
          %v4924 = vld [vmem:[%s482 + $0xe88] sm:$0xff]
          %v4925 = vld [vmem:[%s482 + $0xe90] sm:$0xff]
          %v4926 = vld [vmem:[%s482 + $0xe98] sm:$0xff]
          %v4927 = vld [vmem:[%s482 + $0xea0] sm:$0xff]
          %v4928 = vld [vmem:[%s482 + $0xea8] sm:$0xff]
          %v4929 = vld [vmem:[%s482 + $0xeb0] sm:$0xff]
          %v4930 = vld [vmem:[%s482 + $0xeb8] sm:$0xff]
          %v4931 = vld [vmem:[%s482 + $0xec0] sm:$0xff]
          %v4932 = vld [vmem:[%s482 + $0xec8] sm:$0xff]
          %v4933 = vld [vmem:[%s482 + $0xed0] sm:$0xff]
          %v4934 = vld [vmem:[%s482 + $0xed8] sm:$0xff]
          %v4935 = vld [vmem:[%s482 + $0xee0] sm:$0xff]
          %v4936 = vld [vmem:[%s482 + $0xee8] sm:$0xff]
          %v4937 = vld [vmem:[%s482 + $0xef0] sm:$0xff]
          %v4938 = vld [vmem:[%s482 + $0xef8] sm:$0xff]
          %v4939 = vld [vmem:[%s482 + $0xf00] sm:$0xff]
          %v4940 = vld [vmem:[%s482 + $0xf08] sm:$0xff]
          %v4941 = vld [vmem:[%s482 + $0xf10] sm:$0xff]
          %v4942 = vld [vmem:[%s482 + $0xf18] sm:$0xff]
          %v4943 = vld [vmem:[%s482 + $0xf20] sm:$0xff]
          %v4944 = vld [vmem:[%s482 + $0xf28] sm:$0xff]
          %v4945 = vld [vmem:[%s482 + $0xf30] sm:$0xff]
          %v4946 = vld [vmem:[%s482 + $0xf38] sm:$0xff]
          %v4947 = vld [vmem:[%s482 + $0xf40] sm:$0xff]
          %v4948 = vld [vmem:[%s482 + $0xf48] sm:$0xff]
          %v4949 = vld [vmem:[%s482 + $0xf50] sm:$0xff]
          %v4950 = vld [vmem:[%s482 + $0xf58] sm:$0xff]
          %v4951 = vld [vmem:[%s482 + $0xf60] sm:$0xff]
          %v4952 = vld [vmem:[%s482 + $0xf68] sm:$0xff]
          %v4953 = vld [vmem:[%s482 + $0xf70] sm:$0xff]
          %v4954 = vld [vmem:[%s482 + $0xf78] sm:$0xff]
          %v4955 = vld [vmem:[%s482 + $0xf80] sm:$0xff]
          %v4956 = vld [vmem:[%s482 + $0xf88] sm:$0xff]
          %v4957 = vld [vmem:[%s482 + $0xf90] sm:$0xff]
          %v4958 = vld [vmem:[%s482 + $0xf98] sm:$0xff]
          %v4959 = vld [vmem:[%s482 + $0xfa0] sm:$0xff]
          %v4960 = vld [vmem:[%s482 + $0xfa8] sm:$0xff]
          %v4961 = vld [vmem:[%s482 + $0xfb0] sm:$0xff]
          %v4962 = vld [vmem:[%s482 + $0xfb8] sm:$0xff]
          %v4963 = vld [vmem:[%s482 + $0xfc0] sm:$0xff]
          %v4964 = vld [vmem:[%s482 + $0xfc8] sm:$0xff]
          %v4965 = vld [vmem:[%s482 + $0xfd0] sm:$0xff]
          %v4966 = vld [vmem:[%s482 + $0xfd8] sm:$0xff]
          %v4967 = vld [vmem:[%s482 + $0xfe0] sm:$0xff]
          %v4968 = vld [vmem:[%s482 + $0xfe8] sm:$0xff]
          %v4969 = vld [vmem:[%s482 + $0xff0] sm:$0xff]
          %v4970 = vld [vmem:[%s482 + $0xff8] sm:$0xff]
          %v4971 = vld [vmem:[%s482 + $0x1000] sm:$0xff]
          %v4972 = vld [vmem:[%s482 + $0x1008] sm:$0xff]
          %v4973 = vld [vmem:[%s482 + $0x1010] sm:$0xff]
          %v4974 = vld [vmem:[%s482 + $0x1018] sm:$0xff]
          %v4975 = vld [vmem:[%s482 + $0x1020] sm:$0xff]
          %v4976 = vld [vmem:[%s482 + $0x1028] sm:$0xff]
          %v4977 = vld [vmem:[%s482 + $0x1030] sm:$0xff]
          %v4978 = vld [vmem:[%s482 + $0x1038] sm:$0xff]
          %v4979 = vld [vmem:[%s482 + $0x1040] sm:$0xff]
          %v4980 = vld [vmem:[%s482 + $0x1048] sm:$0xff]
          %v4981 = vld [vmem:[%s482 + $0x1050] sm:$0xff]
          %v4982 = vld [vmem:[%s482 + $0x1058] sm:$0xff]
          %v4983 = vld [vmem:[%s482 + $0x1060] sm:$0xff]
          %v4984 = vld [vmem:[%s482 + $0x1068] sm:$0xff]
          %v4985 = vld [vmem:[%s482 + $0x1070] sm:$0xff]
          %v4986 = vld [vmem:[%s482 + $0x1078] sm:$0xff]
          %v4987 = vld [vmem:[%s482 + $0x1080] sm:$0xff]
          %v4988 = vld [vmem:[%s482 + $0x1088] sm:$0xff]
          %v4989 = vld [vmem:[%s482 + $0x1090] sm:$0xff]
          %v4990 = vld [vmem:[%s482 + $0x1098] sm:$0xff]
          %v4991 = vld [vmem:[%s482 + $0x10a0] sm:$0xff]
          %v4992 = vld [vmem:[%s482 + $0x10a8] sm:$0xff]
          %v4993 = vld [vmem:[%s482 + $0x10b0] sm:$0xff]
          %v4994 = vld [vmem:[%s482 + $0x10b8] sm:$0xff]
          %v4995 = vld [vmem:[%s482 + $0x10c0] sm:$0xff]
          %v4996 = vld [vmem:[%s482 + $0x10c8] sm:$0xff]
          %v4997 = vld [vmem:[%s482 + $0x10d0] sm:$0xff]
          %v4998 = vld [vmem:[%s482 + $0x10d8] sm:$0xff]
          %v4999 = vld [vmem:[%s482 + $0x10e0] sm:$0xff]
          %v5000 = vld [vmem:[%s482 + $0x10e8] sm:$0xff]
          %v5001 = vld [vmem:[%s482 + $0x10f0] sm:$0xff]
          %v5002 = vld [vmem:[%s482 + $0x10f8] sm:$0xff]
          %v5003 = vld [vmem:[%s482 + $0x1100] sm:$0xff]
          %v5004 = vld [vmem:[%s482 + $0x1108] sm:$0xff]
          %v5005 = vld [vmem:[%s482 + $0x1110] sm:$0xff]
          %v5006 = vld [vmem:[%s482 + $0x1118] sm:$0xff]
          %v5007 = vld [vmem:[%s482 + $0x1120] sm:$0xff]
          %v5008 = vld [vmem:[%s482 + $0x1128] sm:$0xff]
          %v5009 = vld [vmem:[%s482 + $0x1130] sm:$0xff]
          %v5010 = vld [vmem:[%s482 + $0x1138] sm:$0xff]
          %v5011 = vld [vmem:[%s482 + $0x1140] sm:$0xff]
          %v5012 = vld [vmem:[%s482 + $0x1148] sm:$0xff]
          %v5013 = vld [vmem:[%s482 + $0x1150] sm:$0xff]
          %v5014 = vld [vmem:[%s482 + $0x1158] sm:$0xff]
          %v5015 = vld [vmem:[%s482 + $0x1160] sm:$0xff]
          %v5016 = vld [vmem:[%s482 + $0x1168] sm:$0xff]
          %v5017 = vld [vmem:[%s482 + $0x1170] sm:$0xff]
          %v5018 = vld [vmem:[%s482 + $0x1178] sm:$0xff]
          %v5019 = vld [vmem:[%s482 + $0x1180] sm:$0xff]
          %v5020 = vld [vmem:[%s482 + $0x1188] sm:$0xff]
          %v5021 = vld [vmem:[%s482 + $0x1190] sm:$0xff]
          %v5022 = vld [vmem:[%s482 + $0x1198] sm:$0xff]
          %v5023 = vld [vmem:[%s482 + $0x11a0] sm:$0xff]
          %v5024 = vld [vmem:[%s482 + $0x11a8] sm:$0xff]
          %v5025 = vld [vmem:[%s482 + $0x11b0] sm:$0xff]
          %v5026 = vld [vmem:[%s482 + $0x11b8] sm:$0xff]
          %v5027 = vld [vmem:[%s482 + $0x11c0] sm:$0xff]
          %v5028 = vld [vmem:[%s482 + $0x11c8] sm:$0xff]
          %v5029 = vld [vmem:[%s482 + $0x11d0] sm:$0xff]
          %v5030 = vld [vmem:[%s482 + $0x11d8] sm:$0xff]
          %v5031 = vld [vmem:[%s482 + $0x11e0] sm:$0xff]
          %v5032 = vld [vmem:[%s482 + $0x11e8] sm:$0xff]
          %v5033 = vld [vmem:[%s482 + $0x11f0] sm:$0xff]
          %v5034 = vld [vmem:[%s482 + $0x11f8] sm:$0xff]
          %v5035 = vld [vmem:[%s482 + $0x1200] sm:$0xff]
          %v5036 = vld [vmem:[%s482 + $0x1208] sm:$0xff]
          %v5037 = vld [vmem:[%s482 + $0x1210] sm:$0xff]
          %v5038 = vld [vmem:[%s482 + $0x1218] sm:$0xff]
          %v5039 = vld [vmem:[%s482 + $0x1220] sm:$0xff]
          %v5040 = vld [vmem:[%s482 + $0x1228] sm:$0xff]
          %v5041 = vld [vmem:[%s482 + $0x1230] sm:$0xff]
          %v5042 = vld [vmem:[%s482 + $0x1238] sm:$0xff]
          %v5043 = vld [vmem:[%s482 + $0x1240] sm:$0xff]
          %v5044 = vld [vmem:[%s482 + $0x1248] sm:$0xff]
          %v5045 = vld [vmem:[%s482 + $0x1250] sm:$0xff]
          %v5046 = vld [vmem:[%s482 + $0x1258] sm:$0xff]
          %v5047 = vld [vmem:[%s482 + $0x1260] sm:$0xff]
          %v5048 = vld [vmem:[%s482 + $0x1268] sm:$0xff]
          %v5049 = vld [vmem:[%s482 + $0x1270] sm:$0xff]
          %v5050 = vld [vmem:[%s482 + $0x1278] sm:$0xff]
          %v5051 = vld [vmem:[%s482 + $0x1280] sm:$0xff]
          %v5052 = vld [vmem:[%s482 + $0x1288] sm:$0xff]
          %v5053 = vld [vmem:[%s482 + $0x1290] sm:$0xff]
          %v5054 = vld [vmem:[%s482 + $0x1298] sm:$0xff]
          %v5055 = vld [vmem:[%s482 + $0x12a0] sm:$0xff]
          %v5056 = vld [vmem:[%s482 + $0x12a8] sm:$0xff]
          %v5057 = vld [vmem:[%s482 + $0x12b0] sm:$0xff]
          %v5058 = vld [vmem:[%s482 + $0x12b8] sm:$0xff]
          %v5059 = vld [vmem:[%s482 + $0x12c0] sm:$0xff]
          %v5060 = vld [vmem:[%s482 + $0x12c8] sm:$0xff]
          %v5061 = vld [vmem:[%s482 + $0x12d0] sm:$0xff]
          %v5062 = vld [vmem:[%s482 + $0x12d8] sm:$0xff]
          %v5063 = vld [vmem:[%s482 + $0x12e0] sm:$0xff]
          %v5064 = vld [vmem:[%s482 + $0x12e8] sm:$0xff]
          %v5065 = vld [vmem:[%s482 + $0x12f0] sm:$0xff]
          %v5066 = vld [vmem:[%s482 + $0x12f8] sm:$0xff]
          %v5067 = vld [vmem:[%s482 + $0x1300] sm:$0xff]
          %v5068 = vld [vmem:[%s482 + $0x1308] sm:$0xff]
          %v5069 = vld [vmem:[%s482 + $0x1310] sm:$0xff]
          %v5070 = vld [vmem:[%s482 + $0x1318] sm:$0xff]
          %v5071 = vld [vmem:[%s482 + $0x1320] sm:$0xff]
          %v5072 = vld [vmem:[%s482 + $0x1328] sm:$0xff]
          %v5073 = vld [vmem:[%s482 + $0x1330] sm:$0xff]
          %v5074 = vld [vmem:[%s482 + $0x1338] sm:$0xff]
          %v5075 = vld [vmem:[%s482 + $0x1340] sm:$0xff]
          %v5076 = vld [vmem:[%s482 + $0x1348] sm:$0xff]
          %v5077 = vld [vmem:[%s482 + $0x1350] sm:$0xff]
          %v5078 = vld [vmem:[%s482 + $0x1358] sm:$0xff]
          %v5079 = vld [vmem:[%s482 + $0x1360] sm:$0xff]
          %v5080 = vld [vmem:[%s482 + $0x1368] sm:$0xff]
          %v5081 = vld [vmem:[%s482 + $0x1370] sm:$0xff]
          %v5082 = vld [vmem:[%s482 + $0x1378] sm:$0xff]
          %v5083 = vld [vmem:[%s482 + $0x1380] sm:$0xff]
          %v5084 = vld [vmem:[%s482 + $0x1388] sm:$0xff]
          %v5085 = vld [vmem:[%s482 + $0x1390] sm:$0xff]
          %v5086 = vld [vmem:[%s482 + $0x1398] sm:$0xff]
          %v5087 = vld [vmem:[%s482 + $0x13a0] sm:$0xff]
          %v5088 = vld [vmem:[%s482 + $0x13a8] sm:$0xff]
          %v5089 = vld [vmem:[%s482 + $0x13b0] sm:$0xff]
          %v5090 = vld [vmem:[%s482 + $0x13b8] sm:$0xff]
          %v5091 = vld [vmem:[%s482 + $0x13c0] sm:$0xff]
          %v5092 = vld [vmem:[%s482 + $0x13c8] sm:$0xff]
          %v5093 = vld [vmem:[%s482 + $0x13d0] sm:$0xff]
          %v5094 = vld [vmem:[%s482 + $0x13d8] sm:$0xff]
          %v5095 = vld [vmem:[%s482 + $0x13e0] sm:$0xff]
          %v5096 = vld [vmem:[%s482 + $0x13e8] sm:$0xff]
          %v5097 = vld [vmem:[%s482 + $0x13f0] sm:$0xff]
          %v5098 = vld [vmem:[%s482 + $0x13f8] sm:$0xff]
          %v5099 = vld [vmem:[%s482 + $0x1400] sm:$0xff]
          %v5100 = vld [vmem:[%s482 + $0x1408] sm:$0xff]
          %v5101 = vld [vmem:[%s482 + $0x1410] sm:$0xff]
          %v5102 = vld [vmem:[%s482 + $0x1418] sm:$0xff]
          %v5103 = vld [vmem:[%s482 + $0x1420] sm:$0xff]
          %v5104 = vld [vmem:[%s482 + $0x1428] sm:$0xff]
          %v5105 = vld [vmem:[%s482 + $0x1430] sm:$0xff]
          %v5106 = vld [vmem:[%s482 + $0x1438] sm:$0xff]
          %v5107 = vld [vmem:[%s482 + $0x1440] sm:$0xff]
          %v5108 = vld [vmem:[%s482 + $0x1448] sm:$0xff]
          %v5109 = vld [vmem:[%s482 + $0x1450] sm:$0xff]
          %v5110 = vld [vmem:[%s482 + $0x1458] sm:$0xff]
          %v5111 = vld [vmem:[%s482 + $0x1460] sm:$0xff]
          %v5112 = vld [vmem:[%s482 + $0x1468] sm:$0xff]
          %v5113 = vld [vmem:[%s482 + $0x1470] sm:$0xff]
          %v5114 = vld [vmem:[%s482 + $0x1478] sm:$0xff]
          %v5115 = vld [vmem:[%s482 + $0x1480] sm:$0xff]
          %v5116 = vld [vmem:[%s482 + $0x1488] sm:$0xff]
          %v5117 = vld [vmem:[%s482 + $0x1490] sm:$0xff]
          %v5118 = vld [vmem:[%s482 + $0x1498] sm:$0xff]
          %v5119 = vld [vmem:[%s482 + $0x14a0] sm:$0xff]
          %v5120 = vld [vmem:[%s482 + $0x14a8] sm:$0xff]
          %v5121 = vld [vmem:[%s482 + $0x14b0] sm:$0xff]
          %v5122 = vld [vmem:[%s482 + $0x14b8] sm:$0xff]
          %v5123 = vld [vmem:[%s482 + $0x14c0] sm:$0xff]
          %v5124 = vld [vmem:[%s482 + $0x14c8] sm:$0xff]
          %v5125 = vld [vmem:[%s482 + $0x14d0] sm:$0xff]
          %v5126 = vld [vmem:[%s482 + $0x14d8] sm:$0xff]
          %v5127 = vld [vmem:[%s482 + $0x14e0] sm:$0xff]
          %v5128 = vld [vmem:[%s482 + $0x14e8] sm:$0xff]
          %v5129 = vld [vmem:[%s482 + $0x14f0] sm:$0xff]
          %v5130 = vld [vmem:[%s482 + $0x14f8] sm:$0xff]
          %v5131 = vld [vmem:[%s482 + $0x1500] sm:$0xff]
          %v5132 = vld [vmem:[%s482 + $0x1508] sm:$0xff]
          %v5133 = vld [vmem:[%s482 + $0x1510] sm:$0xff]
          %v5134 = vld [vmem:[%s482 + $0x1518] sm:$0xff]
          %v5135 = vld [vmem:[%s482 + $0x1520] sm:$0xff]
          %v5136 = vld [vmem:[%s482 + $0x1528] sm:$0xff]
          %v5137 = vld [vmem:[%s482 + $0x1530] sm:$0xff]
          %v5138 = vld [vmem:[%s482 + $0x1538] sm:$0xff]
          %v5139 = vld [vmem:[%s482 + $0x1540] sm:$0xff]
          %v5140 = vld [vmem:[%s482 + $0x1548] sm:$0xff]
          %v5141 = vld [vmem:[%s482 + $0x1550] sm:$0xff]
          %v5142 = vld [vmem:[%s482 + $0x1558] sm:$0xff]
          %v5143 = vld [vmem:[%s482 + $0x1560] sm:$0xff]
          %v5144 = vld [vmem:[%s482 + $0x1568] sm:$0xff]
          %v5145 = vld [vmem:[%s482 + $0x1570] sm:$0xff]
          %v5146 = vld [vmem:[%s482 + $0x1578] sm:$0xff]
          %v5147 = vld [vmem:[%s482 + $0x1580] sm:$0xff]
          %v5148 = vld [vmem:[%s482 + $0x1588] sm:$0xff]
          %v5149 = vld [vmem:[%s482 + $0x1590] sm:$0xff]
          %v5150 = vld [vmem:[%s482 + $0x1598] sm:$0xff]
          %v5151 = vld [vmem:[%s482 + $0x15a0] sm:$0xff]
          %v5152 = vld [vmem:[%s482 + $0x15a8] sm:$0xff]
          %v5153 = vld [vmem:[%s482 + $0x15b0] sm:$0xff]
          %v5154 = vld [vmem:[%s482 + $0x15b8] sm:$0xff]
          %v5155 = vld [vmem:[%s482 + $0x15c0] sm:$0xff]
          %v5156 = vld [vmem:[%s482 + $0x15c8] sm:$0xff]
          %v5157 = vld [vmem:[%s482 + $0x15d0] sm:$0xff]
          %v5158 = vld [vmem:[%s482 + $0x15d8] sm:$0xff]
          %v5159 = vld [vmem:[%s482 + $0x15e0] sm:$0xff]
          %v5160 = vld [vmem:[%s482 + $0x15e8] sm:$0xff]
          %v5161 = vld [vmem:[%s482 + $0x15f0] sm:$0xff]
          %v5162 = vld [vmem:[%s482 + $0x15f8] sm:$0xff]
          %v5163 = vld [vmem:[%s482 + $0x1600] sm:$0xff]
          %v5164 = vld [vmem:[%s482 + $0x1608] sm:$0xff]
          %v5165 = vld [vmem:[%s482 + $0x1610] sm:$0xff]
          %v5166 = vld [vmem:[%s482 + $0x1618] sm:$0xff]
          %v5167 = vld [vmem:[%s482 + $0x1620] sm:$0xff]
          %v5168 = vld [vmem:[%s482 + $0x1628] sm:$0xff]
          %v5169 = vld [vmem:[%s482 + $0x1630] sm:$0xff]
          %v5170 = vld [vmem:[%s482 + $0x1638] sm:$0xff]
          %v5171 = vld [vmem:[%s482 + $0x1640] sm:$0xff]
          %v5172 = vld [vmem:[%s482 + $0x1648] sm:$0xff]
          %v5173 = vld [vmem:[%s482 + $0x1650] sm:$0xff]
          %v5174 = vld [vmem:[%s482 + $0x1658] sm:$0xff]
          %v5175 = vld [vmem:[%s482 + $0x1660] sm:$0xff]
          %v5176 = vld [vmem:[%s482 + $0x1668] sm:$0xff]
          %v5177 = vld [vmem:[%s482 + $0x1670] sm:$0xff]
          %v5178 = vld [vmem:[%s482 + $0x1678] sm:$0xff]
          %v5179 = vld [vmem:[%s482 + $0x1680] sm:$0xff]
          %v5180 = vld [vmem:[%s482 + $0x1688] sm:$0xff]
          %v5181 = vld [vmem:[%s482 + $0x1690] sm:$0xff]
          %v5182 = vld [vmem:[%s482 + $0x1698] sm:$0xff]
          %v5183 = vld [vmem:[%s482 + $0x16a0] sm:$0xff]
          %v5184 = vld [vmem:[%s482 + $0x16a8] sm:$0xff]
          %v5185 = vld [vmem:[%s482 + $0x16b0] sm:$0xff]
          %v5186 = vld [vmem:[%s482 + $0x16b8] sm:$0xff]
          %v5187 = vld [vmem:[%s482 + $0x16c0] sm:$0xff]
          %v5188 = vld [vmem:[%s482 + $0x16c8] sm:$0xff]
          %v5189 = vld [vmem:[%s482 + $0x16d0] sm:$0xff]
          %v5190 = vld [vmem:[%s482 + $0x16d8] sm:$0xff]
          %v5191 = vld [vmem:[%s482 + $0x16e0] sm:$0xff]
          %v5192 = vld [vmem:[%s482 + $0x16e8] sm:$0xff]
          %v5193 = vld [vmem:[%s482 + $0x16f0] sm:$0xff]
          %v5194 = vld [vmem:[%s482 + $0x16f8] sm:$0xff]
          %v5195 = vld [vmem:[%s482 + $0x1700] sm:$0xff]
          %v5196 = vld [vmem:[%s482 + $0x1708] sm:$0xff]
          %v5197 = vld [vmem:[%s482 + $0x1710] sm:$0xff]
          %v5198 = vld [vmem:[%s482 + $0x1718] sm:$0xff]
          %v5199 = vld [vmem:[%s482 + $0x1720] sm:$0xff]
          %v5200 = vld [vmem:[%s482 + $0x1728] sm:$0xff]
          %v5201 = vld [vmem:[%s482 + $0x1730] sm:$0xff]
          %v5202 = vld [vmem:[%s482 + $0x1738] sm:$0xff]
          %v5203 = vld [vmem:[%s482 + $0x1740] sm:$0xff]
          %v5204 = vld [vmem:[%s482 + $0x1748] sm:$0xff]
          %v5205 = vld [vmem:[%s482 + $0x1750] sm:$0xff]
          %v5206 = vld [vmem:[%s482 + $0x1758] sm:$0xff]
          %v5207 = vld [vmem:[%s482 + $0x1760] sm:$0xff]
          %v5208 = vld [vmem:[%s482 + $0x1768] sm:$0xff]
          %v5209 = vld [vmem:[%s482 + $0x1770] sm:$0xff]
          %v5210 = vld [vmem:[%s482 + $0x1778] sm:$0xff]
          %v5211 = vld [vmem:[%s482 + $0x1780] sm:$0xff]
          %v5212 = vld [vmem:[%s482 + $0x1788] sm:$0xff]
          %v5213 = vld [vmem:[%s482 + $0x1790] sm:$0xff]
          %v5214 = vld [vmem:[%s482 + $0x1798] sm:$0xff]
          %v5215 = vld [vmem:[%s482 + $0x17a0] sm:$0xff]
          %v5216 = vld [vmem:[%s482 + $0x17a8] sm:$0xff]
          %v5217 = vld [vmem:[%s482 + $0x17b0] sm:$0xff]
          %v5218 = vld [vmem:[%s482 + $0x17b8] sm:$0xff]
          %v5219 = vld [vmem:[%s482 + $0x17c0] sm:$0xff]
          %v5220 = vld [vmem:[%s482 + $0x17c8] sm:$0xff]
          %v5221 = vld [vmem:[%s482 + $0x17d0] sm:$0xff]
          %v5222 = vld [vmem:[%s482 + $0x17d8] sm:$0xff]
          %v5223 = vld [vmem:[%s482 + $0x17e0] sm:$0xff]
          %v5224 = vld [vmem:[%s482 + $0x17e8] sm:$0xff]
          %v5225 = vld [vmem:[%s482 + $0x17f0] sm:$0xff]
          %v5226 = vld [vmem:[%s482 + $0x17f8] sm:$0xff]
          %v5227 = vld [vmem:[%s482 + $0x1800] sm:$0xff]
          %v5228 = vld [vmem:[%s482 + $0x1808] sm:$0xff]
          %v5229 = vld [vmem:[%s482 + $0x1810] sm:$0xff]
          %v5230 = vld [vmem:[%s482 + $0x1818] sm:$0xff]
          %v5231 = vld [vmem:[%s482 + $0x1820] sm:$0xff]
          %v5232 = vld [vmem:[%s482 + $0x1828] sm:$0xff]
          %v5233 = vld [vmem:[%s482 + $0x1830] sm:$0xff]
          %v5234 = vld [vmem:[%s482 + $0x1838] sm:$0xff]
          %v5235 = vld [vmem:[%s482 + $0x1840] sm:$0xff]
          %v5236 = vld [vmem:[%s482 + $0x1848] sm:$0xff]
          %v5237 = vld [vmem:[%s482 + $0x1850] sm:$0xff]
          %v5238 = vld [vmem:[%s482 + $0x1858] sm:$0xff]
          %v5239 = vld [vmem:[%s482 + $0x1860] sm:$0xff]
          %v5240 = vld [vmem:[%s482 + $0x1868] sm:$0xff]
          %v5241 = vld [vmem:[%s482 + $0x1870] sm:$0xff]
          %v5242 = vld [vmem:[%s482 + $0x1878] sm:$0xff]
          %v5243 = vld [vmem:[%s482 + $0x1880] sm:$0xff]
          %v5244 = vld [vmem:[%s482 + $0x1888] sm:$0xff]
          %v5245 = vld [vmem:[%s482 + $0x1890] sm:$0xff]
          %v5246 = vld [vmem:[%s482 + $0x1898] sm:$0xff]
          %v5247 = vld [vmem:[%s482 + $0x18a0] sm:$0xff]
          %v5248 = vld [vmem:[%s482 + $0x18a8] sm:$0xff]
          %v5249 = vld [vmem:[%s482 + $0x18b0] sm:$0xff]
          %v5250 = vld [vmem:[%s482 + $0x18b8] sm:$0xff]
          %v5251 = vld [vmem:[%s482 + $0x18c0] sm:$0xff]
          %v5252 = vld [vmem:[%s482 + $0x18c8] sm:$0xff]
          %v5253 = vld [vmem:[%s482 + $0x18d0] sm:$0xff]
          %v5254 = vld [vmem:[%s482 + $0x18d8] sm:$0xff]
          %v5255 = vld [vmem:[%s482 + $0x18e0] sm:$0xff]
          %v5256 = vld [vmem:[%s482 + $0x18e8] sm:$0xff]
          %v5257 = vld [vmem:[%s482 + $0x18f0] sm:$0xff]
          %v5258 = vld [vmem:[%s482 + $0x18f8] sm:$0xff]
          %v5259 = vld [vmem:[%s482 + $0x1900] sm:$0xff]
          %v5260 = vld [vmem:[%s482 + $0x1908] sm:$0xff]
          %v5261 = vld [vmem:[%s482 + $0x1910] sm:$0xff]
          %v5262 = vld [vmem:[%s482 + $0x1918] sm:$0xff]
          %v5263 = vld [vmem:[%s482 + $0x1920] sm:$0xff]
          %v5264 = vld [vmem:[%s482 + $0x1928] sm:$0xff]
          %v5265 = vld [vmem:[%s482 + $0x1930] sm:$0xff]
          %v5266 = vld [vmem:[%s482 + $0x1938] sm:$0xff]
          %v5267 = vld [vmem:[%s482 + $0x1940] sm:$0xff]
          %v5268 = vld [vmem:[%s482 + $0x1948] sm:$0xff]
          %v5269 = vld [vmem:[%s482 + $0x1950] sm:$0xff]
          %v5270 = vld [vmem:[%s482 + $0x1958] sm:$0xff]
          %v5271 = vld [vmem:[%s482 + $0x1960] sm:$0xff]
          %v5272 = vld [vmem:[%s482 + $0x1968] sm:$0xff]
          %v5273 = vld [vmem:[%s482 + $0x1970] sm:$0xff]
          %v5274 = vld [vmem:[%s482 + $0x1978] sm:$0xff]
          %v5275 = vld [vmem:[%s482 + $0x1980] sm:$0xff]
          %v5276 = vld [vmem:[%s482 + $0x1988] sm:$0xff]
          %v5277 = vld [vmem:[%s482 + $0x1990] sm:$0xff]
          %v5278 = vld [vmem:[%s482 + $0x1998] sm:$0xff]
          %v5279 = vld [vmem:[%s482 + $0x19a0] sm:$0xff]
          %v5280 = vld [vmem:[%s482 + $0x19a8] sm:$0xff]
          %v5281 = vld [vmem:[%s482 + $0x19b0] sm:$0xff]
          %v5282 = vld [vmem:[%s482 + $0x19b8] sm:$0xff]
          %v5283 = vld [vmem:[%s482 + $0x19c0] sm:$0xff]
          %v5284 = vld [vmem:[%s482 + $0x19c8] sm:$0xff]
          %v5285 = vld [vmem:[%s482 + $0x19d0] sm:$0xff]
          %v5286 = vld [vmem:[%s482 + $0x19d8] sm:$0xff]
          %v5287 = vld [vmem:[%s482 + $0x19e0] sm:$0xff]
          %v5288 = vld [vmem:[%s482 + $0x19e8] sm:$0xff]
          %v5289 = vld [vmem:[%s482 + $0x19f0] sm:$0xff]
          %v5290 = vld [vmem:[%s482 + $0x19f8] sm:$0xff]
          %v5291 = vld [vmem:[%s482 + $0x1a00] sm:$0xff]
          %v5292 = vld [vmem:[%s482 + $0x1a08] sm:$0xff]
          %v5293 = vld [vmem:[%s482 + $0x1a10] sm:$0xff]
          %v5294 = vld [vmem:[%s482 + $0x1a18] sm:$0xff]
          %v5295 = vld [vmem:[%s482 + $0x1a20] sm:$0xff]
          %v5296 = vld [vmem:[%s482 + $0x1a28] sm:$0xff]
          %v5297 = vld [vmem:[%s482 + $0x1a30] sm:$0xff]
          %v5298 = vld [vmem:[%s482 + $0x1a38] sm:$0xff]
          %v5299 = vld [vmem:[%s482 + $0x1a40] sm:$0xff]
          %v5300 = vld [vmem:[%s482 + $0x1a48] sm:$0xff]
          %v5301 = vld [vmem:[%s482 + $0x1a50] sm:$0xff]
          %v5302 = vld [vmem:[%s482 + $0x1a58] sm:$0xff]
          %v5303 = vld [vmem:[%s482 + $0x1a60] sm:$0xff]
          %v5304 = vld [vmem:[%s482 + $0x1a68] sm:$0xff]
          %v5305 = vld [vmem:[%s482 + $0x1a70] sm:$0xff]
          %v5306 = vld [vmem:[%s482 + $0x1a78] sm:$0xff]
          %v5307 = vld [vmem:[%s482 + $0x1a80] sm:$0xff]
          %v5308 = vld [vmem:[%s482 + $0x1a88] sm:$0xff]
          %v5309 = vld [vmem:[%s482 + $0x1a90] sm:$0xff]
          %v5310 = vld [vmem:[%s482 + $0x1a98] sm:$0xff]
          %v5311 = vld [vmem:[%s482 + $0x1aa0] sm:$0xff]
          %v5312 = vld [vmem:[%s482 + $0x1aa8] sm:$0xff]
          %v5313 = vld [vmem:[%s482 + $0x1ab0] sm:$0xff]
          %v5314 = vld [vmem:[%s482 + $0x1ab8] sm:$0xff]
          %v5315 = vld [vmem:[%s482 + $0x1ac0] sm:$0xff]
          %v5316 = vld [vmem:[%s482 + $0x1ac8] sm:$0xff]
          %v5317 = vld [vmem:[%s482 + $0x1ad0] sm:$0xff]
          %v5318 = vld [vmem:[%s482 + $0x1ad8] sm:$0xff]
          %v5319 = vld [vmem:[%s482 + $0x1ae0] sm:$0xff]
          %v5320 = vld [vmem:[%s482 + $0x1ae8] sm:$0xff]
          %v5321 = vld [vmem:[%s482 + $0x1af0] sm:$0xff]
          %v5322 = vld [vmem:[%s482 + $0x1af8] sm:$0xff]
          %v5323 = vld [vmem:[%s482 + $0x1b00] sm:$0xff]
          %v5324 = vld [vmem:[%s482 + $0x1b08] sm:$0xff]
          %v5325 = vld [vmem:[%s482 + $0x1b10] sm:$0xff]
          %v5326 = vld [vmem:[%s482 + $0x1b18] sm:$0xff]
          %v5327 = vld [vmem:[%s482 + $0x1b20] sm:$0xff]
          %v5328 = vld [vmem:[%s482 + $0x1b28] sm:$0xff]
          %v5329 = vld [vmem:[%s482 + $0x1b30] sm:$0xff]
          %v5330 = vld [vmem:[%s482 + $0x1b38] sm:$0xff]
          %v5331 = vld [vmem:[%s482 + $0x1b40] sm:$0xff]
          %v5332 = vld [vmem:[%s482 + $0x1b48] sm:$0xff]
          %v5333 = vld [vmem:[%s482 + $0x1b50] sm:$0xff]
          %v5334 = vld [vmem:[%s482 + $0x1b58] sm:$0xff]
          %v5335 = vld [vmem:[%s482 + $0x1b60] sm:$0xff]
          %v5336 = vld [vmem:[%s482 + $0x1b68] sm:$0xff]
          %v5337 = vld [vmem:[%s482 + $0x1b70] sm:$0xff]
          %v5338 = vld [vmem:[%s482 + $0x1b78] sm:$0xff]
          %v5339 = vld [vmem:[%s482 + $0x1b80] sm:$0xff]
          %v5340 = vld [vmem:[%s482 + $0x1b88] sm:$0xff]
          %v5341 = vld [vmem:[%s482 + $0x1b90] sm:$0xff]
          %v5342 = vld [vmem:[%s482 + $0x1b98] sm:$0xff]
          %v5343 = vld [vmem:[%s482 + $0x1ba0] sm:$0xff]
          %v5344 = vld [vmem:[%s482 + $0x1ba8] sm:$0xff]
          %v5345 = vld [vmem:[%s482 + $0x1bb0] sm:$0xff]
          %v5346 = vld [vmem:[%s482 + $0x1bb8] sm:$0xff]
          %v5347 = vld [vmem:[%s482 + $0x1bc0] sm:$0xff]
          %v5348 = vld [vmem:[%s482 + $0x1bc8] sm:$0xff]
          %v5349 = vld [vmem:[%s482 + $0x1bd0] sm:$0xff]
          %v5350 = vld [vmem:[%s482 + $0x1bd8] sm:$0xff]
          %v5351 = vld [vmem:[%s482 + $0x1be0] sm:$0xff]
          %v5352 = vld [vmem:[%s482 + $0x1be8] sm:$0xff]
          %v5353 = vld [vmem:[%s482 + $0x1bf0] sm:$0xff]
          %v5354 = vld [vmem:[%s482 + $0x1bf8] sm:$0xff]
          %v5355 = vld [vmem:[%s482 + $0x1c00] sm:$0xff]
          %v5356 = vld [vmem:[%s482 + $0x1c08] sm:$0xff]
          %v5357 = vld [vmem:[%s482 + $0x1c10] sm:$0xff]
          %v5358 = vld [vmem:[%s482 + $0x1c18] sm:$0xff]
          %v5359 = vld [vmem:[%s482 + $0x1c20] sm:$0xff]
          %v5360 = vld [vmem:[%s482 + $0x1c28] sm:$0xff]
          %v5361 = vld [vmem:[%s482 + $0x1c30] sm:$0xff]
          %v5362 = vld [vmem:[%s482 + $0x1c38] sm:$0xff]
          %v5363 = vld [vmem:[%s482 + $0x1c40] sm:$0xff]
          %v5364 = vld [vmem:[%s482 + $0x1c48] sm:$0xff]
          %v5365 = vld [vmem:[%s482 + $0x1c50] sm:$0xff]
          %v5366 = vld [vmem:[%s482 + $0x1c58] sm:$0xff]
          %v5367 = vld [vmem:[%s482 + $0x1c60] sm:$0xff]
          %v5368 = vld [vmem:[%s482 + $0x1c68] sm:$0xff]
          %v5369 = vld [vmem:[%s482 + $0x1c70] sm:$0xff]
          %v5370 = vld [vmem:[%s482 + $0x1c78] sm:$0xff]
          %v5371 = vld [vmem:[%s482 + $0x1c80] sm:$0xff]
          %v5372 = vld [vmem:[%s482 + $0x1c88] sm:$0xff]
          %v5373 = vld [vmem:[%s482 + $0x1c90] sm:$0xff]
          %v5374 = vld [vmem:[%s482 + $0x1c98] sm:$0xff]
          %v5375 = vld [vmem:[%s482 + $0x1ca0] sm:$0xff]
          %v5376 = vld [vmem:[%s482 + $0x1ca8] sm:$0xff]
          %v5377 = vld [vmem:[%s482 + $0x1cb0] sm:$0xff]
          %v5378 = vld [vmem:[%s482 + $0x1cb8] sm:$0xff]
          %v5379 = vld [vmem:[%s482 + $0x1cc0] sm:$0xff]
          %v5380 = vld [vmem:[%s482 + $0x1cc8] sm:$0xff]
          %v5381 = vld [vmem:[%s482 + $0x1cd0] sm:$0xff]
          %v5382 = vld [vmem:[%s482 + $0x1cd8] sm:$0xff]
          %v5383 = vld [vmem:[%s482 + $0x1ce0] sm:$0xff]
          %v5384 = vld [vmem:[%s482 + $0x1ce8] sm:$0xff]
          %v5385 = vld [vmem:[%s482 + $0x1cf0] sm:$0xff]
          %v5386 = vld [vmem:[%s482 + $0x1cf8] sm:$0xff]
          %v5387 = vld [vmem:[%s482 + $0x1d00] sm:$0xff]
          %v5388 = vld [vmem:[%s482 + $0x1d08] sm:$0xff]
          %v5389 = vld [vmem:[%s482 + $0x1d10] sm:$0xff]
          %v5390 = vld [vmem:[%s482 + $0x1d18] sm:$0xff]
          %v5391 = vld [vmem:[%s482 + $0x1d20] sm:$0xff]
          %v5392 = vld [vmem:[%s482 + $0x1d28] sm:$0xff]
          %v5393 = vld [vmem:[%s482 + $0x1d30] sm:$0xff]
          %v5394 = vld [vmem:[%s482 + $0x1d38] sm:$0xff]
          %v5395 = vld [vmem:[%s482 + $0x1d40] sm:$0xff]
          %v5396 = vld [vmem:[%s482 + $0x1d48] sm:$0xff]
          %v5397 = vld [vmem:[%s482 + $0x1d50] sm:$0xff]
          %v5398 = vld [vmem:[%s482 + $0x1d58] sm:$0xff]
          %v5399 = vld [vmem:[%s482 + $0x1d60] sm:$0xff]
          %v5400 = vld [vmem:[%s482 + $0x1d68] sm:$0xff]
          %v5401 = vld [vmem:[%s482 + $0x1d70] sm:$0xff]
          %v5402 = vld [vmem:[%s482 + $0x1d78] sm:$0xff]
          %v5403 = vld [vmem:[%s482 + $0x1d80] sm:$0xff]
          %v5404 = vld [vmem:[%s482 + $0x1d88] sm:$0xff]
          %v5405 = vld [vmem:[%s482 + $0x1d90] sm:$0xff]
          %v5406 = vld [vmem:[%s482 + $0x1d98] sm:$0xff]
          %v5407 = vld [vmem:[%s482 + $0x1da0] sm:$0xff]
          %v5408 = vld [vmem:[%s482 + $0x1da8] sm:$0xff]
          %v5409 = vld [vmem:[%s482 + $0x1db0] sm:$0xff]
          %v5410 = vld [vmem:[%s482 + $0x1db8] sm:$0xff]
          %v5411 = vld [vmem:[%s482 + $0x1dc0] sm:$0xff]
          %v5412 = vld [vmem:[%s482 + $0x1dc8] sm:$0xff]
          %v5413 = vld [vmem:[%s482 + $0x1dd0] sm:$0xff]
          %v5414 = vld [vmem:[%s482 + $0x1dd8] sm:$0xff]
          %v5415 = vld [vmem:[%s482 + $0x1de0] sm:$0xff]
          %v5416 = vld [vmem:[%s482 + $0x1de8] sm:$0xff]
          %v5417 = vld [vmem:[%s482 + $0x1df0] sm:$0xff]
          %v5418 = vld [vmem:[%s482 + $0x1df8] sm:$0xff]
          %v5419 = vld [vmem:[%s482 + $0x1e00] sm:$0xff]
          %v5420 = vld [vmem:[%s482 + $0x1e08] sm:$0xff]
          %v5421 = vld [vmem:[%s482 + $0x1e10] sm:$0xff]
          %v5422 = vld [vmem:[%s482 + $0x1e18] sm:$0xff]
          %v5423 = vld [vmem:[%s482 + $0x1e20] sm:$0xff]
          %v5424 = vld [vmem:[%s482 + $0x1e28] sm:$0xff]
          %v5425 = vld [vmem:[%s482 + $0x1e30] sm:$0xff]
          %v5426 = vld [vmem:[%s482 + $0x1e38] sm:$0xff]
          %v5427 = vld [vmem:[%s482 + $0x1e40] sm:$0xff]
          %v5428 = vld [vmem:[%s482 + $0x1e48] sm:$0xff]
          %v5429 = vld [vmem:[%s482 + $0x1e50] sm:$0xff]
          %v5430 = vld [vmem:[%s482 + $0x1e58] sm:$0xff]
          %v5431 = vld [vmem:[%s482 + $0x1e60] sm:$0xff]
          %v5432 = vld [vmem:[%s482 + $0x1e68] sm:$0xff]
          %v5433 = vld [vmem:[%s482 + $0x1e70] sm:$0xff]
          %v5434 = vld [vmem:[%s482 + $0x1e78] sm:$0xff]
          %v5435 = vld [vmem:[%s482 + $0x1e80] sm:$0xff]
          %v5436 = vld [vmem:[%s482 + $0x1e88] sm:$0xff]
          %v5437 = vld [vmem:[%s482 + $0x1e90] sm:$0xff]
          %v5438 = vld [vmem:[%s482 + $0x1e98] sm:$0xff]
          %v5439 = vld [vmem:[%s482 + $0x1ea0] sm:$0xff]
          %v5440 = vld [vmem:[%s482 + $0x1ea8] sm:$0xff]
          %v5441 = vld [vmem:[%s482 + $0x1eb0] sm:$0xff]
          %v5442 = vld [vmem:[%s482 + $0x1eb8] sm:$0xff]
          %v5443 = vld [vmem:[%s482 + $0x1ec0] sm:$0xff]
          %v5444 = vld [vmem:[%s482 + $0x1ec8] sm:$0xff]
          %v5445 = vld [vmem:[%s482 + $0x1ed0] sm:$0xff]
          %v5446 = vld [vmem:[%s482 + $0x1ed8] sm:$0xff]
          %v5447 = vld [vmem:[%s482 + $0x1ee0] sm:$0xff]
          %v5448 = vld [vmem:[%s482 + $0x1ee8] sm:$0xff]
          %v5449 = vld [vmem:[%s482 + $0x1ef0] sm:$0xff]
          %v5450 = vld [vmem:[%s482 + $0x1ef8] sm:$0xff]
          %v5451 = vld [vmem:[%s482 + $0x1f00] sm:$0xff]
          %v5452 = vld [vmem:[%s482 + $0x1f08] sm:$0xff]
          %v5453 = vld [vmem:[%s482 + $0x1f10] sm:$0xff]
          %v5454 = vld [vmem:[%s482 + $0x1f18] sm:$0xff]
          %v5455 = vld [vmem:[%s482 + $0x1f20] sm:$0xff]
          %v5456 = vld [vmem:[%s482 + $0x1f28] sm:$0xff]
          %v5457 = vld [vmem:[%s482 + $0x1f30] sm:$0xff]
          %v5458 = vld [vmem:[%s482 + $0x1f38] sm:$0xff]
          %v5459 = vld [vmem:[%s482 + $0x1f40] sm:$0xff]
          %v5460 = vld [vmem:[%s482 + $0x1f48] sm:$0xff]
          %v5461 = vld [vmem:[%s482 + $0x1f50] sm:$0xff]
          %v5462 = vld [vmem:[%s482 + $0x1f58] sm:$0xff]
          %v5463 = vld [vmem:[%s482 + $0x1f60] sm:$0xff]
          %v5464 = vld [vmem:[%s482 + $0x1f68] sm:$0xff]
          %v5465 = vld [vmem:[%s482 + $0x1f70] sm:$0xff]
          %v5466 = vld [vmem:[%s482 + $0x1f78] sm:$0xff]
          %v5467 = vld [vmem:[%s482 + $0x1f80] sm:$0xff]
          %v5468 = vld [vmem:[%s482 + $0x1f88] sm:$0xff]
          %v5469 = vld [vmem:[%s482 + $0x1f90] sm:$0xff]
          %v5470 = vld [vmem:[%s482 + $0x1f98] sm:$0xff]
          %v5471 = vld [vmem:[%s482 + $0x1fa0] sm:$0xff]
          %v5472 = vld [vmem:[%s482 + $0x1fa8] sm:$0xff]
          %v5473 = vld [vmem:[%s482 + $0x1fb0] sm:$0xff]
          %v5474 = vld [vmem:[%s482 + $0x1fb8] sm:$0xff]
          %v5475 = vld [vmem:[%s482 + $0x1fc0] sm:$0xff]
          %v5476 = vld [vmem:[%s482 + $0x1fc8] sm:$0xff]
          %v5477 = vld [vmem:[%s482 + $0x1fd0] sm:$0xff]
          %v5478 = vld [vmem:[%s482 + $0x1fd8] sm:$0xff]
          %v5479 = vld [vmem:[%s482 + $0x1fe0] sm:$0xff]
          %v5480 = vld [vmem:[%s482 + $0x1fe8] sm:$0xff]
          %v5481 = vld [vmem:[%s482 + $0x1ff0] sm:$0xff]
          %v5482 = vld [vmem:[%s482 + $0x1ff8] sm:$0xff]
          %v5483 = vld [vmem:[%s482 + $0x2000] sm:$0xff]
          %v5484 = vld [vmem:[%s482 + $0x2008] sm:$0xff]
          %v5485 = vld [vmem:[%s482 + $0x2010] sm:$0xff]
          %v5486 = vld [vmem:[%s482 + $0x2018] sm:$0xff]
          %v5487 = vld [vmem:[%s482 + $0x2020] sm:$0xff]
          %v5488 = vld [vmem:[%s482 + $0x2028] sm:$0xff]
          %v5489 = vld [vmem:[%s482 + $0x2030] sm:$0xff]
          %v5490 = vld [vmem:[%s482 + $0x2038] sm:$0xff]
          %v5491 = vld [vmem:[%s482 + $0x2040] sm:$0xff]
          %v5492 = vld [vmem:[%s482 + $0x2048] sm:$0xff]
          %v5493 = vld [vmem:[%s482 + $0x2050] sm:$0xff]
          %v5494 = vld [vmem:[%s482 + $0x2058] sm:$0xff]
          %v5495 = vld [vmem:[%s482 + $0x2060] sm:$0xff]
          %v5496 = vld [vmem:[%s482 + $0x2068] sm:$0xff]
          %v5497 = vld [vmem:[%s482 + $0x2070] sm:$0xff]
          %v5498 = vld [vmem:[%s482 + $0x2078] sm:$0xff]
          %v5499 = vld [vmem:[%s482 + $0x2080] sm:$0xff]
          %v5500 = vld [vmem:[%s482 + $0x2088] sm:$0xff]
          %v5501 = vld [vmem:[%s482 + $0x2090] sm:$0xff]
          %v5502 = vld [vmem:[%s482 + $0x2098] sm:$0xff]
          %v5503 = vld [vmem:[%s482 + $0x20a0] sm:$0xff]
          %v5504 = vld [vmem:[%s482 + $0x20a8] sm:$0xff]
          %v5505 = vld [vmem:[%s482 + $0x20b0] sm:$0xff]
          %v5506 = vld [vmem:[%s482 + $0x20b8] sm:$0xff]
          %v5507 = vld [vmem:[%s482 + $0x20c0] sm:$0xff]
          %v5508 = vld [vmem:[%s482 + $0x20c8] sm:$0xff]
          %v5509 = vld [vmem:[%s482 + $0x20d0] sm:$0xff]
          %v5510 = vld [vmem:[%s482 + $0x20d8] sm:$0xff]
          %v5511 = vld [vmem:[%s482 + $0x20e0] sm:$0xff]
          %v5512 = vld [vmem:[%s482 + $0x20e8] sm:$0xff]
          %v5513 = vld [vmem:[%s482 + $0x20f0] sm:$0xff]
          %v5514 = vld [vmem:[%s482 + $0x20f8] sm:$0xff]
          %v5515 = vld [vmem:[%s482 + $0x2100] sm:$0xff]
          %v5516 = vld [vmem:[%s482 + $0x2108] sm:$0xff]
          %v5517 = vld [vmem:[%s482 + $0x2110] sm:$0xff]
          %v5518 = vld [vmem:[%s482 + $0x2118] sm:$0xff]
          %v5519 = vld [vmem:[%s482 + $0x2120] sm:$0xff]
          %v5520 = vld [vmem:[%s482 + $0x2128] sm:$0xff]
          %v5521 = vld [vmem:[%s482 + $0x2130] sm:$0xff]
          %v5522 = vld [vmem:[%s482 + $0x2138] sm:$0xff]
          %v5523 = vld [vmem:[%s482 + $0x2140] sm:$0xff]
          %v5524 = vld [vmem:[%s482 + $0x2148] sm:$0xff]
          %v5525 = vld [vmem:[%s482 + $0x2150] sm:$0xff]
          %v5526 = vld [vmem:[%s482 + $0x2158] sm:$0xff]
          %v5527 = vld [vmem:[%s482 + $0x2160] sm:$0xff]
          %v5528 = vld [vmem:[%s482 + $0x2168] sm:$0xff]
          %v5529 = vld [vmem:[%s482 + $0x2170] sm:$0xff]
          %v5530 = vld [vmem:[%s482 + $0x2178] sm:$0xff]
          %v5531 = vld [vmem:[%s482 + $0x2180] sm:$0xff]
          %v5532 = vld [vmem:[%s482 + $0x2188] sm:$0xff]
          %v5533 = vld [vmem:[%s482 + $0x2190] sm:$0xff]
          %v5534 = vld [vmem:[%s482 + $0x2198] sm:$0xff]
          %v5535 = vld [vmem:[%s482 + $0x21a0] sm:$0xff]
          %v5536 = vld [vmem:[%s482 + $0x21a8] sm:$0xff]
          %v5537 = vld [vmem:[%s482 + $0x21b0] sm:$0xff]
          %v5538 = vld [vmem:[%s482 + $0x21b8] sm:$0xff]
          %v5539 = vld [vmem:[%s482 + $0x21c0] sm:$0xff]
          %v5540 = vld [vmem:[%s482 + $0x21c8] sm:$0xff]
          %v5541 = vld [vmem:[%s482 + $0x21d0] sm:$0xff]
          %v5542 = vld [vmem:[%s482 + $0x21d8] sm:$0xff]
          %v5543 = vld [vmem:[%s482 + $0x21e0] sm:$0xff]
          %v5544 = vld [vmem:[%s482 + $0x21e8] sm:$0xff]
          %v5545 = vld [vmem:[%s482 + $0x21f0] sm:$0xff]
          %v5546 = vld [vmem:[%s482 + $0x21f8] sm:$0xff]
          %v5547 = vld [vmem:[%s482 + $0x2200] sm:$0xff]
          %v5548 = vld [vmem:[%s482 + $0x2208] sm:$0xff]
          %v5549 = vld [vmem:[%s482 + $0x2210] sm:$0xff]
          %v5550 = vld [vmem:[%s482 + $0x2218] sm:$0xff]
          %v5551 = vld [vmem:[%s482 + $0x2220] sm:$0xff]
          %v5552 = vld [vmem:[%s482 + $0x2228] sm:$0xff]
          %v5553 = vld [vmem:[%s482 + $0x2230] sm:$0xff]
          %v5554 = vld [vmem:[%s482 + $0x2238] sm:$0xff]
          %v5555 = vld [vmem:[%s482 + $0x2240] sm:$0xff]
          %v5556 = vld [vmem:[%s482 + $0x2248] sm:$0xff]
          %v5557 = vld [vmem:[%s482 + $0x2250] sm:$0xff]
          %v5558 = vld [vmem:[%s482 + $0x2258] sm:$0xff]
          %v5559 = vld [vmem:[%s482 + $0x2260] sm:$0xff]
          %v5560 = vld [vmem:[%s482 + $0x2268] sm:$0xff]
          %v5561 = vld [vmem:[%s482 + $0x2270] sm:$0xff]
          %v5562 = vld [vmem:[%s482 + $0x2278] sm:$0xff]
          %v5563 = vld [vmem:[%s482 + $0x2280] sm:$0xff]
          %v5564 = vld [vmem:[%s482 + $0x2288] sm:$0xff]
          %v5565 = vld [vmem:[%s482 + $0x2290] sm:$0xff]
          %v5566 = vld [vmem:[%s482 + $0x2298] sm:$0xff]
          %v5567 = vld [vmem:[%s482 + $0x22a0] sm:$0xff]
          %v5568 = vld [vmem:[%s482 + $0x22a8] sm:$0xff]
          %v5569 = vld [vmem:[%s482 + $0x22b0] sm:$0xff]
          %v5570 = vld [vmem:[%s482 + $0x22b8] sm:$0xff]
          %v5571 = vld [vmem:[%s482 + $0x22c0] sm:$0xff]
          %v5572 = vld [vmem:[%s482 + $0x22c8] sm:$0xff]
          %v5573 = vld [vmem:[%s482 + $0x22d0] sm:$0xff]
          %v5574 = vld [vmem:[%s482 + $0x22d8] sm:$0xff]
          %v5575 = vld [vmem:[%s482 + $0x22e0] sm:$0xff]
          %v5576 = vld [vmem:[%s482 + $0x22e8] sm:$0xff]
          %v5577 = vld [vmem:[%s482 + $0x22f0] sm:$0xff]
          %v5578 = vld [vmem:[%s482 + $0x22f8] sm:$0xff]
          %v5579 = vld [vmem:[%s482 + $0x2300] sm:$0xff]
          %v5580 = vld [vmem:[%s482 + $0x2308] sm:$0xff]
          %v5581 = vld [vmem:[%s482 + $0x2310] sm:$0xff]
          %v5582 = vld [vmem:[%s482 + $0x2318] sm:$0xff]
          %v5583 = vld [vmem:[%s482 + $0x2320] sm:$0xff]
          %v5584 = vld [vmem:[%s482 + $0x2328] sm:$0xff]
          %v5585 = vld [vmem:[%s482 + $0x2330] sm:$0xff]
          %v5586 = vld [vmem:[%s482 + $0x2338] sm:$0xff]
          %v5587 = vld [vmem:[%s482 + $0x2340] sm:$0xff]
          %v5588 = vld [vmem:[%s482 + $0x2348] sm:$0xff]
          %v5589 = vld [vmem:[%s482 + $0x2350] sm:$0xff]
          %v5590 = vld [vmem:[%s482 + $0x2358] sm:$0xff]
          %v5591 = vld [vmem:[%s482 + $0x2360] sm:$0xff]
          %v5592 = vld [vmem:[%s482 + $0x2368] sm:$0xff]
          %v5593 = vld [vmem:[%s482 + $0x2370] sm:$0xff]
          %v5594 = vld [vmem:[%s482 + $0x2378] sm:$0xff]
          %v5595 = vld [vmem:[%s482 + $0x2380] sm:$0xff]
          %v5596 = vld [vmem:[%s482 + $0x2388] sm:$0xff]
          %v5597 = vld [vmem:[%s482 + $0x2390] sm:$0xff]
          %v5598 = vld [vmem:[%s482 + $0x2398] sm:$0xff]
          %v5599 = vld [vmem:[%s482 + $0x23a0] sm:$0xff]
          %v5600 = vld [vmem:[%s482 + $0x23a8] sm:$0xff]
          %v5601 = vld [vmem:[%s482 + $0x23b0] sm:$0xff]
          %v5602 = vld [vmem:[%s482 + $0x23b8] sm:$0xff]
          %v5603 = vld [vmem:[%s482 + $0x23c0] sm:$0xff]
          %v5604 = vld [vmem:[%s482 + $0x23c8] sm:$0xff]
          %v5605 = vld [vmem:[%s482 + $0x23d0] sm:$0xff]
          %v5606 = vld [vmem:[%s482 + $0x23d8] sm:$0xff]
          %v5607 = vld [vmem:[%s482 + $0x23e0] sm:$0xff]
          %v5608 = vld [vmem:[%s482 + $0x23e8] sm:$0xff]
          %v5609 = vld [vmem:[%s482 + $0x23f0] sm:$0xff]
          %v5610 = vld [vmem:[%s482 + $0x23f8] sm:$0xff]
          %v5611 = vld [vmem:[%s482 + $0x2400] sm:$0xff]
          %v5612 = vld [vmem:[%s482 + $0x2408] sm:$0xff]
          %v5613 = vld [vmem:[%s482 + $0x2410] sm:$0xff]
          %v5614 = vld [vmem:[%s482 + $0x2418] sm:$0xff]
          %v5615 = vld [vmem:[%s482 + $0x2420] sm:$0xff]
          %v5616 = vld [vmem:[%s482 + $0x2428] sm:$0xff]
          %v5617 = vld [vmem:[%s482 + $0x2430] sm:$0xff]
          %v5618 = vld [vmem:[%s482 + $0x2438] sm:$0xff]
          %v5619 = vld [vmem:[%s482 + $0x2440] sm:$0xff]
          %v5620 = vld [vmem:[%s482 + $0x2448] sm:$0xff]
          %v5621 = vld [vmem:[%s482 + $0x2450] sm:$0xff]
          %v5622 = vld [vmem:[%s482 + $0x2458] sm:$0xff]
          %v5623 = vld [vmem:[%s482 + $0x2460] sm:$0xff]
          %v5624 = vld [vmem:[%s482 + $0x2468] sm:$0xff]
          %v5625 = vld [vmem:[%s482 + $0x2470] sm:$0xff]
          %v5626 = vld [vmem:[%s482 + $0x2478] sm:$0xff]
          %v5627 = vld [vmem:[%s482 + $0x2480] sm:$0xff]
          %v5628 = vld [vmem:[%s482 + $0x2488] sm:$0xff]
          %v5629 = vld [vmem:[%s482 + $0x2490] sm:$0xff]
          %v5630 = vld [vmem:[%s482 + $0x2498] sm:$0xff]
          %v5631 = vld [vmem:[%s482 + $0x24a0] sm:$0xff]
          %v5632 = vld [vmem:[%s482 + $0x24a8] sm:$0xff]
          %v5633 = vld [vmem:[%s482 + $0x24b0] sm:$0xff]
          %v5634 = vld [vmem:[%s482 + $0x24b8] sm:$0xff]
          %v5635 = vld [vmem:[%s482 + $0x24c0] sm:$0xff]
          %v5636 = vld [vmem:[%s482 + $0x24c8] sm:$0xff]
          %v5637 = vld [vmem:[%s482 + $0x24d0] sm:$0xff]
          %v5638 = vld [vmem:[%s482 + $0x24d8] sm:$0xff]
          %v5639 = vld [vmem:[%s482 + $0x24e0] sm:$0xff]
          %v5640 = vld [vmem:[%s482 + $0x24e8] sm:$0xff]
          %v5641 = vld [vmem:[%s482 + $0x24f0] sm:$0xff]
          %v5642 = vld [vmem:[%s482 + $0x24f8] sm:$0xff]
          %v5643 = vld [vmem:[%s482 + $0x2500] sm:$0xff]
          %v5644 = vld [vmem:[%s482 + $0x2508] sm:$0xff]
          %v5645 = vld [vmem:[%s482 + $0x2510] sm:$0xff]
          %v5646 = vld [vmem:[%s482 + $0x2518] sm:$0xff]
          %v5647 = vld [vmem:[%s482 + $0x2520] sm:$0xff]
          %v5648 = vld [vmem:[%s482 + $0x2528] sm:$0xff]
          %v5649 = vld [vmem:[%s482 + $0x2530] sm:$0xff]
          %v5650 = vld [vmem:[%s482 + $0x2538] sm:$0xff]
          %v5651 = vld [vmem:[%s482 + $0x2540] sm:$0xff]
          %v5652 = vld [vmem:[%s482 + $0x2548] sm:$0xff]
          %v5653 = vld [vmem:[%s482 + $0x2550] sm:$0xff]
          %v5654 = vld [vmem:[%s482 + $0x2558] sm:$0xff]
          %v5655 = vld [vmem:[%s482 + $0x2560] sm:$0xff]
          %v5656 = vld [vmem:[%s482 + $0x2568] sm:$0xff]
          %v5657 = vld [vmem:[%s482 + $0x2570] sm:$0xff]
          %v5658 = vld [vmem:[%s482 + $0x2578] sm:$0xff]
          %v5659 = vld [vmem:[%s482 + $0x2580] sm:$0xff]
          %v5660 = vld [vmem:[%s482 + $0x2588] sm:$0xff]
          %v5661 = vld [vmem:[%s482 + $0x2590] sm:$0xff]
          %v5662 = vld [vmem:[%s482 + $0x2598] sm:$0xff]
          %v5663 = vld [vmem:[%s482 + $0x25a0] sm:$0xff]
          %v5664 = vld [vmem:[%s482 + $0x25a8] sm:$0xff]
          %v5665 = vld [vmem:[%s482 + $0x25b0] sm:$0xff]
          %v5666 = vld [vmem:[%s482 + $0x25b8] sm:$0xff]
          %v5667 = vld [vmem:[%s482 + $0x25c0] sm:$0xff]
          %v5668 = vld [vmem:[%s482 + $0x25c8] sm:$0xff]
          %v5669 = vld [vmem:[%s482 + $0x25d0] sm:$0xff]
          %v5670 = vld [vmem:[%s482 + $0x25d8] sm:$0xff]
          %v5671 = vld [vmem:[%s482 + $0x25e0] sm:$0xff]
          %v5672 = vld [vmem:[%s482 + $0x25e8] sm:$0xff]
          %v5673 = vld [vmem:[%s482 + $0x25f0] sm:$0xff]
          %v5674 = vld [vmem:[%s482 + $0x25f8] sm:$0xff]
          %v5675 = vld [vmem:[%s482 + $0x2600] sm:$0xff]
          %v5676 = vld [vmem:[%s482 + $0x2608] sm:$0xff]
          %v5677 = vld [vmem:[%s482 + $0x2610] sm:$0xff]
          %v5678 = vld [vmem:[%s482 + $0x2618] sm:$0xff]
          %v5679 = vld [vmem:[%s482 + $0x2620] sm:$0xff]
          %v5680 = vld [vmem:[%s482 + $0x2628] sm:$0xff]
          %v5681 = vld [vmem:[%s482 + $0x2630] sm:$0xff]
          %v5682 = vld [vmem:[%s482 + $0x2638] sm:$0xff]
          %v5683 = vld [vmem:[%s482 + $0x2640] sm:$0xff]
          %v5684 = vld [vmem:[%s482 + $0x2648] sm:$0xff]
          %v5685 = vld [vmem:[%s482 + $0x2650] sm:$0xff]
          %v5686 = vld [vmem:[%s482 + $0x2658] sm:$0xff]
          %v5687 = vld [vmem:[%s482 + $0x2660] sm:$0xff]
          %v5688 = vld [vmem:[%s482 + $0x2668] sm:$0xff]
          %v5689 = vld [vmem:[%s482 + $0x2670] sm:$0xff]
          %v5690 = vld [vmem:[%s482 + $0x2678] sm:$0xff]
          %v5691 = vld [vmem:[%s482 + $0x2680] sm:$0xff]
          %v5692 = vld [vmem:[%s482 + $0x2688] sm:$0xff]
          %v5693 = vld [vmem:[%s482 + $0x2690] sm:$0xff]
          %v5694 = vld [vmem:[%s482 + $0x2698] sm:$0xff]
          %v5695 = vld [vmem:[%s482 + $0x26a0] sm:$0xff]
          %v5696 = vld [vmem:[%s482 + $0x26a8] sm:$0xff]
          %v5697 = vld [vmem:[%s482 + $0x26b0] sm:$0xff]
          %v5698 = vld [vmem:[%s482 + $0x26b8] sm:$0xff]
          %v5699 = vld [vmem:[%s482 + $0x26c0] sm:$0xff]
          %v5700 = vld [vmem:[%s482 + $0x26c8] sm:$0xff]
          %v5701 = vld [vmem:[%s482 + $0x26d0] sm:$0xff]
          %v5702 = vld [vmem:[%s482 + $0x26d8] sm:$0xff]
          %v5703 = vld [vmem:[%s482 + $0x26e0] sm:$0xff]
          %v5704 = vld [vmem:[%s482 + $0x26e8] sm:$0xff]
          %v5705 = vld [vmem:[%s482 + $0x26f0] sm:$0xff]
          %v5706 = vld [vmem:[%s482 + $0x26f8] sm:$0xff]
          %v5707 = vld [vmem:[%s482 + $0x2700] sm:$0xff]
          %v5708 = vld [vmem:[%s482 + $0x2708] sm:$0xff]
          %v5709 = vld [vmem:[%s482 + $0x2710] sm:$0xff]
          %v5710 = vld [vmem:[%s482 + $0x2718] sm:$0xff]
          %v5711 = vld [vmem:[%s482 + $0x2720] sm:$0xff]
          %v5712 = vld [vmem:[%s482 + $0x2728] sm:$0xff]
          %v5713 = vld [vmem:[%s482 + $0x2730] sm:$0xff]
          %v5714 = vld [vmem:[%s482 + $0x2738] sm:$0xff]
          %v5715 = vld [vmem:[%s482 + $0x2740] sm:$0xff]
          %v5716 = vld [vmem:[%s482 + $0x2748] sm:$0xff]
          %v5717 = vld [vmem:[%s482 + $0x2750] sm:$0xff]
          %v5718 = vld [vmem:[%s482 + $0x2758] sm:$0xff]
          %v5719 = vld [vmem:[%s482 + $0x2760] sm:$0xff]
          %v5720 = vld [vmem:[%s482 + $0x2768] sm:$0xff]
          %v5721 = vld [vmem:[%s482 + $0x2770] sm:$0xff]
          %v5722 = vld [vmem:[%s482 + $0x2778] sm:$0xff]
          %v5723 = vld [vmem:[%s482 + $0x2780] sm:$0xff]
          %v5724 = vld [vmem:[%s482 + $0x2788] sm:$0xff]
          %v5725 = vld [vmem:[%s482 + $0x2790] sm:$0xff]
          %v5726 = vld [vmem:[%s482 + $0x2798] sm:$0xff]
          %v5727 = vld [vmem:[%s482 + $0x27a0] sm:$0xff]
          %v5728 = vld [vmem:[%s482 + $0x27a8] sm:$0xff]
          %v5729 = vld [vmem:[%s482 + $0x27b0] sm:$0xff]
          %v5730 = vld [vmem:[%s482 + $0x27b8] sm:$0xff]
          %v5731 = vld [vmem:[%s482 + $0x27c0] sm:$0xff]
          %v5732 = vld [vmem:[%s482 + $0x27c8] sm:$0xff]
          %v5733 = vld [vmem:[%s482 + $0x27d0] sm:$0xff]
          %v5734 = vld [vmem:[%s482 + $0x27d8] sm:$0xff]
          %v5735 = vld [vmem:[%s482 + $0x27e0] sm:$0xff]
          %v5736 = vld [vmem:[%s482 + $0x27e8] sm:$0xff]
          %v5737 = vld [vmem:[%s482 + $0x27f0] sm:$0xff]
          %v5738 = vld [vmem:[%s482 + $0x27f8] sm:$0xff]
          %v5739 = vld [vmem:[%s482 + $0x2800] sm:$0xff]
          %v5740 = vld [vmem:[%s482 + $0x2808] sm:$0xff]
          %v5741 = vld [vmem:[%s482 + $0x2810] sm:$0xff]
          %v5742 = vld [vmem:[%s482 + $0x2818] sm:$0xff]
          %v5743 = vld [vmem:[%s482 + $0x2820] sm:$0xff]
          %v5744 = vld [vmem:[%s482 + $0x2828] sm:$0xff]
          %v5745 = vld [vmem:[%s482 + $0x2830] sm:$0xff]
          %v5746 = vld [vmem:[%s482 + $0x2838] sm:$0xff]
          %v5747 = vld [vmem:[%s482 + $0x2840] sm:$0xff]
          %v5748 = vld [vmem:[%s482 + $0x2848] sm:$0xff]
          %v5749 = vld [vmem:[%s482 + $0x2850] sm:$0xff]
          %v5750 = vld [vmem:[%s482 + $0x2858] sm:$0xff]
          %v5751 = vld [vmem:[%s482 + $0x2860] sm:$0xff]
          %v5752 = vld [vmem:[%s482 + $0x2868] sm:$0xff]
          %v5753 = vld [vmem:[%s482 + $0x2870] sm:$0xff]
          %v5754 = vld [vmem:[%s482 + $0x2878] sm:$0xff]
          %v5755 = vld [vmem:[%s482 + $0x2880] sm:$0xff]
          %v5756 = vld [vmem:[%s482 + $0x2888] sm:$0xff]
          %v5757 = vld [vmem:[%s482 + $0x2890] sm:$0xff]
          %v5758 = vld [vmem:[%s482 + $0x2898] sm:$0xff]
          %v5759 = vld [vmem:[%s482 + $0x28a0] sm:$0xff]
          %v5760 = vld [vmem:[%s482 + $0x28a8] sm:$0xff]
          %v5761 = vld [vmem:[%s482 + $0x28b0] sm:$0xff]
          %v5762 = vld [vmem:[%s482 + $0x28b8] sm:$0xff]
          %v5763 = vld [vmem:[%s482 + $0x28c0] sm:$0xff]
          %v5764 = vld [vmem:[%s482 + $0x28c8] sm:$0xff]
          %v5765 = vld [vmem:[%s482 + $0x28d0] sm:$0xff]
          %v5766 = vld [vmem:[%s482 + $0x28d8] sm:$0xff]
          %v5767 = vld [vmem:[%s482 + $0x28e0] sm:$0xff]
          %v5768 = vld [vmem:[%s482 + $0x28e8] sm:$0xff]
          %v5769 = vld [vmem:[%s482 + $0x28f0] sm:$0xff]
          %v5770 = vld [vmem:[%s482 + $0x28f8] sm:$0xff]
          %v5771 = vld [vmem:[%s482 + $0x2900] sm:$0xff]
          %v5772 = vld [vmem:[%s482 + $0x2908] sm:$0xff]
          %v5773 = vld [vmem:[%s482 + $0x2910] sm:$0xff]
          %v5774 = vld [vmem:[%s482 + $0x2918] sm:$0xff]
          %v5775 = vld [vmem:[%s482 + $0x2920] sm:$0xff]
          %v5776 = vld [vmem:[%s482 + $0x2928] sm:$0xff]
          %v5777 = vld [vmem:[%s482 + $0x2930] sm:$0xff]
          %v5778 = vld [vmem:[%s482 + $0x2938] sm:$0xff]
          %v5779 = vld [vmem:[%s482 + $0x2940] sm:$0xff]
          %v5780 = vld [vmem:[%s482 + $0x2948] sm:$0xff]
          %v5781 = vld [vmem:[%s482 + $0x2950] sm:$0xff]
          %v5782 = vld [vmem:[%s482 + $0x2958] sm:$0xff]
          %v5783 = vld [vmem:[%s482 + $0x2960] sm:$0xff]
          %v5784 = vld [vmem:[%s482 + $0x2968] sm:$0xff]
          %v5785 = vld [vmem:[%s482 + $0x2970] sm:$0xff]
          %v5786 = vld [vmem:[%s482 + $0x2978] sm:$0xff]
          %v5787 = vld [vmem:[%s482 + $0x2980] sm:$0xff]
          %v5788 = vld [vmem:[%s482 + $0x2988] sm:$0xff]
          %v5789 = vld [vmem:[%s482 + $0x2990] sm:$0xff]
          %v5790 = vld [vmem:[%s482 + $0x2998] sm:$0xff]
          %v5791 = vld [vmem:[%s482 + $0x29a0] sm:$0xff]
          %v5792 = vld [vmem:[%s482 + $0x29a8] sm:$0xff]
          %v5793 = vld [vmem:[%s482 + $0x29b0] sm:$0xff]
          %v5794 = vld [vmem:[%s482 + $0x29b8] sm:$0xff]
          %v5795 = vld [vmem:[%s482 + $0x29c0] sm:$0xff]
          %v5796 = vld [vmem:[%s482 + $0x29c8] sm:$0xff]
          %v5797 = vld [vmem:[%s482 + $0x29d0] sm:$0xff]
          %v5798 = vld [vmem:[%s482 + $0x29d8] sm:$0xff]
          %v5799 = vld [vmem:[%s482 + $0x29e0] sm:$0xff]
          %v5800 = vld [vmem:[%s482 + $0x29e8] sm:$0xff]
          %v5801 = vld [vmem:[%s482 + $0x29f0] sm:$0xff]
          %v5802 = vld [vmem:[%s482 + $0x29f8] sm:$0xff]
          %v5803 = vld [vmem:[%s482 + $0x2a00] sm:$0xff]
          %v5804 = vld [vmem:[%s482 + $0x2a08] sm:$0xff]
          %v5805 = vld [vmem:[%s482 + $0x2a10] sm:$0xff]
          %v5806 = vld [vmem:[%s482 + $0x2a18] sm:$0xff]
          %v5807 = vld [vmem:[%s482 + $0x2a20] sm:$0xff]
          %v5808 = vld [vmem:[%s482 + $0x2a28] sm:$0xff]
          %v5809 = vld [vmem:[%s482 + $0x2a30] sm:$0xff]
          %v5810 = vld [vmem:[%s482 + $0x2a38] sm:$0xff]
          %v5811 = vld [vmem:[%s482 + $0x2a40] sm:$0xff]
          %v5812 = vld [vmem:[%s482 + $0x2a48] sm:$0xff]
          %v5813 = vld [vmem:[%s482 + $0x2a50] sm:$0xff]
          %v5814 = vld [vmem:[%s482 + $0x2a58] sm:$0xff]
          %v5815 = vld [vmem:[%s482 + $0x2a60] sm:$0xff]
          %v5816 = vld [vmem:[%s482 + $0x2a68] sm:$0xff]
          %v5817 = vld [vmem:[%s482 + $0x2a70] sm:$0xff]
          %v5818 = vld [vmem:[%s482 + $0x2a78] sm:$0xff]
          %v5819 = vld [vmem:[%s482 + $0x2a80] sm:$0xff]
          %v5820 = vld [vmem:[%s482 + $0x2a88] sm:$0xff]
          %v5821 = vld [vmem:[%s482 + $0x2a90] sm:$0xff]
          %v5822 = vld [vmem:[%s482 + $0x2a98] sm:$0xff]
          %v5823 = vld [vmem:[%s482 + $0x2aa0] sm:$0xff]
          %v5824 = vld [vmem:[%s482 + $0x2aa8] sm:$0xff]
          %v5825 = vld [vmem:[%s482 + $0x2ab0] sm:$0xff]
          %v5826 = vld [vmem:[%s482 + $0x2ab8] sm:$0xff]
          %v5827 = vld [vmem:[%s482 + $0x2ac0] sm:$0xff]
          %v5828 = vld [vmem:[%s482 + $0x2ac8] sm:$0xff]
          %v5829 = vld [vmem:[%s482 + $0x2ad0] sm:$0xff]
          %v5830 = vld [vmem:[%s482 + $0x2ad8] sm:$0xff]
          %v5831 = vld [vmem:[%s482 + $0x2ae0] sm:$0xff]
          %v5832 = vld [vmem:[%s482 + $0x2ae8] sm:$0xff]
          %v5833 = vld [vmem:[%s482 + $0x2af0] sm:$0xff]
          %v5834 = vld [vmem:[%s482 + $0x2af8] sm:$0xff]
          %v5835 = vld [vmem:[%s482 + $0x2b00] sm:$0xff]
          %v5836 = vld [vmem:[%s482 + $0x2b08] sm:$0xff]
          %v5837 = vld [vmem:[%s482 + $0x2b10] sm:$0xff]
          %v5838 = vld [vmem:[%s482 + $0x2b18] sm:$0xff]
          %v5839 = vld [vmem:[%s482 + $0x2b20] sm:$0xff]
          %v5840 = vld [vmem:[%s482 + $0x2b28] sm:$0xff]
          %v5841 = vld [vmem:[%s482 + $0x2b30] sm:$0xff]
          %v5842 = vld [vmem:[%s482 + $0x2b38] sm:$0xff]
          %v5843 = vld [vmem:[%s482 + $0x2b40] sm:$0xff]
          %v5844 = vld [vmem:[%s482 + $0x2b48] sm:$0xff]
          %v5845 = vld [vmem:[%s482 + $0x2b50] sm:$0xff]
          %v5846 = vld [vmem:[%s482 + $0x2b58] sm:$0xff]
          %v5847 = vld [vmem:[%s482 + $0x2b60] sm:$0xff]
          %v5848 = vld [vmem:[%s482 + $0x2b68] sm:$0xff]
          %v5849 = vld [vmem:[%s482 + $0x2b70] sm:$0xff]
          %v5850 = vld [vmem:[%s482 + $0x2b78] sm:$0xff]
          %v5851 = vld [vmem:[%s482 + $0x2b80] sm:$0xff]
          %v5852 = vld [vmem:[%s482 + $0x2b88] sm:$0xff]
          %v5853 = vld [vmem:[%s482 + $0x2b90] sm:$0xff]
          %v5854 = vld [vmem:[%s482 + $0x2b98] sm:$0xff]
          %v5855 = vld [vmem:[%s482 + $0x2ba0] sm:$0xff]
          %v5856 = vld [vmem:[%s482 + $0x2ba8] sm:$0xff]
          %v5857 = vld [vmem:[%s482 + $0x2bb0] sm:$0xff]
          %v5858 = vld [vmem:[%s482 + $0x2bb8] sm:$0xff]
          %v5859 = vld [vmem:[%s482 + $0x2bc0] sm:$0xff]
          %v5860 = vld [vmem:[%s482 + $0x2bc8] sm:$0xff]
          %v5861 = vld [vmem:[%s482 + $0x2bd0] sm:$0xff]
          %v5862 = vld [vmem:[%s482 + $0x2bd8] sm:$0xff]
          %v5863 = vld [vmem:[%s482 + $0x2be0] sm:$0xff]
          %v5864 = vld [vmem:[%s482 + $0x2be8] sm:$0xff]
          %v5865 = vld [vmem:[%s482 + $0x2bf0] sm:$0xff]
          %v5866 = vld [vmem:[%s482 + $0x2bf8] sm:$0xff]
          %v5867 = vld [vmem:[%s482 + $0x2c00] sm:$0xff]
          %v5868 = vld [vmem:[%s482 + $0x2c08] sm:$0xff]
          %v5869 = vld [vmem:[%s482 + $0x2c10] sm:$0xff]
          %v5870 = vld [vmem:[%s482 + $0x2c18] sm:$0xff]
          %v5871 = vld [vmem:[%s482 + $0x2c20] sm:$0xff]
          %v5872 = vld [vmem:[%s482 + $0x2c28] sm:$0xff]
          %v5873 = vld [vmem:[%s482 + $0x2c30] sm:$0xff]
          %v5874 = vld [vmem:[%s482 + $0x2c38] sm:$0xff]
          %v5875 = vld [vmem:[%s482 + $0x2c40] sm:$0xff]
          %v5876 = vld [vmem:[%s482 + $0x2c48] sm:$0xff]
          %v5877 = vld [vmem:[%s482 + $0x2c50] sm:$0xff]
          %v5878 = vld [vmem:[%s482 + $0x2c58] sm:$0xff]
          %v5879 = vld [vmem:[%s482 + $0x2c60] sm:$0xff]
          %v5880 = vld [vmem:[%s482 + $0x2c68] sm:$0xff]
          %v5881 = vld [vmem:[%s482 + $0x2c70] sm:$0xff]
          %v5882 = vld [vmem:[%s482 + $0x2c78] sm:$0xff]
          %v5883 = vld [vmem:[%s482 + $0x2c80] sm:$0xff]
          %v5884 = vld [vmem:[%s482 + $0x2c88] sm:$0xff]
          %v5885 = vld [vmem:[%s482 + $0x2c90] sm:$0xff]
          %v5886 = vld [vmem:[%s482 + $0x2c98] sm:$0xff]
          %v5887 = vld [vmem:[%s482 + $0x2ca0] sm:$0xff]
          %v5888 = vld [vmem:[%s482 + $0x2ca8] sm:$0xff]
          %v5889 = vld [vmem:[%s482 + $0x2cb0] sm:$0xff]
          %v5890 = vld [vmem:[%s482 + $0x2cb8] sm:$0xff]
          %v5891 = vld [vmem:[%s482 + $0x2cc0] sm:$0xff]
          %v5892 = vld [vmem:[%s482 + $0x2cc8] sm:$0xff]
          %v5893 = vld [vmem:[%s482 + $0x2cd0] sm:$0xff]
          %v5894 = vld [vmem:[%s482 + $0x2cd8] sm:$0xff]
          %v5895 = vld [vmem:[%s482 + $0x2ce0] sm:$0xff]
          %v5896 = vld [vmem:[%s482 + $0x2ce8] sm:$0xff]
          %v5897 = vld [vmem:[%s482 + $0x2cf0] sm:$0xff]
          %v5898 = vld [vmem:[%s482 + $0x2cf8] sm:$0xff]
          %v5899 = vld [vmem:[%s482 + $0x2d00] sm:$0xff]
          %v5900 = vld [vmem:[%s482 + $0x2d08] sm:$0xff]
          %v5901 = vld [vmem:[%s482 + $0x2d10] sm:$0xff]
          %v5902 = vld [vmem:[%s482 + $0x2d18] sm:$0xff]
          %v5903 = vld [vmem:[%s482 + $0x2d20] sm:$0xff]
          %v5904 = vld [vmem:[%s482 + $0x2d28] sm:$0xff]
          %v5905 = vld [vmem:[%s482 + $0x2d30] sm:$0xff]
          %v5906 = vld [vmem:[%s482 + $0x2d38] sm:$0xff]
          %v5907 = vld [vmem:[%s482 + $0x2d40] sm:$0xff]
          %v5908 = vld [vmem:[%s482 + $0x2d48] sm:$0xff]
          %v5909 = vld [vmem:[%s482 + $0x2d50] sm:$0xff]
          %v5910 = vld [vmem:[%s482 + $0x2d58] sm:$0xff]
          %v5911 = vld [vmem:[%s482 + $0x2d60] sm:$0xff]
          %v5912 = vld [vmem:[%s482 + $0x2d68] sm:$0xff]
          %v5913 = vld [vmem:[%s482 + $0x2d70] sm:$0xff]
          %v5914 = vld [vmem:[%s482 + $0x2d78] sm:$0xff]
          %v5915 = vld [vmem:[%s482 + $0x2d80] sm:$0xff]
          %v5916 = vld [vmem:[%s482 + $0x2d88] sm:$0xff]
          %v5917 = vld [vmem:[%s482 + $0x2d90] sm:$0xff]
          %v5918 = vld [vmem:[%s482 + $0x2d98] sm:$0xff]
          %v5919 = vld [vmem:[%s482 + $0x2da0] sm:$0xff]
          %v5920 = vld [vmem:[%s482 + $0x2da8] sm:$0xff]
          %v5921 = vld [vmem:[%s482 + $0x2db0] sm:$0xff]
          %v5922 = vld [vmem:[%s482 + $0x2db8] sm:$0xff]
          %v5923 = vld [vmem:[%s482 + $0x2dc0] sm:$0xff]
          %v5924 = vld [vmem:[%s482 + $0x2dc8] sm:$0xff]
          %v5925 = vld [vmem:[%s482 + $0x2dd0] sm:$0xff]
          %v5926 = vld [vmem:[%s482 + $0x2dd8] sm:$0xff]
          %v5927 = vld [vmem:[%s482 + $0x2de0] sm:$0xff]
          %v5928 = vld [vmem:[%s482 + $0x2de8] sm:$0xff]
          %v5929 = vld [vmem:[%s482 + $0x2df0] sm:$0xff]
          %v5930 = vld [vmem:[%s482 + $0x2df8] sm:$0xff]
          %v5931 = vld [vmem:[%s482 + $0x2e00] sm:$0xff]
          %v5932 = vld [vmem:[%s482 + $0x2e08] sm:$0xff]
          %v5933 = vld [vmem:[%s482 + $0x2e10] sm:$0xff]
          %v5934 = vld [vmem:[%s482 + $0x2e18] sm:$0xff]
          %v5935 = vld [vmem:[%s482 + $0x2e20] sm:$0xff]
          %v5936 = vld [vmem:[%s482 + $0x2e28] sm:$0xff]
          %v5937 = vld [vmem:[%s482 + $0x2e30] sm:$0xff]
          %v5938 = vld [vmem:[%s482 + $0x2e38] sm:$0xff]
          %v5939 = vld [vmem:[%s482 + $0x2e40] sm:$0xff]
          %v5940 = vld [vmem:[%s482 + $0x2e48] sm:$0xff]
          %v5941 = vld [vmem:[%s482 + $0x2e50] sm:$0xff]
          %v5942 = vld [vmem:[%s482 + $0x2e58] sm:$0xff]
          %v5943 = vld [vmem:[%s482 + $0x2e60] sm:$0xff]
          %v5944 = vld [vmem:[%s482 + $0x2e68] sm:$0xff]
          %v5945 = vld [vmem:[%s482 + $0x2e70] sm:$0xff]
          %v5946 = vld [vmem:[%s482 + $0x2e78] sm:$0xff]
          %v5947 = vld [vmem:[%s482 + $0x2e80] sm:$0xff]
          %v5948 = vld [vmem:[%s482 + $0x2e88] sm:$0xff]
          %v5949 = vld [vmem:[%s482 + $0x2e90] sm:$0xff]
          %v5950 = vld [vmem:[%s482 + $0x2e98] sm:$0xff]
          %v5951 = vld [vmem:[%s482 + $0x2ea0] sm:$0xff]
          %v5952 = vld [vmem:[%s482 + $0x2ea8] sm:$0xff]
          %v5953 = vld [vmem:[%s482 + $0x2eb0] sm:$0xff]
          %v5954 = vld [vmem:[%s482 + $0x2eb8] sm:$0xff]
          %v5955 = vld [vmem:[%s482 + $0x2ec0] sm:$0xff]
          %v5956 = vld [vmem:[%s482 + $0x2ec8] sm:$0xff]
          %v5957 = vld [vmem:[%s482 + $0x2ed0] sm:$0xff]
          %v5958 = vld [vmem:[%s482 + $0x2ed8] sm:$0xff]
          %v5959 = vld [vmem:[%s482 + $0x2ee0] sm:$0xff]
          %v5960 = vld [vmem:[%s482 + $0x2ee8] sm:$0xff]
          %v5961 = vld [vmem:[%s482 + $0x2ef0] sm:$0xff]
          %v5962 = vld [vmem:[%s482 + $0x2ef8] sm:$0xff]
          %v5963 = vld [vmem:[%s482 + $0x2f00] sm:$0xff]
          %v5964 = vld [vmem:[%s482 + $0x2f08] sm:$0xff]
          %v5965 = vld [vmem:[%s482 + $0x2f10] sm:$0xff]
          %v5966 = vld [vmem:[%s482 + $0x2f18] sm:$0xff]
          %v5967 = vld [vmem:[%s482 + $0x2f20] sm:$0xff]
          %v5968 = vld [vmem:[%s482 + $0x2f28] sm:$0xff]
          %v5969 = vld [vmem:[%s482 + $0x2f30] sm:$0xff]
          %v5970 = vld [vmem:[%s482 + $0x2f38] sm:$0xff]
          %v5971 = vld [vmem:[%s482 + $0x2f40] sm:$0xff]
          %v5972 = vld [vmem:[%s482 + $0x2f48] sm:$0xff]
          %v5973 = vld [vmem:[%s482 + $0x2f50] sm:$0xff]
          %v5974 = vld [vmem:[%s482 + $0x2f58] sm:$0xff]
          %v5975 = vld [vmem:[%s482 + $0x2f60] sm:$0xff]
          %v5976 = vld [vmem:[%s482 + $0x2f68] sm:$0xff]
          %v5977 = vld [vmem:[%s482 + $0x2f70] sm:$0xff]
          %v5978 = vld [vmem:[%s482 + $0x2f78] sm:$0xff]
          %v5979 = vld [vmem:[%s482 + $0x2f80] sm:$0xff]
          %v5980 = vld [vmem:[%s482 + $0x2f88] sm:$0xff]
          %v5981 = vld [vmem:[%s482 + $0x2f90] sm:$0xff]
          %v5982 = vld [vmem:[%s482 + $0x2f98] sm:$0xff]
          %v5983 = vld [vmem:[%s482 + $0x2fa0] sm:$0xff]
          %v5984 = vld [vmem:[%s482 + $0x2fa8] sm:$0xff]
          %v5985 = vld [vmem:[%s482 + $0x2fb0] sm:$0xff]
          %v5986 = vld [vmem:[%s482 + $0x2fb8] sm:$0xff]
          %v5987 = vld [vmem:[%s482 + $0x2fc0] sm:$0xff]
          %v5988 = vld [vmem:[%s482 + $0x2fc8] sm:$0xff]
          %v5989 = vld [vmem:[%s482 + $0x2fd0] sm:$0xff]
          %v5990 = vld [vmem:[%s482 + $0x2fd8] sm:$0xff]
          %v5991 = vld [vmem:[%s482 + $0x2fe0] sm:$0xff]
          %v5992 = vld [vmem:[%s482 + $0x2fe8] sm:$0xff]
          %v5993 = vld [vmem:[%s482 + $0x2ff0] sm:$0xff]
          %v5994 = vld [vmem:[%s482 + $0x2ff8] sm:$0xff]
          %v5995 = vld [vmem:[%s492] sm:$0xff]
          %v5996 = vld [vmem:[%s492 + $0x8] sm:$0xff]
          %v5997 = vld [vmem:[%s492 + $0x10] sm:$0xff]
          %v6001 = vperm.slane %v5995, 0
          %v6002 = vperm.slane %v5995, 1
          %v6003 = vperm.slane %v5995, 2
          %v6004 = vperm.slane %v5995, 3
          %v6005 = vperm.slane %v5995, 4
          %v6006 = vperm.slane %v5995, 5
          %v6007 = vperm.slane %v5995, 6
          %v6008 = vperm.slane %v5995, 7
          %v6009 = vperm.slane %v5996, 0
          %v6010 = vperm.slane %v5996, 1
          %v6011 = vperm.slane %v5996, 2
          %v6012 = vperm.slane %v5996, 3
          %v6013 = vperm.slane %v5996, 4
          %v6014 = vperm.slane %v5996, 5
          %v6015 = vperm.slane %v5996, 6
          %v6016 = vperm.slane %v5996, 7
          %v6017 = vperm.slane %v5997, 0
          %v6018 = vperm.slane %v5997, 1
          %v6019 = vperm.slane %v5997, 2
          %v6020 = vperm.slane %v5997, 3
          %v6021 = vperm.slane %v5997, 4
          %v6022 = vperm.slane %v5997, 5
          %v6023 = vperm.slane %v5997, 6
          %v6024 = vperm.slane %v5997, 7
          %6050 = vst [vmem:[#allocation1] ss:$4 sm:$0xff] %v4458
          %v6051 = vld.sshfl [vmem:[#allocation1] sm:$0xff pattern:$0x73625140]
          %v6052 = vld.sshfl [vmem:[#allocation1 + $0x8] sm:$0xff pattern:$0x73625140]
          %v6053 = vld.sshfl [vmem:[#allocation1 + $0x10] sm:$0xff pattern:$0x73625140]
          %v6054 = vld.sshfl [vmem:[#allocation1 + $0x18] sm:$0xff pattern:$0x73625140]
          %6059 = vmatpush.msra.mxu0 %v4819
          %6060 = vmatpush.msra.mxu0 %v4795
          %6061 = vmatpush.msra.mxu0 %v4771
          %6062 = vmatpush.msra.mxu0 %v4747
          %6063 = vmatpush.msra.mxu0 %v4723
          %6064 = vmatpush.msra.mxu0 %v4699
          %6065 = vmatpush.msra.mxu0 %v4675
          %6066 = vmatpush.msra.mxu0 %v4651
          %6067 = vmatpush.msra.mxu0 %v4627
          %6068 = vmatpush.msra.mxu0 %v4603
          %6069 = vmatpush.msra.mxu0 %v4579
          %6070 = vmatpush.msra.mxu0 %v4555
          %6071 = vmatpush.msra.mxu0 %v4531
          %6072 = vmatpush.msra.mxu0 %v4507
          %6073 = vmatpush.msra.mxu0 %v4483
          %6074 = vmatpush.msra.mxu0 %v4459
          %6075 = vmatmul.f32.gmra.mxu0 %v6051
          %v6076 = vpop.f32.mrf.mxu0
          %v6077 = vadd.f32 %v6001, %v6076
          %6078 = vdwg.mxu0
          %6079 = vmatpush.msra.mxu0 %v5203
          %6080 = vmatpush.msra.mxu0 %v5179
          %6081 = vmatpush.msra.mxu0 %v5155
          %6082 = vmatpush.msra.mxu0 %v5131
          %6083 = vmatpush.msra.mxu0 %v5107
          %6084 = vmatpush.msra.mxu0 %v5083
          %6085 = vmatpush.msra.mxu0 %v5059
          %6086 = vmatpush.msra.mxu0 %v5035
          %6087 = vmatpush.msra.mxu0 %v5011
          %6088 = vmatpush.msra.mxu0 %v4987
          %6089 = vmatpush.msra.mxu0 %v4963
          %6090 = vmatpush.msra.mxu0 %v4939
          %6091 = vmatpush.msra.mxu0 %v4915
          %6092 = vmatpush.msra.mxu0 %v4891
          %6093 = vmatpush.msra.mxu0 %v4867
          %6094 = vmatpush.msra.mxu0 %v4843
          %6095 = vmatmul.f32.gmra.mxu0 %v6052
          %v6096 = vpop.f32.mrf.mxu0
          %v6097 = vadd.f32 %v6077, %v6096
          %6098 = vdwg.mxu0
          %6099 = vmatpush.msra.mxu0 %v5587
          %6100 = vmatpush.msra.mxu0 %v5563
          %6101 = vmatpush.msra.mxu0 %v5539
          %6102 = vmatpush.msra.mxu0 %v5515
          %6103 = vmatpush.msra.mxu0 %v5491
          %6104 = vmatpush.msra.mxu0 %v5467
          %6105 = vmatpush.msra.mxu0 %v5443
          %6106 = vmatpush.msra.mxu0 %v5419
          %6107 = vmatpush.msra.mxu0 %v5395
          %6108 = vmatpush.msra.mxu0 %v5371
          %6109 = vmatpush.msra.mxu0 %v5347
          %6110 = vmatpush.msra.mxu0 %v5323
          %6111 = vmatpush.msra.mxu0 %v5299
          %6112 = vmatpush.msra.mxu0 %v5275
          %6113 = vmatpush.msra.mxu0 %v5251
          %6114 = vmatpush.msra.mxu0 %v5227
          %6115 = vmatmul.f32.gmra.mxu0 %v6053
          %v6116 = vpop.f32.mrf.mxu0
          %v6117 = vadd.f32 %v6097, %v6116
          %6118 = vdwg.mxu0
          %6119 = vmatpush.msra.mxu0 %v5971
          %6120 = vmatpush.msra.mxu0 %v5947
          %6121 = vmatpush.msra.mxu0 %v5923
          %6122 = vmatpush.msra.mxu0 %v5899
          %6123 = vmatpush.msra.mxu0 %v5875
          %6124 = vmatpush.msra.mxu0 %v5851
          %6125 = vmatpush.msra.mxu0 %v5827
          %6126 = vmatpush.msra.mxu0 %v5803
          %6127 = vmatpush.msra.mxu0 %v5779
          %6128 = vmatpush.msra.mxu0 %v5755
          %6129 = vmatpush.msra.mxu0 %v5731
          %6130 = vmatpush.msra.mxu0 %v5707
          %6131 = vmatpush.msra.mxu0 %v5683
          %6132 = vmatpush.msra.mxu0 %v5659
          %6133 = vmatpush.msra.mxu0 %v5635
          %6134 = vmatpush.msra.mxu0 %v5611
          %6135 = vmatmul.f32.gmra.mxu0 %v6054
          %v6136 = vpop.f32.mrf.mxu0
          %v6137 = vadd.f32 %v6117, %v6136
          %6138 = vdwg.mxu0
          %6139 = vmatpush.msra.mxu0 %v4820
          %6140 = vmatpush.msra.mxu0 %v4796
          %6141 = vmatpush.msra.mxu0 %v4772
          %6142 = vmatpush.msra.mxu0 %v4748
          %6143 = vmatpush.msra.mxu0 %v4724
          %6144 = vmatpush.msra.mxu0 %v4700
          %6145 = vmatpush.msra.mxu0 %v4676
          %6146 = vmatpush.msra.mxu0 %v4652
          %6147 = vmatpush.msra.mxu0 %v4628
          %6148 = vmatpush.msra.mxu0 %v4604
          %6149 = vmatpush.msra.mxu0 %v4580
          %6150 = vmatpush.msra.mxu0 %v4556
          %6151 = vmatpush.msra.mxu0 %v4532
          %6152 = vmatpush.msra.mxu0 %v4508
          %6153 = vmatpush.msra.mxu0 %v4484
          %6154 = vmatpush.msra.mxu0 %v4460
          %6155 = vmatmul.f32.gmra.mxu0 %v6051
          %v6156 = vpop.f32.mrf.mxu0
          %v6157 = vadd.f32 %v6002, %v6156
          %6158 = vdwg.mxu0
          %6159 = vmatpush.msra.mxu0 %v5204
          %6160 = vmatpush.msra.mxu0 %v5180
          %6161 = vmatpush.msra.mxu0 %v5156
          %6162 = vmatpush.msra.mxu0 %v5132
          %6163 = vmatpush.msra.mxu0 %v5108
          %6164 = vmatpush.msra.mxu0 %v5084
          %6165 = vmatpush.msra.mxu0 %v5060
          %6166 = vmatpush.msra.mxu0 %v5036
          %6167 = vmatpush.msra.mxu0 %v5012
          %6168 = vmatpush.msra.mxu0 %v4988
          %6169 = vmatpush.msra.mxu0 %v4964
          %6170 = vmatpush.msra.mxu0 %v4940
          %6171 = vmatpush.msra.mxu0 %v4916
          %6172 = vmatpush.msra.mxu0 %v4892
          %6173 = vmatpush.msra.mxu0 %v4868
          %6174 = vmatpush.msra.mxu0 %v4844
          %6175 = vmatmul.f32.gmra.mxu0 %v6052
          %v6176 = vpop.f32.mrf.mxu0
          %v6177 = vadd.f32 %v6157, %v6176
          %6178 = vdwg.mxu0
          %6179 = vmatpush.msra.mxu0 %v5588
          %6180 = vmatpush.msra.mxu0 %v5564
          %6181 = vmatpush.msra.mxu0 %v5540
          %6182 = vmatpush.msra.mxu0 %v5516
          %6183 = vmatpush.msra.mxu0 %v5492
          %6184 = vmatpush.msra.mxu0 %v5468
          %6185 = vmatpush.msra.mxu0 %v5444
          %6186 = vmatpush.msra.mxu0 %v5420
          %6187 = vmatpush.msra.mxu0 %v5396
          %6188 = vmatpush.msra.mxu0 %v5372
          %6189 = vmatpush.msra.mxu0 %v5348
          %6190 = vmatpush.msra.mxu0 %v5324
          %6191 = vmatpush.msra.mxu0 %v5300
          %6192 = vmatpush.msra.mxu0 %v5276
          %6193 = vmatpush.msra.mxu0 %v5252
          %6194 = vmatpush.msra.mxu0 %v5228
          %6195 = vmatmul.f32.gmra.mxu0 %v6053
          %v6196 = vpop.f32.mrf.mxu0
          %v6197 = vadd.f32 %v6177, %v6196
          %6198 = vdwg.mxu0
          %6199 = vmatpush.msra.mxu0 %v5972
          %6200 = vmatpush.msra.mxu0 %v5948
          %6201 = vmatpush.msra.mxu0 %v5924
          %6202 = vmatpush.msra.mxu0 %v5900
          %6203 = vmatpush.msra.mxu0 %v5876
          %6204 = vmatpush.msra.mxu0 %v5852
          %6205 = vmatpush.msra.mxu0 %v5828
          %6206 = vmatpush.msra.mxu0 %v5804
          %6207 = vmatpush.msra.mxu0 %v5780
          %6208 = vmatpush.msra.mxu0 %v5756
          %6209 = vmatpush.msra.mxu0 %v5732
          %6210 = vmatpush.msra.mxu0 %v5708
          %6211 = vmatpush.msra.mxu0 %v5684
          %6212 = vmatpush.msra.mxu0 %v5660
          %6213 = vmatpush.msra.mxu0 %v5636
          %6214 = vmatpush.msra.mxu0 %v5612
          %6215 = vmatmul.f32.gmra.mxu0 %v6054
          %v6216 = vpop.f32.mrf.mxu0
          %v6217 = vadd.f32 %v6197, %v6216
          %6218 = vdwg.mxu0
          %6219 = vmatpush.msra.mxu0 %v4821
          %6220 = vmatpush.msra.mxu0 %v4797
          %6221 = vmatpush.msra.mxu0 %v4773
          %6222 = vmatpush.msra.mxu0 %v4749
          %6223 = vmatpush.msra.mxu0 %v4725
          %6224 = vmatpush.msra.mxu0 %v4701
          %6225 = vmatpush.msra.mxu0 %v4677
          %6226 = vmatpush.msra.mxu0 %v4653
          %6227 = vmatpush.msra.mxu0 %v4629
          %6228 = vmatpush.msra.mxu0 %v4605
          %6229 = vmatpush.msra.mxu0 %v4581
          %6230 = vmatpush.msra.mxu0 %v4557
          %6231 = vmatpush.msra.mxu0 %v4533
          %6232 = vmatpush.msra.mxu0 %v4509
          %6233 = vmatpush.msra.mxu0 %v4485
          %6234 = vmatpush.msra.mxu0 %v4461
          %6235 = vmatmul.f32.gmra.mxu0 %v6051
          %v6236 = vpop.f32.mrf.mxu0
          %v6237 = vadd.f32 %v6003, %v6236
          %6238 = vdwg.mxu0
          %6239 = vmatpush.msra.mxu0 %v5205
          %6240 = vmatpush.msra.mxu0 %v5181
          %6241 = vmatpush.msra.mxu0 %v5157
          %6242 = vmatpush.msra.mxu0 %v5133
          %6243 = vmatpush.msra.mxu0 %v5109
          %6244 = vmatpush.msra.mxu0 %v5085
          %6245 = vmatpush.msra.mxu0 %v5061
          %6246 = vmatpush.msra.mxu0 %v5037
          %6247 = vmatpush.msra.mxu0 %v5013
          %6248 = vmatpush.msra.mxu0 %v4989
          %6249 = vmatpush.msra.mxu0 %v4965
          %6250 = vmatpush.msra.mxu0 %v4941
          %6251 = vmatpush.msra.mxu0 %v4917
          %6252 = vmatpush.msra.mxu0 %v4893
          %6253 = vmatpush.msra.mxu0 %v4869
          %6254 = vmatpush.msra.mxu0 %v4845
          %6255 = vmatmul.f32.gmra.mxu0 %v6052
          %v6256 = vpop.f32.mrf.mxu0
          %v6257 = vadd.f32 %v6237, %v6256
          %6258 = vdwg.mxu0
          %6259 = vmatpush.msra.mxu0 %v5589
          %6260 = vmatpush.msra.mxu0 %v5565
          %6261 = vmatpush.msra.mxu0 %v5541
          %6262 = vmatpush.msra.mxu0 %v5517
          %6263 = vmatpush.msra.mxu0 %v5493
          %6264 = vmatpush.msra.mxu0 %v5469
          %6265 = vmatpush.msra.mxu0 %v5445
          %6266 = vmatpush.msra.mxu0 %v5421
          %6267 = vmatpush.msra.mxu0 %v5397
          %6268 = vmatpush.msra.mxu0 %v5373
          %6269 = vmatpush.msra.mxu0 %v5349
          %6270 = vmatpush.msra.mxu0 %v5325
          %6271 = vmatpush.msra.mxu0 %v5301
          %6272 = vmatpush.msra.mxu0 %v5277
          %6273 = vmatpush.msra.mxu0 %v5253
          %6274 = vmatpush.msra.mxu0 %v5229
          %6275 = vmatmul.f32.gmra.mxu0 %v6053
          %v6276 = vpop.f32.mrf.mxu0
          %v6277 = vadd.f32 %v6257, %v6276
          %6278 = vdwg.mxu0
          %6279 = vmatpush.msra.mxu0 %v5973
          %6280 = vmatpush.msra.mxu0 %v5949
          %6281 = vmatpush.msra.mxu0 %v5925
          %6282 = vmatpush.msra.mxu0 %v5901
          %6283 = vmatpush.msra.mxu0 %v5877
          %6284 = vmatpush.msra.mxu0 %v5853
          %6285 = vmatpush.msra.mxu0 %v5829
          %6286 = vmatpush.msra.mxu0 %v5805
          %6287 = vmatpush.msra.mxu0 %v5781
          %6288 = vmatpush.msra.mxu0 %v5757
          %6289 = vmatpush.msra.mxu0 %v5733
          %6290 = vmatpush.msra.mxu0 %v5709
          %6291 = vmatpush.msra.mxu0 %v5685
          %6292 = vmatpush.msra.mxu0 %v5661
          %6293 = vmatpush.msra.mxu0 %v5637
          %6294 = vmatpush.msra.mxu0 %v5613
          %6295 = vmatmul.f32.gmra.mxu0 %v6054
          %v6296 = vpop.f32.mrf.mxu0
          %v6297 = vadd.f32 %v6277, %v6296
          %6298 = vdwg.mxu0
          %6299 = vmatpush.msra.mxu0 %v4822
          %6300 = vmatpush.msra.mxu0 %v4798
          %6301 = vmatpush.msra.mxu0 %v4774
          %6302 = vmatpush.msra.mxu0 %v4750
          %6303 = vmatpush.msra.mxu0 %v4726
          %6304 = vmatpush.msra.mxu0 %v4702
          %6305 = vmatpush.msra.mxu0 %v4678
          %6306 = vmatpush.msra.mxu0 %v4654
          %6307 = vmatpush.msra.mxu0 %v4630
          %6308 = vmatpush.msra.mxu0 %v4606
          %6309 = vmatpush.msra.mxu0 %v4582
          %6310 = vmatpush.msra.mxu0 %v4558
          %6311 = vmatpush.msra.mxu0 %v4534
          %6312 = vmatpush.msra.mxu0 %v4510
          %6313 = vmatpush.msra.mxu0 %v4486
          %6314 = vmatpush.msra.mxu0 %v4462
          %6315 = vmatmul.f32.gmra.mxu0 %v6051
          %v6316 = vpop.f32.mrf.mxu0
          %v6317 = vadd.f32 %v6004, %v6316
          %6318 = vdwg.mxu0
          %6319 = vmatpush.msra.mxu0 %v5206
          %6320 = vmatpush.msra.mxu0 %v5182
          %6321 = vmatpush.msra.mxu0 %v5158
          %6322 = vmatpush.msra.mxu0 %v5134
          %6323 = vmatpush.msra.mxu0 %v5110
          %6324 = vmatpush.msra.mxu0 %v5086
          %6325 = vmatpush.msra.mxu0 %v5062
          %6326 = vmatpush.msra.mxu0 %v5038
          %6327 = vmatpush.msra.mxu0 %v5014
          %6328 = vmatpush.msra.mxu0 %v4990
          %6329 = vmatpush.msra.mxu0 %v4966
          %6330 = vmatpush.msra.mxu0 %v4942
          %6331 = vmatpush.msra.mxu0 %v4918
          %6332 = vmatpush.msra.mxu0 %v4894
          %6333 = vmatpush.msra.mxu0 %v4870
          %6334 = vmatpush.msra.mxu0 %v4846
          %6335 = vmatmul.f32.gmra.mxu0 %v6052
          %v6336 = vpop.f32.mrf.mxu0
          %v6337 = vadd.f32 %v6317, %v6336
          %6338 = vdwg.mxu0
          %6339 = vmatpush.msra.mxu0 %v5590
          %6340 = vmatpush.msra.mxu0 %v5566
          %6341 = vmatpush.msra.mxu0 %v5542
          %6342 = vmatpush.msra.mxu0 %v5518
          %6343 = vmatpush.msra.mxu0 %v5494
          %6344 = vmatpush.msra.mxu0 %v5470
          %6345 = vmatpush.msra.mxu0 %v5446
          %6346 = vmatpush.msra.mxu0 %v5422
          %6347 = vmatpush.msra.mxu0 %v5398
          %6348 = vmatpush.msra.mxu0 %v5374
          %6349 = vmatpush.msra.mxu0 %v5350
          %6350 = vmatpush.msra.mxu0 %v5326
          %6351 = vmatpush.msra.mxu0 %v5302
          %6352 = vmatpush.msra.mxu0 %v5278
          %6353 = vmatpush.msra.mxu0 %v5254
          %6354 = vmatpush.msra.mxu0 %v5230
          %6355 = vmatmul.f32.gmra.mxu0 %v6053
          %v6356 = vpop.f32.mrf.mxu0
          %v6357 = vadd.f32 %v6337, %v6356
          %6358 = vdwg.mxu0
          %6359 = vmatpush.msra.mxu0 %v5974
          %6360 = vmatpush.msra.mxu0 %v5950
          %6361 = vmatpush.msra.mxu0 %v5926
          %6362 = vmatpush.msra.mxu0 %v5902
          %6363 = vmatpush.msra.mxu0 %v5878
          %6364 = vmatpush.msra.mxu0 %v5854
          %6365 = vmatpush.msra.mxu0 %v5830
          %6366 = vmatpush.msra.mxu0 %v5806
          %6367 = vmatpush.msra.mxu0 %v5782
          %6368 = vmatpush.msra.mxu0 %v5758
          %6369 = vmatpush.msra.mxu0 %v5734
          %6370 = vmatpush.msra.mxu0 %v5710
          %6371 = vmatpush.msra.mxu0 %v5686
          %6372 = vmatpush.msra.mxu0 %v5662
          %6373 = vmatpush.msra.mxu0 %v5638
          %6374 = vmatpush.msra.mxu0 %v5614
          %6375 = vmatmul.f32.gmra.mxu0 %v6054
          %v6376 = vpop.f32.mrf.mxu0
          %v6377 = vadd.f32 %v6357, %v6376
          %6378 = vdwg.mxu0
          %6379 = vmatpush.msra.mxu0 %v4823
          %6380 = vmatpush.msra.mxu0 %v4799
          %6381 = vmatpush.msra.mxu0 %v4775
          %6382 = vmatpush.msra.mxu0 %v4751
          %6383 = vmatpush.msra.mxu0 %v4727
          %6384 = vmatpush.msra.mxu0 %v4703
          %6385 = vmatpush.msra.mxu0 %v4679
          %6386 = vmatpush.msra.mxu0 %v4655
          %6387 = vmatpush.msra.mxu0 %v4631
          %6388 = vmatpush.msra.mxu0 %v4607
          %6389 = vmatpush.msra.mxu0 %v4583
          %6390 = vmatpush.msra.mxu0 %v4559
          %6391 = vmatpush.msra.mxu0 %v4535
          %6392 = vmatpush.msra.mxu0 %v4511
          %6393 = vmatpush.msra.mxu0 %v4487
          %6394 = vmatpush.msra.mxu0 %v4463
          %6395 = vmatmul.f32.gmra.mxu0 %v6051
          %v6396 = vpop.f32.mrf.mxu0
          %v6397 = vadd.f32 %v6005, %v6396
          %6398 = vdwg.mxu0
          %6399 = vmatpush.msra.mxu0 %v5207
          %6400 = vmatpush.msra.mxu0 %v5183
          %6401 = vmatpush.msra.mxu0 %v5159
          %6402 = vmatpush.msra.mxu0 %v5135
          %6403 = vmatpush.msra.mxu0 %v5111
          %6404 = vmatpush.msra.mxu0 %v5087
          %6405 = vmatpush.msra.mxu0 %v5063
          %6406 = vmatpush.msra.mxu0 %v5039
          %6407 = vmatpush.msra.mxu0 %v5015
          %6408 = vmatpush.msra.mxu0 %v4991
          %6409 = vmatpush.msra.mxu0 %v4967
          %6410 = vmatpush.msra.mxu0 %v4943
          %6411 = vmatpush.msra.mxu0 %v4919
          %6412 = vmatpush.msra.mxu0 %v4895
          %6413 = vmatpush.msra.mxu0 %v4871
          %6414 = vmatpush.msra.mxu0 %v4847
          %6415 = vmatmul.f32.gmra.mxu0 %v6052
          %v6416 = vpop.f32.mrf.mxu0
          %v6417 = vadd.f32 %v6397, %v6416
          %6418 = vdwg.mxu0
          %6419 = vmatpush.msra.mxu0 %v5591
          %6420 = vmatpush.msra.mxu0 %v5567
          %6421 = vmatpush.msra.mxu0 %v5543
          %6422 = vmatpush.msra.mxu0 %v5519
          %6423 = vmatpush.msra.mxu0 %v5495
          %6424 = vmatpush.msra.mxu0 %v5471
          %6425 = vmatpush.msra.mxu0 %v5447
          %6426 = vmatpush.msra.mxu0 %v5423
          %6427 = vmatpush.msra.mxu0 %v5399
          %6428 = vmatpush.msra.mxu0 %v5375
          %6429 = vmatpush.msra.mxu0 %v5351
          %6430 = vmatpush.msra.mxu0 %v5327
          %6431 = vmatpush.msra.mxu0 %v5303
          %6432 = vmatpush.msra.mxu0 %v5279
          %6433 = vmatpush.msra.mxu0 %v5255
          %6434 = vmatpush.msra.mxu0 %v5231
          %6435 = vmatmul.f32.gmra.mxu0 %v6053
          %v6436 = vpop.f32.mrf.mxu0
          %v6437 = vadd.f32 %v6417, %v6436
          %6438 = vdwg.mxu0
          %6439 = vmatpush.msra.mxu0 %v5975
          %6440 = vmatpush.msra.mxu0 %v5951
          %6441 = vmatpush.msra.mxu0 %v5927
          %6442 = vmatpush.msra.mxu0 %v5903
          %6443 = vmatpush.msra.mxu0 %v5879
          %6444 = vmatpush.msra.mxu0 %v5855
          %6445 = vmatpush.msra.mxu0 %v5831
          %6446 = vmatpush.msra.mxu0 %v5807
          %6447 = vmatpush.msra.mxu0 %v5783
          %6448 = vmatpush.msra.mxu0 %v5759
          %6449 = vmatpush.msra.mxu0 %v5735
          %6450 = vmatpush.msra.mxu0 %v5711
          %6451 = vmatpush.msra.mxu0 %v5687
          %6452 = vmatpush.msra.mxu0 %v5663
          %6453 = vmatpush.msra.mxu0 %v5639
          %6454 = vmatpush.msra.mxu0 %v5615
          %6455 = vmatmul.f32.gmra.mxu0 %v6054
          %v6456 = vpop.f32.mrf.mxu0
          %v6457 = vadd.f32 %v6437, %v6456
          %6458 = vdwg.mxu0
          %6459 = vmatpush.msra.mxu0 %v4824
          %6460 = vmatpush.msra.mxu0 %v4800
          %6461 = vmatpush.msra.mxu0 %v4776
          %6462 = vmatpush.msra.mxu0 %v4752
          %6463 = vmatpush.msra.mxu0 %v4728
          %6464 = vmatpush.msra.mxu0 %v4704
          %6465 = vmatpush.msra.mxu0 %v4680
          %6466 = vmatpush.msra.mxu0 %v4656
          %6467 = vmatpush.msra.mxu0 %v4632
          %6468 = vmatpush.msra.mxu0 %v4608
          %6469 = vmatpush.msra.mxu0 %v4584
          %6470 = vmatpush.msra.mxu0 %v4560
          %6471 = vmatpush.msra.mxu0 %v4536
          %6472 = vmatpush.msra.mxu0 %v4512
          %6473 = vmatpush.msra.mxu0 %v4488
          %6474 = vmatpush.msra.mxu0 %v4464
          %6475 = vmatmul.f32.gmra.mxu0 %v6051
          %v6476 = vpop.f32.mrf.mxu0
          %v6477 = vadd.f32 %v6006, %v6476
          %6478 = vdwg.mxu0
          %6479 = vmatpush.msra.mxu0 %v5208
          %6480 = vmatpush.msra.mxu0 %v5184
          %6481 = vmatpush.msra.mxu0 %v5160
          %6482 = vmatpush.msra.mxu0 %v5136
          %6483 = vmatpush.msra.mxu0 %v5112
          %6484 = vmatpush.msra.mxu0 %v5088
          %6485 = vmatpush.msra.mxu0 %v5064
          %6486 = vmatpush.msra.mxu0 %v5040
          %6487 = vmatpush.msra.mxu0 %v5016
          %6488 = vmatpush.msra.mxu0 %v4992
          %6489 = vmatpush.msra.mxu0 %v4968
          %6490 = vmatpush.msra.mxu0 %v4944
          %6491 = vmatpush.msra.mxu0 %v4920
          %6492 = vmatpush.msra.mxu0 %v4896
          %6493 = vmatpush.msra.mxu0 %v4872
          %6494 = vmatpush.msra.mxu0 %v4848
          %6495 = vmatmul.f32.gmra.mxu0 %v6052
          %v6496 = vpop.f32.mrf.mxu0
          %v6497 = vadd.f32 %v6477, %v6496
          %6498 = vdwg.mxu0
          %6499 = vmatpush.msra.mxu0 %v5592
          %6500 = vmatpush.msra.mxu0 %v5568
          %6501 = vmatpush.msra.mxu0 %v5544
          %6502 = vmatpush.msra.mxu0 %v5520
          %6503 = vmatpush.msra.mxu0 %v5496
          %6504 = vmatpush.msra.mxu0 %v5472
          %6505 = vmatpush.msra.mxu0 %v5448
          %6506 = vmatpush.msra.mxu0 %v5424
          %6507 = vmatpush.msra.mxu0 %v5400
          %6508 = vmatpush.msra.mxu0 %v5376
          %6509 = vmatpush.msra.mxu0 %v5352
          %6510 = vmatpush.msra.mxu0 %v5328
          %6511 = vmatpush.msra.mxu0 %v5304
          %6512 = vmatpush.msra.mxu0 %v5280
          %6513 = vmatpush.msra.mxu0 %v5256
          %6514 = vmatpush.msra.mxu0 %v5232
          %6515 = vmatmul.f32.gmra.mxu0 %v6053
          %v6516 = vpop.f32.mrf.mxu0
          %v6517 = vadd.f32 %v6497, %v6516
          %6518 = vdwg.mxu0
          %6519 = vmatpush.msra.mxu0 %v5976
          %6520 = vmatpush.msra.mxu0 %v5952
          %6521 = vmatpush.msra.mxu0 %v5928
          %6522 = vmatpush.msra.mxu0 %v5904
          %6523 = vmatpush.msra.mxu0 %v5880
          %6524 = vmatpush.msra.mxu0 %v5856
          %6525 = vmatpush.msra.mxu0 %v5832
          %6526 = vmatpush.msra.mxu0 %v5808
          %6527 = vmatpush.msra.mxu0 %v5784
          %6528 = vmatpush.msra.mxu0 %v5760
          %6529 = vmatpush.msra.mxu0 %v5736
          %6530 = vmatpush.msra.mxu0 %v5712
          %6531 = vmatpush.msra.mxu0 %v5688
          %6532 = vmatpush.msra.mxu0 %v5664
          %6533 = vmatpush.msra.mxu0 %v5640
          %6534 = vmatpush.msra.mxu0 %v5616
          %6535 = vmatmul.f32.gmra.mxu0 %v6054
          %v6536 = vpop.f32.mrf.mxu0
          %v6537 = vadd.f32 %v6517, %v6536
          %6538 = vdwg.mxu0
          %6539 = vmatpush.msra.mxu0 %v4825
          %6540 = vmatpush.msra.mxu0 %v4801
          %6541 = vmatpush.msra.mxu0 %v4777
          %6542 = vmatpush.msra.mxu0 %v4753
          %6543 = vmatpush.msra.mxu0 %v4729
          %6544 = vmatpush.msra.mxu0 %v4705
          %6545 = vmatpush.msra.mxu0 %v4681
          %6546 = vmatpush.msra.mxu0 %v4657
          %6547 = vmatpush.msra.mxu0 %v4633
          %6548 = vmatpush.msra.mxu0 %v4609
          %6549 = vmatpush.msra.mxu0 %v4585
          %6550 = vmatpush.msra.mxu0 %v4561
          %6551 = vmatpush.msra.mxu0 %v4537
          %6552 = vmatpush.msra.mxu0 %v4513
          %6553 = vmatpush.msra.mxu0 %v4489
          %6554 = vmatpush.msra.mxu0 %v4465
          %6555 = vmatmul.f32.gmra.mxu0 %v6051
          %v6556 = vpop.f32.mrf.mxu0
          %v6557 = vadd.f32 %v6007, %v6556
          %6558 = vdwg.mxu0
          %6559 = vmatpush.msra.mxu0 %v5209
          %6560 = vmatpush.msra.mxu0 %v5185
          %6561 = vmatpush.msra.mxu0 %v5161
          %6562 = vmatpush.msra.mxu0 %v5137
          %6563 = vmatpush.msra.mxu0 %v5113
          %6564 = vmatpush.msra.mxu0 %v5089
          %6565 = vmatpush.msra.mxu0 %v5065
          %6566 = vmatpush.msra.mxu0 %v5041
          %6567 = vmatpush.msra.mxu0 %v5017
          %6568 = vmatpush.msra.mxu0 %v4993
          %6569 = vmatpush.msra.mxu0 %v4969
          %6570 = vmatpush.msra.mxu0 %v4945
          %6571 = vmatpush.msra.mxu0 %v4921
          %6572 = vmatpush.msra.mxu0 %v4897
          %6573 = vmatpush.msra.mxu0 %v4873
          %6574 = vmatpush.msra.mxu0 %v4849
          %6575 = vmatmul.f32.gmra.mxu0 %v6052
          %v6576 = vpop.f32.mrf.mxu0
          %v6577 = vadd.f32 %v6557, %v6576
          %6578 = vdwg.mxu0
          %6579 = vmatpush.msra.mxu0 %v5593
          %6580 = vmatpush.msra.mxu0 %v5569
          %6581 = vmatpush.msra.mxu0 %v5545
          %6582 = vmatpush.msra.mxu0 %v5521
          %6583 = vmatpush.msra.mxu0 %v5497
          %6584 = vmatpush.msra.mxu0 %v5473
          %6585 = vmatpush.msra.mxu0 %v5449
          %6586 = vmatpush.msra.mxu0 %v5425
          %6587 = vmatpush.msra.mxu0 %v5401
          %6588 = vmatpush.msra.mxu0 %v5377
          %6589 = vmatpush.msra.mxu0 %v5353
          %6590 = vmatpush.msra.mxu0 %v5329
          %6591 = vmatpush.msra.mxu0 %v5305
          %6592 = vmatpush.msra.mxu0 %v5281
          %6593 = vmatpush.msra.mxu0 %v5257
          %6594 = vmatpush.msra.mxu0 %v5233
          %6595 = vmatmul.f32.gmra.mxu0 %v6053
          %v6596 = vpop.f32.mrf.mxu0
          %v6597 = vadd.f32 %v6577, %v6596
          %6598 = vdwg.mxu0
          %6599 = vmatpush.msra.mxu0 %v5977
          %6600 = vmatpush.msra.mxu0 %v5953
          %6601 = vmatpush.msra.mxu0 %v5929
          %6602 = vmatpush.msra.mxu0 %v5905
          %6603 = vmatpush.msra.mxu0 %v5881
          %6604 = vmatpush.msra.mxu0 %v5857
          %6605 = vmatpush.msra.mxu0 %v5833
          %6606 = vmatpush.msra.mxu0 %v5809
          %6607 = vmatpush.msra.mxu0 %v5785
          %6608 = vmatpush.msra.mxu0 %v5761
          %6609 = vmatpush.msra.mxu0 %v5737
          %6610 = vmatpush.msra.mxu0 %v5713
          %6611 = vmatpush.msra.mxu0 %v5689
          %6612 = vmatpush.msra.mxu0 %v5665
          %6613 = vmatpush.msra.mxu0 %v5641
          %6614 = vmatpush.msra.mxu0 %v5617
          %6615 = vmatmul.f32.gmra.mxu0 %v6054
          %v6616 = vpop.f32.mrf.mxu0
          %v6617 = vadd.f32 %v6597, %v6616
          %6618 = vdwg.mxu0
          %6619 = vmatpush.msra.mxu0 %v4826
          %6620 = vmatpush.msra.mxu0 %v4802
          %6621 = vmatpush.msra.mxu0 %v4778
          %6622 = vmatpush.msra.mxu0 %v4754
          %6623 = vmatpush.msra.mxu0 %v4730
          %6624 = vmatpush.msra.mxu0 %v4706
          %6625 = vmatpush.msra.mxu0 %v4682
          %6626 = vmatpush.msra.mxu0 %v4658
          %6627 = vmatpush.msra.mxu0 %v4634
          %6628 = vmatpush.msra.mxu0 %v4610
          %6629 = vmatpush.msra.mxu0 %v4586
          %6630 = vmatpush.msra.mxu0 %v4562
          %6631 = vmatpush.msra.mxu0 %v4538
          %6632 = vmatpush.msra.mxu0 %v4514
          %6633 = vmatpush.msra.mxu0 %v4490
          %6634 = vmatpush.msra.mxu0 %v4466
          %6635 = vmatmul.f32.gmra.mxu0 %v6051
          %v6636 = vpop.f32.mrf.mxu0
          %v6637 = vadd.f32 %v6008, %v6636
          %6638 = vdwg.mxu0
          %6639 = vmatpush.msra.mxu0 %v5210
          %6640 = vmatpush.msra.mxu0 %v5186
          %6641 = vmatpush.msra.mxu0 %v5162
          %6642 = vmatpush.msra.mxu0 %v5138
          %6643 = vmatpush.msra.mxu0 %v5114
          %6644 = vmatpush.msra.mxu0 %v5090
          %6645 = vmatpush.msra.mxu0 %v5066
          %6646 = vmatpush.msra.mxu0 %v5042
          %6647 = vmatpush.msra.mxu0 %v5018
          %6648 = vmatpush.msra.mxu0 %v4994
          %6649 = vmatpush.msra.mxu0 %v4970
          %6650 = vmatpush.msra.mxu0 %v4946
          %6651 = vmatpush.msra.mxu0 %v4922
          %6652 = vmatpush.msra.mxu0 %v4898
          %6653 = vmatpush.msra.mxu0 %v4874
          %6654 = vmatpush.msra.mxu0 %v4850
          %6655 = vmatmul.f32.gmra.mxu0 %v6052
          %v6656 = vpop.f32.mrf.mxu0
          %v6657 = vadd.f32 %v6637, %v6656
          %6658 = vdwg.mxu0
          %6659 = vmatpush.msra.mxu0 %v5594
          %6660 = vmatpush.msra.mxu0 %v5570
          %6661 = vmatpush.msra.mxu0 %v5546
          %6662 = vmatpush.msra.mxu0 %v5522
          %6663 = vmatpush.msra.mxu0 %v5498
          %6664 = vmatpush.msra.mxu0 %v5474
          %6665 = vmatpush.msra.mxu0 %v5450
          %6666 = vmatpush.msra.mxu0 %v5426
          %6667 = vmatpush.msra.mxu0 %v5402
          %6668 = vmatpush.msra.mxu0 %v5378
          %6669 = vmatpush.msra.mxu0 %v5354
          %6670 = vmatpush.msra.mxu0 %v5330
          %6671 = vmatpush.msra.mxu0 %v5306
          %6672 = vmatpush.msra.mxu0 %v5282
          %6673 = vmatpush.msra.mxu0 %v5258
          %6674 = vmatpush.msra.mxu0 %v5234
          %6675 = vmatmul.f32.gmra.mxu0 %v6053
          %v6676 = vpop.f32.mrf.mxu0
          %v6677 = vadd.f32 %v6657, %v6676
          %6678 = vdwg.mxu0
          %6679 = vmatpush.msra.mxu0 %v5978
          %6680 = vmatpush.msra.mxu0 %v5954
          %6681 = vmatpush.msra.mxu0 %v5930
          %6682 = vmatpush.msra.mxu0 %v5906
          %6683 = vmatpush.msra.mxu0 %v5882
          %6684 = vmatpush.msra.mxu0 %v5858
          %6685 = vmatpush.msra.mxu0 %v5834
          %6686 = vmatpush.msra.mxu0 %v5810
          %6687 = vmatpush.msra.mxu0 %v5786
          %6688 = vmatpush.msra.mxu0 %v5762
          %6689 = vmatpush.msra.mxu0 %v5738
          %6690 = vmatpush.msra.mxu0 %v5714
          %6691 = vmatpush.msra.mxu0 %v5690
          %6692 = vmatpush.msra.mxu0 %v5666
          %6693 = vmatpush.msra.mxu0 %v5642
          %6694 = vmatpush.msra.mxu0 %v5618
          %6695 = vmatmul.f32.gmra.mxu0 %v6054
          %v6696 = vpop.f32.mrf.mxu0
          %v6697 = vadd.f32 %v6677, %v6696
          %6698 = vdwg.mxu0
          %6699 = vmatpush.msra.mxu0 %v4827
          %6700 = vmatpush.msra.mxu0 %v4803
          %6701 = vmatpush.msra.mxu0 %v4779
          %6702 = vmatpush.msra.mxu0 %v4755
          %6703 = vmatpush.msra.mxu0 %v4731
          %6704 = vmatpush.msra.mxu0 %v4707
          %6705 = vmatpush.msra.mxu0 %v4683
          %6706 = vmatpush.msra.mxu0 %v4659
          %6707 = vmatpush.msra.mxu0 %v4635
          %6708 = vmatpush.msra.mxu0 %v4611
          %6709 = vmatpush.msra.mxu0 %v4587
          %6710 = vmatpush.msra.mxu0 %v4563
          %6711 = vmatpush.msra.mxu0 %v4539
          %6712 = vmatpush.msra.mxu0 %v4515
          %6713 = vmatpush.msra.mxu0 %v4491
          %6714 = vmatpush.msra.mxu0 %v4467
          %6715 = vmatmul.f32.gmra.mxu0 %v6051
          %v6716 = vpop.f32.mrf.mxu0
          %v6717 = vadd.f32 %v6009, %v6716
          %6718 = vdwg.mxu0
          %6719 = vmatpush.msra.mxu0 %v5211
          %6720 = vmatpush.msra.mxu0 %v5187
          %6721 = vmatpush.msra.mxu0 %v5163
          %6722 = vmatpush.msra.mxu0 %v5139
          %6723 = vmatpush.msra.mxu0 %v5115
          %6724 = vmatpush.msra.mxu0 %v5091
          %6725 = vmatpush.msra.mxu0 %v5067
          %6726 = vmatpush.msra.mxu0 %v5043
          %6727 = vmatpush.msra.mxu0 %v5019
          %6728 = vmatpush.msra.mxu0 %v4995
          %6729 = vmatpush.msra.mxu0 %v4971
          %6730 = vmatpush.msra.mxu0 %v4947
          %6731 = vmatpush.msra.mxu0 %v4923
          %6732 = vmatpush.msra.mxu0 %v4899
          %6733 = vmatpush.msra.mxu0 %v4875
          %6734 = vmatpush.msra.mxu0 %v4851
          %6735 = vmatmul.f32.gmra.mxu0 %v6052
          %v6736 = vpop.f32.mrf.mxu0
          %v6737 = vadd.f32 %v6717, %v6736
          %6738 = vdwg.mxu0
          %6739 = vmatpush.msra.mxu0 %v5595
          %6740 = vmatpush.msra.mxu0 %v5571
          %6741 = vmatpush.msra.mxu0 %v5547
          %6742 = vmatpush.msra.mxu0 %v5523
          %6743 = vmatpush.msra.mxu0 %v5499
          %6744 = vmatpush.msra.mxu0 %v5475
          %6745 = vmatpush.msra.mxu0 %v5451
          %6746 = vmatpush.msra.mxu0 %v5427
          %6747 = vmatpush.msra.mxu0 %v5403
          %6748 = vmatpush.msra.mxu0 %v5379
          %6749 = vmatpush.msra.mxu0 %v5355
          %6750 = vmatpush.msra.mxu0 %v5331
          %6751 = vmatpush.msra.mxu0 %v5307
          %6752 = vmatpush.msra.mxu0 %v5283
          %6753 = vmatpush.msra.mxu0 %v5259
          %6754 = vmatpush.msra.mxu0 %v5235
          %6755 = vmatmul.f32.gmra.mxu0 %v6053
          %v6756 = vpop.f32.mrf.mxu0
          %v6757 = vadd.f32 %v6737, %v6756
          %6758 = vdwg.mxu0
          %6759 = vmatpush.msra.mxu0 %v5979
          %6760 = vmatpush.msra.mxu0 %v5955
          %6761 = vmatpush.msra.mxu0 %v5931
          %6762 = vmatpush.msra.mxu0 %v5907
          %6763 = vmatpush.msra.mxu0 %v5883
          %6764 = vmatpush.msra.mxu0 %v5859
          %6765 = vmatpush.msra.mxu0 %v5835
          %6766 = vmatpush.msra.mxu0 %v5811
          %6767 = vmatpush.msra.mxu0 %v5787
          %6768 = vmatpush.msra.mxu0 %v5763
          %6769 = vmatpush.msra.mxu0 %v5739
          %6770 = vmatpush.msra.mxu0 %v5715
          %6771 = vmatpush.msra.mxu0 %v5691
          %6772 = vmatpush.msra.mxu0 %v5667
          %6773 = vmatpush.msra.mxu0 %v5643
          %6774 = vmatpush.msra.mxu0 %v5619
          %6775 = vmatmul.f32.gmra.mxu0 %v6054
          %v6776 = vpop.f32.mrf.mxu0
          %v6777 = vadd.f32 %v6757, %v6776
          %6778 = vdwg.mxu0
          %6779 = vmatpush.msra.mxu0 %v4828
          %6780 = vmatpush.msra.mxu0 %v4804
          %6781 = vmatpush.msra.mxu0 %v4780
          %6782 = vmatpush.msra.mxu0 %v4756
          %6783 = vmatpush.msra.mxu0 %v4732
          %6784 = vmatpush.msra.mxu0 %v4708
          %6785 = vmatpush.msra.mxu0 %v4684
          %6786 = vmatpush.msra.mxu0 %v4660
          %6787 = vmatpush.msra.mxu0 %v4636
          %6788 = vmatpush.msra.mxu0 %v4612
          %6789 = vmatpush.msra.mxu0 %v4588
          %6790 = vmatpush.msra.mxu0 %v4564
          %6791 = vmatpush.msra.mxu0 %v4540
          %6792 = vmatpush.msra.mxu0 %v4516
          %6793 = vmatpush.msra.mxu0 %v4492
          %6794 = vmatpush.msra.mxu0 %v4468
          %6795 = vmatmul.f32.gmra.mxu0 %v6051
          %v6796 = vpop.f32.mrf.mxu0
          %v6797 = vadd.f32 %v6010, %v6796
          %6798 = vdwg.mxu0
          %6799 = vmatpush.msra.mxu0 %v5212
          %6800 = vmatpush.msra.mxu0 %v5188
          %6801 = vmatpush.msra.mxu0 %v5164
          %6802 = vmatpush.msra.mxu0 %v5140
          %6803 = vmatpush.msra.mxu0 %v5116
          %6804 = vmatpush.msra.mxu0 %v5092
          %6805 = vmatpush.msra.mxu0 %v5068
          %6806 = vmatpush.msra.mxu0 %v5044
          %6807 = vmatpush.msra.mxu0 %v5020
          %6808 = vmatpush.msra.mxu0 %v4996
          %6809 = vmatpush.msra.mxu0 %v4972
          %6810 = vmatpush.msra.mxu0 %v4948
          %6811 = vmatpush.msra.mxu0 %v4924
          %6812 = vmatpush.msra.mxu0 %v4900
          %6813 = vmatpush.msra.mxu0 %v4876
          %6814 = vmatpush.msra.mxu0 %v4852
          %6815 = vmatmul.f32.gmra.mxu0 %v6052
          %v6816 = vpop.f32.mrf.mxu0
          %v6817 = vadd.f32 %v6797, %v6816
          %6818 = vdwg.mxu0
          %6819 = vmatpush.msra.mxu0 %v5596
          %6820 = vmatpush.msra.mxu0 %v5572
          %6821 = vmatpush.msra.mxu0 %v5548
          %6822 = vmatpush.msra.mxu0 %v5524
          %6823 = vmatpush.msra.mxu0 %v5500
          %6824 = vmatpush.msra.mxu0 %v5476
          %6825 = vmatpush.msra.mxu0 %v5452
          %6826 = vmatpush.msra.mxu0 %v5428
          %6827 = vmatpush.msra.mxu0 %v5404
          %6828 = vmatpush.msra.mxu0 %v5380
          %6829 = vmatpush.msra.mxu0 %v5356
          %6830 = vmatpush.msra.mxu0 %v5332
          %6831 = vmatpush.msra.mxu0 %v5308
          %6832 = vmatpush.msra.mxu0 %v5284
          %6833 = vmatpush.msra.mxu0 %v5260
          %6834 = vmatpush.msra.mxu0 %v5236
          %6835 = vmatmul.f32.gmra.mxu0 %v6053
          %v6836 = vpop.f32.mrf.mxu0
          %v6837 = vadd.f32 %v6817, %v6836
          %6838 = vdwg.mxu0
          %6839 = vmatpush.msra.mxu0 %v5980
          %6840 = vmatpush.msra.mxu0 %v5956
          %6841 = vmatpush.msra.mxu0 %v5932
          %6842 = vmatpush.msra.mxu0 %v5908
          %6843 = vmatpush.msra.mxu0 %v5884
          %6844 = vmatpush.msra.mxu0 %v5860
          %6845 = vmatpush.msra.mxu0 %v5836
          %6846 = vmatpush.msra.mxu0 %v5812
          %6847 = vmatpush.msra.mxu0 %v5788
          %6848 = vmatpush.msra.mxu0 %v5764
          %6849 = vmatpush.msra.mxu0 %v5740
          %6850 = vmatpush.msra.mxu0 %v5716
          %6851 = vmatpush.msra.mxu0 %v5692
          %6852 = vmatpush.msra.mxu0 %v5668
          %6853 = vmatpush.msra.mxu0 %v5644
          %6854 = vmatpush.msra.mxu0 %v5620
          %6855 = vmatmul.f32.gmra.mxu0 %v6054
          %v6856 = vpop.f32.mrf.mxu0
          %v6857 = vadd.f32 %v6837, %v6856
          %6858 = vdwg.mxu0
          %6859 = vmatpush.msra.mxu0 %v4829
          %6860 = vmatpush.msra.mxu0 %v4805
          %6861 = vmatpush.msra.mxu0 %v4781
          %6862 = vmatpush.msra.mxu0 %v4757
          %6863 = vmatpush.msra.mxu0 %v4733
          %6864 = vmatpush.msra.mxu0 %v4709
          %6865 = vmatpush.msra.mxu0 %v4685
          %6866 = vmatpush.msra.mxu0 %v4661
          %6867 = vmatpush.msra.mxu0 %v4637
          %6868 = vmatpush.msra.mxu0 %v4613
          %6869 = vmatpush.msra.mxu0 %v4589
          %6870 = vmatpush.msra.mxu0 %v4565
          %6871 = vmatpush.msra.mxu0 %v4541
          %6872 = vmatpush.msra.mxu0 %v4517
          %6873 = vmatpush.msra.mxu0 %v4493
          %6874 = vmatpush.msra.mxu0 %v4469
          %6875 = vmatmul.f32.gmra.mxu0 %v6051
          %v6876 = vpop.f32.mrf.mxu0
          %v6877 = vadd.f32 %v6011, %v6876
          %6878 = vdwg.mxu0
          %6879 = vmatpush.msra.mxu0 %v5213
          %6880 = vmatpush.msra.mxu0 %v5189
          %6881 = vmatpush.msra.mxu0 %v5165
          %6882 = vmatpush.msra.mxu0 %v5141
          %6883 = vmatpush.msra.mxu0 %v5117
          %6884 = vmatpush.msra.mxu0 %v5093
          %6885 = vmatpush.msra.mxu0 %v5069
          %6886 = vmatpush.msra.mxu0 %v5045
          %6887 = vmatpush.msra.mxu0 %v5021
          %6888 = vmatpush.msra.mxu0 %v4997
          %6889 = vmatpush.msra.mxu0 %v4973
          %6890 = vmatpush.msra.mxu0 %v4949
          %6891 = vmatpush.msra.mxu0 %v4925
          %6892 = vmatpush.msra.mxu0 %v4901
          %6893 = vmatpush.msra.mxu0 %v4877
          %6894 = vmatpush.msra.mxu0 %v4853
          %6895 = vmatmul.f32.gmra.mxu0 %v6052
          %v6896 = vpop.f32.mrf.mxu0
          %v6897 = vadd.f32 %v6877, %v6896
          %6898 = vdwg.mxu0
          %6899 = vmatpush.msra.mxu0 %v5597
          %6900 = vmatpush.msra.mxu0 %v5573
          %6901 = vmatpush.msra.mxu0 %v5549
          %6902 = vmatpush.msra.mxu0 %v5525
          %6903 = vmatpush.msra.mxu0 %v5501
          %6904 = vmatpush.msra.mxu0 %v5477
          %6905 = vmatpush.msra.mxu0 %v5453
          %6906 = vmatpush.msra.mxu0 %v5429
          %6907 = vmatpush.msra.mxu0 %v5405
          %6908 = vmatpush.msra.mxu0 %v5381
          %6909 = vmatpush.msra.mxu0 %v5357
          %6910 = vmatpush.msra.mxu0 %v5333
          %6911 = vmatpush.msra.mxu0 %v5309
          %6912 = vmatpush.msra.mxu0 %v5285
          %6913 = vmatpush.msra.mxu0 %v5261
          %6914 = vmatpush.msra.mxu0 %v5237
          %6915 = vmatmul.f32.gmra.mxu0 %v6053
          %v6916 = vpop.f32.mrf.mxu0
          %v6917 = vadd.f32 %v6897, %v6916
          %6918 = vdwg.mxu0
          %6919 = vmatpush.msra.mxu0 %v5981
          %6920 = vmatpush.msra.mxu0 %v5957
          %6921 = vmatpush.msra.mxu0 %v5933
          %6922 = vmatpush.msra.mxu0 %v5909
          %6923 = vmatpush.msra.mxu0 %v5885
          %6924 = vmatpush.msra.mxu0 %v5861
          %6925 = vmatpush.msra.mxu0 %v5837
          %6926 = vmatpush.msra.mxu0 %v5813
          %6927 = vmatpush.msra.mxu0 %v5789
          %6928 = vmatpush.msra.mxu0 %v5765
          %6929 = vmatpush.msra.mxu0 %v5741
          %6930 = vmatpush.msra.mxu0 %v5717
          %6931 = vmatpush.msra.mxu0 %v5693
          %6932 = vmatpush.msra.mxu0 %v5669
          %6933 = vmatpush.msra.mxu0 %v5645
          %6934 = vmatpush.msra.mxu0 %v5621
          %6935 = vmatmul.f32.gmra.mxu0 %v6054
          %v6936 = vpop.f32.mrf.mxu0
          %v6937 = vadd.f32 %v6917, %v6936
          %6938 = vdwg.mxu0
          %6939 = vmatpush.msra.mxu0 %v4830
          %6940 = vmatpush.msra.mxu0 %v4806
          %6941 = vmatpush.msra.mxu0 %v4782
          %6942 = vmatpush.msra.mxu0 %v4758
          %6943 = vmatpush.msra.mxu0 %v4734
          %6944 = vmatpush.msra.mxu0 %v4710
          %6945 = vmatpush.msra.mxu0 %v4686
          %6946 = vmatpush.msra.mxu0 %v4662
          %6947 = vmatpush.msra.mxu0 %v4638
          %6948 = vmatpush.msra.mxu0 %v4614
          %6949 = vmatpush.msra.mxu0 %v4590
          %6950 = vmatpush.msra.mxu0 %v4566
          %6951 = vmatpush.msra.mxu0 %v4542
          %6952 = vmatpush.msra.mxu0 %v4518
          %6953 = vmatpush.msra.mxu0 %v4494
          %6954 = vmatpush.msra.mxu0 %v4470
          %6955 = vmatmul.f32.gmra.mxu0 %v6051
          %v6956 = vpop.f32.mrf.mxu0
          %v6957 = vadd.f32 %v6012, %v6956
          %6958 = vdwg.mxu0
          %6959 = vmatpush.msra.mxu0 %v5214
          %6960 = vmatpush.msra.mxu0 %v5190
          %6961 = vmatpush.msra.mxu0 %v5166
          %6962 = vmatpush.msra.mxu0 %v5142
          %6963 = vmatpush.msra.mxu0 %v5118
          %6964 = vmatpush.msra.mxu0 %v5094
          %6965 = vmatpush.msra.mxu0 %v5070
          %6966 = vmatpush.msra.mxu0 %v5046
          %6967 = vmatpush.msra.mxu0 %v5022
          %6968 = vmatpush.msra.mxu0 %v4998
          %6969 = vmatpush.msra.mxu0 %v4974
          %6970 = vmatpush.msra.mxu0 %v4950
          %6971 = vmatpush.msra.mxu0 %v4926
          %6972 = vmatpush.msra.mxu0 %v4902
          %6973 = vmatpush.msra.mxu0 %v4878
          %6974 = vmatpush.msra.mxu0 %v4854
          %6975 = vmatmul.f32.gmra.mxu0 %v6052
          %v6976 = vpop.f32.mrf.mxu0
          %v6977 = vadd.f32 %v6957, %v6976
          %6978 = vdwg.mxu0
          %6979 = vmatpush.msra.mxu0 %v5598
          %6980 = vmatpush.msra.mxu0 %v5574
          %6981 = vmatpush.msra.mxu0 %v5550
          %6982 = vmatpush.msra.mxu0 %v5526
          %6983 = vmatpush.msra.mxu0 %v5502
          %6984 = vmatpush.msra.mxu0 %v5478
          %6985 = vmatpush.msra.mxu0 %v5454
          %6986 = vmatpush.msra.mxu0 %v5430
          %6987 = vmatpush.msra.mxu0 %v5406
          %6988 = vmatpush.msra.mxu0 %v5382
          %6989 = vmatpush.msra.mxu0 %v5358
          %6990 = vmatpush.msra.mxu0 %v5334
          %6991 = vmatpush.msra.mxu0 %v5310
          %6992 = vmatpush.msra.mxu0 %v5286
          %6993 = vmatpush.msra.mxu0 %v5262
          %6994 = vmatpush.msra.mxu0 %v5238
          %6995 = vmatmul.f32.gmra.mxu0 %v6053
          %v6996 = vpop.f32.mrf.mxu0
          %v6997 = vadd.f32 %v6977, %v6996
          %6998 = vdwg.mxu0
          %6999 = vmatpush.msra.mxu0 %v5982
          %7000 = vmatpush.msra.mxu0 %v5958
          %7001 = vmatpush.msra.mxu0 %v5934
          %7002 = vmatpush.msra.mxu0 %v5910
          %7003 = vmatpush.msra.mxu0 %v5886
          %7004 = vmatpush.msra.mxu0 %v5862
          %7005 = vmatpush.msra.mxu0 %v5838
          %7006 = vmatpush.msra.mxu0 %v5814
          %7007 = vmatpush.msra.mxu0 %v5790
          %7008 = vmatpush.msra.mxu0 %v5766
          %7009 = vmatpush.msra.mxu0 %v5742
          %7010 = vmatpush.msra.mxu0 %v5718
          %7011 = vmatpush.msra.mxu0 %v5694
          %7012 = vmatpush.msra.mxu0 %v5670
          %7013 = vmatpush.msra.mxu0 %v5646
          %7014 = vmatpush.msra.mxu0 %v5622
          %7015 = vmatmul.f32.gmra.mxu0 %v6054
          %v7016 = vpop.f32.mrf.mxu0
          %v7017 = vadd.f32 %v6997, %v7016
          %7018 = vdwg.mxu0
          %7019 = vmatpush.msra.mxu0 %v4831
          %7020 = vmatpush.msra.mxu0 %v4807
          %7021 = vmatpush.msra.mxu0 %v4783
          %7022 = vmatpush.msra.mxu0 %v4759
          %7023 = vmatpush.msra.mxu0 %v4735
          %7024 = vmatpush.msra.mxu0 %v4711
          %7025 = vmatpush.msra.mxu0 %v4687
          %7026 = vmatpush.msra.mxu0 %v4663
          %7027 = vmatpush.msra.mxu0 %v4639
          %7028 = vmatpush.msra.mxu0 %v4615
          %7029 = vmatpush.msra.mxu0 %v4591
          %7030 = vmatpush.msra.mxu0 %v4567
          %7031 = vmatpush.msra.mxu0 %v4543
          %7032 = vmatpush.msra.mxu0 %v4519
          %7033 = vmatpush.msra.mxu0 %v4495
          %7034 = vmatpush.msra.mxu0 %v4471
          %7035 = vmatmul.f32.gmra.mxu0 %v6051
          %v7036 = vpop.f32.mrf.mxu0
          %v7037 = vadd.f32 %v6013, %v7036
          %7038 = vdwg.mxu0
          %7039 = vmatpush.msra.mxu0 %v5215
          %7040 = vmatpush.msra.mxu0 %v5191
          %7041 = vmatpush.msra.mxu0 %v5167
          %7042 = vmatpush.msra.mxu0 %v5143
          %7043 = vmatpush.msra.mxu0 %v5119
          %7044 = vmatpush.msra.mxu0 %v5095
          %7045 = vmatpush.msra.mxu0 %v5071
          %7046 = vmatpush.msra.mxu0 %v5047
          %7047 = vmatpush.msra.mxu0 %v5023
          %7048 = vmatpush.msra.mxu0 %v4999
          %7049 = vmatpush.msra.mxu0 %v4975
          %7050 = vmatpush.msra.mxu0 %v4951
          %7051 = vmatpush.msra.mxu0 %v4927
          %7052 = vmatpush.msra.mxu0 %v4903
          %7053 = vmatpush.msra.mxu0 %v4879
          %7054 = vmatpush.msra.mxu0 %v4855
          %7055 = vmatmul.f32.gmra.mxu0 %v6052
          %v7056 = vpop.f32.mrf.mxu0
          %v7057 = vadd.f32 %v7037, %v7056
          %7058 = vdwg.mxu0
          %7059 = vmatpush.msra.mxu0 %v5599
          %7060 = vmatpush.msra.mxu0 %v5575
          %7061 = vmatpush.msra.mxu0 %v5551
          %7062 = vmatpush.msra.mxu0 %v5527
          %7063 = vmatpush.msra.mxu0 %v5503
          %7064 = vmatpush.msra.mxu0 %v5479
          %7065 = vmatpush.msra.mxu0 %v5455
          %7066 = vmatpush.msra.mxu0 %v5431
          %7067 = vmatpush.msra.mxu0 %v5407
          %7068 = vmatpush.msra.mxu0 %v5383
          %7069 = vmatpush.msra.mxu0 %v5359
          %7070 = vmatpush.msra.mxu0 %v5335
          %7071 = vmatpush.msra.mxu0 %v5311
          %7072 = vmatpush.msra.mxu0 %v5287
          %7073 = vmatpush.msra.mxu0 %v5263
          %7074 = vmatpush.msra.mxu0 %v5239
          %7075 = vmatmul.f32.gmra.mxu0 %v6053
          %v7076 = vpop.f32.mrf.mxu0
          %v7077 = vadd.f32 %v7057, %v7076
          %7078 = vdwg.mxu0
          %7079 = vmatpush.msra.mxu0 %v5983
          %7080 = vmatpush.msra.mxu0 %v5959
          %7081 = vmatpush.msra.mxu0 %v5935
          %7082 = vmatpush.msra.mxu0 %v5911
          %7083 = vmatpush.msra.mxu0 %v5887
          %7084 = vmatpush.msra.mxu0 %v5863
          %7085 = vmatpush.msra.mxu0 %v5839
          %7086 = vmatpush.msra.mxu0 %v5815
          %7087 = vmatpush.msra.mxu0 %v5791
          %7088 = vmatpush.msra.mxu0 %v5767
          %7089 = vmatpush.msra.mxu0 %v5743
          %7090 = vmatpush.msra.mxu0 %v5719
          %7091 = vmatpush.msra.mxu0 %v5695
          %7092 = vmatpush.msra.mxu0 %v5671
          %7093 = vmatpush.msra.mxu0 %v5647
          %7094 = vmatpush.msra.mxu0 %v5623
          %7095 = vmatmul.f32.gmra.mxu0 %v6054
          %v7096 = vpop.f32.mrf.mxu0
          %v7097 = vadd.f32 %v7077, %v7096
          %7098 = vdwg.mxu0
          %7099 = vmatpush.msra.mxu0 %v4832
          %7100 = vmatpush.msra.mxu0 %v4808
          %7101 = vmatpush.msra.mxu0 %v4784
          %7102 = vmatpush.msra.mxu0 %v4760
          %7103 = vmatpush.msra.mxu0 %v4736
          %7104 = vmatpush.msra.mxu0 %v4712
          %7105 = vmatpush.msra.mxu0 %v4688
          %7106 = vmatpush.msra.mxu0 %v4664
          %7107 = vmatpush.msra.mxu0 %v4640
          %7108 = vmatpush.msra.mxu0 %v4616
          %7109 = vmatpush.msra.mxu0 %v4592
          %7110 = vmatpush.msra.mxu0 %v4568
          %7111 = vmatpush.msra.mxu0 %v4544
          %7112 = vmatpush.msra.mxu0 %v4520
          %7113 = vmatpush.msra.mxu0 %v4496
          %7114 = vmatpush.msra.mxu0 %v4472
          %7115 = vmatmul.f32.gmra.mxu0 %v6051
          %v7116 = vpop.f32.mrf.mxu0
          %v7117 = vadd.f32 %v6014, %v7116
          %7118 = vdwg.mxu0
          %7119 = vmatpush.msra.mxu0 %v5216
          %7120 = vmatpush.msra.mxu0 %v5192
          %7121 = vmatpush.msra.mxu0 %v5168
          %7122 = vmatpush.msra.mxu0 %v5144
          %7123 = vmatpush.msra.mxu0 %v5120
          %7124 = vmatpush.msra.mxu0 %v5096
          %7125 = vmatpush.msra.mxu0 %v5072
          %7126 = vmatpush.msra.mxu0 %v5048
          %7127 = vmatpush.msra.mxu0 %v5024
          %7128 = vmatpush.msra.mxu0 %v5000
          %7129 = vmatpush.msra.mxu0 %v4976
          %7130 = vmatpush.msra.mxu0 %v4952
          %7131 = vmatpush.msra.mxu0 %v4928
          %7132 = vmatpush.msra.mxu0 %v4904
          %7133 = vmatpush.msra.mxu0 %v4880
          %7134 = vmatpush.msra.mxu0 %v4856
          %7135 = vmatmul.f32.gmra.mxu0 %v6052
          %v7136 = vpop.f32.mrf.mxu0
          %v7137 = vadd.f32 %v7117, %v7136
          %7138 = vdwg.mxu0
          %7139 = vmatpush.msra.mxu0 %v5600
          %7140 = vmatpush.msra.mxu0 %v5576
          %7141 = vmatpush.msra.mxu0 %v5552
          %7142 = vmatpush.msra.mxu0 %v5528
          %7143 = vmatpush.msra.mxu0 %v5504
          %7144 = vmatpush.msra.mxu0 %v5480
          %7145 = vmatpush.msra.mxu0 %v5456
          %7146 = vmatpush.msra.mxu0 %v5432
          %7147 = vmatpush.msra.mxu0 %v5408
          %7148 = vmatpush.msra.mxu0 %v5384
          %7149 = vmatpush.msra.mxu0 %v5360
          %7150 = vmatpush.msra.mxu0 %v5336
          %7151 = vmatpush.msra.mxu0 %v5312
          %7152 = vmatpush.msra.mxu0 %v5288
          %7153 = vmatpush.msra.mxu0 %v5264
          %7154 = vmatpush.msra.mxu0 %v5240
          %7155 = vmatmul.f32.gmra.mxu0 %v6053
          %v7156 = vpop.f32.mrf.mxu0
          %v7157 = vadd.f32 %v7137, %v7156
          %7158 = vdwg.mxu0
          %7159 = vmatpush.msra.mxu0 %v5984
          %7160 = vmatpush.msra.mxu0 %v5960
          %7161 = vmatpush.msra.mxu0 %v5936
          %7162 = vmatpush.msra.mxu0 %v5912
          %7163 = vmatpush.msra.mxu0 %v5888
          %7164 = vmatpush.msra.mxu0 %v5864
          %7165 = vmatpush.msra.mxu0 %v5840
          %7166 = vmatpush.msra.mxu0 %v5816
          %7167 = vmatpush.msra.mxu0 %v5792
          %7168 = vmatpush.msra.mxu0 %v5768
          %7169 = vmatpush.msra.mxu0 %v5744
          %7170 = vmatpush.msra.mxu0 %v5720
          %7171 = vmatpush.msra.mxu0 %v5696
          %7172 = vmatpush.msra.mxu0 %v5672
          %7173 = vmatpush.msra.mxu0 %v5648
          %7174 = vmatpush.msra.mxu0 %v5624
          %7175 = vmatmul.f32.gmra.mxu0 %v6054
          %v7176 = vpop.f32.mrf.mxu0
          %v7177 = vadd.f32 %v7157, %v7176
          %7178 = vdwg.mxu0
          %7179 = vmatpush.msra.mxu0 %v4833
          %7180 = vmatpush.msra.mxu0 %v4809
          %7181 = vmatpush.msra.mxu0 %v4785
          %7182 = vmatpush.msra.mxu0 %v4761
          %7183 = vmatpush.msra.mxu0 %v4737
          %7184 = vmatpush.msra.mxu0 %v4713
          %7185 = vmatpush.msra.mxu0 %v4689
          %7186 = vmatpush.msra.mxu0 %v4665
          %7187 = vmatpush.msra.mxu0 %v4641
          %7188 = vmatpush.msra.mxu0 %v4617
          %7189 = vmatpush.msra.mxu0 %v4593
          %7190 = vmatpush.msra.mxu0 %v4569
          %7191 = vmatpush.msra.mxu0 %v4545
          %7192 = vmatpush.msra.mxu0 %v4521
          %7193 = vmatpush.msra.mxu0 %v4497
          %7194 = vmatpush.msra.mxu0 %v4473
          %7195 = vmatmul.f32.gmra.mxu0 %v6051
          %v7196 = vpop.f32.mrf.mxu0
          %v7197 = vadd.f32 %v6015, %v7196
          %7198 = vdwg.mxu0
          %7199 = vmatpush.msra.mxu0 %v5217
          %7200 = vmatpush.msra.mxu0 %v5193
          %7201 = vmatpush.msra.mxu0 %v5169
          %7202 = vmatpush.msra.mxu0 %v5145
          %7203 = vmatpush.msra.mxu0 %v5121
          %7204 = vmatpush.msra.mxu0 %v5097
          %7205 = vmatpush.msra.mxu0 %v5073
          %7206 = vmatpush.msra.mxu0 %v5049
          %7207 = vmatpush.msra.mxu0 %v5025
          %7208 = vmatpush.msra.mxu0 %v5001
          %7209 = vmatpush.msra.mxu0 %v4977
          %7210 = vmatpush.msra.mxu0 %v4953
          %7211 = vmatpush.msra.mxu0 %v4929
          %7212 = vmatpush.msra.mxu0 %v4905
          %7213 = vmatpush.msra.mxu0 %v4881
          %7214 = vmatpush.msra.mxu0 %v4857
          %7215 = vmatmul.f32.gmra.mxu0 %v6052
          %v7216 = vpop.f32.mrf.mxu0
          %v7217 = vadd.f32 %v7197, %v7216
          %7218 = vdwg.mxu0
          %7219 = vmatpush.msra.mxu0 %v5601
          %7220 = vmatpush.msra.mxu0 %v5577
          %7221 = vmatpush.msra.mxu0 %v5553
          %7222 = vmatpush.msra.mxu0 %v5529
          %7223 = vmatpush.msra.mxu0 %v5505
          %7224 = vmatpush.msra.mxu0 %v5481
          %7225 = vmatpush.msra.mxu0 %v5457
          %7226 = vmatpush.msra.mxu0 %v5433
          %7227 = vmatpush.msra.mxu0 %v5409
          %7228 = vmatpush.msra.mxu0 %v5385
          %7229 = vmatpush.msra.mxu0 %v5361
          %7230 = vmatpush.msra.mxu0 %v5337
          %7231 = vmatpush.msra.mxu0 %v5313
          %7232 = vmatpush.msra.mxu0 %v5289
          %7233 = vmatpush.msra.mxu0 %v5265
          %7234 = vmatpush.msra.mxu0 %v5241
          %7235 = vmatmul.f32.gmra.mxu0 %v6053
          %v7236 = vpop.f32.mrf.mxu0
          %v7237 = vadd.f32 %v7217, %v7236
          %7238 = vdwg.mxu0
          %7239 = vmatpush.msra.mxu0 %v5985
          %7240 = vmatpush.msra.mxu0 %v5961
          %7241 = vmatpush.msra.mxu0 %v5937
          %7242 = vmatpush.msra.mxu0 %v5913
          %7243 = vmatpush.msra.mxu0 %v5889
          %7244 = vmatpush.msra.mxu0 %v5865
          %7245 = vmatpush.msra.mxu0 %v5841
          %7246 = vmatpush.msra.mxu0 %v5817
          %7247 = vmatpush.msra.mxu0 %v5793
          %7248 = vmatpush.msra.mxu0 %v5769
          %7249 = vmatpush.msra.mxu0 %v5745
          %7250 = vmatpush.msra.mxu0 %v5721
          %7251 = vmatpush.msra.mxu0 %v5697
          %7252 = vmatpush.msra.mxu0 %v5673
          %7253 = vmatpush.msra.mxu0 %v5649
          %7254 = vmatpush.msra.mxu0 %v5625
          %7255 = vmatmul.f32.gmra.mxu0 %v6054
          %v7256 = vpop.f32.mrf.mxu0
          %v7257 = vadd.f32 %v7237, %v7256
          %7258 = vdwg.mxu0
          %7259 = vmatpush.msra.mxu0 %v4834
          %7260 = vmatpush.msra.mxu0 %v4810
          %7261 = vmatpush.msra.mxu0 %v4786
          %7262 = vmatpush.msra.mxu0 %v4762
          %7263 = vmatpush.msra.mxu0 %v4738
          %7264 = vmatpush.msra.mxu0 %v4714
          %7265 = vmatpush.msra.mxu0 %v4690
          %7266 = vmatpush.msra.mxu0 %v4666
          %7267 = vmatpush.msra.mxu0 %v4642
          %7268 = vmatpush.msra.mxu0 %v4618
          %7269 = vmatpush.msra.mxu0 %v4594
          %7270 = vmatpush.msra.mxu0 %v4570
          %7271 = vmatpush.msra.mxu0 %v4546
          %7272 = vmatpush.msra.mxu0 %v4522
          %7273 = vmatpush.msra.mxu0 %v4498
          %7274 = vmatpush.msra.mxu0 %v4474
          %7275 = vmatmul.f32.gmra.mxu0 %v6051
          %v7276 = vpop.f32.mrf.mxu0
          %v7277 = vadd.f32 %v6016, %v7276
          %7278 = vdwg.mxu0
          %7279 = vmatpush.msra.mxu0 %v5218
          %7280 = vmatpush.msra.mxu0 %v5194
          %7281 = vmatpush.msra.mxu0 %v5170
          %7282 = vmatpush.msra.mxu0 %v5146
          %7283 = vmatpush.msra.mxu0 %v5122
          %7284 = vmatpush.msra.mxu0 %v5098
          %7285 = vmatpush.msra.mxu0 %v5074
          %7286 = vmatpush.msra.mxu0 %v5050
          %7287 = vmatpush.msra.mxu0 %v5026
          %7288 = vmatpush.msra.mxu0 %v5002
          %7289 = vmatpush.msra.mxu0 %v4978
          %7290 = vmatpush.msra.mxu0 %v4954
          %7291 = vmatpush.msra.mxu0 %v4930
          %7292 = vmatpush.msra.mxu0 %v4906
          %7293 = vmatpush.msra.mxu0 %v4882
          %7294 = vmatpush.msra.mxu0 %v4858
          %7295 = vmatmul.f32.gmra.mxu0 %v6052
          %v7296 = vpop.f32.mrf.mxu0
          %v7297 = vadd.f32 %v7277, %v7296
          %7298 = vdwg.mxu0
          %7299 = vmatpush.msra.mxu0 %v5602
          %7300 = vmatpush.msra.mxu0 %v5578
          %7301 = vmatpush.msra.mxu0 %v5554
          %7302 = vmatpush.msra.mxu0 %v5530
          %7303 = vmatpush.msra.mxu0 %v5506
          %7304 = vmatpush.msra.mxu0 %v5482
          %7305 = vmatpush.msra.mxu0 %v5458
          %7306 = vmatpush.msra.mxu0 %v5434
          %7307 = vmatpush.msra.mxu0 %v5410
          %7308 = vmatpush.msra.mxu0 %v5386
          %7309 = vmatpush.msra.mxu0 %v5362
          %7310 = vmatpush.msra.mxu0 %v5338
          %7311 = vmatpush.msra.mxu0 %v5314
          %7312 = vmatpush.msra.mxu0 %v5290
          %7313 = vmatpush.msra.mxu0 %v5266
          %7314 = vmatpush.msra.mxu0 %v5242
          %7315 = vmatmul.f32.gmra.mxu0 %v6053
          %v7316 = vpop.f32.mrf.mxu0
          %v7317 = vadd.f32 %v7297, %v7316
          %7318 = vdwg.mxu0
          %7319 = vmatpush.msra.mxu0 %v5986
          %7320 = vmatpush.msra.mxu0 %v5962
          %7321 = vmatpush.msra.mxu0 %v5938
          %7322 = vmatpush.msra.mxu0 %v5914
          %7323 = vmatpush.msra.mxu0 %v5890
          %7324 = vmatpush.msra.mxu0 %v5866
          %7325 = vmatpush.msra.mxu0 %v5842
          %7326 = vmatpush.msra.mxu0 %v5818
          %7327 = vmatpush.msra.mxu0 %v5794
          %7328 = vmatpush.msra.mxu0 %v5770
          %7329 = vmatpush.msra.mxu0 %v5746
          %7330 = vmatpush.msra.mxu0 %v5722
          %7331 = vmatpush.msra.mxu0 %v5698
          %7332 = vmatpush.msra.mxu0 %v5674
          %7333 = vmatpush.msra.mxu0 %v5650
          %7334 = vmatpush.msra.mxu0 %v5626
          %7335 = vmatmul.f32.gmra.mxu0 %v6054
          %v7336 = vpop.f32.mrf.mxu0
          %v7337 = vadd.f32 %v7317, %v7336
          %7338 = vdwg.mxu0
          %7339 = vmatpush.msra.mxu0 %v4835
          %7340 = vmatpush.msra.mxu0 %v4811
          %7341 = vmatpush.msra.mxu0 %v4787
          %7342 = vmatpush.msra.mxu0 %v4763
          %7343 = vmatpush.msra.mxu0 %v4739
          %7344 = vmatpush.msra.mxu0 %v4715
          %7345 = vmatpush.msra.mxu0 %v4691
          %7346 = vmatpush.msra.mxu0 %v4667
          %7347 = vmatpush.msra.mxu0 %v4643
          %7348 = vmatpush.msra.mxu0 %v4619
          %7349 = vmatpush.msra.mxu0 %v4595
          %7350 = vmatpush.msra.mxu0 %v4571
          %7351 = vmatpush.msra.mxu0 %v4547
          %7352 = vmatpush.msra.mxu0 %v4523
          %7353 = vmatpush.msra.mxu0 %v4499
          %7354 = vmatpush.msra.mxu0 %v4475
          %7355 = vmatmul.f32.gmra.mxu0 %v6051
          %v7356 = vpop.f32.mrf.mxu0
          %v7357 = vadd.f32 %v6017, %v7356
          %7358 = vdwg.mxu0
          %7359 = vmatpush.msra.mxu0 %v5219
          %7360 = vmatpush.msra.mxu0 %v5195
          %7361 = vmatpush.msra.mxu0 %v5171
          %7362 = vmatpush.msra.mxu0 %v5147
          %7363 = vmatpush.msra.mxu0 %v5123
          %7364 = vmatpush.msra.mxu0 %v5099
          %7365 = vmatpush.msra.mxu0 %v5075
          %7366 = vmatpush.msra.mxu0 %v5051
          %7367 = vmatpush.msra.mxu0 %v5027
          %7368 = vmatpush.msra.mxu0 %v5003
          %7369 = vmatpush.msra.mxu0 %v4979
          %7370 = vmatpush.msra.mxu0 %v4955
          %7371 = vmatpush.msra.mxu0 %v4931
          %7372 = vmatpush.msra.mxu0 %v4907
          %7373 = vmatpush.msra.mxu0 %v4883
          %7374 = vmatpush.msra.mxu0 %v4859
          %7375 = vmatmul.f32.gmra.mxu0 %v6052
          %v7376 = vpop.f32.mrf.mxu0
          %v7377 = vadd.f32 %v7357, %v7376
          %7378 = vdwg.mxu0
          %7379 = vmatpush.msra.mxu0 %v5603
          %7380 = vmatpush.msra.mxu0 %v5579
          %7381 = vmatpush.msra.mxu0 %v5555
          %7382 = vmatpush.msra.mxu0 %v5531
          %7383 = vmatpush.msra.mxu0 %v5507
          %7384 = vmatpush.msra.mxu0 %v5483
          %7385 = vmatpush.msra.mxu0 %v5459
          %7386 = vmatpush.msra.mxu0 %v5435
          %7387 = vmatpush.msra.mxu0 %v5411
          %7388 = vmatpush.msra.mxu0 %v5387
          %7389 = vmatpush.msra.mxu0 %v5363
          %7390 = vmatpush.msra.mxu0 %v5339
          %7391 = vmatpush.msra.mxu0 %v5315
          %7392 = vmatpush.msra.mxu0 %v5291
          %7393 = vmatpush.msra.mxu0 %v5267
          %7394 = vmatpush.msra.mxu0 %v5243
          %7395 = vmatmul.f32.gmra.mxu0 %v6053
          %v7396 = vpop.f32.mrf.mxu0
          %v7397 = vadd.f32 %v7377, %v7396
          %7398 = vdwg.mxu0
          %7399 = vmatpush.msra.mxu0 %v5987
          %7400 = vmatpush.msra.mxu0 %v5963
          %7401 = vmatpush.msra.mxu0 %v5939
          %7402 = vmatpush.msra.mxu0 %v5915
          %7403 = vmatpush.msra.mxu0 %v5891
          %7404 = vmatpush.msra.mxu0 %v5867
          %7405 = vmatpush.msra.mxu0 %v5843
          %7406 = vmatpush.msra.mxu0 %v5819
          %7407 = vmatpush.msra.mxu0 %v5795
          %7408 = vmatpush.msra.mxu0 %v5771
          %7409 = vmatpush.msra.mxu0 %v5747
          %7410 = vmatpush.msra.mxu0 %v5723
          %7411 = vmatpush.msra.mxu0 %v5699
          %7412 = vmatpush.msra.mxu0 %v5675
          %7413 = vmatpush.msra.mxu0 %v5651
          %7414 = vmatpush.msra.mxu0 %v5627
          %7415 = vmatmul.f32.gmra.mxu0 %v6054
          %v7416 = vpop.f32.mrf.mxu0
          %v7417 = vadd.f32 %v7397, %v7416
          %7418 = vdwg.mxu0
          %7419 = vmatpush.msra.mxu0 %v4836
          %7420 = vmatpush.msra.mxu0 %v4812
          %7421 = vmatpush.msra.mxu0 %v4788
          %7422 = vmatpush.msra.mxu0 %v4764
          %7423 = vmatpush.msra.mxu0 %v4740
          %7424 = vmatpush.msra.mxu0 %v4716
          %7425 = vmatpush.msra.mxu0 %v4692
          %7426 = vmatpush.msra.mxu0 %v4668
          %7427 = vmatpush.msra.mxu0 %v4644
          %7428 = vmatpush.msra.mxu0 %v4620
          %7429 = vmatpush.msra.mxu0 %v4596
          %7430 = vmatpush.msra.mxu0 %v4572
          %7431 = vmatpush.msra.mxu0 %v4548
          %7432 = vmatpush.msra.mxu0 %v4524
          %7433 = vmatpush.msra.mxu0 %v4500
          %7434 = vmatpush.msra.mxu0 %v4476
          %7435 = vmatmul.f32.gmra.mxu0 %v6051
          %v7436 = vpop.f32.mrf.mxu0
          %v7437 = vadd.f32 %v6018, %v7436
          %7438 = vdwg.mxu0
          %7439 = vmatpush.msra.mxu0 %v5220
          %7440 = vmatpush.msra.mxu0 %v5196
          %7441 = vmatpush.msra.mxu0 %v5172
          %7442 = vmatpush.msra.mxu0 %v5148
          %7443 = vmatpush.msra.mxu0 %v5124
          %7444 = vmatpush.msra.mxu0 %v5100
          %7445 = vmatpush.msra.mxu0 %v5076
          %7446 = vmatpush.msra.mxu0 %v5052
          %7447 = vmatpush.msra.mxu0 %v5028
          %7448 = vmatpush.msra.mxu0 %v5004
          %7449 = vmatpush.msra.mxu0 %v4980
          %7450 = vmatpush.msra.mxu0 %v4956
          %7451 = vmatpush.msra.mxu0 %v4932
          %7452 = vmatpush.msra.mxu0 %v4908
          %7453 = vmatpush.msra.mxu0 %v4884
          %7454 = vmatpush.msra.mxu0 %v4860
          %7455 = vmatmul.f32.gmra.mxu0 %v6052
          %v7456 = vpop.f32.mrf.mxu0
          %v7457 = vadd.f32 %v7437, %v7456
          %7458 = vdwg.mxu0
          %7459 = vmatpush.msra.mxu0 %v5604
          %7460 = vmatpush.msra.mxu0 %v5580
          %7461 = vmatpush.msra.mxu0 %v5556
          %7462 = vmatpush.msra.mxu0 %v5532
          %7463 = vmatpush.msra.mxu0 %v5508
          %7464 = vmatpush.msra.mxu0 %v5484
          %7465 = vmatpush.msra.mxu0 %v5460
          %7466 = vmatpush.msra.mxu0 %v5436
          %7467 = vmatpush.msra.mxu0 %v5412
          %7468 = vmatpush.msra.mxu0 %v5388
          %7469 = vmatpush.msra.mxu0 %v5364
          %7470 = vmatpush.msra.mxu0 %v5340
          %7471 = vmatpush.msra.mxu0 %v5316
          %7472 = vmatpush.msra.mxu0 %v5292
          %7473 = vmatpush.msra.mxu0 %v5268
          %7474 = vmatpush.msra.mxu0 %v5244
          %7475 = vmatmul.f32.gmra.mxu0 %v6053
          %v7476 = vpop.f32.mrf.mxu0
          %v7477 = vadd.f32 %v7457, %v7476
          %7478 = vdwg.mxu0
          %7479 = vmatpush.msra.mxu0 %v5988
          %7480 = vmatpush.msra.mxu0 %v5964
          %7481 = vmatpush.msra.mxu0 %v5940
          %7482 = vmatpush.msra.mxu0 %v5916
          %7483 = vmatpush.msra.mxu0 %v5892
          %7484 = vmatpush.msra.mxu0 %v5868
          %7485 = vmatpush.msra.mxu0 %v5844
          %7486 = vmatpush.msra.mxu0 %v5820
          %7487 = vmatpush.msra.mxu0 %v5796
          %7488 = vmatpush.msra.mxu0 %v5772
          %7489 = vmatpush.msra.mxu0 %v5748
          %7490 = vmatpush.msra.mxu0 %v5724
          %7491 = vmatpush.msra.mxu0 %v5700
          %7492 = vmatpush.msra.mxu0 %v5676
          %7493 = vmatpush.msra.mxu0 %v5652
          %7494 = vmatpush.msra.mxu0 %v5628
          %7495 = vmatmul.f32.gmra.mxu0 %v6054
          %v7496 = vpop.f32.mrf.mxu0
          %v7497 = vadd.f32 %v7477, %v7496
          %7498 = vdwg.mxu0
          %7499 = vmatpush.msra.mxu0 %v4837
          %7500 = vmatpush.msra.mxu0 %v4813
          %7501 = vmatpush.msra.mxu0 %v4789
          %7502 = vmatpush.msra.mxu0 %v4765
          %7503 = vmatpush.msra.mxu0 %v4741
          %7504 = vmatpush.msra.mxu0 %v4717
          %7505 = vmatpush.msra.mxu0 %v4693
          %7506 = vmatpush.msra.mxu0 %v4669
          %7507 = vmatpush.msra.mxu0 %v4645
          %7508 = vmatpush.msra.mxu0 %v4621
          %7509 = vmatpush.msra.mxu0 %v4597
          %7510 = vmatpush.msra.mxu0 %v4573
          %7511 = vmatpush.msra.mxu0 %v4549
          %7512 = vmatpush.msra.mxu0 %v4525
          %7513 = vmatpush.msra.mxu0 %v4501
          %7514 = vmatpush.msra.mxu0 %v4477
          %7515 = vmatmul.f32.gmra.mxu0 %v6051
          %v7516 = vpop.f32.mrf.mxu0
          %v7517 = vadd.f32 %v6019, %v7516
          %7518 = vdwg.mxu0
          %7519 = vmatpush.msra.mxu0 %v5221
          %7520 = vmatpush.msra.mxu0 %v5197
          %7521 = vmatpush.msra.mxu0 %v5173
          %7522 = vmatpush.msra.mxu0 %v5149
          %7523 = vmatpush.msra.mxu0 %v5125
          %7524 = vmatpush.msra.mxu0 %v5101
          %7525 = vmatpush.msra.mxu0 %v5077
          %7526 = vmatpush.msra.mxu0 %v5053
          %7527 = vmatpush.msra.mxu0 %v5029
          %7528 = vmatpush.msra.mxu0 %v5005
          %7529 = vmatpush.msra.mxu0 %v4981
          %7530 = vmatpush.msra.mxu0 %v4957
          %7531 = vmatpush.msra.mxu0 %v4933
          %7532 = vmatpush.msra.mxu0 %v4909
          %7533 = vmatpush.msra.mxu0 %v4885
          %7534 = vmatpush.msra.mxu0 %v4861
          %7535 = vmatmul.f32.gmra.mxu0 %v6052
          %v7536 = vpop.f32.mrf.mxu0
          %v7537 = vadd.f32 %v7517, %v7536
          %7538 = vdwg.mxu0
          %7539 = vmatpush.msra.mxu0 %v5605
          %7540 = vmatpush.msra.mxu0 %v5581
          %7541 = vmatpush.msra.mxu0 %v5557
          %7542 = vmatpush.msra.mxu0 %v5533
          %7543 = vmatpush.msra.mxu0 %v5509
          %7544 = vmatpush.msra.mxu0 %v5485
          %7545 = vmatpush.msra.mxu0 %v5461
          %7546 = vmatpush.msra.mxu0 %v5437
          %7547 = vmatpush.msra.mxu0 %v5413
          %7548 = vmatpush.msra.mxu0 %v5389
          %7549 = vmatpush.msra.mxu0 %v5365
          %7550 = vmatpush.msra.mxu0 %v5341
          %7551 = vmatpush.msra.mxu0 %v5317
          %7552 = vmatpush.msra.mxu0 %v5293
          %7553 = vmatpush.msra.mxu0 %v5269
          %7554 = vmatpush.msra.mxu0 %v5245
          %7555 = vmatmul.f32.gmra.mxu0 %v6053
          %v7556 = vpop.f32.mrf.mxu0
          %v7557 = vadd.f32 %v7537, %v7556
          %7558 = vdwg.mxu0
          %7559 = vmatpush.msra.mxu0 %v5989
          %7560 = vmatpush.msra.mxu0 %v5965
          %7561 = vmatpush.msra.mxu0 %v5941
          %7562 = vmatpush.msra.mxu0 %v5917
          %7563 = vmatpush.msra.mxu0 %v5893
          %7564 = vmatpush.msra.mxu0 %v5869
          %7565 = vmatpush.msra.mxu0 %v5845
          %7566 = vmatpush.msra.mxu0 %v5821
          %7567 = vmatpush.msra.mxu0 %v5797
          %7568 = vmatpush.msra.mxu0 %v5773
          %7569 = vmatpush.msra.mxu0 %v5749
          %7570 = vmatpush.msra.mxu0 %v5725
          %7571 = vmatpush.msra.mxu0 %v5701
          %7572 = vmatpush.msra.mxu0 %v5677
          %7573 = vmatpush.msra.mxu0 %v5653
          %7574 = vmatpush.msra.mxu0 %v5629
          %7575 = vmatmul.f32.gmra.mxu0 %v6054
          %v7576 = vpop.f32.mrf.mxu0
          %v7577 = vadd.f32 %v7557, %v7576
          %7578 = vdwg.mxu0
          %7579 = vmatpush.msra.mxu0 %v4838
          %7580 = vmatpush.msra.mxu0 %v4814
          %7581 = vmatpush.msra.mxu0 %v4790
          %7582 = vmatpush.msra.mxu0 %v4766
          %7583 = vmatpush.msra.mxu0 %v4742
          %7584 = vmatpush.msra.mxu0 %v4718
          %7585 = vmatpush.msra.mxu0 %v4694
          %7586 = vmatpush.msra.mxu0 %v4670
          %7587 = vmatpush.msra.mxu0 %v4646
          %7588 = vmatpush.msra.mxu0 %v4622
          %7589 = vmatpush.msra.mxu0 %v4598
          %7590 = vmatpush.msra.mxu0 %v4574
          %7591 = vmatpush.msra.mxu0 %v4550
          %7592 = vmatpush.msra.mxu0 %v4526
          %7593 = vmatpush.msra.mxu0 %v4502
          %7594 = vmatpush.msra.mxu0 %v4478
          %7595 = vmatmul.f32.gmra.mxu0 %v6051
          %v7596 = vpop.f32.mrf.mxu0
          %v7597 = vadd.f32 %v6020, %v7596
          %7598 = vdwg.mxu0
          %7599 = vmatpush.msra.mxu0 %v5222
          %7600 = vmatpush.msra.mxu0 %v5198
          %7601 = vmatpush.msra.mxu0 %v5174
          %7602 = vmatpush.msra.mxu0 %v5150
          %7603 = vmatpush.msra.mxu0 %v5126
          %7604 = vmatpush.msra.mxu0 %v5102
          %7605 = vmatpush.msra.mxu0 %v5078
          %7606 = vmatpush.msra.mxu0 %v5054
          %7607 = vmatpush.msra.mxu0 %v5030
          %7608 = vmatpush.msra.mxu0 %v5006
          %7609 = vmatpush.msra.mxu0 %v4982
          %7610 = vmatpush.msra.mxu0 %v4958
          %7611 = vmatpush.msra.mxu0 %v4934
          %7612 = vmatpush.msra.mxu0 %v4910
          %7613 = vmatpush.msra.mxu0 %v4886
          %7614 = vmatpush.msra.mxu0 %v4862
          %7615 = vmatmul.f32.gmra.mxu0 %v6052
          %v7616 = vpop.f32.mrf.mxu0
          %v7617 = vadd.f32 %v7597, %v7616
          %7618 = vdwg.mxu0
          %7619 = vmatpush.msra.mxu0 %v5606
          %7620 = vmatpush.msra.mxu0 %v5582
          %7621 = vmatpush.msra.mxu0 %v5558
          %7622 = vmatpush.msra.mxu0 %v5534
          %7623 = vmatpush.msra.mxu0 %v5510
          %7624 = vmatpush.msra.mxu0 %v5486
          %7625 = vmatpush.msra.mxu0 %v5462
          %7626 = vmatpush.msra.mxu0 %v5438
          %7627 = vmatpush.msra.mxu0 %v5414
          %7628 = vmatpush.msra.mxu0 %v5390
          %7629 = vmatpush.msra.mxu0 %v5366
          %7630 = vmatpush.msra.mxu0 %v5342
          %7631 = vmatpush.msra.mxu0 %v5318
          %7632 = vmatpush.msra.mxu0 %v5294
          %7633 = vmatpush.msra.mxu0 %v5270
          %7634 = vmatpush.msra.mxu0 %v5246
          %7635 = vmatmul.f32.gmra.mxu0 %v6053
          %v7636 = vpop.f32.mrf.mxu0
          %v7637 = vadd.f32 %v7617, %v7636
          %7638 = vdwg.mxu0
          %7639 = vmatpush.msra.mxu0 %v5990
          %7640 = vmatpush.msra.mxu0 %v5966
          %7641 = vmatpush.msra.mxu0 %v5942
          %7642 = vmatpush.msra.mxu0 %v5918
          %7643 = vmatpush.msra.mxu0 %v5894
          %7644 = vmatpush.msra.mxu0 %v5870
          %7645 = vmatpush.msra.mxu0 %v5846
          %7646 = vmatpush.msra.mxu0 %v5822
          %7647 = vmatpush.msra.mxu0 %v5798
          %7648 = vmatpush.msra.mxu0 %v5774
          %7649 = vmatpush.msra.mxu0 %v5750
          %7650 = vmatpush.msra.mxu0 %v5726
          %7651 = vmatpush.msra.mxu0 %v5702
          %7652 = vmatpush.msra.mxu0 %v5678
          %7653 = vmatpush.msra.mxu0 %v5654
          %7654 = vmatpush.msra.mxu0 %v5630
          %7655 = vmatmul.f32.gmra.mxu0 %v6054
          %v7656 = vpop.f32.mrf.mxu0
          %v7657 = vadd.f32 %v7637, %v7656
          %7658 = vdwg.mxu0
          %7659 = vmatpush.msra.mxu0 %v4839
          %7660 = vmatpush.msra.mxu0 %v4815
          %7661 = vmatpush.msra.mxu0 %v4791
          %7662 = vmatpush.msra.mxu0 %v4767
          %7663 = vmatpush.msra.mxu0 %v4743
          %7664 = vmatpush.msra.mxu0 %v4719
          %7665 = vmatpush.msra.mxu0 %v4695
          %7666 = vmatpush.msra.mxu0 %v4671
          %7667 = vmatpush.msra.mxu0 %v4647
          %7668 = vmatpush.msra.mxu0 %v4623
          %7669 = vmatpush.msra.mxu0 %v4599
          %7670 = vmatpush.msra.mxu0 %v4575
          %7671 = vmatpush.msra.mxu0 %v4551
          %7672 = vmatpush.msra.mxu0 %v4527
          %7673 = vmatpush.msra.mxu0 %v4503
          %7674 = vmatpush.msra.mxu0 %v4479
          %7675 = vmatmul.f32.gmra.mxu0 %v6051
          %v7676 = vpop.f32.mrf.mxu0
          %v7677 = vadd.f32 %v6021, %v7676
          %7678 = vdwg.mxu0
          %7679 = vmatpush.msra.mxu0 %v5223
          %7680 = vmatpush.msra.mxu0 %v5199
          %7681 = vmatpush.msra.mxu0 %v5175
          %7682 = vmatpush.msra.mxu0 %v5151
          %7683 = vmatpush.msra.mxu0 %v5127
          %7684 = vmatpush.msra.mxu0 %v5103
          %7685 = vmatpush.msra.mxu0 %v5079
          %7686 = vmatpush.msra.mxu0 %v5055
          %7687 = vmatpush.msra.mxu0 %v5031
          %7688 = vmatpush.msra.mxu0 %v5007
          %7689 = vmatpush.msra.mxu0 %v4983
          %7690 = vmatpush.msra.mxu0 %v4959
          %7691 = vmatpush.msra.mxu0 %v4935
          %7692 = vmatpush.msra.mxu0 %v4911
          %7693 = vmatpush.msra.mxu0 %v4887
          %7694 = vmatpush.msra.mxu0 %v4863
          %7695 = vmatmul.f32.gmra.mxu0 %v6052
          %v7696 = vpop.f32.mrf.mxu0
          %v7697 = vadd.f32 %v7677, %v7696
          %7698 = vdwg.mxu0
          %7699 = vmatpush.msra.mxu0 %v5607
          %7700 = vmatpush.msra.mxu0 %v5583
          %7701 = vmatpush.msra.mxu0 %v5559
          %7702 = vmatpush.msra.mxu0 %v5535
          %7703 = vmatpush.msra.mxu0 %v5511
          %7704 = vmatpush.msra.mxu0 %v5487
          %7705 = vmatpush.msra.mxu0 %v5463
          %7706 = vmatpush.msra.mxu0 %v5439
          %7707 = vmatpush.msra.mxu0 %v5415
          %7708 = vmatpush.msra.mxu0 %v5391
          %7709 = vmatpush.msra.mxu0 %v5367
          %7710 = vmatpush.msra.mxu0 %v5343
          %7711 = vmatpush.msra.mxu0 %v5319
          %7712 = vmatpush.msra.mxu0 %v5295
          %7713 = vmatpush.msra.mxu0 %v5271
          %7714 = vmatpush.msra.mxu0 %v5247
          %7715 = vmatmul.f32.gmra.mxu0 %v6053
          %v7716 = vpop.f32.mrf.mxu0
          %v7717 = vadd.f32 %v7697, %v7716
          %7718 = vdwg.mxu0
          %7719 = vmatpush.msra.mxu0 %v5991
          %7720 = vmatpush.msra.mxu0 %v5967
          %7721 = vmatpush.msra.mxu0 %v5943
          %7722 = vmatpush.msra.mxu0 %v5919
          %7723 = vmatpush.msra.mxu0 %v5895
          %7724 = vmatpush.msra.mxu0 %v5871
          %7725 = vmatpush.msra.mxu0 %v5847
          %7726 = vmatpush.msra.mxu0 %v5823
          %7727 = vmatpush.msra.mxu0 %v5799
          %7728 = vmatpush.msra.mxu0 %v5775
          %7729 = vmatpush.msra.mxu0 %v5751
          %7730 = vmatpush.msra.mxu0 %v5727
          %7731 = vmatpush.msra.mxu0 %v5703
          %7732 = vmatpush.msra.mxu0 %v5679
          %7733 = vmatpush.msra.mxu0 %v5655
          %7734 = vmatpush.msra.mxu0 %v5631
          %7735 = vmatmul.f32.gmra.mxu0 %v6054
          %v7736 = vpop.f32.mrf.mxu0
          %v7737 = vadd.f32 %v7717, %v7736
          %7738 = vdwg.mxu0
          %7739 = vmatpush.msra.mxu0 %v4840
          %7740 = vmatpush.msra.mxu0 %v4816
          %7741 = vmatpush.msra.mxu0 %v4792
          %7742 = vmatpush.msra.mxu0 %v4768
          %7743 = vmatpush.msra.mxu0 %v4744
          %7744 = vmatpush.msra.mxu0 %v4720
          %7745 = vmatpush.msra.mxu0 %v4696
          %7746 = vmatpush.msra.mxu0 %v4672
          %7747 = vmatpush.msra.mxu0 %v4648
          %7748 = vmatpush.msra.mxu0 %v4624
          %7749 = vmatpush.msra.mxu0 %v4600
          %7750 = vmatpush.msra.mxu0 %v4576
          %7751 = vmatpush.msra.mxu0 %v4552
          %7752 = vmatpush.msra.mxu0 %v4528
          %7753 = vmatpush.msra.mxu0 %v4504
          %7754 = vmatpush.msra.mxu0 %v4480
          %7755 = vmatmul.f32.gmra.mxu0 %v6051
          %v7756 = vpop.f32.mrf.mxu0
          %v7757 = vadd.f32 %v6022, %v7756
          %7758 = vdwg.mxu0
          %7759 = vmatpush.msra.mxu0 %v5224
          %7760 = vmatpush.msra.mxu0 %v5200
          %7761 = vmatpush.msra.mxu0 %v5176
          %7762 = vmatpush.msra.mxu0 %v5152
          %7763 = vmatpush.msra.mxu0 %v5128
          %7764 = vmatpush.msra.mxu0 %v5104
          %7765 = vmatpush.msra.mxu0 %v5080
          %7766 = vmatpush.msra.mxu0 %v5056
          %7767 = vmatpush.msra.mxu0 %v5032
          %7768 = vmatpush.msra.mxu0 %v5008
          %7769 = vmatpush.msra.mxu0 %v4984
          %7770 = vmatpush.msra.mxu0 %v4960
          %7771 = vmatpush.msra.mxu0 %v4936
          %7772 = vmatpush.msra.mxu0 %v4912
          %7773 = vmatpush.msra.mxu0 %v4888
          %7774 = vmatpush.msra.mxu0 %v4864
          %7775 = vmatmul.f32.gmra.mxu0 %v6052
          %v7776 = vpop.f32.mrf.mxu0
          %v7777 = vadd.f32 %v7757, %v7776
          %7778 = vdwg.mxu0
          %7779 = vmatpush.msra.mxu0 %v5608
          %7780 = vmatpush.msra.mxu0 %v5584
          %7781 = vmatpush.msra.mxu0 %v5560
          %7782 = vmatpush.msra.mxu0 %v5536
          %7783 = vmatpush.msra.mxu0 %v5512
          %7784 = vmatpush.msra.mxu0 %v5488
          %7785 = vmatpush.msra.mxu0 %v5464
          %7786 = vmatpush.msra.mxu0 %v5440
          %7787 = vmatpush.msra.mxu0 %v5416
          %7788 = vmatpush.msra.mxu0 %v5392
          %7789 = vmatpush.msra.mxu0 %v5368
          %7790 = vmatpush.msra.mxu0 %v5344
          %7791 = vmatpush.msra.mxu0 %v5320
          %7792 = vmatpush.msra.mxu0 %v5296
          %7793 = vmatpush.msra.mxu0 %v5272
          %7794 = vmatpush.msra.mxu0 %v5248
          %7795 = vmatmul.f32.gmra.mxu0 %v6053
          %v7796 = vpop.f32.mrf.mxu0
          %v7797 = vadd.f32 %v7777, %v7796
          %7798 = vdwg.mxu0
          %7799 = vmatpush.msra.mxu0 %v5992
          %7800 = vmatpush.msra.mxu0 %v5968
          %7801 = vmatpush.msra.mxu0 %v5944
          %7802 = vmatpush.msra.mxu0 %v5920
          %7803 = vmatpush.msra.mxu0 %v5896
          %7804 = vmatpush.msra.mxu0 %v5872
          %7805 = vmatpush.msra.mxu0 %v5848
          %7806 = vmatpush.msra.mxu0 %v5824
          %7807 = vmatpush.msra.mxu0 %v5800
          %7808 = vmatpush.msra.mxu0 %v5776
          %7809 = vmatpush.msra.mxu0 %v5752
          %7810 = vmatpush.msra.mxu0 %v5728
          %7811 = vmatpush.msra.mxu0 %v5704
          %7812 = vmatpush.msra.mxu0 %v5680
          %7813 = vmatpush.msra.mxu0 %v5656
          %7814 = vmatpush.msra.mxu0 %v5632
          %7815 = vmatmul.f32.gmra.mxu0 %v6054
          %v7816 = vpop.f32.mrf.mxu0
          %v7817 = vadd.f32 %v7797, %v7816
          %7818 = vdwg.mxu0
          %7819 = vmatpush.msra.mxu0 %v4841
          %7820 = vmatpush.msra.mxu0 %v4817
          %7821 = vmatpush.msra.mxu0 %v4793
          %7822 = vmatpush.msra.mxu0 %v4769
          %7823 = vmatpush.msra.mxu0 %v4745
          %7824 = vmatpush.msra.mxu0 %v4721
          %7825 = vmatpush.msra.mxu0 %v4697
          %7826 = vmatpush.msra.mxu0 %v4673
          %7827 = vmatpush.msra.mxu0 %v4649
          %7828 = vmatpush.msra.mxu0 %v4625
          %7829 = vmatpush.msra.mxu0 %v4601
          %7830 = vmatpush.msra.mxu0 %v4577
          %7831 = vmatpush.msra.mxu0 %v4553
          %7832 = vmatpush.msra.mxu0 %v4529
          %7833 = vmatpush.msra.mxu0 %v4505
          %7834 = vmatpush.msra.mxu0 %v4481
          %7835 = vmatmul.f32.gmra.mxu0 %v6051
          %v7836 = vpop.f32.mrf.mxu0
          %v7837 = vadd.f32 %v6023, %v7836
          %7838 = vdwg.mxu0
          %7839 = vmatpush.msra.mxu0 %v5225
          %7840 = vmatpush.msra.mxu0 %v5201
          %7841 = vmatpush.msra.mxu0 %v5177
          %7842 = vmatpush.msra.mxu0 %v5153
          %7843 = vmatpush.msra.mxu0 %v5129
          %7844 = vmatpush.msra.mxu0 %v5105
          %7845 = vmatpush.msra.mxu0 %v5081
          %7846 = vmatpush.msra.mxu0 %v5057
          %7847 = vmatpush.msra.mxu0 %v5033
          %7848 = vmatpush.msra.mxu0 %v5009
          %7849 = vmatpush.msra.mxu0 %v4985
          %7850 = vmatpush.msra.mxu0 %v4961
          %7851 = vmatpush.msra.mxu0 %v4937
          %7852 = vmatpush.msra.mxu0 %v4913
          %7853 = vmatpush.msra.mxu0 %v4889
          %7854 = vmatpush.msra.mxu0 %v4865
          %7855 = vmatmul.f32.gmra.mxu0 %v6052
          %v7856 = vpop.f32.mrf.mxu0
          %v7857 = vadd.f32 %v7837, %v7856
          %7858 = vdwg.mxu0
          %7859 = vmatpush.msra.mxu0 %v5609
          %7860 = vmatpush.msra.mxu0 %v5585
          %7861 = vmatpush.msra.mxu0 %v5561
          %7862 = vmatpush.msra.mxu0 %v5537
          %7863 = vmatpush.msra.mxu0 %v5513
          %7864 = vmatpush.msra.mxu0 %v5489
          %7865 = vmatpush.msra.mxu0 %v5465
          %7866 = vmatpush.msra.mxu0 %v5441
          %7867 = vmatpush.msra.mxu0 %v5417
          %7868 = vmatpush.msra.mxu0 %v5393
          %7869 = vmatpush.msra.mxu0 %v5369
          %7870 = vmatpush.msra.mxu0 %v5345
          %7871 = vmatpush.msra.mxu0 %v5321
          %7872 = vmatpush.msra.mxu0 %v5297
          %7873 = vmatpush.msra.mxu0 %v5273
          %7874 = vmatpush.msra.mxu0 %v5249
          %7875 = vmatmul.f32.gmra.mxu0 %v6053
          %v7876 = vpop.f32.mrf.mxu0
          %v7877 = vadd.f32 %v7857, %v7876
          %7878 = vdwg.mxu0
          %7879 = vmatpush.msra.mxu0 %v5993
          %7880 = vmatpush.msra.mxu0 %v5969
          %7881 = vmatpush.msra.mxu0 %v5945
          %7882 = vmatpush.msra.mxu0 %v5921
          %7883 = vmatpush.msra.mxu0 %v5897
          %7884 = vmatpush.msra.mxu0 %v5873
          %7885 = vmatpush.msra.mxu0 %v5849
          %7886 = vmatpush.msra.mxu0 %v5825
          %7887 = vmatpush.msra.mxu0 %v5801
          %7888 = vmatpush.msra.mxu0 %v5777
          %7889 = vmatpush.msra.mxu0 %v5753
          %7890 = vmatpush.msra.mxu0 %v5729
          %7891 = vmatpush.msra.mxu0 %v5705
          %7892 = vmatpush.msra.mxu0 %v5681
          %7893 = vmatpush.msra.mxu0 %v5657
          %7894 = vmatpush.msra.mxu0 %v5633
          %7895 = vmatmul.f32.gmra.mxu0 %v6054
          %v7896 = vpop.f32.mrf.mxu0
          %v7897 = vadd.f32 %v7877, %v7896
          %7898 = vdwg.mxu0
          %7899 = vmatpush.msra.mxu0 %v4842
          %7900 = vmatpush.msra.mxu0 %v4818
          %7901 = vmatpush.msra.mxu0 %v4794
          %7902 = vmatpush.msra.mxu0 %v4770
          %7903 = vmatpush.msra.mxu0 %v4746
          %7904 = vmatpush.msra.mxu0 %v4722
          %7905 = vmatpush.msra.mxu0 %v4698
          %7906 = vmatpush.msra.mxu0 %v4674
          %7907 = vmatpush.msra.mxu0 %v4650
          %7908 = vmatpush.msra.mxu0 %v4626
          %7909 = vmatpush.msra.mxu0 %v4602
          %7910 = vmatpush.msra.mxu0 %v4578
          %7911 = vmatpush.msra.mxu0 %v4554
          %7912 = vmatpush.msra.mxu0 %v4530
          %7913 = vmatpush.msra.mxu0 %v4506
          %7914 = vmatpush.msra.mxu0 %v4482
          %7915 = vmatmul.f32.gmra.mxu0 %v6051
          %v7916 = vpop.f32.mrf.mxu0
          %v7917 = vadd.f32 %v6024, %v7916
          %7918 = vdwg.mxu0
          %7919 = vmatpush.msra.mxu0 %v5226
          %7920 = vmatpush.msra.mxu0 %v5202
          %7921 = vmatpush.msra.mxu0 %v5178
          %7922 = vmatpush.msra.mxu0 %v5154
          %7923 = vmatpush.msra.mxu0 %v5130
          %7924 = vmatpush.msra.mxu0 %v5106
          %7925 = vmatpush.msra.mxu0 %v5082
          %7926 = vmatpush.msra.mxu0 %v5058
          %7927 = vmatpush.msra.mxu0 %v5034
          %7928 = vmatpush.msra.mxu0 %v5010
          %7929 = vmatpush.msra.mxu0 %v4986
          %7930 = vmatpush.msra.mxu0 %v4962
          %7931 = vmatpush.msra.mxu0 %v4938
          %7932 = vmatpush.msra.mxu0 %v4914
          %7933 = vmatpush.msra.mxu0 %v4890
          %7934 = vmatpush.msra.mxu0 %v4866
          %7935 = vmatmul.f32.gmra.mxu0 %v6052
          %v7936 = vpop.f32.mrf.mxu0
          %v7937 = vadd.f32 %v7917, %v7936
          %7938 = vdwg.mxu0
          %7939 = vmatpush.msra.mxu0 %v5610
          %7940 = vmatpush.msra.mxu0 %v5586
          %7941 = vmatpush.msra.mxu0 %v5562
          %7942 = vmatpush.msra.mxu0 %v5538
          %7943 = vmatpush.msra.mxu0 %v5514
          %7944 = vmatpush.msra.mxu0 %v5490
          %7945 = vmatpush.msra.mxu0 %v5466
          %7946 = vmatpush.msra.mxu0 %v5442
          %7947 = vmatpush.msra.mxu0 %v5418
          %7948 = vmatpush.msra.mxu0 %v5394
          %7949 = vmatpush.msra.mxu0 %v5370
          %7950 = vmatpush.msra.mxu0 %v5346
          %7951 = vmatpush.msra.mxu0 %v5322
          %7952 = vmatpush.msra.mxu0 %v5298
          %7953 = vmatpush.msra.mxu0 %v5274
          %7954 = vmatpush.msra.mxu0 %v5250
          %7955 = vmatmul.f32.gmra.mxu0 %v6053
          %v7956 = vpop.f32.mrf.mxu0
          %v7957 = vadd.f32 %v7937, %v7956
          %7958 = vdwg.mxu0
          %7959 = vmatpush.msra.mxu0 %v5994
          %7960 = vmatpush.msra.mxu0 %v5970
          %7961 = vmatpush.msra.mxu0 %v5946
          %7962 = vmatpush.msra.mxu0 %v5922
          %7963 = vmatpush.msra.mxu0 %v5898
          %7964 = vmatpush.msra.mxu0 %v5874
          %7965 = vmatpush.msra.mxu0 %v5850
          %7966 = vmatpush.msra.mxu0 %v5826
          %7967 = vmatpush.msra.mxu0 %v5802
          %7968 = vmatpush.msra.mxu0 %v5778
          %7969 = vmatpush.msra.mxu0 %v5754
          %7970 = vmatpush.msra.mxu0 %v5730
          %7971 = vmatpush.msra.mxu0 %v5706
          %7972 = vmatpush.msra.mxu0 %v5682
          %7973 = vmatpush.msra.mxu0 %v5658
          %7974 = vmatpush.msra.mxu0 %v5634
          %7975 = vmatmul.f32.gmra.mxu0 %v6054
          %v7976 = vpop.f32.mrf.mxu0
          %v7977 = vadd.f32 %v7957, %v7976
          %7978 = vdwg.mxu0
          %v7979 = vxor.u32 %v6137, 2147483648
          %v7980 = vxor.u32 %v6217, 2147483648
          %v7981 = vxor.u32 %v6297, 2147483648
          %v7982 = vxor.u32 %v6377, 2147483648
          %v7983 = vxor.u32 %v6457, 2147483648
          %v7984 = vxor.u32 %v6537, 2147483648
          %v7985 = vxor.u32 %v6617, 2147483648
          %v7986 = vxor.u32 %v6697, 2147483648
          %v7987 = vxor.u32 %v6777, 2147483648
          %v7988 = vxor.u32 %v6857, 2147483648
          %v7989 = vxor.u32 %v6937, 2147483648
          %v7990 = vxor.u32 %v7017, 2147483648
          %v7991 = vxor.u32 %v7097, 2147483648
          %v7992 = vxor.u32 %v7177, 2147483648
          %v7993 = vxor.u32 %v7257, 2147483648
          %v7994 = vxor.u32 %v7337, 2147483648
          %v7995 = vxor.u32 %v7417, 2147483648
          %v7996 = vxor.u32 %v7497, 2147483648
          %v7997 = vxor.u32 %v7577, 2147483648
          %v7998 = vxor.u32 %v7657, 2147483648
          %v7999 = vxor.u32 %v7737, 2147483648
          %v8000 = vxor.u32 %v7817, 2147483648
          %v8001 = vxor.u32 %v7897, 2147483648
          %v8002 = vxor.u32 %v7977, 2147483648
          %v8003 = vmul.f32 %v7979, 1.442695
          %v8004 = vpow.pop %v8003
          %v8005 = vmul.f32 %v7980, 1.442695
          %v8006 = vpow.pop %v8005
          %v8007 = vmul.f32 %v7981, 1.442695
          %v8008 = vpow.pop %v8007
          %v8009 = vmul.f32 %v7982, 1.442695
          %v8010 = vpow.pop %v8009
          %v8011 = vmul.f32 %v7983, 1.442695
          %v8012 = vpow.pop %v8011
          %v8013 = vmul.f32 %v7984, 1.442695
          %v8014 = vpow.pop %v8013
          %v8015 = vmul.f32 %v7985, 1.442695
          %v8016 = vpow.pop %v8015
          %v8017 = vmul.f32 %v7986, 1.442695
          %v8018 = vpow.pop %v8017
          %v8019 = vmul.f32 %v7987, 1.442695
          %v8020 = vpow.pop %v8019
          %v8021 = vmul.f32 %v7988, 1.442695
          %v8022 = vpow.pop %v8021
          %v8023 = vmul.f32 %v7989, 1.442695
          %v8024 = vpow.pop %v8023
          %v8025 = vmul.f32 %v7990, 1.442695
          %v8026 = vpow.pop %v8025
          %v8027 = vmul.f32 %v7991, 1.442695
          %v8028 = vpow.pop %v8027
          %v8029 = vmul.f32 %v7992, 1.442695
          %v8030 = vpow.pop %v8029
          %v8031 = vmul.f32 %v7993, 1.442695
          %v8032 = vpow.pop %v8031
          %v8033 = vmul.f32 %v7994, 1.442695
          %v8034 = vpow.pop %v8033
          %v8035 = vmul.f32 %v7995, 1.442695
          %v8036 = vpow.pop %v8035
          %v8037 = vmul.f32 %v7996, 1.442695
          %v8038 = vpow.pop %v8037
          %v8039 = vmul.f32 %v7997, 1.442695
          %v8040 = vpow.pop %v8039
          %v8041 = vmul.f32 %v7998, 1.442695
          %v8042 = vpow.pop %v8041
          %v8043 = vmul.f32 %v7999, 1.442695
          %v8044 = vpow.pop %v8043
          %v8045 = vmul.f32 %v8000, 1.442695
          %v8046 = vpow.pop %v8045
          %v8047 = vmul.f32 %v8001, 1.442695
          %v8048 = vpow.pop %v8047
          %v8049 = vmul.f32 %v8002, 1.442695
          %v8050 = vpow.pop %v8049
          %v8051 = vadd.f32 %v8004, 1.0
          %v8052 = vadd.f32 %v8006, 1.0
          %v8053 = vadd.f32 %v8008, 1.0
          %v8054 = vadd.f32 %v8010, 1.0
          %v8055 = vadd.f32 %v8012, 1.0
          %v8056 = vadd.f32 %v8014, 1.0
          %v8057 = vadd.f32 %v8016, 1.0
          %v8058 = vadd.f32 %v8018, 1.0
          %v8059 = vadd.f32 %v8020, 1.0
          %v8060 = vadd.f32 %v8022, 1.0
          %v8061 = vadd.f32 %v8024, 1.0
          %v8062 = vadd.f32 %v8026, 1.0
          %v8063 = vadd.f32 %v8028, 1.0
          %v8064 = vadd.f32 %v8030, 1.0
          %v8065 = vadd.f32 %v8032, 1.0
          %v8066 = vadd.f32 %v8034, 1.0
          %v8067 = vadd.f32 %v8036, 1.0
          %v8068 = vadd.f32 %v8038, 1.0
          %v8069 = vadd.f32 %v8040, 1.0
          %v8070 = vadd.f32 %v8042, 1.0
          %v8071 = vadd.f32 %v8044, 1.0
          %v8072 = vadd.f32 %v8046, 1.0
          %v8073 = vadd.f32 %v8048, 1.0
          %v8074 = vadd.f32 %v8050, 1.0
          %v8075 = vrcp.pop %v8051
          %v8076 = vmul.f32 %v8051, %v8075
          %v8077 = vsub.f32 1.0, %v8076
          %v8078 = vmul.f32 %v8075, %v8077
          %v8079 = vadd.f32 %v8075, %v8078
          %vm8080 = vweird.f32 %v8051
          %vm8081 = vweird.f32 %v8075
          %vm8082 = vmor %vm8080, %vm8081
          %v8083 = vsel %vm8082, %v8075, %v8079
          %v8084 = vand.u32 2147483647, %v8051
          %vm8085 = vcmp.eq.f32.partialorder %v8084, 8.507059e+37
          %v8086 = vand.u32 %v8051, 2147483648
          %v8087 = vor.u32 1.1754944e-38, %v8086
          %v8088 = vsel %vm8085, %v8087, %v8083
          %v8089 = vmul.f32 1.0, %v8088
          %v8090 = vrcp.pop %v8052
          %v8091 = vmul.f32 %v8052, %v8090
          %v8092 = vsub.f32 1.0, %v8091
          %v8093 = vmul.f32 %v8090, %v8092
          %v8094 = vadd.f32 %v8090, %v8093
          %vm8095 = vweird.f32 %v8052
          %vm8096 = vweird.f32 %v8090
          %vm8097 = vmor %vm8095, %vm8096
          %v8098 = vsel %vm8097, %v8090, %v8094
          %v8099 = vand.u32 2147483647, %v8052
          %vm8100 = vcmp.eq.f32.partialorder %v8099, 8.507059e+37
          %v8101 = vand.u32 %v8052, 2147483648
          %v8102 = vor.u32 1.1754944e-38, %v8101
          %v8103 = vsel %vm8100, %v8102, %v8098
          %v8104 = vmul.f32 1.0, %v8103
          %v8105 = vrcp.pop %v8053
          %v8106 = vmul.f32 %v8053, %v8105
          %v8107 = vsub.f32 1.0, %v8106
          %v8108 = vmul.f32 %v8105, %v8107
          %v8109 = vadd.f32 %v8105, %v8108
          %vm8110 = vweird.f32 %v8053
          %vm8111 = vweird.f32 %v8105
          %vm8112 = vmor %vm8110, %vm8111
          %v8113 = vsel %vm8112, %v8105, %v8109
          %v8114 = vand.u32 2147483647, %v8053
          %vm8115 = vcmp.eq.f32.partialorder %v8114, 8.507059e+37
          %v8116 = vand.u32 %v8053, 2147483648
          %v8117 = vor.u32 1.1754944e-38, %v8116
          %v8118 = vsel %vm8115, %v8117, %v8113
          %v8119 = vmul.f32 1.0, %v8118
          %v8120 = vrcp.pop %v8054
          %v8121 = vmul.f32 %v8054, %v8120
          %v8122 = vsub.f32 1.0, %v8121
          %v8123 = vmul.f32 %v8120, %v8122
          %v8124 = vadd.f32 %v8120, %v8123
          %vm8125 = vweird.f32 %v8054
          %vm8126 = vweird.f32 %v8120
          %vm8127 = vmor %vm8125, %vm8126
          %v8128 = vsel %vm8127, %v8120, %v8124
          %v8129 = vand.u32 2147483647, %v8054
          %vm8130 = vcmp.eq.f32.partialorder %v8129, 8.507059e+37
          %v8131 = vand.u32 %v8054, 2147483648
          %v8132 = vor.u32 1.1754944e-38, %v8131
          %v8133 = vsel %vm8130, %v8132, %v8128
          %v8134 = vmul.f32 1.0, %v8133
          %v8135 = vrcp.pop %v8055
          %v8136 = vmul.f32 %v8055, %v8135
          %v8137 = vsub.f32 1.0, %v8136
          %v8138 = vmul.f32 %v8135, %v8137
          %v8139 = vadd.f32 %v8135, %v8138
          %vm8140 = vweird.f32 %v8055
          %vm8141 = vweird.f32 %v8135
          %vm8142 = vmor %vm8140, %vm8141
          %v8143 = vsel %vm8142, %v8135, %v8139
          %v8144 = vand.u32 2147483647, %v8055
          %vm8145 = vcmp.eq.f32.partialorder %v8144, 8.507059e+37
          %v8146 = vand.u32 %v8055, 2147483648
          %v8147 = vor.u32 1.1754944e-38, %v8146
          %v8148 = vsel %vm8145, %v8147, %v8143
          %v8149 = vmul.f32 1.0, %v8148
          %v8150 = vrcp.pop %v8056
          %v8151 = vmul.f32 %v8056, %v8150
          %v8152 = vsub.f32 1.0, %v8151
          %v8153 = vmul.f32 %v8150, %v8152
          %v8154 = vadd.f32 %v8150, %v8153
          %vm8155 = vweird.f32 %v8056
          %vm8156 = vweird.f32 %v8150
          %vm8157 = vmor %vm8155, %vm8156
          %v8158 = vsel %vm8157, %v8150, %v8154
          %v8159 = vand.u32 2147483647, %v8056
          %vm8160 = vcmp.eq.f32.partialorder %v8159, 8.507059e+37
          %v8161 = vand.u32 %v8056, 2147483648
          %v8162 = vor.u32 1.1754944e-38, %v8161
          %v8163 = vsel %vm8160, %v8162, %v8158
          %v8164 = vmul.f32 1.0, %v8163
          %v8165 = vrcp.pop %v8057
          %v8166 = vmul.f32 %v8057, %v8165
          %v8167 = vsub.f32 1.0, %v8166
          %v8168 = vmul.f32 %v8165, %v8167
          %v8169 = vadd.f32 %v8165, %v8168
          %vm8170 = vweird.f32 %v8057
          %vm8171 = vweird.f32 %v8165
          %vm8172 = vmor %vm8170, %vm8171
          %v8173 = vsel %vm8172, %v8165, %v8169
          %v8174 = vand.u32 2147483647, %v8057
          %vm8175 = vcmp.eq.f32.partialorder %v8174, 8.507059e+37
          %v8176 = vand.u32 %v8057, 2147483648
          %v8177 = vor.u32 1.1754944e-38, %v8176
          %v8178 = vsel %vm8175, %v8177, %v8173
          %v8179 = vmul.f32 1.0, %v8178
          %v8180 = vrcp.pop %v8058
          %v8181 = vmul.f32 %v8058, %v8180
          %v8182 = vsub.f32 1.0, %v8181
          %v8183 = vmul.f32 %v8180, %v8182
          %v8184 = vadd.f32 %v8180, %v8183
          %vm8185 = vweird.f32 %v8058
          %vm8186 = vweird.f32 %v8180
          %vm8187 = vmor %vm8185, %vm8186
          %v8188 = vsel %vm8187, %v8180, %v8184
          %v8189 = vand.u32 2147483647, %v8058
          %vm8190 = vcmp.eq.f32.partialorder %v8189, 8.507059e+37
          %v8191 = vand.u32 %v8058, 2147483648
          %v8192 = vor.u32 1.1754944e-38, %v8191
          %v8193 = vsel %vm8190, %v8192, %v8188
          %v8194 = vmul.f32 1.0, %v8193
          %v8195 = vrcp.pop %v8059
          %v8196 = vmul.f32 %v8059, %v8195
          %v8197 = vsub.f32 1.0, %v8196
          %v8198 = vmul.f32 %v8195, %v8197
          %v8199 = vadd.f32 %v8195, %v8198
          %vm8200 = vweird.f32 %v8059
          %vm8201 = vweird.f32 %v8195
          %vm8202 = vmor %vm8200, %vm8201
          %v8203 = vsel %vm8202, %v8195, %v8199
          %v8204 = vand.u32 2147483647, %v8059
          %vm8205 = vcmp.eq.f32.partialorder %v8204, 8.507059e+37
          %v8206 = vand.u32 %v8059, 2147483648
          %v8207 = vor.u32 1.1754944e-38, %v8206
          %v8208 = vsel %vm8205, %v8207, %v8203
          %v8209 = vmul.f32 1.0, %v8208
          %v8210 = vrcp.pop %v8060
          %v8211 = vmul.f32 %v8060, %v8210
          %v8212 = vsub.f32 1.0, %v8211
          %v8213 = vmul.f32 %v8210, %v8212
          %v8214 = vadd.f32 %v8210, %v8213
          %vm8215 = vweird.f32 %v8060
          %vm8216 = vweird.f32 %v8210
          %vm8217 = vmor %vm8215, %vm8216
          %v8218 = vsel %vm8217, %v8210, %v8214
          %v8219 = vand.u32 2147483647, %v8060
          %vm8220 = vcmp.eq.f32.partialorder %v8219, 8.507059e+37
          %v8221 = vand.u32 %v8060, 2147483648
          %v8222 = vor.u32 1.1754944e-38, %v8221
          %v8223 = vsel %vm8220, %v8222, %v8218
          %v8224 = vmul.f32 1.0, %v8223
          %v8225 = vrcp.pop %v8061
          %v8226 = vmul.f32 %v8061, %v8225
          %v8227 = vsub.f32 1.0, %v8226
          %v8228 = vmul.f32 %v8225, %v8227
          %v8229 = vadd.f32 %v8225, %v8228
          %vm8230 = vweird.f32 %v8061
          %vm8231 = vweird.f32 %v8225
          %vm8232 = vmor %vm8230, %vm8231
          %v8233 = vsel %vm8232, %v8225, %v8229
          %v8234 = vand.u32 2147483647, %v8061
          %vm8235 = vcmp.eq.f32.partialorder %v8234, 8.507059e+37
          %v8236 = vand.u32 %v8061, 2147483648
          %v8237 = vor.u32 1.1754944e-38, %v8236
          %v8238 = vsel %vm8235, %v8237, %v8233
          %v8239 = vmul.f32 1.0, %v8238
          %v8240 = vrcp.pop %v8062
          %v8241 = vmul.f32 %v8062, %v8240
          %v8242 = vsub.f32 1.0, %v8241
          %v8243 = vmul.f32 %v8240, %v8242
          %v8244 = vadd.f32 %v8240, %v8243
          %vm8245 = vweird.f32 %v8062
          %vm8246 = vweird.f32 %v8240
          %vm8247 = vmor %vm8245, %vm8246
          %v8248 = vsel %vm8247, %v8240, %v8244
          %v8249 = vand.u32 2147483647, %v8062
          %vm8250 = vcmp.eq.f32.partialorder %v8249, 8.507059e+37
          %v8251 = vand.u32 %v8062, 2147483648
          %v8252 = vor.u32 1.1754944e-38, %v8251
          %v8253 = vsel %vm8250, %v8252, %v8248
          %v8254 = vmul.f32 1.0, %v8253
          %v8255 = vrcp.pop %v8063
          %v8256 = vmul.f32 %v8063, %v8255
          %v8257 = vsub.f32 1.0, %v8256
          %v8258 = vmul.f32 %v8255, %v8257
          %v8259 = vadd.f32 %v8255, %v8258
          %vm8260 = vweird.f32 %v8063
          %vm8261 = vweird.f32 %v8255
          %vm8262 = vmor %vm8260, %vm8261
          %v8263 = vsel %vm8262, %v8255, %v8259
          %v8264 = vand.u32 2147483647, %v8063
          %vm8265 = vcmp.eq.f32.partialorder %v8264, 8.507059e+37
          %v8266 = vand.u32 %v8063, 2147483648
          %v8267 = vor.u32 1.1754944e-38, %v8266
          %v8268 = vsel %vm8265, %v8267, %v8263
          %v8269 = vmul.f32 1.0, %v8268
          %v8270 = vrcp.pop %v8064
          %v8271 = vmul.f32 %v8064, %v8270
          %v8272 = vsub.f32 1.0, %v8271
          %v8273 = vmul.f32 %v8270, %v8272
          %v8274 = vadd.f32 %v8270, %v8273
          %vm8275 = vweird.f32 %v8064
          %vm8276 = vweird.f32 %v8270
          %vm8277 = vmor %vm8275, %vm8276
          %v8278 = vsel %vm8277, %v8270, %v8274
          %v8279 = vand.u32 2147483647, %v8064
          %vm8280 = vcmp.eq.f32.partialorder %v8279, 8.507059e+37
          %v8281 = vand.u32 %v8064, 2147483648
          %v8282 = vor.u32 1.1754944e-38, %v8281
          %v8283 = vsel %vm8280, %v8282, %v8278
          %v8284 = vmul.f32 1.0, %v8283
          %v8285 = vrcp.pop %v8065
          %v8286 = vmul.f32 %v8065, %v8285
          %v8287 = vsub.f32 1.0, %v8286
          %v8288 = vmul.f32 %v8285, %v8287
          %v8289 = vadd.f32 %v8285, %v8288
          %vm8290 = vweird.f32 %v8065
          %vm8291 = vweird.f32 %v8285
          %vm8292 = vmor %vm8290, %vm8291
          %v8293 = vsel %vm8292, %v8285, %v8289
          %v8294 = vand.u32 2147483647, %v8065
          %vm8295 = vcmp.eq.f32.partialorder %v8294, 8.507059e+37
          %v8296 = vand.u32 %v8065, 2147483648
          %v8297 = vor.u32 1.1754944e-38, %v8296
          %v8298 = vsel %vm8295, %v8297, %v8293
          %v8299 = vmul.f32 1.0, %v8298
          %v8300 = vrcp.pop %v8066
          %v8301 = vmul.f32 %v8066, %v8300
          %v8302 = vsub.f32 1.0, %v8301
          %v8303 = vmul.f32 %v8300, %v8302
          %v8304 = vadd.f32 %v8300, %v8303
          %vm8305 = vweird.f32 %v8066
          %vm8306 = vweird.f32 %v8300
          %vm8307 = vmor %vm8305, %vm8306
          %v8308 = vsel %vm8307, %v8300, %v8304
          %v8309 = vand.u32 2147483647, %v8066
          %vm8310 = vcmp.eq.f32.partialorder %v8309, 8.507059e+37
          %v8311 = vand.u32 %v8066, 2147483648
          %v8312 = vor.u32 1.1754944e-38, %v8311
          %v8313 = vsel %vm8310, %v8312, %v8308
          %v8314 = vmul.f32 1.0, %v8313
          %v8315 = vrcp.pop %v8067
          %v8316 = vmul.f32 %v8067, %v8315
          %v8317 = vsub.f32 1.0, %v8316
          %v8318 = vmul.f32 %v8315, %v8317
          %v8319 = vadd.f32 %v8315, %v8318
          %vm8320 = vweird.f32 %v8067
          %vm8321 = vweird.f32 %v8315
          %vm8322 = vmor %vm8320, %vm8321
          %v8323 = vsel %vm8322, %v8315, %v8319
          %v8324 = vand.u32 2147483647, %v8067
          %vm8325 = vcmp.eq.f32.partialorder %v8324, 8.507059e+37
          %v8326 = vand.u32 %v8067, 2147483648
          %v8327 = vor.u32 1.1754944e-38, %v8326
          %v8328 = vsel %vm8325, %v8327, %v8323
          %v8329 = vmul.f32 1.0, %v8328
          %v8330 = vrcp.pop %v8068
          %v8331 = vmul.f32 %v8068, %v8330
          %v8332 = vsub.f32 1.0, %v8331
          %v8333 = vmul.f32 %v8330, %v8332
          %v8334 = vadd.f32 %v8330, %v8333
          %vm8335 = vweird.f32 %v8068
          %vm8336 = vweird.f32 %v8330
          %vm8337 = vmor %vm8335, %vm8336
          %v8338 = vsel %vm8337, %v8330, %v8334
          %v8339 = vand.u32 2147483647, %v8068
          %vm8340 = vcmp.eq.f32.partialorder %v8339, 8.507059e+37
          %v8341 = vand.u32 %v8068, 2147483648
          %v8342 = vor.u32 1.1754944e-38, %v8341
          %v8343 = vsel %vm8340, %v8342, %v8338
          %v8344 = vmul.f32 1.0, %v8343
          %v8345 = vrcp.pop %v8069
          %v8346 = vmul.f32 %v8069, %v8345
          %v8347 = vsub.f32 1.0, %v8346
          %v8348 = vmul.f32 %v8345, %v8347
          %v8349 = vadd.f32 %v8345, %v8348
          %vm8350 = vweird.f32 %v8069
          %vm8351 = vweird.f32 %v8345
          %vm8352 = vmor %vm8350, %vm8351
          %v8353 = vsel %vm8352, %v8345, %v8349
          %v8354 = vand.u32 2147483647, %v8069
          %vm8355 = vcmp.eq.f32.partialorder %v8354, 8.507059e+37
          %v8356 = vand.u32 %v8069, 2147483648
          %v8357 = vor.u32 1.1754944e-38, %v8356
          %v8358 = vsel %vm8355, %v8357, %v8353
          %v8359 = vmul.f32 1.0, %v8358
          %v8360 = vrcp.pop %v8070
          %v8361 = vmul.f32 %v8070, %v8360
          %v8362 = vsub.f32 1.0, %v8361
          %v8363 = vmul.f32 %v8360, %v8362
          %v8364 = vadd.f32 %v8360, %v8363
          %vm8365 = vweird.f32 %v8070
          %vm8366 = vweird.f32 %v8360
          %vm8367 = vmor %vm8365, %vm8366
          %v8368 = vsel %vm8367, %v8360, %v8364
          %v8369 = vand.u32 2147483647, %v8070
          %vm8370 = vcmp.eq.f32.partialorder %v8369, 8.507059e+37
          %v8371 = vand.u32 %v8070, 2147483648
          %v8372 = vor.u32 1.1754944e-38, %v8371
          %v8373 = vsel %vm8370, %v8372, %v8368
          %v8374 = vmul.f32 1.0, %v8373
          %v8375 = vrcp.pop %v8071
          %v8376 = vmul.f32 %v8071, %v8375
          %v8377 = vsub.f32 1.0, %v8376
          %v8378 = vmul.f32 %v8375, %v8377
          %v8379 = vadd.f32 %v8375, %v8378
          %vm8380 = vweird.f32 %v8071
          %vm8381 = vweird.f32 %v8375
          %vm8382 = vmor %vm8380, %vm8381
          %v8383 = vsel %vm8382, %v8375, %v8379
          %v8384 = vand.u32 2147483647, %v8071
          %vm8385 = vcmp.eq.f32.partialorder %v8384, 8.507059e+37
          %v8386 = vand.u32 %v8071, 2147483648
          %v8387 = vor.u32 1.1754944e-38, %v8386
          %v8388 = vsel %vm8385, %v8387, %v8383
          %v8389 = vmul.f32 1.0, %v8388
          %v8390 = vrcp.pop %v8072
          %v8391 = vmul.f32 %v8072, %v8390
          %v8392 = vsub.f32 1.0, %v8391
          %v8393 = vmul.f32 %v8390, %v8392
          %v8394 = vadd.f32 %v8390, %v8393
          %vm8395 = vweird.f32 %v8072
          %vm8396 = vweird.f32 %v8390
          %vm8397 = vmor %vm8395, %vm8396
          %v8398 = vsel %vm8397, %v8390, %v8394
          %v8399 = vand.u32 2147483647, %v8072
          %vm8400 = vcmp.eq.f32.partialorder %v8399, 8.507059e+37
          %v8401 = vand.u32 %v8072, 2147483648
          %v8402 = vor.u32 1.1754944e-38, %v8401
          %v8403 = vsel %vm8400, %v8402, %v8398
          %v8404 = vmul.f32 1.0, %v8403
          %v8405 = vrcp.pop %v8073
          %v8406 = vmul.f32 %v8073, %v8405
          %v8407 = vsub.f32 1.0, %v8406
          %v8408 = vmul.f32 %v8405, %v8407
          %v8409 = vadd.f32 %v8405, %v8408
          %vm8410 = vweird.f32 %v8073
          %vm8411 = vweird.f32 %v8405
          %vm8412 = vmor %vm8410, %vm8411
          %v8413 = vsel %vm8412, %v8405, %v8409
          %v8414 = vand.u32 2147483647, %v8073
          %vm8415 = vcmp.eq.f32.partialorder %v8414, 8.507059e+37
          %v8416 = vand.u32 %v8073, 2147483648
          %v8417 = vor.u32 1.1754944e-38, %v8416
          %v8418 = vsel %vm8415, %v8417, %v8413
          %v8419 = vmul.f32 1.0, %v8418
          %v8420 = vrcp.pop %v8074
          %v8421 = vmul.f32 %v8074, %v8420
          %v8422 = vsub.f32 1.0, %v8421
          %v8423 = vmul.f32 %v8420, %v8422
          %v8424 = vadd.f32 %v8420, %v8423
          %vm8425 = vweird.f32 %v8074
          %vm8426 = vweird.f32 %v8420
          %vm8427 = vmor %vm8425, %vm8426
          %v8428 = vsel %vm8427, %v8420, %v8424
          %v8429 = vand.u32 2147483647, %v8074
          %vm8430 = vcmp.eq.f32.partialorder %v8429, 8.507059e+37
          %v8431 = vand.u32 %v8074, 2147483648
          %v8432 = vor.u32 1.1754944e-38, %v8431
          %v8433 = vsel %vm8430, %v8432, %v8428
          %v8434 = vmul.f32 1.0, %v8433
          %v8459 = vrot.slane %v8104, 6
          %v8460 = vrot.slane %v8119, 4
          %v8461 = vrot.slane %v8134, 2
          %v8462 = vrot.slane %v8164, 6
          %v8463 = vrot.slane %v8179, 4
          %v8464 = vrot.slane %v8194, 2
          %v8465 = vrot.slane %v8224, 6
          %v8466 = vrot.slane %v8239, 4
          %v8467 = vrot.slane %v8254, 2
          %v8468 = vrot.slane %v8284, 6
          %v8469 = vrot.slane %v8299, 4
          %v8470 = vrot.slane %v8314, 2
          %v8471 = vrot.slane %v8344, 6
          %v8472 = vrot.slane %v8359, 4
          %v8473 = vrot.slane %v8374, 2
          %v8474 = vrot.slane %v8404, 6
          %v8475 = vrot.slane %v8419, 4
          %v8476 = vrot.slane %v8434, 2
          %vm8477 = vcmask 1041408
          %v8478 = vsel %vm8477, %v8089, %v8459
          %vm8479 = vcmask 1045508
          %v8480 = vsel %vm8479, %v8460, %v8461
          %vm8481 = vcmask 1043456
          %v8482 = vsel %vm8481, %v8478, %v8480
          %v8483 = vsel %vm8477, %v8149, %v8462
          %v8484 = vsel %vm8479, %v8463, %v8464
          %v8485 = vsel %vm8481, %v8483, %v8484
          %v8486 = vsel %vm8477, %v8209, %v8465
          %v8487 = vsel %vm8479, %v8466, %v8467
          %v8488 = vsel %vm8481, %v8486, %v8487
          %v8489 = vsel %vm8477, %v8269, %v8468
          %v8490 = vsel %vm8479, %v8469, %v8470
          %v8491 = vsel %vm8481, %v8489, %v8490
          %v8492 = vsel %vm8477, %v8329, %v8471
          %v8493 = vsel %vm8479, %v8472, %v8473
          %v8494 = vsel %vm8481, %v8492, %v8493
          %v8495 = vsel %vm8477, %v8389, %v8474
          %v8496 = vsel %vm8479, %v8475, %v8476
          %v8497 = vsel %vm8481, %v8495, %v8496
          %8504 = vst [vmem:[%s576] sm:$0xff] %v8482
          %8505 = vst [vmem:[%s576 + $0x8] sm:$0xff] %v8485
          %8506 = vst [vmem:[%s576 + $0x10] sm:$0xff] %v8488
          %8507 = vst [vmem:[%s576 + $0x18] sm:$0xff] %v8491
          %8508 = vst [vmem:[%s576 + $0x20] sm:$0xff] %v8494
          %8509 = vst [vmem:[%s576 + $0x28] sm:$0xff] %v8497
        $region100: #{autoencoder_forward.1} parent=55 // pred_fallthru
          _
        %s8510 = ssub.s32 %s28, 4
        %p8511 = scmp.gt.s32.totalorder %s8510, 0
        %s8512 = scalar_select %p8511, %s8510, 0
        %s8513 = smul.u32 24, %s8512
        %p8514 = scmp.lt.s32.totalorder %s8513, 95
        %s8515 = scalar_select %p8514, %s8513, 95
        %s8516 = smul.addr %s8515, 2
        %s8517 = scalar_lea.vmem %s9, %s8516
        // Predicated region
        $region101: #{autoencoder_forward.1} parent=55 // pred_check
          %p8518 = pneg %p281
        $region102: #{autoencoder_forward.1} parent=55 // pred_check_branch
          %8520 = sbr.rel (%p8518) target = $region104
        $region103: #{autoencoder_forward.1} parent=55 // pred_region
          %s8521 = ssub.s32 %s28, 4
          %p8522 = scmp.gt.s32.totalorder %s8521, 0
          %s8523 = scalar_select %p8522, %s8521, 0
          %s8524 = smul.u32 24, %s8523
        $region104: #{autoencoder_forward.1} parent=55 // pred_fallthru
          _
      $region56: #{autoencoder_forward.1} parent=5 // pred_fallthru
        _
      %p8525 = scmp.le.s32.totalorder 2, %s23
      // Predicated region
      $region105: #{autoencoder_forward.1} parent=5 // pred_check
        %p8526 = pneg %p8525
      $region106: #{autoencoder_forward.1} parent=5 // pred_check_branch
        %8528 = sbr.rel (%p8526) target = $region108
      $region107: #{autoencoder_forward.1} parent=5 // pred_region
        %s8529 = ssub.s32 %s23, 2
        // Predicated region
        $region109: #{autoencoder_forward.1} parent=107 // pred_check
          %p8530 = pneg %p287
        $region110: #{autoencoder_forward.1} parent=107 // pred_check_branch
          %8532 = sbr.rel (%p8530) target = $region112
        $region111: #{autoencoder_forward.1} parent=107 // pred_region
          %s8533 = ssub.s32 %s29, 4
          %p8534 = scmp.gt.s32.totalorder %s8533, 0
          %s8535 = scalar_select %p8534, %s8533, 0
          %s8536 = smul.u32 24, %s8535
          %p8537 = scmp.lt.s32.totalorder %s8536, 95
          %s8538 = scalar_select %p8537, %s8536, 95
          %s8539 = smul.addr %s8538, 2
          %s8540 = scalar_lea.vmem %s9, %s8539
        $region112: #{autoencoder_forward.1} parent=107 // pred_fallthru
          _
      $region108: #{autoencoder_forward.1} parent=5 // pred_fallthru
        _
    $region6: #{autoencoder_forward.1} parent=1 // loop_footer
      %s27 = sadd.s32 1, %s23
    $region7: #{autoencoder_forward.1} parent=1 // loop_footer_branch
      %22 = sbr.rel target = $region3
    $region8: #{autoencoder_forward.1} parent=1 // loop_exit
      _
    %8541 = vsyncpa [#allocation5], 1
    %s8542 = scalar_lea.sflag [#allocation5], 1
    %8543 = vsyncpa %s8542, 1
    %8544 = vsyncpa [#allocation7], 1
    %8545 = vsyncpa [#allocation10], 1
    %8546 = vsyncpa [#allocation13], 1
    %s8547 = scalar_lea.sflag [#allocation13], 1
    %8548 = vsyncpa %s8547, 1

</llo_original>
